<compile_context>
chip_gen: v6e
topology: v6e:2x2x1
jax: 0.10.0
libtpu: 0.0.40
codegen_flags: <defaults>
</compile_context>

<pallas_src>
import math

import jax
import jax.numpy as jnp
from jax.experimental import pallas as pl
from jax.experimental.pallas import tpu as pltpu

IN_DIM = 1280
MLP_DIM = 1024
LANE = 128


def _gelu_exact(x):
    # nn.GELU() default = exact erf formulation.
    return 0.5 * x * (1.0 + jax.lax.erf(x * (1.0 / math.sqrt(2.0))))


def classifier_kernel(x_ref, w1_ref, b1_ref, w2_ref, b2_ref, w3_ref, b3_ref, o_ref):
    # x_ref: (TB, C, H*W) f32 tile (lane-dense along H*W).
    # AdaptiveAvgPool2d(1) + flatten -> (TB, C) in f32.
    pooled = jnp.mean(x_ref[...], axis=-1)

    # Matmul inputs in bf16 (native MXU dtype), accumulate in f32, bias in f32.
    h = jnp.dot(pooled.astype(jnp.bfloat16), w1_ref[...],
                preferred_element_type=jnp.float32) + b1_ref[...]
    h = _gelu_exact(h)
    # dropout_1: identity in eval mode
    h = jnp.dot(h.astype(jnp.bfloat16), w2_ref[...],
                preferred_element_type=jnp.float32) + b2_ref[...]
    h = _gelu_exact(h)
    # dropout_2: identity in eval mode
    out = jnp.dot(h.astype(jnp.bfloat16), w3_ref[...],
                  preferred_element_type=jnp.float32) + b3_ref[...]
    o_ref[...] = out.astype(o_ref.dtype)


def init_params(key, n_class):
    """Deterministic parameter init mirroring MLPBlock.__init__ shapes/dists.

    Linear weights are stored pre-transposed as (in_dim, out_dim) in bf16;
    biases as (1, out_dim) rows in f32.
    """
    ks = jax.random.split(key, 6)

    def xavier(k, fan_in, fan_out):
        bound = math.sqrt(6.0 / (fan_in + fan_out))
        w = jax.random.uniform(k, (fan_in, fan_out), jnp.float32, -bound, bound)
        return w.astype(jnp.bfloat16)

    w1 = xavier(ks[0], IN_DIM, MLP_DIM)
    w2 = xavier(ks[1], MLP_DIM, MLP_DIM)
    w3 = xavier(ks[2], MLP_DIM, n_class)
    b1 = 1e-6 * jax.random.normal(ks[3], (1, MLP_DIM), jnp.float32)
    b2 = 1e-6 * jax.random.normal(ks[4], (1, MLP_DIM), jnp.float32)
    b3 = 1e-6 * jax.random.normal(ks[5], (1, n_class), jnp.float32)
    return (w1, b1, w2, b2, w3, b3)


def _pick_batch_tile(B, per_sample_bytes, budget_bytes=24 << 20):
    """Batch tile so a double-buffered feature tile stays within ~24 MiB."""
    tb = max(1, budget_bytes // (2 * per_sample_bytes))
    tb = int(min(tb, B, 128))
    if tb >= 8:
        tb = (tb // 8) * 8        # sublane-aligned tiles when B allows it
    return tb


def classifier_forward(features, params):
    B, C, H, W = features.shape
    assert C == IN_DIM, f"expected {IN_DIM} channels, got {C}"
    HW = H * W
    # Free reshape of NCHW -> (B, C, H*W): lane-dense feature layout.
    x = features.reshape(B, C, HW)

    w1, b1, w2, b2, w3, b3 = params
    n_class = w3.shape[1]

    # Pad the classifier head to a lane-dense width (multiple of 128) so the
    # last matmul and the output store are unmasked.  Slice back afterwards.
    n_pad = max(LANE, ((n_class + LANE - 1) // LANE) * LANE)
    if n_pad != n_class:
        w3p = jnp.pad(w3, ((0, 0), (0, n_pad - n_class)))
        b3p = jnp.pad(b3, ((0, 0), (0, n_pad - n_class)))
    else:
        w3p, b3p = w3, b3

    feat_itemsize = x.dtype.itemsize
    per_sample_bytes = C * HW * feat_itemsize
    tb = _pick_batch_tile(B, per_sample_bytes)
    grid = (pl.cdiv(B, tb),)

    # Right-sized VMEM budget: double-buffered feature/output tiles plus the
    # resident weights/biases, with headroom.  Kept under v7x's 64 MiB VMEM.
    def _nbytes(a):
        return a.size * a.dtype.itemsize

    feat_tile_bytes = tb * per_sample_bytes
    out_tile_bytes = tb * n_pad * 4
    weight_bytes = sum(_nbytes(p) for p in (w1, b1, w2, b2, w3p, b3p))
    vmem_limit = int(2 * (feat_tile_bytes + out_tile_bytes + weight_bytes) + (4 << 20))
    vmem_limit = min(max(vmem_limit, 16 << 20), 48 << 20)

    const2d = lambda b: (0, 0)

    out = pl.pallas_call(
        classifier_kernel,
        out_shape=jax.ShapeDtypeStruct((B, n_pad), jnp.float32),
        grid=grid,
        in_specs=[
            pl.BlockSpec((tb, C, HW), lambda b: (b, 0, 0)),      # features (tiled)
            pl.BlockSpec((IN_DIM, MLP_DIM), const2d),            # w1 (resident)
            pl.BlockSpec((1, MLP_DIM), const2d),                 # b1
            pl.BlockSpec((MLP_DIM, MLP_DIM), const2d),           # w2
            pl.BlockSpec((1, MLP_DIM), const2d),                 # b2
            pl.BlockSpec((MLP_DIM, n_pad), const2d),             # w3 (padded)
            pl.BlockSpec((1, n_pad), const2d),                   # b3 (padded)
        ],
        out_specs=pl.BlockSpec((tb, n_pad), lambda b: (b, 0)),
        compiler_params=pltpu.CompilerParams(
            dimension_semantics=("parallel",),
            vmem_limit_bytes=vmem_limit,
        ),
    )(x, w1, b1, w2, b2, w3p, b3p)

    return out[:, :n_class] if n_pad != n_class else out


def classifier_reference(features, params):
    """Pure-JAX reference with the same mixed-precision recipe as the kernel."""
    w1, b1, w2, b2, w3, b3 = params
    pooled = jnp.mean(features.astype(jnp.float32), axis=(2, 3))
    h = jnp.dot(pooled.astype(jnp.bfloat16), w1,
                preferred_element_type=jnp.float32) + b1
    h = _gelu_exact(h)
    h = jnp.dot(h.astype(jnp.bfloat16), w2,
                preferred_element_type=jnp.float32) + b2
    h = _gelu_exact(h)
    return jnp.dot(h.astype(jnp.bfloat16), w3,
                   preferred_element_type=jnp.float32) + b3


if __name__ == "__main__":
    key = jax.random.PRNGKey(0)
    k_x, k_p = jax.random.split(key)

    B, C, H, W = 2, IN_DIM, 16, 16     # C must be 1280 (MLP in_dim)
    n_class = 8

    features = jax.random.normal(k_x, (B, C, H, W), jnp.float32)
    params = init_params(k_p, n_class)

    out = classifier_forward(features, params)
    out = jax.block_until_ready(out)

    ref = classifier_reference(features, params)
    assert out.shape == (B, n_class)
    assert jnp.allclose(out, ref, atol=1e-2, rtol=1e-2), (
        f"max abs err {jnp.max(jnp.abs(out - ref))}")

    print("KERNEL_OK")
</pallas_src>

<mosaic_0001>
module attributes {stable_mosaic.version = 11 : i64} {
  func.func @classifier_kernel(%arg0: i32, %arg1: memref<2x1280x256xf32, #tpu.memory_space<vmem>>, %arg2: memref<1280x1024xbf16, #tpu.memory_space<vmem>>, %arg3: memref<1x1024xf32, #tpu.memory_space<vmem>>, %arg4: memref<1024x1024xbf16, #tpu.memory_space<vmem>>, %arg5: memref<1x1024xf32, #tpu.memory_space<vmem>>, %arg6: memref<1024x128xbf16, #tpu.memory_space<vmem>>, %arg7: memref<1x128xf32, #tpu.memory_space<vmem>>, %arg8: memref<2x128xf32, #tpu.memory_space<vmem>>) attributes {dimension_semantics = [#tpu.dimension_semantics<parallel>], iteration_bounds = array<i64: 1>, scalar_prefetch = 0 : i64, scratch_operands = 0 : i64, tpu.core_type = #tpu.core_type<tc>, window_params = [{transform_indices = @transform_0, window_bounds = array<i64: 2, 1280, 256>}, {pipeline_mode = #tpu.pipeline_mode<synchronous>, transform_indices = @transform_1, window_bounds = array<i64: 1280, 1024>}, {pipeline_mode = #tpu.pipeline_mode<synchronous>, transform_indices = @transform_2, window_bounds = array<i64: 1, 1024>}, {pipeline_mode = #tpu.pipeline_mode<synchronous>, transform_indices = @transform_3, window_bounds = array<i64: 1024, 1024>}, {pipeline_mode = #tpu.pipeline_mode<synchronous>, transform_indices = @transform_4, window_bounds = array<i64: 1, 1024>}, {pipeline_mode = #tpu.pipeline_mode<synchronous>, transform_indices = @transform_5, window_bounds = array<i64: 1024, 128>}, {pipeline_mode = #tpu.pipeline_mode<synchronous>, transform_indices = @transform_6, window_bounds = array<i64: 1, 128>}, {transform_indices = @transform_7, window_bounds = array<i64: 2, 128>}]} {
    %c0 = arith.constant 0 : index
    %c0_0 = arith.constant 0 : index
    %c0_1 = arith.constant 0 : index
    %0 = vector.load %arg1[%c0, %c0_0, %c0_1] : memref<2x1280x256xf32, #tpu.memory_space<vmem>>, vector<2x1280x256xf32>
    %cst = arith.constant dense<0.000000e+00> : vector<2x1280xf32>
    %1 = vector.multi_reduction <add>, %0, %cst [2] : vector<2x1280x256xf32> to vector<2x1280xf32>
    %cst_2 = arith.constant 2.560000e+02 : f32
    %2 = vector.broadcast %cst_2 : f32 to vector<2x1280xf32>
    %3 = arith.divf %1, %2 : vector<2x1280xf32>
    %4 = arith.truncf %3 : vector<2x1280xf32> to vector<2x1280xbf16>
    %c0_3 = arith.constant 0 : index
    %c0_4 = arith.constant 0 : index
    %5 = vector.load %arg2[%c0_3, %c0_4] : memref<1280x1024xbf16, #tpu.memory_space<vmem>>, vector<1280x1024xbf16>
    %cst_5 = arith.constant dense<0.000000e+00> : vector<2x1024xf32>
    %6 = tpu.matmul %4, %5, %cst_5 {dimension_numbers = #tpu.dot_dimension_numbers<[1], [0], [0], [1], [0, 0, 1, 1], [], []>} : vector<2x1280xbf16>, vector<1280x1024xbf16>, vector<2x1024xf32> -> vector<2x1024xf32>
    %c0_6 = arith.constant 0 : index
    %c0_7 = arith.constant 0 : index
    %7 = vector.load %arg3[%c0_6, %c0_7] : memref<1x1024xf32, #tpu.memory_space<vmem>>, vector<1x1024xf32>
    %8 = vector.broadcast %7 : vector<1x1024xf32> to vector<2x1024xf32>
    %9 = arith.addf %6, %8 : vector<2x1024xf32>
    %cst_8 = arith.constant 5.000000e-01 : f32
    %10 = vector.broadcast %cst_8 : f32 to vector<2x1024xf32>
    %11 = arith.mulf %10, %9 : vector<2x1024xf32>
    %cst_9 = arith.constant 0.707106769 : f32
    %12 = vector.broadcast %cst_9 : f32 to vector<2x1024xf32>
    %13 = arith.mulf %9, %12 : vector<2x1024xf32>
    %14 = math.erf %13 : vector<2x1024xf32>
    %cst_10 = arith.constant 1.000000e+00 : f32
    %15 = vector.broadcast %cst_10 : f32 to vector<2x1024xf32>
    %16 = arith.addf %15, %14 : vector<2x1024xf32>
    %17 = arith.mulf %11, %16 : vector<2x1024xf32>
    %18 = arith.truncf %17 : vector<2x1024xf32> to vector<2x1024xbf16>
    %c0_11 = arith.constant 0 : index
    %c0_12 = arith.constant 0 : index
    %19 = vector.load %arg4[%c0_11, %c0_12] : memref<1024x1024xbf16, #tpu.memory_space<vmem>>, vector<1024x1024xbf16>
    %cst_13 = arith.constant dense<0.000000e+00> : vector<2x1024xf32>
    %20 = tpu.matmul %18, %19, %cst_13 {dimension_numbers = #tpu.dot_dimension_numbers<[1], [0], [0], [1], [0, 0, 1, 1], [], []>} : vector<2x1024xbf16>, vector<1024x1024xbf16>, vector<2x1024xf32> -> vector<2x1024xf32>
    %c0_14 = arith.constant 0 : index
    %c0_15 = arith.constant 0 : index
    %21 = vector.load %arg5[%c0_14, %c0_15] : memref<1x1024xf32, #tpu.memory_space<vmem>>, vector<1x1024xf32>
    %22 = vector.broadcast %21 : vector<1x1024xf32> to vector<2x1024xf32>
    %23 = arith.addf %20, %22 : vector<2x1024xf32>
    %cst_16 = arith.constant 5.000000e-01 : f32
    %24 = vector.broadcast %cst_16 : f32 to vector<2x1024xf32>
    %25 = arith.mulf %24, %23 : vector<2x1024xf32>
    %cst_17 = arith.constant 0.707106769 : f32
    %26 = vector.broadcast %cst_17 : f32 to vector<2x1024xf32>
    %27 = arith.mulf %23, %26 : vector<2x1024xf32>
    %28 = math.erf %27 : vector<2x1024xf32>
    %cst_18 = arith.constant 1.000000e+00 : f32
    %29 = vector.broadcast %cst_18 : f32 to vector<2x1024xf32>
    %30 = arith.addf %29, %28 : vector<2x1024xf32>
    %31 = arith.mulf %25, %30 : vector<2x1024xf32>
    %32 = arith.truncf %31 : vector<2x1024xf32> to vector<2x1024xbf16>
    %c0_19 = arith.constant 0 : index
    %c0_20 = arith.constant 0 : index
    %33 = vector.load %arg6[%c0_19, %c0_20] : memref<1024x128xbf16, #tpu.memory_space<vmem>>, vector<1024x128xbf16>
    %cst_21 = arith.constant dense<0.000000e+00> : vector<2x128xf32>
    %34 = tpu.matmul %32, %33, %cst_21 {dimension_numbers = #tpu.dot_dimension_numbers<[1], [0], [0], [1], [0, 0, 1, 1], [], []>} : vector<2x1024xbf16>, vector<1024x128xbf16>, vector<2x128xf32> -> vector<2x128xf32>
    %c0_22 = arith.constant 0 : index
    %c0_23 = arith.constant 0 : index
    %35 = vector.load %arg7[%c0_22, %c0_23] : memref<1x128xf32, #tpu.memory_space<vmem>>, vector<1x128xf32>
    %36 = vector.broadcast %35 : vector<1x128xf32> to vector<2x128xf32>
    %37 = arith.addf %34, %36 : vector<2x128xf32>
    %c0_24 = arith.constant 0 : index
    %c0_25 = arith.constant 0 : index
    %38 = vector.load %arg8[%c0_24, %c0_25] : memref<2x128xf32, #tpu.memory_space<vmem>>, vector<2x128xf32>
    tpu.vector_store %arg8[%c0_24, %c0_25], %37 {strides = array<i32>} : memref<2x128xf32, #tpu.memory_space<vmem>>, vector<2x128xf32>,
    return
  }
  func.func @transform_0(%arg0: i32) -> (i32, i32, i32) {
    %c0_i32 = arith.constant 0 : i32
    %c0_i32_0 = arith.constant 0 : i32
    %c0_i32_1 = arith.constant 0 : i32
    return %arg0, %c0_i32, %c0_i32_0 : i32, i32, i32
  }
  func.func @transform_1(%arg0: i32) -> (i32, i32) {
    %c0_i32 = arith.constant 0 : i32
    %c0_i32_0 = arith.constant 0 : i32
    %c0_i32_1 = arith.constant 0 : i32
    return %c0_i32, %c0_i32_0 : i32, i32
  }
  func.func @transform_2(%arg0: i32) -> (i32, i32) {
    %c0_i32 = arith.constant 0 : i32
    %c0_i32_0 = arith.constant 0 : i32
    %c0_i32_1 = arith.constant 0 : i32
    return %c0_i32, %c0_i32_0 : i32, i32
  }
  func.func @transform_3(%arg0: i32) -> (i32, i32) {
    %c0_i32 = arith.constant 0 : i32
    %c0_i32_0 = arith.constant 0 : i32
    %c0_i32_1 = arith.constant 0 : i32
    return %c0_i32, %c0_i32_0 : i32, i32
  }
  func.func @transform_4(%arg0: i32) -> (i32, i32) {
    %c0_i32 = arith.constant 0 : i32
    %c0_i32_0 = arith.constant 0 : i32
    %c0_i32_1 = arith.constant 0 : i32
    return %c0_i32, %c0_i32_0 : i32, i32
  }
  func.func @transform_5(%arg0: i32) -> (i32, i32) {
    %c0_i32 = arith.constant 0 : i32
    %c0_i32_0 = arith.constant 0 : i32
    %c0_i32_1 = arith.constant 0 : i32
    return %c0_i32, %c0_i32_0 : i32, i32
  }
  func.func @transform_6(%arg0: i32) -> (i32, i32) {
    %c0_i32 = arith.constant 0 : i32
    %c0_i32_0 = arith.constant 0 : i32
    %c0_i32_1 = arith.constant 0 : i32
    return %c0_i32, %c0_i32_0 : i32, i32
  }
  func.func @transform_7(%arg0: i32) -> (i32, i32) {
    %c0_i32 = arith.constant 0 : i32
    %c0_i32_0 = arith.constant 0 : i32
    return %arg0, %c0_i32 : i32, i32
  }
}

</mosaic_0001>

<llo_original>
// kernel: tpu_custom_call.1
$region0: #{tpu_custom_call.1}
  #allocation0 [shape = 'u32[]', space=smem, size = 0x4, offset = 0x4, fixed_abs, tag = 'smem constant byte address 0x4 - core index']
  #allocation1 [shape = 'u32[144,128]{1,0:T(1,128)}', space=vmem, size = 0x12000, scoped, tag = 'internal scratch']
  %s0 = inlined_call_operand.hbm [shape: f32[2,1280,256], index: 0, kind: input, shape index: {}]
  %s1 = inlined_call_operand.hbm [shape: bf16[1280,1024], index: 1, kind: input, shape index: {}]
  %s2 = inlined_call_operand.hbm [shape: f32[1,1024], index: 2, kind: input, shape index: {}]
  %s3 = inlined_call_operand.hbm [shape: bf16[1024,1024], index: 3, kind: input, shape index: {}]
  %s4 = inlined_call_operand.hbm [shape: f32[1,1024], index: 4, kind: input, shape index: {}]
  %s5 = inlined_call_operand.hbm [shape: bf16[1024,128], index: 5, kind: input, shape index: {}]
  %s6 = inlined_call_operand.hbm [shape: f32[1,128], index: 6, kind: input, shape index: {}]
  %s7 = inlined_call_operand.hbm [shape: f32[2,128], index: 7, kind: output, shape index: {}]
  %s8 = sld [smem:[#allocation0]]
  $region66: #{tpu_custom_call.1} parent=0
    _
  %s10 = ssub.s32 1, %s8
  %s11 = scalar_select 0, %s10, %s8
  $region1: #{tpu_custom_call.1} parent=0
    #allocation2 [shape = 'u8[2621440]{0}', space=vmem, size = 0x280000, scoped, tag = 'input window, operand 0, single buffered']
    #allocation3 [shape = 's32[1]{0}', space=sflag, size = 0x4, scoped, tag = 'scoped memory for tpu_custom_call.1']
    #allocation4 [shape = 's32[1]{0}', space=sflag, size = 0x4, scoped, tag = 'scoped memory for tpu_custom_call.1']
    #allocation5 [shape = 'u8[2621440]{0}', space=vmem, size = 0x280000, scoped, tag = 'input window, operand 1, single buffered']
    #allocation6 [shape = 's32[1]{0}', space=sflag, size = 0x4, scoped, tag = 'scoped memory for tpu_custom_call.1']
    #allocation7 [shape = 'u8[4096]{0}', space=vmem, size = 0x1000, scoped, tag = 'input window, operand 2, single buffered']
    #allocation8 [shape = 'u8[2097152]{0}', space=vmem, size = 0x200000, scoped, tag = 'input window, operand 3, single buffered']
    #allocation9 [shape = 's32[1]{0}', space=sflag, size = 0x4, scoped, tag = 'scoped memory for tpu_custom_call.1']
    #allocation10 [shape = 'u8[4096]{0}', space=vmem, size = 0x1000, scoped, tag = 'input window, operand 4, single buffered']
    #allocation11 [shape = 'u8[262144]{0}', space=vmem, size = 0x40000, scoped, tag = 'input window, operand 5, single buffered']
    #allocation12 [shape = 's32[1]{0}', space=sflag, size = 0x4, scoped, tag = 'scoped memory for tpu_custom_call.1']
    #allocation13 [shape = 'u8[512]{0}', space=vmem, size = 0x400, scoped, tag = 'input window, operand 6, single buffered']
    #allocation14 [shape = 'u8[1024]{0}', space=vmem, size = 0x400, scoped, tag = 'output window, operand 0, single buffered']
    %12 = vsyncpa [#allocation3], 0
    %13 = vsyncpa [#allocation6], 0
    %14 = vsyncpa [#allocation9], 0
    %15 = vsyncpa [#allocation12], 0
    %16 = vsyncpa [#allocation4], 0
    // Predicated region
    $region2: #{tpu_custom_call.1} parent=1 // pred_check
      _
    $region3: #{tpu_custom_call.1} parent=1 // pred_check_branch
      %18 = sbr.rel (0) target = $region5
    $region4: #{tpu_custom_call.1} parent=1 // pred_region
      %s20 = ssub.s32 81920, 81920
      %21 = vsyncadd [#allocation3], %s20
      %s22 = sshll.u32 [#allocation2], 4
      %s23 = int_to_ptr.vmem [resolvable:$true] %s22
      %28 = dma.hbm_to_vmem [thread:$0]  %s0, 81920, %s23, [#allocation3], 256, 256, 16
    $region5: #{tpu_custom_call.1} parent=1 // pred_fallthru
      _
    // Predicated region
    $region6: #{tpu_custom_call.1} parent=1 // pred_check
      _
    $region7: #{tpu_custom_call.1} parent=1 // pred_check_branch
      %30 = sbr.rel (0) target = $region9
    $region8: #{tpu_custom_call.1} parent=1 // pred_region
      %s32 = ssub.s32 81920, 81920
      %33 = vsyncadd [#allocation6], %s32
      %s34 = sshll.u32 [#allocation5], 4
      %s35 = int_to_ptr.vmem [resolvable:$true] %s34
      %40 = dma.hbm_to_vmem [thread:$0]  %s1, 81920, %s35, [#allocation6], 512, 512, 32
    $region9: #{tpu_custom_call.1} parent=1 // pred_fallthru
      _
    // Predicated region
    $region10: #{tpu_custom_call.1} parent=1 // pred_check
      _
    $region11: #{tpu_custom_call.1} parent=1 // pred_check_branch
      %42 = sbr.rel (0) target = $region13
    $region12: #{tpu_custom_call.1} parent=1 // pred_region
      %s44 = ssub.s32 128, 128
      %45 = vsyncadd [#allocation6], %s44
      %s47 = sshll.u32 [#allocation7], 4
      %s48 = int_to_ptr.vmem [resolvable:$true] %s47
      %50 = dma.hbm_to_vmem [thread:$0]  %s2, 128, %s48, [#allocation6]
    $region13: #{tpu_custom_call.1} parent=1 // pred_fallthru
      _
    // Predicated region
    $region14: #{tpu_custom_call.1} parent=1 // pred_check
      _
    $region15: #{tpu_custom_call.1} parent=1 // pred_check_branch
      %52 = sbr.rel (0) target = $region17
    $region16: #{tpu_custom_call.1} parent=1 // pred_region
      %s54 = ssub.s32 65536, 65536
      %55 = vsyncadd [#allocation9], %s54
      %s56 = sshll.u32 [#allocation8], 4
      %s57 = int_to_ptr.vmem [resolvable:$true] %s56
      %62 = dma.hbm_to_vmem [thread:$0]  %s3, 65536, %s57, [#allocation9], 512, 512, 32
    $region17: #{tpu_custom_call.1} parent=1 // pred_fallthru
      _
    // Predicated region
    $region18: #{tpu_custom_call.1} parent=1 // pred_check
      _
    $region19: #{tpu_custom_call.1} parent=1 // pred_check_branch
      %64 = sbr.rel (0) target = $region21
    $region20: #{tpu_custom_call.1} parent=1 // pred_region
      %s66 = ssub.s32 128, 128
      %67 = vsyncadd [#allocation9], %s66
      %s69 = sshll.u32 [#allocation10], 4
      %s70 = int_to_ptr.vmem [resolvable:$true] %s69
      %72 = dma.hbm_to_vmem [thread:$0]  %s4, 128, %s70, [#allocation9]
    $region21: #{tpu_custom_call.1} parent=1 // pred_fallthru
      _
    // Predicated region
    $region22: #{tpu_custom_call.1} parent=1 // pred_check
      _
    $region23: #{tpu_custom_call.1} parent=1 // pred_check_branch
      %74 = sbr.rel (0) target = $region25
    $region24: #{tpu_custom_call.1} parent=1 // pred_region
      %s76 = ssub.s32 8192, 8192
      %77 = vsyncadd [#allocation12], %s76
      %s78 = sshll.u32 [#allocation11], 4
      %s79 = int_to_ptr.vmem [resolvable:$true] %s78
      %84 = dma.hbm_to_vmem [thread:$0]  %s5, 8192, %s79, [#allocation12], 64, 64, 4
    $region25: #{tpu_custom_call.1} parent=1 // pred_fallthru
      _
    // Predicated region
    $region26: #{tpu_custom_call.1} parent=1 // pred_check
      _
    $region27: #{tpu_custom_call.1} parent=1 // pred_check_branch
      %86 = sbr.rel (0) target = $region29
    $region28: #{tpu_custom_call.1} parent=1 // pred_region
      %s88 = ssub.s32 16, 16
      %89 = vsyncadd [#allocation12], %s88
      %s91 = sshll.u32 [#allocation13], 4
      %s92 = int_to_ptr.vmem [resolvable:$true] %s91
      %94 = dma.hbm_to_vmem [thread:$0]  %s6, 16, %s92, [#allocation12]
    $region29: #{tpu_custom_call.1} parent=1 // pred_fallthru
      _
    // Predicated region
    $region30: #{tpu_custom_call.1} parent=1 // pred_check
      _
    $region31: #{tpu_custom_call.1} parent=1 // pred_check_branch
      %96 = sbr.rel (0) target = $region33
    $region32: #{tpu_custom_call.1} parent=1 // pred_region
      %97 = dma.done [#allocation3], 81920
    $region33: #{tpu_custom_call.1} parent=1 // pred_fallthru
      _
    // Predicated region
    $region34: #{tpu_custom_call.1} parent=1 // pred_check
      _
    $region35: #{tpu_custom_call.1} parent=1 // pred_check_branch
      %99 = sbr.rel (0) target = $region37
    $region36: #{tpu_custom_call.1} parent=1 // pred_region
      %100 = dma.done [#allocation6], 81920
    $region37: #{tpu_custom_call.1} parent=1 // pred_fallthru
      _
    // Predicated region
    $region38: #{tpu_custom_call.1} parent=1 // pred_check
      _
    $region39: #{tpu_custom_call.1} parent=1 // pred_check_branch
      %102 = sbr.rel (0) target = $region41
    $region40: #{tpu_custom_call.1} parent=1 // pred_region
      %103 = dma.done [#allocation6], 128
    $region41: #{tpu_custom_call.1} parent=1 // pred_fallthru
      _
    // Predicated region
    $region42: #{tpu_custom_call.1} parent=1 // pred_check
      _
    $region43: #{tpu_custom_call.1} parent=1 // pred_check_branch
      %105 = sbr.rel (0) target = $region45
    $region44: #{tpu_custom_call.1} parent=1 // pred_region
      %106 = dma.done [#allocation9], 65536
    $region45: #{tpu_custom_call.1} parent=1 // pred_fallthru
      _
    // Predicated region
    $region46: #{tpu_custom_call.1} parent=1 // pred_check
      _
    $region47: #{tpu_custom_call.1} parent=1 // pred_check_branch
      %108 = sbr.rel (0) target = $region49
    $region48: #{tpu_custom_call.1} parent=1 // pred_region
      %109 = dma.done [#allocation9], 128
    $region49: #{tpu_custom_call.1} parent=1 // pred_fallthru
      _
    // Predicated region
    $region50: #{tpu_custom_call.1} parent=1 // pred_check
      _
    $region51: #{tpu_custom_call.1} parent=1 // pred_check_branch
      %111 = sbr.rel (0) target = $region53
    $region52: #{tpu_custom_call.1} parent=1 // pred_region
      %112 = dma.done [#allocation12], 8192
    $region53: #{tpu_custom_call.1} parent=1 // pred_fallthru
      _
    // Predicated region
    $region54: #{tpu_custom_call.1} parent=1 // pred_check
      _
    $region55: #{tpu_custom_call.1} parent=1 // pred_check_branch
      %114 = sbr.rel (0) target = $region57
    $region56: #{tpu_custom_call.1} parent=1 // pred_region
      %115 = dma.done [#allocation12], 16
    $region57: #{tpu_custom_call.1} parent=1 // pred_fallthru
      _
    %v117 = vld [vmem:[#allocation2] sm:$0xff]
    %v118 = vld [vmem:[#allocation2 + $0x8] sm:$0xff]
    %v119 = vld [vmem:[#allocation2 + $0x10] sm:$0xff]
    %v120 = vld [vmem:[#allocation2 + $0x18] sm:$0xff]
    %v121 = vld [vmem:[#allocation2 + $0x20] sm:$0xff]
    %v122 = vld [vmem:[#allocation2 + $0x28] sm:$0xff]
    %v123 = vld [vmem:[#allocation2 + $0x30] sm:$0xff]
    %v124 = vld [vmem:[#allocation2 + $0x38] sm:$0xff]
    %v125 = vld [vmem:[#allocation2 + $0x40] sm:$0xff]
    %v126 = vld [vmem:[#allocation2 + $0x48] sm:$0xff]
    %v127 = vld [vmem:[#allocation2 + $0x50] sm:$0xff]
    %v128 = vld [vmem:[#allocation2 + $0x58] sm:$0xff]
    %v129 = vld [vmem:[#allocation2 + $0x60] sm:$0xff]
    %v130 = vld [vmem:[#allocation2 + $0x68] sm:$0xff]
    %v131 = vld [vmem:[#allocation2 + $0x70] sm:$0xff]
    %v132 = vld [vmem:[#allocation2 + $0x78] sm:$0xff]
    %v133 = vld [vmem:[#allocation2 + $0x80] sm:$0xff]
    %v134 = vld [vmem:[#allocation2 + $0x88] sm:$0xff]
    %v135 = vld [vmem:[#allocation2 + $0x90] sm:$0xff]
    %v136 = vld [vmem:[#allocation2 + $0x98] sm:$0xff]
    %v137 = vld [vmem:[#allocation2 + $0xa0] sm:$0xff]
    %v138 = vld [vmem:[#allocation2 + $0xa8] sm:$0xff]
    %v139 = vld [vmem:[#allocation2 + $0xb0] sm:$0xff]
    %v140 = vld [vmem:[#allocation2 + $0xb8] sm:$0xff]
    %v141 = vld [vmem:[#allocation2 + $0xc0] sm:$0xff]
    %v142 = vld [vmem:[#allocation2 + $0xc8] sm:$0xff]
    %v143 = vld [vmem:[#allocation2 + $0xd0] sm:$0xff]
    %v144 = vld [vmem:[#allocation2 + $0xd8] sm:$0xff]
    %v145 = vld [vmem:[#allocation2 + $0xe0] sm:$0xff]
    %v146 = vld [vmem:[#allocation2 + $0xe8] sm:$0xff]
    %v147 = vld [vmem:[#allocation2 + $0xf0] sm:$0xff]
    %v148 = vld [vmem:[#allocation2 + $0xf8] sm:$0xff]
    %v149 = vld [vmem:[#allocation2 + $0x100] sm:$0xff]
    %v150 = vld [vmem:[#allocation2 + $0x108] sm:$0xff]
    %v151 = vld [vmem:[#allocation2 + $0x110] sm:$0xff]
    %v152 = vld [vmem:[#allocation2 + $0x118] sm:$0xff]
    %v153 = vld [vmem:[#allocation2 + $0x120] sm:$0xff]
    %v154 = vld [vmem:[#allocation2 + $0x128] sm:$0xff]
    %v155 = vld [vmem:[#allocation2 + $0x130] sm:$0xff]
    %v156 = vld [vmem:[#allocation2 + $0x138] sm:$0xff]
    %v157 = vld [vmem:[#allocation2 + $0x140] sm:$0xff]
    %v158 = vld [vmem:[#allocation2 + $0x148] sm:$0xff]
    %v159 = vld [vmem:[#allocation2 + $0x150] sm:$0xff]
    %v160 = vld [vmem:[#allocation2 + $0x158] sm:$0xff]
    %v161 = vld [vmem:[#allocation2 + $0x160] sm:$0xff]
    %v162 = vld [vmem:[#allocation2 + $0x168] sm:$0xff]
    %v163 = vld [vmem:[#allocation2 + $0x170] sm:$0xff]
    %v164 = vld [vmem:[#allocation2 + $0x178] sm:$0xff]
    %v165 = vld [vmem:[#allocation2 + $0x180] sm:$0xff]
    %v166 = vld [vmem:[#allocation2 + $0x188] sm:$0xff]
    %v167 = vld [vmem:[#allocation2 + $0x190] sm:$0xff]
    %v168 = vld [vmem:[#allocation2 + $0x198] sm:$0xff]
    %v169 = vld [vmem:[#allocation2 + $0x1a0] sm:$0xff]
    %v170 = vld [vmem:[#allocation2 + $0x1a8] sm:$0xff]
    %v171 = vld [vmem:[#allocation2 + $0x1b0] sm:$0xff]
    %v172 = vld [vmem:[#allocation2 + $0x1b8] sm:$0xff]
    %v173 = vld [vmem:[#allocation2 + $0x1c0] sm:$0xff]
    %v174 = vld [vmem:[#allocation2 + $0x1c8] sm:$0xff]
    %v175 = vld [vmem:[#allocation2 + $0x1d0] sm:$0xff]
    %v176 = vld [vmem:[#allocation2 + $0x1d8] sm:$0xff]
    %v177 = vld [vmem:[#allocation2 + $0x1e0] sm:$0xff]
    %v178 = vld [vmem:[#allocation2 + $0x1e8] sm:$0xff]
    %v179 = vld [vmem:[#allocation2 + $0x1f0] sm:$0xff]
    %v180 = vld [vmem:[#allocation2 + $0x1f8] sm:$0xff]
    %v181 = vld [vmem:[#allocation2 + $0x200] sm:$0xff]
    %v182 = vld [vmem:[#allocation2 + $0x208] sm:$0xff]
    %v183 = vld [vmem:[#allocation2 + $0x210] sm:$0xff]
    %v184 = vld [vmem:[#allocation2 + $0x218] sm:$0xff]
    %v185 = vld [vmem:[#allocation2 + $0x220] sm:$0xff]
    %v186 = vld [vmem:[#allocation2 + $0x228] sm:$0xff]
    %v187 = vld [vmem:[#allocation2 + $0x230] sm:$0xff]
    %v188 = vld [vmem:[#allocation2 + $0x238] sm:$0xff]
    %v189 = vld [vmem:[#allocation2 + $0x240] sm:$0xff]
    %v190 = vld [vmem:[#allocation2 + $0x248] sm:$0xff]
    %v191 = vld [vmem:[#allocation2 + $0x250] sm:$0xff]
    %v192 = vld [vmem:[#allocation2 + $0x258] sm:$0xff]
    %v193 = vld [vmem:[#allocation2 + $0x260] sm:$0xff]
    %v194 = vld [vmem:[#allocation2 + $0x268] sm:$0xff]
    %v195 = vld [vmem:[#allocation2 + $0x270] sm:$0xff]
    %v196 = vld [vmem:[#allocation2 + $0x278] sm:$0xff]
    %v197 = vld [vmem:[#allocation2 + $0x280] sm:$0xff]
    %v198 = vld [vmem:[#allocation2 + $0x288] sm:$0xff]
    %v199 = vld [vmem:[#allocation2 + $0x290] sm:$0xff]
    %v200 = vld [vmem:[#allocation2 + $0x298] sm:$0xff]
    %v201 = vld [vmem:[#allocation2 + $0x2a0] sm:$0xff]
    %v202 = vld [vmem:[#allocation2 + $0x2a8] sm:$0xff]
    %v203 = vld [vmem:[#allocation2 + $0x2b0] sm:$0xff]
    %v204 = vld [vmem:[#allocation2 + $0x2b8] sm:$0xff]
    %v205 = vld [vmem:[#allocation2 + $0x2c0] sm:$0xff]
    %v206 = vld [vmem:[#allocation2 + $0x2c8] sm:$0xff]
    %v207 = vld [vmem:[#allocation2 + $0x2d0] sm:$0xff]
    %v208 = vld [vmem:[#allocation2 + $0x2d8] sm:$0xff]
    %v209 = vld [vmem:[#allocation2 + $0x2e0] sm:$0xff]
    %v210 = vld [vmem:[#allocation2 + $0x2e8] sm:$0xff]
    %v211 = vld [vmem:[#allocation2 + $0x2f0] sm:$0xff]
    %v212 = vld [vmem:[#allocation2 + $0x2f8] sm:$0xff]
    %v213 = vld [vmem:[#allocation2 + $0x300] sm:$0xff]
    %v214 = vld [vmem:[#allocation2 + $0x308] sm:$0xff]
    %v215 = vld [vmem:[#allocation2 + $0x310] sm:$0xff]
    %v216 = vld [vmem:[#allocation2 + $0x318] sm:$0xff]
    %v217 = vld [vmem:[#allocation2 + $0x320] sm:$0xff]
    %v218 = vld [vmem:[#allocation2 + $0x328] sm:$0xff]
    %v219 = vld [vmem:[#allocation2 + $0x330] sm:$0xff]
    %v220 = vld [vmem:[#allocation2 + $0x338] sm:$0xff]
    %v221 = vld [vmem:[#allocation2 + $0x340] sm:$0xff]
    %v222 = vld [vmem:[#allocation2 + $0x348] sm:$0xff]
    %v223 = vld [vmem:[#allocation2 + $0x350] sm:$0xff]
    %v224 = vld [vmem:[#allocation2 + $0x358] sm:$0xff]
    %v225 = vld [vmem:[#allocation2 + $0x360] sm:$0xff]
    %v226 = vld [vmem:[#allocation2 + $0x368] sm:$0xff]
    %v227 = vld [vmem:[#allocation2 + $0x370] sm:$0xff]
    %v228 = vld [vmem:[#allocation2 + $0x378] sm:$0xff]
    %v229 = vld [vmem:[#allocation2 + $0x380] sm:$0xff]
    %v230 = vld [vmem:[#allocation2 + $0x388] sm:$0xff]
    %v231 = vld [vmem:[#allocation2 + $0x390] sm:$0xff]
    %v232 = vld [vmem:[#allocation2 + $0x398] sm:$0xff]
    %v233 = vld [vmem:[#allocation2 + $0x3a0] sm:$0xff]
    %v234 = vld [vmem:[#allocation2 + $0x3a8] sm:$0xff]
    %v235 = vld [vmem:[#allocation2 + $0x3b0] sm:$0xff]
    %v236 = vld [vmem:[#allocation2 + $0x3b8] sm:$0xff]
    %v237 = vld [vmem:[#allocation2 + $0x3c0] sm:$0xff]
    %v238 = vld [vmem:[#allocation2 + $0x3c8] sm:$0xff]
    %v239 = vld [vmem:[#allocation2 + $0x3d0] sm:$0xff]
    %v240 = vld [vmem:[#allocation2 + $0x3d8] sm:$0xff]
    %v241 = vld [vmem:[#allocation2 + $0x3e0] sm:$0xff]
    %v242 = vld [vmem:[#allocation2 + $0x3e8] sm:$0xff]
    %v243 = vld [vmem:[#allocation2 + $0x3f0] sm:$0xff]
    %v244 = vld [vmem:[#allocation2 + $0x3f8] sm:$0xff]
    %v245 = vld [vmem:[#allocation2 + $0x400] sm:$0xff]
    %v246 = vld [vmem:[#allocation2 + $0x408] sm:$0xff]
    %v247 = vld [vmem:[#allocation2 + $0x410] sm:$0xff]
    %v248 = vld [vmem:[#allocation2 + $0x418] sm:$0xff]
    %v249 = vld [vmem:[#allocation2 + $0x420] sm:$0xff]
    %v250 = vld [vmem:[#allocation2 + $0x428] sm:$0xff]
    %v251 = vld [vmem:[#allocation2 + $0x430] sm:$0xff]
    %v252 = vld [vmem:[#allocation2 + $0x438] sm:$0xff]
    %v253 = vld [vmem:[#allocation2 + $0x440] sm:$0xff]
    %v254 = vld [vmem:[#allocation2 + $0x448] sm:$0xff]
    %v255 = vld [vmem:[#allocation2 + $0x450] sm:$0xff]
    %v256 = vld [vmem:[#allocation2 + $0x458] sm:$0xff]
    %v257 = vld [vmem:[#allocation2 + $0x460] sm:$0xff]
    %v258 = vld [vmem:[#allocation2 + $0x468] sm:$0xff]
    %v259 = vld [vmem:[#allocation2 + $0x470] sm:$0xff]
    %v260 = vld [vmem:[#allocation2 + $0x478] sm:$0xff]
    %v261 = vld [vmem:[#allocation2 + $0x480] sm:$0xff]
    %v262 = vld [vmem:[#allocation2 + $0x488] sm:$0xff]
    %v263 = vld [vmem:[#allocation2 + $0x490] sm:$0xff]
    %v264 = vld [vmem:[#allocation2 + $0x498] sm:$0xff]
    %v265 = vld [vmem:[#allocation2 + $0x4a0] sm:$0xff]
    %v266 = vld [vmem:[#allocation2 + $0x4a8] sm:$0xff]
    %v267 = vld [vmem:[#allocation2 + $0x4b0] sm:$0xff]
    %v268 = vld [vmem:[#allocation2 + $0x4b8] sm:$0xff]
    %v269 = vld [vmem:[#allocation2 + $0x4c0] sm:$0xff]
    %v270 = vld [vmem:[#allocation2 + $0x4c8] sm:$0xff]
    %v271 = vld [vmem:[#allocation2 + $0x4d0] sm:$0xff]
    %v272 = vld [vmem:[#allocation2 + $0x4d8] sm:$0xff]
    %v273 = vld [vmem:[#allocation2 + $0x4e0] sm:$0xff]
    %v274 = vld [vmem:[#allocation2 + $0x4e8] sm:$0xff]
    %v275 = vld [vmem:[#allocation2 + $0x4f0] sm:$0xff]
    %v276 = vld [vmem:[#allocation2 + $0x4f8] sm:$0xff]
    %v277 = vld [vmem:[#allocation2 + $0x500] sm:$0xff]
    %v278 = vld [vmem:[#allocation2 + $0x508] sm:$0xff]
    %v279 = vld [vmem:[#allocation2 + $0x510] sm:$0xff]
    %v280 = vld [vmem:[#allocation2 + $0x518] sm:$0xff]
    %v281 = vld [vmem:[#allocation2 + $0x520] sm:$0xff]
    %v282 = vld [vmem:[#allocation2 + $0x528] sm:$0xff]
    %v283 = vld [vmem:[#allocation2 + $0x530] sm:$0xff]
    %v284 = vld [vmem:[#allocation2 + $0x538] sm:$0xff]
    %v285 = vld [vmem:[#allocation2 + $0x540] sm:$0xff]
    %v286 = vld [vmem:[#allocation2 + $0x548] sm:$0xff]
    %v287 = vld [vmem:[#allocation2 + $0x550] sm:$0xff]
    %v288 = vld [vmem:[#allocation2 + $0x558] sm:$0xff]
    %v289 = vld [vmem:[#allocation2 + $0x560] sm:$0xff]
    %v290 = vld [vmem:[#allocation2 + $0x568] sm:$0xff]
    %v291 = vld [vmem:[#allocation2 + $0x570] sm:$0xff]
    %v292 = vld [vmem:[#allocation2 + $0x578] sm:$0xff]
    %v293 = vld [vmem:[#allocation2 + $0x580] sm:$0xff]
    %v294 = vld [vmem:[#allocation2 + $0x588] sm:$0xff]
    %v295 = vld [vmem:[#allocation2 + $0x590] sm:$0xff]
    %v296 = vld [vmem:[#allocation2 + $0x598] sm:$0xff]
    %v297 = vld [vmem:[#allocation2 + $0x5a0] sm:$0xff]
    %v298 = vld [vmem:[#allocation2 + $0x5a8] sm:$0xff]
    %v299 = vld [vmem:[#allocation2 + $0x5b0] sm:$0xff]
    %v300 = vld [vmem:[#allocation2 + $0x5b8] sm:$0xff]
    %v301 = vld [vmem:[#allocation2 + $0x5c0] sm:$0xff]
    %v302 = vld [vmem:[#allocation2 + $0x5c8] sm:$0xff]
    %v303 = vld [vmem:[#allocation2 + $0x5d0] sm:$0xff]
    %v304 = vld [vmem:[#allocation2 + $0x5d8] sm:$0xff]
    %v305 = vld [vmem:[#allocation2 + $0x5e0] sm:$0xff]
    %v306 = vld [vmem:[#allocation2 + $0x5e8] sm:$0xff]
    %v307 = vld [vmem:[#allocation2 + $0x5f0] sm:$0xff]
    %v308 = vld [vmem:[#allocation2 + $0x5f8] sm:$0xff]
    %v309 = vld [vmem:[#allocation2 + $0x600] sm:$0xff]
    %v310 = vld [vmem:[#allocation2 + $0x608] sm:$0xff]
    %v311 = vld [vmem:[#allocation2 + $0x610] sm:$0xff]
    %v312 = vld [vmem:[#allocation2 + $0x618] sm:$0xff]
    %v313 = vld [vmem:[#allocation2 + $0x620] sm:$0xff]
    %v314 = vld [vmem:[#allocation2 + $0x628] sm:$0xff]
    %v315 = vld [vmem:[#allocation2 + $0x630] sm:$0xff]
    %v316 = vld [vmem:[#allocation2 + $0x638] sm:$0xff]
    %v317 = vld [vmem:[#allocation2 + $0x640] sm:$0xff]
    %v318 = vld [vmem:[#allocation2 + $0x648] sm:$0xff]
    %v319 = vld [vmem:[#allocation2 + $0x650] sm:$0xff]
    %v320 = vld [vmem:[#allocation2 + $0x658] sm:$0xff]
    %v321 = vld [vmem:[#allocation2 + $0x660] sm:$0xff]
    %v322 = vld [vmem:[#allocation2 + $0x668] sm:$0xff]
    %v323 = vld [vmem:[#allocation2 + $0x670] sm:$0xff]
    %v324 = vld [vmem:[#allocation2 + $0x678] sm:$0xff]
    %v325 = vld [vmem:[#allocation2 + $0x680] sm:$0xff]
    %v326 = vld [vmem:[#allocation2 + $0x688] sm:$0xff]
    %v327 = vld [vmem:[#allocation2 + $0x690] sm:$0xff]
    %v328 = vld [vmem:[#allocation2 + $0x698] sm:$0xff]
    %v329 = vld [vmem:[#allocation2 + $0x6a0] sm:$0xff]
    %v330 = vld [vmem:[#allocation2 + $0x6a8] sm:$0xff]
    %v331 = vld [vmem:[#allocation2 + $0x6b0] sm:$0xff]
    %v332 = vld [vmem:[#allocation2 + $0x6b8] sm:$0xff]
    %v333 = vld [vmem:[#allocation2 + $0x6c0] sm:$0xff]
    %v334 = vld [vmem:[#allocation2 + $0x6c8] sm:$0xff]
    %v335 = vld [vmem:[#allocation2 + $0x6d0] sm:$0xff]
    %v336 = vld [vmem:[#allocation2 + $0x6d8] sm:$0xff]
    %v337 = vld [vmem:[#allocation2 + $0x6e0] sm:$0xff]
    %v338 = vld [vmem:[#allocation2 + $0x6e8] sm:$0xff]
    %v339 = vld [vmem:[#allocation2 + $0x6f0] sm:$0xff]
    %v340 = vld [vmem:[#allocation2 + $0x6f8] sm:$0xff]
    %v341 = vld [vmem:[#allocation2 + $0x700] sm:$0xff]
    %v342 = vld [vmem:[#allocation2 + $0x708] sm:$0xff]
    %v343 = vld [vmem:[#allocation2 + $0x710] sm:$0xff]
    %v344 = vld [vmem:[#allocation2 + $0x718] sm:$0xff]
    %v345 = vld [vmem:[#allocation2 + $0x720] sm:$0xff]
    %v346 = vld [vmem:[#allocation2 + $0x728] sm:$0xff]
    %v347 = vld [vmem:[#allocation2 + $0x730] sm:$0xff]
    %v348 = vld [vmem:[#allocation2 + $0x738] sm:$0xff]
    %v349 = vld [vmem:[#allocation2 + $0x740] sm:$0xff]
    %v350 = vld [vmem:[#allocation2 + $0x748] sm:$0xff]
    %v351 = vld [vmem:[#allocation2 + $0x750] sm:$0xff]
    %v352 = vld [vmem:[#allocation2 + $0x758] sm:$0xff]
    %v353 = vld [vmem:[#allocation2 + $0x760] sm:$0xff]
    %v354 = vld [vmem:[#allocation2 + $0x768] sm:$0xff]
    %v355 = vld [vmem:[#allocation2 + $0x770] sm:$0xff]
    %v356 = vld [vmem:[#allocation2 + $0x778] sm:$0xff]
    %v357 = vld [vmem:[#allocation2 + $0x780] sm:$0xff]
    %v358 = vld [vmem:[#allocation2 + $0x788] sm:$0xff]
    %v359 = vld [vmem:[#allocation2 + $0x790] sm:$0xff]
    %v360 = vld [vmem:[#allocation2 + $0x798] sm:$0xff]
    %v361 = vld [vmem:[#allocation2 + $0x7a0] sm:$0xff]
    %v362 = vld [vmem:[#allocation2 + $0x7a8] sm:$0xff]
    %v363 = vld [vmem:[#allocation2 + $0x7b0] sm:$0xff]
    %v364 = vld [vmem:[#allocation2 + $0x7b8] sm:$0xff]
    %v365 = vld [vmem:[#allocation2 + $0x7c0] sm:$0xff]
    %v366 = vld [vmem:[#allocation2 + $0x7c8] sm:$0xff]
    %v367 = vld [vmem:[#allocation2 + $0x7d0] sm:$0xff]
    %v368 = vld [vmem:[#allocation2 + $0x7d8] sm:$0xff]
    %v369 = vld [vmem:[#allocation2 + $0x7e0] sm:$0xff]
    %v370 = vld [vmem:[#allocation2 + $0x7e8] sm:$0xff]
    %v371 = vld [vmem:[#allocation2 + $0x7f0] sm:$0xff]
    %v372 = vld [vmem:[#allocation2 + $0x7f8] sm:$0xff]
    %v373 = vld [vmem:[#allocation2 + $0x800] sm:$0xff]
    %v374 = vld [vmem:[#allocation2 + $0x808] sm:$0xff]
    %v375 = vld [vmem:[#allocation2 + $0x810] sm:$0xff]
    %v376 = vld [vmem:[#allocation2 + $0x818] sm:$0xff]
    %v377 = vld [vmem:[#allocation2 + $0x820] sm:$0xff]
    %v378 = vld [vmem:[#allocation2 + $0x828] sm:$0xff]
    %v379 = vld [vmem:[#allocation2 + $0x830] sm:$0xff]
    %v380 = vld [vmem:[#allocation2 + $0x838] sm:$0xff]
    %v381 = vld [vmem:[#allocation2 + $0x840] sm:$0xff]
    %v382 = vld [vmem:[#allocation2 + $0x848] sm:$0xff]
    %v383 = vld [vmem:[#allocation2 + $0x850] sm:$0xff]
    %v384 = vld [vmem:[#allocation2 + $0x858] sm:$0xff]
    %v385 = vld [vmem:[#allocation2 + $0x860] sm:$0xff]
    %v386 = vld [vmem:[#allocation2 + $0x868] sm:$0xff]
    %v387 = vld [vmem:[#allocation2 + $0x870] sm:$0xff]
    %v388 = vld [vmem:[#allocation2 + $0x878] sm:$0xff]
    %v389 = vld [vmem:[#allocation2 + $0x880] sm:$0xff]
    %v390 = vld [vmem:[#allocation2 + $0x888] sm:$0xff]
    %v391 = vld [vmem:[#allocation2 + $0x890] sm:$0xff]
    %v392 = vld [vmem:[#allocation2 + $0x898] sm:$0xff]
    %v393 = vld [vmem:[#allocation2 + $0x8a0] sm:$0xff]
    %v394 = vld [vmem:[#allocation2 + $0x8a8] sm:$0xff]
    %v395 = vld [vmem:[#allocation2 + $0x8b0] sm:$0xff]
    %v396 = vld [vmem:[#allocation2 + $0x8b8] sm:$0xff]
    %v397 = vld [vmem:[#allocation2 + $0x8c0] sm:$0xff]
    %v398 = vld [vmem:[#allocation2 + $0x8c8] sm:$0xff]
    %v399 = vld [vmem:[#allocation2 + $0x8d0] sm:$0xff]
    %v400 = vld [vmem:[#allocation2 + $0x8d8] sm:$0xff]
    %v401 = vld [vmem:[#allocation2 + $0x8e0] sm:$0xff]
    %v402 = vld [vmem:[#allocation2 + $0x8e8] sm:$0xff]
    %v403 = vld [vmem:[#allocation2 + $0x8f0] sm:$0xff]
    %v404 = vld [vmem:[#allocation2 + $0x8f8] sm:$0xff]
    %v405 = vld [vmem:[#allocation2 + $0x900] sm:$0xff]
    %v406 = vld [vmem:[#allocation2 + $0x908] sm:$0xff]
    %v407 = vld [vmem:[#allocation2 + $0x910] sm:$0xff]
    %v408 = vld [vmem:[#allocation2 + $0x918] sm:$0xff]
    %v409 = vld [vmem:[#allocation2 + $0x920] sm:$0xff]
    %v410 = vld [vmem:[#allocation2 + $0x928] sm:$0xff]
    %v411 = vld [vmem:[#allocation2 + $0x930] sm:$0xff]
    %v412 = vld [vmem:[#allocation2 + $0x938] sm:$0xff]
    %v413 = vld [vmem:[#allocation2 + $0x940] sm:$0xff]
    %v414 = vld [vmem:[#allocation2 + $0x948] sm:$0xff]
    %v415 = vld [vmem:[#allocation2 + $0x950] sm:$0xff]
    %v416 = vld [vmem:[#allocation2 + $0x958] sm:$0xff]
    %v417 = vld [vmem:[#allocation2 + $0x960] sm:$0xff]
    %v418 = vld [vmem:[#allocation2 + $0x968] sm:$0xff]
    %v419 = vld [vmem:[#allocation2 + $0x970] sm:$0xff]
    %v420 = vld [vmem:[#allocation2 + $0x978] sm:$0xff]
    %v421 = vld [vmem:[#allocation2 + $0x980] sm:$0xff]
    %v422 = vld [vmem:[#allocation2 + $0x988] sm:$0xff]
    %v423 = vld [vmem:[#allocation2 + $0x990] sm:$0xff]
    %v424 = vld [vmem:[#allocation2 + $0x998] sm:$0xff]
    %v425 = vld [vmem:[#allocation2 + $0x9a0] sm:$0xff]
    %v426 = vld [vmem:[#allocation2 + $0x9a8] sm:$0xff]
    %v427 = vld [vmem:[#allocation2 + $0x9b0] sm:$0xff]
    %v428 = vld [vmem:[#allocation2 + $0x9b8] sm:$0xff]
    %v429 = vld [vmem:[#allocation2 + $0x9c0] sm:$0xff]
    %v430 = vld [vmem:[#allocation2 + $0x9c8] sm:$0xff]
    %v431 = vld [vmem:[#allocation2 + $0x9d0] sm:$0xff]
    %v432 = vld [vmem:[#allocation2 + $0x9d8] sm:$0xff]
    %v433 = vld [vmem:[#allocation2 + $0x9e0] sm:$0xff]
    %v434 = vld [vmem:[#allocation2 + $0x9e8] sm:$0xff]
    %v435 = vld [vmem:[#allocation2 + $0x9f0] sm:$0xff]
    %v436 = vld [vmem:[#allocation2 + $0x9f8] sm:$0xff]
    %v437 = vld [vmem:[#allocation2 + $0xa00] sm:$0xff]
    %v438 = vld [vmem:[#allocation2 + $0xa08] sm:$0xff]
    %v439 = vld [vmem:[#allocation2 + $0xa10] sm:$0xff]
    %v440 = vld [vmem:[#allocation2 + $0xa18] sm:$0xff]
    %v441 = vld [vmem:[#allocation2 + $0xa20] sm:$0xff]
    %v442 = vld [vmem:[#allocation2 + $0xa28] sm:$0xff]
    %v443 = vld [vmem:[#allocation2 + $0xa30] sm:$0xff]
    %v444 = vld [vmem:[#allocation2 + $0xa38] sm:$0xff]
    %v445 = vld [vmem:[#allocation2 + $0xa40] sm:$0xff]
    %v446 = vld [vmem:[#allocation2 + $0xa48] sm:$0xff]
    %v447 = vld [vmem:[#allocation2 + $0xa50] sm:$0xff]
    %v448 = vld [vmem:[#allocation2 + $0xa58] sm:$0xff]
    %v449 = vld [vmem:[#allocation2 + $0xa60] sm:$0xff]
    %v450 = vld [vmem:[#allocation2 + $0xa68] sm:$0xff]
    %v451 = vld [vmem:[#allocation2 + $0xa70] sm:$0xff]
    %v452 = vld [vmem:[#allocation2 + $0xa78] sm:$0xff]
    %v453 = vld [vmem:[#allocation2 + $0xa80] sm:$0xff]
    %v454 = vld [vmem:[#allocation2 + $0xa88] sm:$0xff]
    %v455 = vld [vmem:[#allocation2 + $0xa90] sm:$0xff]
    %v456 = vld [vmem:[#allocation2 + $0xa98] sm:$0xff]
    %v457 = vld [vmem:[#allocation2 + $0xaa0] sm:$0xff]
    %v458 = vld [vmem:[#allocation2 + $0xaa8] sm:$0xff]
    %v459 = vld [vmem:[#allocation2 + $0xab0] sm:$0xff]
    %v460 = vld [vmem:[#allocation2 + $0xab8] sm:$0xff]
    %v461 = vld [vmem:[#allocation2 + $0xac0] sm:$0xff]
    %v462 = vld [vmem:[#allocation2 + $0xac8] sm:$0xff]
    %v463 = vld [vmem:[#allocation2 + $0xad0] sm:$0xff]
    %v464 = vld [vmem:[#allocation2 + $0xad8] sm:$0xff]
    %v465 = vld [vmem:[#allocation2 + $0xae0] sm:$0xff]
    %v466 = vld [vmem:[#allocation2 + $0xae8] sm:$0xff]
    %v467 = vld [vmem:[#allocation2 + $0xaf0] sm:$0xff]
    %v468 = vld [vmem:[#allocation2 + $0xaf8] sm:$0xff]
    %v469 = vld [vmem:[#allocation2 + $0xb00] sm:$0xff]
    %v470 = vld [vmem:[#allocation2 + $0xb08] sm:$0xff]
    %v471 = vld [vmem:[#allocation2 + $0xb10] sm:$0xff]
    %v472 = vld [vmem:[#allocation2 + $0xb18] sm:$0xff]
    %v473 = vld [vmem:[#allocation2 + $0xb20] sm:$0xff]
    %v474 = vld [vmem:[#allocation2 + $0xb28] sm:$0xff]
    %v475 = vld [vmem:[#allocation2 + $0xb30] sm:$0xff]
    %v476 = vld [vmem:[#allocation2 + $0xb38] sm:$0xff]
    %v477 = vld [vmem:[#allocation2 + $0xb40] sm:$0xff]
    %v478 = vld [vmem:[#allocation2 + $0xb48] sm:$0xff]
    %v479 = vld [vmem:[#allocation2 + $0xb50] sm:$0xff]
    %v480 = vld [vmem:[#allocation2 + $0xb58] sm:$0xff]
    %v481 = vld [vmem:[#allocation2 + $0xb60] sm:$0xff]
    %v482 = vld [vmem:[#allocation2 + $0xb68] sm:$0xff]
    %v483 = vld [vmem:[#allocation2 + $0xb70] sm:$0xff]
    %v484 = vld [vmem:[#allocation2 + $0xb78] sm:$0xff]
    %v485 = vld [vmem:[#allocation2 + $0xb80] sm:$0xff]
    %v486 = vld [vmem:[#allocation2 + $0xb88] sm:$0xff]
    %v487 = vld [vmem:[#allocation2 + $0xb90] sm:$0xff]
    %v488 = vld [vmem:[#allocation2 + $0xb98] sm:$0xff]
    %v489 = vld [vmem:[#allocation2 + $0xba0] sm:$0xff]
    %v490 = vld [vmem:[#allocation2 + $0xba8] sm:$0xff]
    %v491 = vld [vmem:[#allocation2 + $0xbb0] sm:$0xff]
    %v492 = vld [vmem:[#allocation2 + $0xbb8] sm:$0xff]
    %v493 = vld [vmem:[#allocation2 + $0xbc0] sm:$0xff]
    %v494 = vld [vmem:[#allocation2 + $0xbc8] sm:$0xff]
    %v495 = vld [vmem:[#allocation2 + $0xbd0] sm:$0xff]
    %v496 = vld [vmem:[#allocation2 + $0xbd8] sm:$0xff]
    %v497 = vld [vmem:[#allocation2 + $0xbe0] sm:$0xff]
    %v498 = vld [vmem:[#allocation2 + $0xbe8] sm:$0xff]
    %v499 = vld [vmem:[#allocation2 + $0xbf0] sm:$0xff]
    %v500 = vld [vmem:[#allocation2 + $0xbf8] sm:$0xff]
    %v501 = vld [vmem:[#allocation2 + $0xc00] sm:$0xff]
    %v502 = vld [vmem:[#allocation2 + $0xc08] sm:$0xff]
    %v503 = vld [vmem:[#allocation2 + $0xc10] sm:$0xff]
    %v504 = vld [vmem:[#allocation2 + $0xc18] sm:$0xff]
    %v505 = vld [vmem:[#allocation2 + $0xc20] sm:$0xff]
    %v506 = vld [vmem:[#allocation2 + $0xc28] sm:$0xff]
    %v507 = vld [vmem:[#allocation2 + $0xc30] sm:$0xff]
    %v508 = vld [vmem:[#allocation2 + $0xc38] sm:$0xff]
    %v509 = vld [vmem:[#allocation2 + $0xc40] sm:$0xff]
    %v510 = vld [vmem:[#allocation2 + $0xc48] sm:$0xff]
    %v511 = vld [vmem:[#allocation2 + $0xc50] sm:$0xff]
    %v512 = vld [vmem:[#allocation2 + $0xc58] sm:$0xff]
    %v513 = vld [vmem:[#allocation2 + $0xc60] sm:$0xff]
    %v514 = vld [vmem:[#allocation2 + $0xc68] sm:$0xff]
    %v515 = vld [vmem:[#allocation2 + $0xc70] sm:$0xff]
    %v516 = vld [vmem:[#allocation2 + $0xc78] sm:$0xff]
    %v517 = vld [vmem:[#allocation2 + $0xc80] sm:$0xff]
    %v518 = vld [vmem:[#allocation2 + $0xc88] sm:$0xff]
    %v519 = vld [vmem:[#allocation2 + $0xc90] sm:$0xff]
    %v520 = vld [vmem:[#allocation2 + $0xc98] sm:$0xff]
    %v521 = vld [vmem:[#allocation2 + $0xca0] sm:$0xff]
    %v522 = vld [vmem:[#allocation2 + $0xca8] sm:$0xff]
    %v523 = vld [vmem:[#allocation2 + $0xcb0] sm:$0xff]
    %v524 = vld [vmem:[#allocation2 + $0xcb8] sm:$0xff]
    %v525 = vld [vmem:[#allocation2 + $0xcc0] sm:$0xff]
    %v526 = vld [vmem:[#allocation2 + $0xcc8] sm:$0xff]
    %v527 = vld [vmem:[#allocation2 + $0xcd0] sm:$0xff]
    %v528 = vld [vmem:[#allocation2 + $0xcd8] sm:$0xff]
    %v529 = vld [vmem:[#allocation2 + $0xce0] sm:$0xff]
    %v530 = vld [vmem:[#allocation2 + $0xce8] sm:$0xff]
    %v531 = vld [vmem:[#allocation2 + $0xcf0] sm:$0xff]
    %v532 = vld [vmem:[#allocation2 + $0xcf8] sm:$0xff]
    %v533 = vld [vmem:[#allocation2 + $0xd00] sm:$0xff]
    %v534 = vld [vmem:[#allocation2 + $0xd08] sm:$0xff]
    %v535 = vld [vmem:[#allocation2 + $0xd10] sm:$0xff]
    %v536 = vld [vmem:[#allocation2 + $0xd18] sm:$0xff]
    %v537 = vld [vmem:[#allocation2 + $0xd20] sm:$0xff]
    %v538 = vld [vmem:[#allocation2 + $0xd28] sm:$0xff]
    %v539 = vld [vmem:[#allocation2 + $0xd30] sm:$0xff]
    %v540 = vld [vmem:[#allocation2 + $0xd38] sm:$0xff]
    %v541 = vld [vmem:[#allocation2 + $0xd40] sm:$0xff]
    %v542 = vld [vmem:[#allocation2 + $0xd48] sm:$0xff]
    %v543 = vld [vmem:[#allocation2 + $0xd50] sm:$0xff]
    %v544 = vld [vmem:[#allocation2 + $0xd58] sm:$0xff]
    %v545 = vld [vmem:[#allocation2 + $0xd60] sm:$0xff]
    %v546 = vld [vmem:[#allocation2 + $0xd68] sm:$0xff]
    %v547 = vld [vmem:[#allocation2 + $0xd70] sm:$0xff]
    %v548 = vld [vmem:[#allocation2 + $0xd78] sm:$0xff]
    %v549 = vld [vmem:[#allocation2 + $0xd80] sm:$0xff]
    %v550 = vld [vmem:[#allocation2 + $0xd88] sm:$0xff]
    %v551 = vld [vmem:[#allocation2 + $0xd90] sm:$0xff]
    %v552 = vld [vmem:[#allocation2 + $0xd98] sm:$0xff]
    %v553 = vld [vmem:[#allocation2 + $0xda0] sm:$0xff]
    %v554 = vld [vmem:[#allocation2 + $0xda8] sm:$0xff]
    %v555 = vld [vmem:[#allocation2 + $0xdb0] sm:$0xff]
    %v556 = vld [vmem:[#allocation2 + $0xdb8] sm:$0xff]
    %v557 = vld [vmem:[#allocation2 + $0xdc0] sm:$0xff]
    %v558 = vld [vmem:[#allocation2 + $0xdc8] sm:$0xff]
    %v559 = vld [vmem:[#allocation2 + $0xdd0] sm:$0xff]
    %v560 = vld [vmem:[#allocation2 + $0xdd8] sm:$0xff]
    %v561 = vld [vmem:[#allocation2 + $0xde0] sm:$0xff]
    %v562 = vld [vmem:[#allocation2 + $0xde8] sm:$0xff]
    %v563 = vld [vmem:[#allocation2 + $0xdf0] sm:$0xff]
    %v564 = vld [vmem:[#allocation2 + $0xdf8] sm:$0xff]
    %v565 = vld [vmem:[#allocation2 + $0xe00] sm:$0xff]
    %v566 = vld [vmem:[#allocation2 + $0xe08] sm:$0xff]
    %v567 = vld [vmem:[#allocation2 + $0xe10] sm:$0xff]
    %v568 = vld [vmem:[#allocation2 + $0xe18] sm:$0xff]
    %v569 = vld [vmem:[#allocation2 + $0xe20] sm:$0xff]
    %v570 = vld [vmem:[#allocation2 + $0xe28] sm:$0xff]
    %v571 = vld [vmem:[#allocation2 + $0xe30] sm:$0xff]
    %v572 = vld [vmem:[#allocation2 + $0xe38] sm:$0xff]
    %v573 = vld [vmem:[#allocation2 + $0xe40] sm:$0xff]
    %v574 = vld [vmem:[#allocation2 + $0xe48] sm:$0xff]
    %v575 = vld [vmem:[#allocation2 + $0xe50] sm:$0xff]
    %v576 = vld [vmem:[#allocation2 + $0xe58] sm:$0xff]
    %v577 = vld [vmem:[#allocation2 + $0xe60] sm:$0xff]
    %v578 = vld [vmem:[#allocation2 + $0xe68] sm:$0xff]
    %v579 = vld [vmem:[#allocation2 + $0xe70] sm:$0xff]
    %v580 = vld [vmem:[#allocation2 + $0xe78] sm:$0xff]
    %v581 = vld [vmem:[#allocation2 + $0xe80] sm:$0xff]
    %v582 = vld [vmem:[#allocation2 + $0xe88] sm:$0xff]
    %v583 = vld [vmem:[#allocation2 + $0xe90] sm:$0xff]
    %v584 = vld [vmem:[#allocation2 + $0xe98] sm:$0xff]
    %v585 = vld [vmem:[#allocation2 + $0xea0] sm:$0xff]
    %v586 = vld [vmem:[#allocation2 + $0xea8] sm:$0xff]
    %v587 = vld [vmem:[#allocation2 + $0xeb0] sm:$0xff]
    %v588 = vld [vmem:[#allocation2 + $0xeb8] sm:$0xff]
    %v589 = vld [vmem:[#allocation2 + $0xec0] sm:$0xff]
    %v590 = vld [vmem:[#allocation2 + $0xec8] sm:$0xff]
    %v591 = vld [vmem:[#allocation2 + $0xed0] sm:$0xff]
    %v592 = vld [vmem:[#allocation2 + $0xed8] sm:$0xff]
    %v593 = vld [vmem:[#allocation2 + $0xee0] sm:$0xff]
    %v594 = vld [vmem:[#allocation2 + $0xee8] sm:$0xff]
    %v595 = vld [vmem:[#allocation2 + $0xef0] sm:$0xff]
    %v596 = vld [vmem:[#allocation2 + $0xef8] sm:$0xff]
    %v597 = vld [vmem:[#allocation2 + $0xf00] sm:$0xff]
    %v598 = vld [vmem:[#allocation2 + $0xf08] sm:$0xff]
    %v599 = vld [vmem:[#allocation2 + $0xf10] sm:$0xff]
    %v600 = vld [vmem:[#allocation2 + $0xf18] sm:$0xff]
    %v601 = vld [vmem:[#allocation2 + $0xf20] sm:$0xff]
    %v602 = vld [vmem:[#allocation2 + $0xf28] sm:$0xff]
    %v603 = vld [vmem:[#allocation2 + $0xf30] sm:$0xff]
    %v604 = vld [vmem:[#allocation2 + $0xf38] sm:$0xff]
    %v605 = vld [vmem:[#allocation2 + $0xf40] sm:$0xff]
    %v606 = vld [vmem:[#allocation2 + $0xf48] sm:$0xff]
    %v607 = vld [vmem:[#allocation2 + $0xf50] sm:$0xff]
    %v608 = vld [vmem:[#allocation2 + $0xf58] sm:$0xff]
    %v609 = vld [vmem:[#allocation2 + $0xf60] sm:$0xff]
    %v610 = vld [vmem:[#allocation2 + $0xf68] sm:$0xff]
    %v611 = vld [vmem:[#allocation2 + $0xf70] sm:$0xff]
    %v612 = vld [vmem:[#allocation2 + $0xf78] sm:$0xff]
    %v613 = vld [vmem:[#allocation2 + $0xf80] sm:$0xff]
    %v614 = vld [vmem:[#allocation2 + $0xf88] sm:$0xff]
    %v615 = vld [vmem:[#allocation2 + $0xf90] sm:$0xff]
    %v616 = vld [vmem:[#allocation2 + $0xf98] sm:$0xff]
    %v617 = vld [vmem:[#allocation2 + $0xfa0] sm:$0xff]
    %v618 = vld [vmem:[#allocation2 + $0xfa8] sm:$0xff]
    %v619 = vld [vmem:[#allocation2 + $0xfb0] sm:$0xff]
    %v620 = vld [vmem:[#allocation2 + $0xfb8] sm:$0xff]
    %v621 = vld [vmem:[#allocation2 + $0xfc0] sm:$0xff]
    %v622 = vld [vmem:[#allocation2 + $0xfc8] sm:$0xff]
    %v623 = vld [vmem:[#allocation2 + $0xfd0] sm:$0xff]
    %v624 = vld [vmem:[#allocation2 + $0xfd8] sm:$0xff]
    %v625 = vld [vmem:[#allocation2 + $0xfe0] sm:$0xff]
    %v626 = vld [vmem:[#allocation2 + $0xfe8] sm:$0xff]
    %v627 = vld [vmem:[#allocation2 + $0xff0] sm:$0xff]
    %v628 = vld [vmem:[#allocation2 + $0xff8] sm:$0xff]
    %v629 = vld [vmem:[#allocation2 + $0x1000] sm:$0xff]
    %v630 = vld [vmem:[#allocation2 + $0x1008] sm:$0xff]
    %v631 = vld [vmem:[#allocation2 + $0x1010] sm:$0xff]
    %v632 = vld [vmem:[#allocation2 + $0x1018] sm:$0xff]
    %v633 = vld [vmem:[#allocation2 + $0x1020] sm:$0xff]
    %v634 = vld [vmem:[#allocation2 + $0x1028] sm:$0xff]
    %v635 = vld [vmem:[#allocation2 + $0x1030] sm:$0xff]
    %v636 = vld [vmem:[#allocation2 + $0x1038] sm:$0xff]
    %v637 = vld [vmem:[#allocation2 + $0x1040] sm:$0xff]
    %v638 = vld [vmem:[#allocation2 + $0x1048] sm:$0xff]
    %v639 = vld [vmem:[#allocation2 + $0x1050] sm:$0xff]
    %v640 = vld [vmem:[#allocation2 + $0x1058] sm:$0xff]
    %v641 = vld [vmem:[#allocation2 + $0x1060] sm:$0xff]
    %v642 = vld [vmem:[#allocation2 + $0x1068] sm:$0xff]
    %v643 = vld [vmem:[#allocation2 + $0x1070] sm:$0xff]
    %v644 = vld [vmem:[#allocation2 + $0x1078] sm:$0xff]
    %v645 = vld [vmem:[#allocation2 + $0x1080] sm:$0xff]
    %v646 = vld [vmem:[#allocation2 + $0x1088] sm:$0xff]
    %v647 = vld [vmem:[#allocation2 + $0x1090] sm:$0xff]
    %v648 = vld [vmem:[#allocation2 + $0x1098] sm:$0xff]
    %v649 = vld [vmem:[#allocation2 + $0x10a0] sm:$0xff]
    %v650 = vld [vmem:[#allocation2 + $0x10a8] sm:$0xff]
    %v651 = vld [vmem:[#allocation2 + $0x10b0] sm:$0xff]
    %v652 = vld [vmem:[#allocation2 + $0x10b8] sm:$0xff]
    %v653 = vld [vmem:[#allocation2 + $0x10c0] sm:$0xff]
    %v654 = vld [vmem:[#allocation2 + $0x10c8] sm:$0xff]
    %v655 = vld [vmem:[#allocation2 + $0x10d0] sm:$0xff]
    %v656 = vld [vmem:[#allocation2 + $0x10d8] sm:$0xff]
    %v657 = vld [vmem:[#allocation2 + $0x10e0] sm:$0xff]
    %v658 = vld [vmem:[#allocation2 + $0x10e8] sm:$0xff]
    %v659 = vld [vmem:[#allocation2 + $0x10f0] sm:$0xff]
    %v660 = vld [vmem:[#allocation2 + $0x10f8] sm:$0xff]
    %v661 = vld [vmem:[#allocation2 + $0x1100] sm:$0xff]
    %v662 = vld [vmem:[#allocation2 + $0x1108] sm:$0xff]
    %v663 = vld [vmem:[#allocation2 + $0x1110] sm:$0xff]
    %v664 = vld [vmem:[#allocation2 + $0x1118] sm:$0xff]
    %v665 = vld [vmem:[#allocation2 + $0x1120] sm:$0xff]
    %v666 = vld [vmem:[#allocation2 + $0x1128] sm:$0xff]
    %v667 = vld [vmem:[#allocation2 + $0x1130] sm:$0xff]
    %v668 = vld [vmem:[#allocation2 + $0x1138] sm:$0xff]
    %v669 = vld [vmem:[#allocation2 + $0x1140] sm:$0xff]
    %v670 = vld [vmem:[#allocation2 + $0x1148] sm:$0xff]
    %v671 = vld [vmem:[#allocation2 + $0x1150] sm:$0xff]
    %v672 = vld [vmem:[#allocation2 + $0x1158] sm:$0xff]
    %v673 = vld [vmem:[#allocation2 + $0x1160] sm:$0xff]
    %v674 = vld [vmem:[#allocation2 + $0x1168] sm:$0xff]
    %v675 = vld [vmem:[#allocation2 + $0x1170] sm:$0xff]
    %v676 = vld [vmem:[#allocation2 + $0x1178] sm:$0xff]
    %v677 = vld [vmem:[#allocation2 + $0x1180] sm:$0xff]
    %v678 = vld [vmem:[#allocation2 + $0x1188] sm:$0xff]
    %v679 = vld [vmem:[#allocation2 + $0x1190] sm:$0xff]
    %v680 = vld [vmem:[#allocation2 + $0x1198] sm:$0xff]
    %v681 = vld [vmem:[#allocation2 + $0x11a0] sm:$0xff]
    %v682 = vld [vmem:[#allocation2 + $0x11a8] sm:$0xff]
    %v683 = vld [vmem:[#allocation2 + $0x11b0] sm:$0xff]
    %v684 = vld [vmem:[#allocation2 + $0x11b8] sm:$0xff]
    %v685 = vld [vmem:[#allocation2 + $0x11c0] sm:$0xff]
    %v686 = vld [vmem:[#allocation2 + $0x11c8] sm:$0xff]
    %v687 = vld [vmem:[#allocation2 + $0x11d0] sm:$0xff]
    %v688 = vld [vmem:[#allocation2 + $0x11d8] sm:$0xff]
    %v689 = vld [vmem:[#allocation2 + $0x11e0] sm:$0xff]
    %v690 = vld [vmem:[#allocation2 + $0x11e8] sm:$0xff]
    %v691 = vld [vmem:[#allocation2 + $0x11f0] sm:$0xff]
    %v692 = vld [vmem:[#allocation2 + $0x11f8] sm:$0xff]
    %v693 = vld [vmem:[#allocation2 + $0x1200] sm:$0xff]
    %v694 = vld [vmem:[#allocation2 + $0x1208] sm:$0xff]
    %v695 = vld [vmem:[#allocation2 + $0x1210] sm:$0xff]
    %v696 = vld [vmem:[#allocation2 + $0x1218] sm:$0xff]
    %v697 = vld [vmem:[#allocation2 + $0x1220] sm:$0xff]
    %v698 = vld [vmem:[#allocation2 + $0x1228] sm:$0xff]
    %v699 = vld [vmem:[#allocation2 + $0x1230] sm:$0xff]
    %v700 = vld [vmem:[#allocation2 + $0x1238] sm:$0xff]
    %v701 = vld [vmem:[#allocation2 + $0x1240] sm:$0xff]
    %v702 = vld [vmem:[#allocation2 + $0x1248] sm:$0xff]
    %v703 = vld [vmem:[#allocation2 + $0x1250] sm:$0xff]
    %v704 = vld [vmem:[#allocation2 + $0x1258] sm:$0xff]
    %v705 = vld [vmem:[#allocation2 + $0x1260] sm:$0xff]
    %v706 = vld [vmem:[#allocation2 + $0x1268] sm:$0xff]
    %v707 = vld [vmem:[#allocation2 + $0x1270] sm:$0xff]
    %v708 = vld [vmem:[#allocation2 + $0x1278] sm:$0xff]
    %v709 = vld [vmem:[#allocation2 + $0x1280] sm:$0xff]
    %v710 = vld [vmem:[#allocation2 + $0x1288] sm:$0xff]
    %v711 = vld [vmem:[#allocation2 + $0x1290] sm:$0xff]
    %v712 = vld [vmem:[#allocation2 + $0x1298] sm:$0xff]
    %v713 = vld [vmem:[#allocation2 + $0x12a0] sm:$0xff]
    %v714 = vld [vmem:[#allocation2 + $0x12a8] sm:$0xff]
    %v715 = vld [vmem:[#allocation2 + $0x12b0] sm:$0xff]
    %v716 = vld [vmem:[#allocation2 + $0x12b8] sm:$0xff]
    %v717 = vld [vmem:[#allocation2 + $0x12c0] sm:$0xff]
    %v718 = vld [vmem:[#allocation2 + $0x12c8] sm:$0xff]
    %v719 = vld [vmem:[#allocation2 + $0x12d0] sm:$0xff]
    %v720 = vld [vmem:[#allocation2 + $0x12d8] sm:$0xff]
    %v721 = vld [vmem:[#allocation2 + $0x12e0] sm:$0xff]
    %v722 = vld [vmem:[#allocation2 + $0x12e8] sm:$0xff]
    %v723 = vld [vmem:[#allocation2 + $0x12f0] sm:$0xff]
    %v724 = vld [vmem:[#allocation2 + $0x12f8] sm:$0xff]
    %v725 = vld [vmem:[#allocation2 + $0x1300] sm:$0xff]
    %v726 = vld [vmem:[#allocation2 + $0x1308] sm:$0xff]
    %v727 = vld [vmem:[#allocation2 + $0x1310] sm:$0xff]
    %v728 = vld [vmem:[#allocation2 + $0x1318] sm:$0xff]
    %v729 = vld [vmem:[#allocation2 + $0x1320] sm:$0xff]
    %v730 = vld [vmem:[#allocation2 + $0x1328] sm:$0xff]
    %v731 = vld [vmem:[#allocation2 + $0x1330] sm:$0xff]
    %v732 = vld [vmem:[#allocation2 + $0x1338] sm:$0xff]
    %v733 = vld [vmem:[#allocation2 + $0x1340] sm:$0xff]
    %v734 = vld [vmem:[#allocation2 + $0x1348] sm:$0xff]
    %v735 = vld [vmem:[#allocation2 + $0x1350] sm:$0xff]
    %v736 = vld [vmem:[#allocation2 + $0x1358] sm:$0xff]
    %v737 = vld [vmem:[#allocation2 + $0x1360] sm:$0xff]
    %v738 = vld [vmem:[#allocation2 + $0x1368] sm:$0xff]
    %v739 = vld [vmem:[#allocation2 + $0x1370] sm:$0xff]
    %v740 = vld [vmem:[#allocation2 + $0x1378] sm:$0xff]
    %v741 = vld [vmem:[#allocation2 + $0x1380] sm:$0xff]
    %v742 = vld [vmem:[#allocation2 + $0x1388] sm:$0xff]
    %v743 = vld [vmem:[#allocation2 + $0x1390] sm:$0xff]
    %v744 = vld [vmem:[#allocation2 + $0x1398] sm:$0xff]
    %v745 = vld [vmem:[#allocation2 + $0x13a0] sm:$0xff]
    %v746 = vld [vmem:[#allocation2 + $0x13a8] sm:$0xff]
    %v747 = vld [vmem:[#allocation2 + $0x13b0] sm:$0xff]
    %v748 = vld [vmem:[#allocation2 + $0x13b8] sm:$0xff]
    %v749 = vld [vmem:[#allocation2 + $0x13c0] sm:$0xff]
    %v750 = vld [vmem:[#allocation2 + $0x13c8] sm:$0xff]
    %v751 = vld [vmem:[#allocation2 + $0x13d0] sm:$0xff]
    %v752 = vld [vmem:[#allocation2 + $0x13d8] sm:$0xff]
    %v753 = vld [vmem:[#allocation2 + $0x13e0] sm:$0xff]
    %v754 = vld [vmem:[#allocation2 + $0x13e8] sm:$0xff]
    %v755 = vld [vmem:[#allocation2 + $0x13f0] sm:$0xff]
    %v756 = vld [vmem:[#allocation2 + $0x13f8] sm:$0xff]
    %v757 = vadd.f32 %v117, %v118
    %758 = vadd.xlane.f32.xlu0 %v757
    %v759 = vpop.xlane.xlu0 %758
    %v760 = vadd.f32 %v119, %v120
    %761 = vadd.xlane.f32.xlu0 %v760
    %v762 = vpop.xlane.xlu0 %761
    %v763 = vadd.f32 %v121, %v122
    %764 = vadd.xlane.f32.xlu0 %v763
    %v765 = vpop.xlane.xlu0 %764
    %v766 = vadd.f32 %v123, %v124
    %767 = vadd.xlane.f32.xlu0 %v766
    %v768 = vpop.xlane.xlu0 %767
    %v769 = vadd.f32 %v125, %v126
    %770 = vadd.xlane.f32.xlu0 %v769
    %v771 = vpop.xlane.xlu0 %770
    %v772 = vadd.f32 %v127, %v128
    %773 = vadd.xlane.f32.xlu0 %v772
    %v774 = vpop.xlane.xlu0 %773
    %v775 = vadd.f32 %v129, %v130
    %776 = vadd.xlane.f32.xlu0 %v775
    %v777 = vpop.xlane.xlu0 %776
    %v778 = vadd.f32 %v131, %v132
    %779 = vadd.xlane.f32.xlu0 %v778
    %v780 = vpop.xlane.xlu0 %779
    %v781 = vadd.f32 %v133, %v134
    %782 = vadd.xlane.f32.xlu0 %v781
    %v783 = vpop.xlane.xlu0 %782
    %v784 = vadd.f32 %v135, %v136
    %785 = vadd.xlane.f32.xlu0 %v784
    %v786 = vpop.xlane.xlu0 %785
    %v787 = vadd.f32 %v137, %v138
    %788 = vadd.xlane.f32.xlu0 %v787
    %v789 = vpop.xlane.xlu0 %788
    %v790 = vadd.f32 %v139, %v140
    %791 = vadd.xlane.f32.xlu0 %v790
    %v792 = vpop.xlane.xlu0 %791
    %v793 = vadd.f32 %v141, %v142
    %794 = vadd.xlane.f32.xlu0 %v793
    %v795 = vpop.xlane.xlu0 %794
    %v796 = vadd.f32 %v143, %v144
    %797 = vadd.xlane.f32.xlu0 %v796
    %v798 = vpop.xlane.xlu0 %797
    %v799 = vadd.f32 %v145, %v146
    %800 = vadd.xlane.f32.xlu0 %v799
    %v801 = vpop.xlane.xlu0 %800
    %v802 = vadd.f32 %v147, %v148
    %803 = vadd.xlane.f32.xlu0 %v802
    %v804 = vpop.xlane.xlu0 %803
    %v805 = vadd.f32 %v149, %v150
    %806 = vadd.xlane.f32.xlu0 %v805
    %v807 = vpop.xlane.xlu0 %806
    %v808 = vadd.f32 %v151, %v152
    %809 = vadd.xlane.f32.xlu0 %v808
    %v810 = vpop.xlane.xlu0 %809
    %v811 = vadd.f32 %v153, %v154
    %812 = vadd.xlane.f32.xlu0 %v811
    %v813 = vpop.xlane.xlu0 %812
    %v814 = vadd.f32 %v155, %v156
    %815 = vadd.xlane.f32.xlu0 %v814
    %v816 = vpop.xlane.xlu0 %815
    %v817 = vadd.f32 %v157, %v158
    %818 = vadd.xlane.f32.xlu0 %v817
    %v819 = vpop.xlane.xlu0 %818
    %v820 = vadd.f32 %v159, %v160
    %821 = vadd.xlane.f32.xlu0 %v820
    %v822 = vpop.xlane.xlu0 %821
    %v823 = vadd.f32 %v161, %v162
    %824 = vadd.xlane.f32.xlu0 %v823
    %v825 = vpop.xlane.xlu0 %824
    %v826 = vadd.f32 %v163, %v164
    %827 = vadd.xlane.f32.xlu0 %v826
    %v828 = vpop.xlane.xlu0 %827
    %v829 = vadd.f32 %v165, %v166
    %830 = vadd.xlane.f32.xlu0 %v829
    %v831 = vpop.xlane.xlu0 %830
    %v832 = vadd.f32 %v167, %v168
    %833 = vadd.xlane.f32.xlu0 %v832
    %v834 = vpop.xlane.xlu0 %833
    %v835 = vadd.f32 %v169, %v170
    %836 = vadd.xlane.f32.xlu0 %v835
    %v837 = vpop.xlane.xlu0 %836
    %v838 = vadd.f32 %v171, %v172
    %839 = vadd.xlane.f32.xlu0 %v838
    %v840 = vpop.xlane.xlu0 %839
    %v841 = vadd.f32 %v173, %v174
    %842 = vadd.xlane.f32.xlu0 %v841
    %v843 = vpop.xlane.xlu0 %842
    %v844 = vadd.f32 %v175, %v176
    %845 = vadd.xlane.f32.xlu0 %v844
    %v846 = vpop.xlane.xlu0 %845
    %v847 = vadd.f32 %v177, %v178
    %848 = vadd.xlane.f32.xlu0 %v847
    %v849 = vpop.xlane.xlu0 %848
    %v850 = vadd.f32 %v179, %v180
    %851 = vadd.xlane.f32.xlu0 %v850
    %v852 = vpop.xlane.xlu0 %851
    %v853 = vadd.f32 %v181, %v182
    %854 = vadd.xlane.f32.xlu0 %v853
    %v855 = vpop.xlane.xlu0 %854
    %v856 = vadd.f32 %v183, %v184
    %857 = vadd.xlane.f32.xlu0 %v856
    %v858 = vpop.xlane.xlu0 %857
    %v859 = vadd.f32 %v185, %v186
    %860 = vadd.xlane.f32.xlu0 %v859
    %v861 = vpop.xlane.xlu0 %860
    %v862 = vadd.f32 %v187, %v188
    %863 = vadd.xlane.f32.xlu0 %v862
    %v864 = vpop.xlane.xlu0 %863
    %v865 = vadd.f32 %v189, %v190
    %866 = vadd.xlane.f32.xlu0 %v865
    %v867 = vpop.xlane.xlu0 %866
    %v868 = vadd.f32 %v191, %v192
    %869 = vadd.xlane.f32.xlu0 %v868
    %v870 = vpop.xlane.xlu0 %869
    %v871 = vadd.f32 %v193, %v194
    %872 = vadd.xlane.f32.xlu0 %v871
    %v873 = vpop.xlane.xlu0 %872
    %v874 = vadd.f32 %v195, %v196
    %875 = vadd.xlane.f32.xlu0 %v874
    %v876 = vpop.xlane.xlu0 %875
    %v877 = vadd.f32 %v197, %v198
    %878 = vadd.xlane.f32.xlu0 %v877
    %v879 = vpop.xlane.xlu0 %878
    %v880 = vadd.f32 %v199, %v200
    %881 = vadd.xlane.f32.xlu0 %v880
    %v882 = vpop.xlane.xlu0 %881
    %v883 = vadd.f32 %v201, %v202
    %884 = vadd.xlane.f32.xlu0 %v883
    %v885 = vpop.xlane.xlu0 %884
    %v886 = vadd.f32 %v203, %v204
    %887 = vadd.xlane.f32.xlu0 %v886
    %v888 = vpop.xlane.xlu0 %887
    %v889 = vadd.f32 %v205, %v206
    %890 = vadd.xlane.f32.xlu0 %v889
    %v891 = vpop.xlane.xlu0 %890
    %v892 = vadd.f32 %v207, %v208
    %893 = vadd.xlane.f32.xlu0 %v892
    %v894 = vpop.xlane.xlu0 %893
    %v895 = vadd.f32 %v209, %v210
    %896 = vadd.xlane.f32.xlu0 %v895
    %v897 = vpop.xlane.xlu0 %896
    %v898 = vadd.f32 %v211, %v212
    %899 = vadd.xlane.f32.xlu0 %v898
    %v900 = vpop.xlane.xlu0 %899
    %v901 = vadd.f32 %v213, %v214
    %902 = vadd.xlane.f32.xlu0 %v901
    %v903 = vpop.xlane.xlu0 %902
    %v904 = vadd.f32 %v215, %v216
    %905 = vadd.xlane.f32.xlu0 %v904
    %v906 = vpop.xlane.xlu0 %905
    %v907 = vadd.f32 %v217, %v218
    %908 = vadd.xlane.f32.xlu0 %v907
    %v909 = vpop.xlane.xlu0 %908
    %v910 = vadd.f32 %v219, %v220
    %911 = vadd.xlane.f32.xlu0 %v910
    %v912 = vpop.xlane.xlu0 %911
    %v913 = vadd.f32 %v221, %v222
    %914 = vadd.xlane.f32.xlu0 %v913
    %v915 = vpop.xlane.xlu0 %914
    %v916 = vadd.f32 %v223, %v224
    %917 = vadd.xlane.f32.xlu0 %v916
    %v918 = vpop.xlane.xlu0 %917
    %v919 = vadd.f32 %v225, %v226
    %920 = vadd.xlane.f32.xlu0 %v919
    %v921 = vpop.xlane.xlu0 %920
    %v922 = vadd.f32 %v227, %v228
    %923 = vadd.xlane.f32.xlu0 %v922
    %v924 = vpop.xlane.xlu0 %923
    %v925 = vadd.f32 %v229, %v230
    %926 = vadd.xlane.f32.xlu0 %v925
    %v927 = vpop.xlane.xlu0 %926
    %v928 = vadd.f32 %v231, %v232
    %929 = vadd.xlane.f32.xlu0 %v928
    %v930 = vpop.xlane.xlu0 %929
    %v931 = vadd.f32 %v233, %v234
    %932 = vadd.xlane.f32.xlu0 %v931
    %v933 = vpop.xlane.xlu0 %932
    %v934 = vadd.f32 %v235, %v236
    %935 = vadd.xlane.f32.xlu0 %v934
    %v936 = vpop.xlane.xlu0 %935
    %v937 = vadd.f32 %v237, %v238
    %938 = vadd.xlane.f32.xlu0 %v937
    %v939 = vpop.xlane.xlu0 %938
    %v940 = vadd.f32 %v239, %v240
    %941 = vadd.xlane.f32.xlu0 %v940
    %v942 = vpop.xlane.xlu0 %941
    %v943 = vadd.f32 %v241, %v242
    %944 = vadd.xlane.f32.xlu0 %v943
    %v945 = vpop.xlane.xlu0 %944
    %v946 = vadd.f32 %v243, %v244
    %947 = vadd.xlane.f32.xlu0 %v946
    %v948 = vpop.xlane.xlu0 %947
    %v949 = vadd.f32 %v245, %v246
    %950 = vadd.xlane.f32.xlu0 %v949
    %v951 = vpop.xlane.xlu0 %950
    %v952 = vadd.f32 %v247, %v248
    %953 = vadd.xlane.f32.xlu0 %v952
    %v954 = vpop.xlane.xlu0 %953
    %v955 = vadd.f32 %v249, %v250
    %956 = vadd.xlane.f32.xlu0 %v955
    %v957 = vpop.xlane.xlu0 %956
    %v958 = vadd.f32 %v251, %v252
    %959 = vadd.xlane.f32.xlu0 %v958
    %v960 = vpop.xlane.xlu0 %959
    %v961 = vadd.f32 %v253, %v254
    %962 = vadd.xlane.f32.xlu0 %v961
    %v963 = vpop.xlane.xlu0 %962
    %v964 = vadd.f32 %v255, %v256
    %965 = vadd.xlane.f32.xlu0 %v964
    %v966 = vpop.xlane.xlu0 %965
    %v967 = vadd.f32 %v257, %v258
    %968 = vadd.xlane.f32.xlu0 %v967
    %v969 = vpop.xlane.xlu0 %968
    %v970 = vadd.f32 %v259, %v260
    %971 = vadd.xlane.f32.xlu0 %v970
    %v972 = vpop.xlane.xlu0 %971
    %v973 = vadd.f32 %v261, %v262
    %974 = vadd.xlane.f32.xlu0 %v973
    %v975 = vpop.xlane.xlu0 %974
    %v976 = vadd.f32 %v263, %v264
    %977 = vadd.xlane.f32.xlu0 %v976
    %v978 = vpop.xlane.xlu0 %977
    %v979 = vadd.f32 %v265, %v266
    %980 = vadd.xlane.f32.xlu0 %v979
    %v981 = vpop.xlane.xlu0 %980
    %v982 = vadd.f32 %v267, %v268
    %983 = vadd.xlane.f32.xlu0 %v982
    %v984 = vpop.xlane.xlu0 %983
    %v985 = vadd.f32 %v269, %v270
    %986 = vadd.xlane.f32.xlu0 %v985
    %v987 = vpop.xlane.xlu0 %986
    %v988 = vadd.f32 %v271, %v272
    %989 = vadd.xlane.f32.xlu0 %v988
    %v990 = vpop.xlane.xlu0 %989
    %v991 = vadd.f32 %v273, %v274
    %992 = vadd.xlane.f32.xlu0 %v991
    %v993 = vpop.xlane.xlu0 %992
    %v994 = vadd.f32 %v275, %v276
    %995 = vadd.xlane.f32.xlu0 %v994
    %v996 = vpop.xlane.xlu0 %995
    %v997 = vadd.f32 %v277, %v278
    %998 = vadd.xlane.f32.xlu0 %v997
    %v999 = vpop.xlane.xlu0 %998
    %v1000 = vadd.f32 %v279, %v280
    %1001 = vadd.xlane.f32.xlu0 %v1000
    %v1002 = vpop.xlane.xlu0 %1001
    %v1003 = vadd.f32 %v281, %v282
    %1004 = vadd.xlane.f32.xlu0 %v1003
    %v1005 = vpop.xlane.xlu0 %1004
    %v1006 = vadd.f32 %v283, %v284
    %1007 = vadd.xlane.f32.xlu0 %v1006
    %v1008 = vpop.xlane.xlu0 %1007
    %v1009 = vadd.f32 %v285, %v286
    %1010 = vadd.xlane.f32.xlu0 %v1009
    %v1011 = vpop.xlane.xlu0 %1010
    %v1012 = vadd.f32 %v287, %v288
    %1013 = vadd.xlane.f32.xlu0 %v1012
    %v1014 = vpop.xlane.xlu0 %1013
    %v1015 = vadd.f32 %v289, %v290
    %1016 = vadd.xlane.f32.xlu0 %v1015
    %v1017 = vpop.xlane.xlu0 %1016
    %v1018 = vadd.f32 %v291, %v292
    %1019 = vadd.xlane.f32.xlu0 %v1018
    %v1020 = vpop.xlane.xlu0 %1019
    %v1021 = vadd.f32 %v293, %v294
    %1022 = vadd.xlane.f32.xlu0 %v1021
    %v1023 = vpop.xlane.xlu0 %1022
    %v1024 = vadd.f32 %v295, %v296
    %1025 = vadd.xlane.f32.xlu0 %v1024
    %v1026 = vpop.xlane.xlu0 %1025
    %v1027 = vadd.f32 %v297, %v298
    %1028 = vadd.xlane.f32.xlu0 %v1027
    %v1029 = vpop.xlane.xlu0 %1028
    %v1030 = vadd.f32 %v299, %v300
    %1031 = vadd.xlane.f32.xlu0 %v1030
    %v1032 = vpop.xlane.xlu0 %1031
    %v1033 = vadd.f32 %v301, %v302
    %1034 = vadd.xlane.f32.xlu0 %v1033
    %v1035 = vpop.xlane.xlu0 %1034
    %v1036 = vadd.f32 %v303, %v304
    %1037 = vadd.xlane.f32.xlu0 %v1036
    %v1038 = vpop.xlane.xlu0 %1037
    %v1039 = vadd.f32 %v305, %v306
    %1040 = vadd.xlane.f32.xlu0 %v1039
    %v1041 = vpop.xlane.xlu0 %1040
    %v1042 = vadd.f32 %v307, %v308
    %1043 = vadd.xlane.f32.xlu0 %v1042
    %v1044 = vpop.xlane.xlu0 %1043
    %v1045 = vadd.f32 %v309, %v310
    %1046 = vadd.xlane.f32.xlu0 %v1045
    %v1047 = vpop.xlane.xlu0 %1046
    %v1048 = vadd.f32 %v311, %v312
    %1049 = vadd.xlane.f32.xlu0 %v1048
    %v1050 = vpop.xlane.xlu0 %1049
    %v1051 = vadd.f32 %v313, %v314
    %1052 = vadd.xlane.f32.xlu0 %v1051
    %v1053 = vpop.xlane.xlu0 %1052
    %v1054 = vadd.f32 %v315, %v316
    %1055 = vadd.xlane.f32.xlu0 %v1054
    %v1056 = vpop.xlane.xlu0 %1055
    %v1057 = vadd.f32 %v317, %v318
    %1058 = vadd.xlane.f32.xlu0 %v1057
    %v1059 = vpop.xlane.xlu0 %1058
    %v1060 = vadd.f32 %v319, %v320
    %1061 = vadd.xlane.f32.xlu0 %v1060
    %v1062 = vpop.xlane.xlu0 %1061
    %v1063 = vadd.f32 %v321, %v322
    %1064 = vadd.xlane.f32.xlu0 %v1063
    %v1065 = vpop.xlane.xlu0 %1064
    %v1066 = vadd.f32 %v323, %v324
    %1067 = vadd.xlane.f32.xlu0 %v1066
    %v1068 = vpop.xlane.xlu0 %1067
    %v1069 = vadd.f32 %v325, %v326
    %1070 = vadd.xlane.f32.xlu0 %v1069
    %v1071 = vpop.xlane.xlu0 %1070
    %v1072 = vadd.f32 %v327, %v328
    %1073 = vadd.xlane.f32.xlu0 %v1072
    %v1074 = vpop.xlane.xlu0 %1073
    %v1075 = vadd.f32 %v329, %v330
    %1076 = vadd.xlane.f32.xlu0 %v1075
    %v1077 = vpop.xlane.xlu0 %1076
    %v1078 = vadd.f32 %v331, %v332
    %1079 = vadd.xlane.f32.xlu0 %v1078
    %v1080 = vpop.xlane.xlu0 %1079
    %v1081 = vadd.f32 %v333, %v334
    %1082 = vadd.xlane.f32.xlu0 %v1081
    %v1083 = vpop.xlane.xlu0 %1082
    %v1084 = vadd.f32 %v335, %v336
    %1085 = vadd.xlane.f32.xlu0 %v1084
    %v1086 = vpop.xlane.xlu0 %1085
    %v1087 = vadd.f32 %v337, %v338
    %1088 = vadd.xlane.f32.xlu0 %v1087
    %v1089 = vpop.xlane.xlu0 %1088
    %v1090 = vadd.f32 %v339, %v340
    %1091 = vadd.xlane.f32.xlu0 %v1090
    %v1092 = vpop.xlane.xlu0 %1091
    %v1093 = vadd.f32 %v341, %v342
    %1094 = vadd.xlane.f32.xlu0 %v1093
    %v1095 = vpop.xlane.xlu0 %1094
    %v1096 = vadd.f32 %v343, %v344
    %1097 = vadd.xlane.f32.xlu0 %v1096
    %v1098 = vpop.xlane.xlu0 %1097
    %v1099 = vadd.f32 %v345, %v346
    %1100 = vadd.xlane.f32.xlu0 %v1099
    %v1101 = vpop.xlane.xlu0 %1100
    %v1102 = vadd.f32 %v347, %v348
    %1103 = vadd.xlane.f32.xlu0 %v1102
    %v1104 = vpop.xlane.xlu0 %1103
    %v1105 = vadd.f32 %v349, %v350
    %1106 = vadd.xlane.f32.xlu0 %v1105
    %v1107 = vpop.xlane.xlu0 %1106
    %v1108 = vadd.f32 %v351, %v352
    %1109 = vadd.xlane.f32.xlu0 %v1108
    %v1110 = vpop.xlane.xlu0 %1109
    %v1111 = vadd.f32 %v353, %v354
    %1112 = vadd.xlane.f32.xlu0 %v1111
    %v1113 = vpop.xlane.xlu0 %1112
    %v1114 = vadd.f32 %v355, %v356
    %1115 = vadd.xlane.f32.xlu0 %v1114
    %v1116 = vpop.xlane.xlu0 %1115
    %v1117 = vadd.f32 %v357, %v358
    %1118 = vadd.xlane.f32.xlu0 %v1117
    %v1119 = vpop.xlane.xlu0 %1118
    %v1120 = vadd.f32 %v359, %v360
    %1121 = vadd.xlane.f32.xlu0 %v1120
    %v1122 = vpop.xlane.xlu0 %1121
    %v1123 = vadd.f32 %v361, %v362
    %1124 = vadd.xlane.f32.xlu0 %v1123
    %v1125 = vpop.xlane.xlu0 %1124
    %v1126 = vadd.f32 %v363, %v364
    %1127 = vadd.xlane.f32.xlu0 %v1126
    %v1128 = vpop.xlane.xlu0 %1127
    %v1129 = vadd.f32 %v365, %v366
    %1130 = vadd.xlane.f32.xlu0 %v1129
    %v1131 = vpop.xlane.xlu0 %1130
    %v1132 = vadd.f32 %v367, %v368
    %1133 = vadd.xlane.f32.xlu0 %v1132
    %v1134 = vpop.xlane.xlu0 %1133
    %v1135 = vadd.f32 %v369, %v370
    %1136 = vadd.xlane.f32.xlu0 %v1135
    %v1137 = vpop.xlane.xlu0 %1136
    %v1138 = vadd.f32 %v371, %v372
    %1139 = vadd.xlane.f32.xlu0 %v1138
    %v1140 = vpop.xlane.xlu0 %1139
    %v1141 = vadd.f32 %v373, %v374
    %1142 = vadd.xlane.f32.xlu0 %v1141
    %v1143 = vpop.xlane.xlu0 %1142
    %v1144 = vadd.f32 %v375, %v376
    %1145 = vadd.xlane.f32.xlu0 %v1144
    %v1146 = vpop.xlane.xlu0 %1145
    %v1147 = vadd.f32 %v377, %v378
    %1148 = vadd.xlane.f32.xlu0 %v1147
    %v1149 = vpop.xlane.xlu0 %1148
    %v1150 = vadd.f32 %v379, %v380
    %1151 = vadd.xlane.f32.xlu0 %v1150
    %v1152 = vpop.xlane.xlu0 %1151
    %v1153 = vadd.f32 %v381, %v382
    %1154 = vadd.xlane.f32.xlu0 %v1153
    %v1155 = vpop.xlane.xlu0 %1154
    %v1156 = vadd.f32 %v383, %v384
    %1157 = vadd.xlane.f32.xlu0 %v1156
    %v1158 = vpop.xlane.xlu0 %1157
    %v1159 = vadd.f32 %v385, %v386
    %1160 = vadd.xlane.f32.xlu0 %v1159
    %v1161 = vpop.xlane.xlu0 %1160
    %v1162 = vadd.f32 %v387, %v388
    %1163 = vadd.xlane.f32.xlu0 %v1162
    %v1164 = vpop.xlane.xlu0 %1163
    %v1165 = vadd.f32 %v389, %v390
    %1166 = vadd.xlane.f32.xlu0 %v1165
    %v1167 = vpop.xlane.xlu0 %1166
    %v1168 = vadd.f32 %v391, %v392
    %1169 = vadd.xlane.f32.xlu0 %v1168
    %v1170 = vpop.xlane.xlu0 %1169
    %v1171 = vadd.f32 %v393, %v394
    %1172 = vadd.xlane.f32.xlu0 %v1171
    %v1173 = vpop.xlane.xlu0 %1172
    %v1174 = vadd.f32 %v395, %v396
    %1175 = vadd.xlane.f32.xlu0 %v1174
    %v1176 = vpop.xlane.xlu0 %1175
    %v1177 = vadd.f32 %v397, %v398
    %1178 = vadd.xlane.f32.xlu0 %v1177
    %v1179 = vpop.xlane.xlu0 %1178
    %v1180 = vadd.f32 %v399, %v400
    %1181 = vadd.xlane.f32.xlu0 %v1180
    %v1182 = vpop.xlane.xlu0 %1181
    %v1183 = vadd.f32 %v401, %v402
    %1184 = vadd.xlane.f32.xlu0 %v1183
    %v1185 = vpop.xlane.xlu0 %1184
    %v1186 = vadd.f32 %v403, %v404
    %1187 = vadd.xlane.f32.xlu0 %v1186
    %v1188 = vpop.xlane.xlu0 %1187
    %v1189 = vadd.f32 %v405, %v406
    %1190 = vadd.xlane.f32.xlu0 %v1189
    %v1191 = vpop.xlane.xlu0 %1190
    %v1192 = vadd.f32 %v407, %v408
    %1193 = vadd.xlane.f32.xlu0 %v1192
    %v1194 = vpop.xlane.xlu0 %1193
    %v1195 = vadd.f32 %v409, %v410
    %1196 = vadd.xlane.f32.xlu0 %v1195
    %v1197 = vpop.xlane.xlu0 %1196
    %v1198 = vadd.f32 %v411, %v412
    %1199 = vadd.xlane.f32.xlu0 %v1198
    %v1200 = vpop.xlane.xlu0 %1199
    %v1201 = vadd.f32 %v413, %v414
    %1202 = vadd.xlane.f32.xlu0 %v1201
    %v1203 = vpop.xlane.xlu0 %1202
    %v1204 = vadd.f32 %v415, %v416
    %1205 = vadd.xlane.f32.xlu0 %v1204
    %v1206 = vpop.xlane.xlu0 %1205
    %v1207 = vadd.f32 %v417, %v418
    %1208 = vadd.xlane.f32.xlu0 %v1207
    %v1209 = vpop.xlane.xlu0 %1208
    %v1210 = vadd.f32 %v419, %v420
    %1211 = vadd.xlane.f32.xlu0 %v1210
    %v1212 = vpop.xlane.xlu0 %1211
    %v1213 = vadd.f32 %v421, %v422
    %1214 = vadd.xlane.f32.xlu0 %v1213
    %v1215 = vpop.xlane.xlu0 %1214
    %v1216 = vadd.f32 %v423, %v424
    %1217 = vadd.xlane.f32.xlu0 %v1216
    %v1218 = vpop.xlane.xlu0 %1217
    %v1219 = vadd.f32 %v425, %v426
    %1220 = vadd.xlane.f32.xlu0 %v1219
    %v1221 = vpop.xlane.xlu0 %1220
    %v1222 = vadd.f32 %v427, %v428
    %1223 = vadd.xlane.f32.xlu0 %v1222
    %v1224 = vpop.xlane.xlu0 %1223
    %v1225 = vadd.f32 %v429, %v430
    %1226 = vadd.xlane.f32.xlu0 %v1225
    %v1227 = vpop.xlane.xlu0 %1226
    %v1228 = vadd.f32 %v431, %v432
    %1229 = vadd.xlane.f32.xlu0 %v1228
    %v1230 = vpop.xlane.xlu0 %1229
    %v1231 = vadd.f32 %v433, %v434
    %1232 = vadd.xlane.f32.xlu0 %v1231
    %v1233 = vpop.xlane.xlu0 %1232
    %v1234 = vadd.f32 %v435, %v436
    %1235 = vadd.xlane.f32.xlu0 %v1234
    %v1236 = vpop.xlane.xlu0 %1235
    %v1237 = vadd.f32 %v437, %v438
    %1238 = vadd.xlane.f32.xlu0 %v1237
    %v1239 = vpop.xlane.xlu0 %1238
    %v1240 = vadd.f32 %v439, %v440
    %1241 = vadd.xlane.f32.xlu0 %v1240
    %v1242 = vpop.xlane.xlu0 %1241
    %v1243 = vadd.f32 %v441, %v442
    %1244 = vadd.xlane.f32.xlu0 %v1243
    %v1245 = vpop.xlane.xlu0 %1244
    %v1246 = vadd.f32 %v443, %v444
    %1247 = vadd.xlane.f32.xlu0 %v1246
    %v1248 = vpop.xlane.xlu0 %1247
    %v1249 = vadd.f32 %v445, %v446
    %1250 = vadd.xlane.f32.xlu0 %v1249
    %v1251 = vpop.xlane.xlu0 %1250
    %v1252 = vadd.f32 %v447, %v448
    %1253 = vadd.xlane.f32.xlu0 %v1252
    %v1254 = vpop.xlane.xlu0 %1253
    %v1255 = vadd.f32 %v449, %v450
    %1256 = vadd.xlane.f32.xlu0 %v1255
    %v1257 = vpop.xlane.xlu0 %1256
    %v1258 = vadd.f32 %v451, %v452
    %1259 = vadd.xlane.f32.xlu0 %v1258
    %v1260 = vpop.xlane.xlu0 %1259
    %v1261 = vadd.f32 %v453, %v454
    %1262 = vadd.xlane.f32.xlu0 %v1261
    %v1263 = vpop.xlane.xlu0 %1262
    %v1264 = vadd.f32 %v455, %v456
    %1265 = vadd.xlane.f32.xlu0 %v1264
    %v1266 = vpop.xlane.xlu0 %1265
    %v1267 = vadd.f32 %v457, %v458
    %1268 = vadd.xlane.f32.xlu0 %v1267
    %v1269 = vpop.xlane.xlu0 %1268
    %v1270 = vadd.f32 %v459, %v460
    %1271 = vadd.xlane.f32.xlu0 %v1270
    %v1272 = vpop.xlane.xlu0 %1271
    %v1273 = vadd.f32 %v461, %v462
    %1274 = vadd.xlane.f32.xlu0 %v1273
    %v1275 = vpop.xlane.xlu0 %1274
    %v1276 = vadd.f32 %v463, %v464
    %1277 = vadd.xlane.f32.xlu0 %v1276
    %v1278 = vpop.xlane.xlu0 %1277
    %v1279 = vadd.f32 %v465, %v466
    %1280 = vadd.xlane.f32.xlu0 %v1279
    %v1281 = vpop.xlane.xlu0 %1280
    %v1282 = vadd.f32 %v467, %v468
    %1283 = vadd.xlane.f32.xlu0 %v1282
    %v1284 = vpop.xlane.xlu0 %1283
    %v1285 = vadd.f32 %v469, %v470
    %1286 = vadd.xlane.f32.xlu0 %v1285
    %v1287 = vpop.xlane.xlu0 %1286
    %v1288 = vadd.f32 %v471, %v472
    %1289 = vadd.xlane.f32.xlu0 %v1288
    %v1290 = vpop.xlane.xlu0 %1289
    %v1291 = vadd.f32 %v473, %v474
    %1292 = vadd.xlane.f32.xlu0 %v1291
    %v1293 = vpop.xlane.xlu0 %1292
    %v1294 = vadd.f32 %v475, %v476
    %1295 = vadd.xlane.f32.xlu0 %v1294
    %v1296 = vpop.xlane.xlu0 %1295
    %v1297 = vadd.f32 %v477, %v478
    %1298 = vadd.xlane.f32.xlu0 %v1297
    %v1299 = vpop.xlane.xlu0 %1298
    %v1300 = vadd.f32 %v479, %v480
    %1301 = vadd.xlane.f32.xlu0 %v1300
    %v1302 = vpop.xlane.xlu0 %1301
    %v1303 = vadd.f32 %v481, %v482
    %1304 = vadd.xlane.f32.xlu0 %v1303
    %v1305 = vpop.xlane.xlu0 %1304
    %v1306 = vadd.f32 %v483, %v484
    %1307 = vadd.xlane.f32.xlu0 %v1306
    %v1308 = vpop.xlane.xlu0 %1307
    %v1309 = vadd.f32 %v485, %v486
    %1310 = vadd.xlane.f32.xlu0 %v1309
    %v1311 = vpop.xlane.xlu0 %1310
    %v1312 = vadd.f32 %v487, %v488
    %1313 = vadd.xlane.f32.xlu0 %v1312
    %v1314 = vpop.xlane.xlu0 %1313
    %v1315 = vadd.f32 %v489, %v490
    %1316 = vadd.xlane.f32.xlu0 %v1315
    %v1317 = vpop.xlane.xlu0 %1316
    %v1318 = vadd.f32 %v491, %v492
    %1319 = vadd.xlane.f32.xlu0 %v1318
    %v1320 = vpop.xlane.xlu0 %1319
    %v1321 = vadd.f32 %v493, %v494
    %1322 = vadd.xlane.f32.xlu0 %v1321
    %v1323 = vpop.xlane.xlu0 %1322
    %v1324 = vadd.f32 %v495, %v496
    %1325 = vadd.xlane.f32.xlu0 %v1324
    %v1326 = vpop.xlane.xlu0 %1325
    %v1327 = vadd.f32 %v497, %v498
    %1328 = vadd.xlane.f32.xlu0 %v1327
    %v1329 = vpop.xlane.xlu0 %1328
    %v1330 = vadd.f32 %v499, %v500
    %1331 = vadd.xlane.f32.xlu0 %v1330
    %v1332 = vpop.xlane.xlu0 %1331
    %v1333 = vadd.f32 %v501, %v502
    %1334 = vadd.xlane.f32.xlu0 %v1333
    %v1335 = vpop.xlane.xlu0 %1334
    %v1336 = vadd.f32 %v503, %v504
    %1337 = vadd.xlane.f32.xlu0 %v1336
    %v1338 = vpop.xlane.xlu0 %1337
    %v1339 = vadd.f32 %v505, %v506
    %1340 = vadd.xlane.f32.xlu0 %v1339
    %v1341 = vpop.xlane.xlu0 %1340
    %v1342 = vadd.f32 %v507, %v508
    %1343 = vadd.xlane.f32.xlu0 %v1342
    %v1344 = vpop.xlane.xlu0 %1343
    %v1345 = vadd.f32 %v509, %v510
    %1346 = vadd.xlane.f32.xlu0 %v1345
    %v1347 = vpop.xlane.xlu0 %1346
    %v1348 = vadd.f32 %v511, %v512
    %1349 = vadd.xlane.f32.xlu0 %v1348
    %v1350 = vpop.xlane.xlu0 %1349
    %v1351 = vadd.f32 %v513, %v514
    %1352 = vadd.xlane.f32.xlu0 %v1351
    %v1353 = vpop.xlane.xlu0 %1352
    %v1354 = vadd.f32 %v515, %v516
    %1355 = vadd.xlane.f32.xlu0 %v1354
    %v1356 = vpop.xlane.xlu0 %1355
    %v1357 = vadd.f32 %v517, %v518
    %1358 = vadd.xlane.f32.xlu0 %v1357
    %v1359 = vpop.xlane.xlu0 %1358
    %v1360 = vadd.f32 %v519, %v520
    %1361 = vadd.xlane.f32.xlu0 %v1360
    %v1362 = vpop.xlane.xlu0 %1361
    %v1363 = vadd.f32 %v521, %v522
    %1364 = vadd.xlane.f32.xlu0 %v1363
    %v1365 = vpop.xlane.xlu0 %1364
    %v1366 = vadd.f32 %v523, %v524
    %1367 = vadd.xlane.f32.xlu0 %v1366
    %v1368 = vpop.xlane.xlu0 %1367
    %v1369 = vadd.f32 %v525, %v526
    %1370 = vadd.xlane.f32.xlu0 %v1369
    %v1371 = vpop.xlane.xlu0 %1370
    %v1372 = vadd.f32 %v527, %v528
    %1373 = vadd.xlane.f32.xlu0 %v1372
    %v1374 = vpop.xlane.xlu0 %1373
    %v1375 = vadd.f32 %v529, %v530
    %1376 = vadd.xlane.f32.xlu0 %v1375
    %v1377 = vpop.xlane.xlu0 %1376
    %v1378 = vadd.f32 %v531, %v532
    %1379 = vadd.xlane.f32.xlu0 %v1378
    %v1380 = vpop.xlane.xlu0 %1379
    %v1381 = vadd.f32 %v533, %v534
    %1382 = vadd.xlane.f32.xlu0 %v1381
    %v1383 = vpop.xlane.xlu0 %1382
    %v1384 = vadd.f32 %v535, %v536
    %1385 = vadd.xlane.f32.xlu0 %v1384
    %v1386 = vpop.xlane.xlu0 %1385
    %v1387 = vadd.f32 %v537, %v538
    %1388 = vadd.xlane.f32.xlu0 %v1387
    %v1389 = vpop.xlane.xlu0 %1388
    %v1390 = vadd.f32 %v539, %v540
    %1391 = vadd.xlane.f32.xlu0 %v1390
    %v1392 = vpop.xlane.xlu0 %1391
    %v1393 = vadd.f32 %v541, %v542
    %1394 = vadd.xlane.f32.xlu0 %v1393
    %v1395 = vpop.xlane.xlu0 %1394
    %v1396 = vadd.f32 %v543, %v544
    %1397 = vadd.xlane.f32.xlu0 %v1396
    %v1398 = vpop.xlane.xlu0 %1397
    %v1399 = vadd.f32 %v545, %v546
    %1400 = vadd.xlane.f32.xlu0 %v1399
    %v1401 = vpop.xlane.xlu0 %1400
    %v1402 = vadd.f32 %v547, %v548
    %1403 = vadd.xlane.f32.xlu0 %v1402
    %v1404 = vpop.xlane.xlu0 %1403
    %v1405 = vadd.f32 %v549, %v550
    %1406 = vadd.xlane.f32.xlu0 %v1405
    %v1407 = vpop.xlane.xlu0 %1406
    %v1408 = vadd.f32 %v551, %v552
    %1409 = vadd.xlane.f32.xlu0 %v1408
    %v1410 = vpop.xlane.xlu0 %1409
    %v1411 = vadd.f32 %v553, %v554
    %1412 = vadd.xlane.f32.xlu0 %v1411
    %v1413 = vpop.xlane.xlu0 %1412
    %v1414 = vadd.f32 %v555, %v556
    %1415 = vadd.xlane.f32.xlu0 %v1414
    %v1416 = vpop.xlane.xlu0 %1415
    %v1417 = vadd.f32 %v557, %v558
    %1418 = vadd.xlane.f32.xlu0 %v1417
    %v1419 = vpop.xlane.xlu0 %1418
    %v1420 = vadd.f32 %v559, %v560
    %1421 = vadd.xlane.f32.xlu0 %v1420
    %v1422 = vpop.xlane.xlu0 %1421
    %v1423 = vadd.f32 %v561, %v562
    %1424 = vadd.xlane.f32.xlu0 %v1423
    %v1425 = vpop.xlane.xlu0 %1424
    %v1426 = vadd.f32 %v563, %v564
    %1427 = vadd.xlane.f32.xlu0 %v1426
    %v1428 = vpop.xlane.xlu0 %1427
    %v1429 = vadd.f32 %v565, %v566
    %1430 = vadd.xlane.f32.xlu0 %v1429
    %v1431 = vpop.xlane.xlu0 %1430
    %v1432 = vadd.f32 %v567, %v568
    %1433 = vadd.xlane.f32.xlu0 %v1432
    %v1434 = vpop.xlane.xlu0 %1433
    %v1435 = vadd.f32 %v569, %v570
    %1436 = vadd.xlane.f32.xlu0 %v1435
    %v1437 = vpop.xlane.xlu0 %1436
    %v1438 = vadd.f32 %v571, %v572
    %1439 = vadd.xlane.f32.xlu0 %v1438
    %v1440 = vpop.xlane.xlu0 %1439
    %v1441 = vadd.f32 %v573, %v574
    %1442 = vadd.xlane.f32.xlu0 %v1441
    %v1443 = vpop.xlane.xlu0 %1442
    %v1444 = vadd.f32 %v575, %v576
    %1445 = vadd.xlane.f32.xlu0 %v1444
    %v1446 = vpop.xlane.xlu0 %1445
    %v1447 = vadd.f32 %v577, %v578
    %1448 = vadd.xlane.f32.xlu0 %v1447
    %v1449 = vpop.xlane.xlu0 %1448
    %v1450 = vadd.f32 %v579, %v580
    %1451 = vadd.xlane.f32.xlu0 %v1450
    %v1452 = vpop.xlane.xlu0 %1451
    %v1453 = vadd.f32 %v581, %v582
    %1454 = vadd.xlane.f32.xlu0 %v1453
    %v1455 = vpop.xlane.xlu0 %1454
    %v1456 = vadd.f32 %v583, %v584
    %1457 = vadd.xlane.f32.xlu0 %v1456
    %v1458 = vpop.xlane.xlu0 %1457
    %v1459 = vadd.f32 %v585, %v586
    %1460 = vadd.xlane.f32.xlu0 %v1459
    %v1461 = vpop.xlane.xlu0 %1460
    %v1462 = vadd.f32 %v587, %v588
    %1463 = vadd.xlane.f32.xlu0 %v1462
    %v1464 = vpop.xlane.xlu0 %1463
    %v1465 = vadd.f32 %v589, %v590
    %1466 = vadd.xlane.f32.xlu0 %v1465
    %v1467 = vpop.xlane.xlu0 %1466
    %v1468 = vadd.f32 %v591, %v592
    %1469 = vadd.xlane.f32.xlu0 %v1468
    %v1470 = vpop.xlane.xlu0 %1469
    %v1471 = vadd.f32 %v593, %v594
    %1472 = vadd.xlane.f32.xlu0 %v1471
    %v1473 = vpop.xlane.xlu0 %1472
    %v1474 = vadd.f32 %v595, %v596
    %1475 = vadd.xlane.f32.xlu0 %v1474
    %v1476 = vpop.xlane.xlu0 %1475
    %v1477 = vadd.f32 %v597, %v598
    %1478 = vadd.xlane.f32.xlu0 %v1477
    %v1479 = vpop.xlane.xlu0 %1478
    %v1480 = vadd.f32 %v599, %v600
    %1481 = vadd.xlane.f32.xlu0 %v1480
    %v1482 = vpop.xlane.xlu0 %1481
    %v1483 = vadd.f32 %v601, %v602
    %1484 = vadd.xlane.f32.xlu0 %v1483
    %v1485 = vpop.xlane.xlu0 %1484
    %v1486 = vadd.f32 %v603, %v604
    %1487 = vadd.xlane.f32.xlu0 %v1486
    %v1488 = vpop.xlane.xlu0 %1487
    %v1489 = vadd.f32 %v605, %v606
    %1490 = vadd.xlane.f32.xlu0 %v1489
    %v1491 = vpop.xlane.xlu0 %1490
    %v1492 = vadd.f32 %v607, %v608
    %1493 = vadd.xlane.f32.xlu0 %v1492
    %v1494 = vpop.xlane.xlu0 %1493
    %v1495 = vadd.f32 %v609, %v610
    %1496 = vadd.xlane.f32.xlu0 %v1495
    %v1497 = vpop.xlane.xlu0 %1496
    %v1498 = vadd.f32 %v611, %v612
    %1499 = vadd.xlane.f32.xlu0 %v1498
    %v1500 = vpop.xlane.xlu0 %1499
    %v1501 = vadd.f32 %v613, %v614
    %1502 = vadd.xlane.f32.xlu0 %v1501
    %v1503 = vpop.xlane.xlu0 %1502
    %v1504 = vadd.f32 %v615, %v616
    %1505 = vadd.xlane.f32.xlu0 %v1504
    %v1506 = vpop.xlane.xlu0 %1505
    %v1507 = vadd.f32 %v617, %v618
    %1508 = vadd.xlane.f32.xlu0 %v1507
    %v1509 = vpop.xlane.xlu0 %1508
    %v1510 = vadd.f32 %v619, %v620
    %1511 = vadd.xlane.f32.xlu0 %v1510
    %v1512 = vpop.xlane.xlu0 %1511
    %v1513 = vadd.f32 %v621, %v622
    %1514 = vadd.xlane.f32.xlu0 %v1513
    %v1515 = vpop.xlane.xlu0 %1514
    %v1516 = vadd.f32 %v623, %v624
    %1517 = vadd.xlane.f32.xlu0 %v1516
    %v1518 = vpop.xlane.xlu0 %1517
    %v1519 = vadd.f32 %v625, %v626
    %1520 = vadd.xlane.f32.xlu0 %v1519
    %v1521 = vpop.xlane.xlu0 %1520
    %v1522 = vadd.f32 %v627, %v628
    %1523 = vadd.xlane.f32.xlu0 %v1522
    %v1524 = vpop.xlane.xlu0 %1523
    %v1525 = vadd.f32 %v629, %v630
    %1526 = vadd.xlane.f32.xlu0 %v1525
    %v1527 = vpop.xlane.xlu0 %1526
    %v1528 = vadd.f32 %v631, %v632
    %1529 = vadd.xlane.f32.xlu0 %v1528
    %v1530 = vpop.xlane.xlu0 %1529
    %v1531 = vadd.f32 %v633, %v634
    %1532 = vadd.xlane.f32.xlu0 %v1531
    %v1533 = vpop.xlane.xlu0 %1532
    %v1534 = vadd.f32 %v635, %v636
    %1535 = vadd.xlane.f32.xlu0 %v1534
    %v1536 = vpop.xlane.xlu0 %1535
    %v1537 = vadd.f32 %v637, %v638
    %1538 = vadd.xlane.f32.xlu0 %v1537
    %v1539 = vpop.xlane.xlu0 %1538
    %v1540 = vadd.f32 %v639, %v640
    %1541 = vadd.xlane.f32.xlu0 %v1540
    %v1542 = vpop.xlane.xlu0 %1541
    %v1543 = vadd.f32 %v641, %v642
    %1544 = vadd.xlane.f32.xlu0 %v1543
    %v1545 = vpop.xlane.xlu0 %1544
    %v1546 = vadd.f32 %v643, %v644
    %1547 = vadd.xlane.f32.xlu0 %v1546
    %v1548 = vpop.xlane.xlu0 %1547
    %v1549 = vadd.f32 %v645, %v646
    %1550 = vadd.xlane.f32.xlu0 %v1549
    %v1551 = vpop.xlane.xlu0 %1550
    %v1552 = vadd.f32 %v647, %v648
    %1553 = vadd.xlane.f32.xlu0 %v1552
    %v1554 = vpop.xlane.xlu0 %1553
    %v1555 = vadd.f32 %v649, %v650
    %1556 = vadd.xlane.f32.xlu0 %v1555
    %v1557 = vpop.xlane.xlu0 %1556
    %v1558 = vadd.f32 %v651, %v652
    %1559 = vadd.xlane.f32.xlu0 %v1558
    %v1560 = vpop.xlane.xlu0 %1559
    %v1561 = vadd.f32 %v653, %v654
    %1562 = vadd.xlane.f32.xlu0 %v1561
    %v1563 = vpop.xlane.xlu0 %1562
    %v1564 = vadd.f32 %v655, %v656
    %1565 = vadd.xlane.f32.xlu0 %v1564
    %v1566 = vpop.xlane.xlu0 %1565
    %v1567 = vadd.f32 %v657, %v658
    %1568 = vadd.xlane.f32.xlu0 %v1567
    %v1569 = vpop.xlane.xlu0 %1568
    %v1570 = vadd.f32 %v659, %v660
    %1571 = vadd.xlane.f32.xlu0 %v1570
    %v1572 = vpop.xlane.xlu0 %1571
    %v1573 = vadd.f32 %v661, %v662
    %1574 = vadd.xlane.f32.xlu0 %v1573
    %v1575 = vpop.xlane.xlu0 %1574
    %v1576 = vadd.f32 %v663, %v664
    %1577 = vadd.xlane.f32.xlu0 %v1576
    %v1578 = vpop.xlane.xlu0 %1577
    %v1579 = vadd.f32 %v665, %v666
    %1580 = vadd.xlane.f32.xlu0 %v1579
    %v1581 = vpop.xlane.xlu0 %1580
    %v1582 = vadd.f32 %v667, %v668
    %1583 = vadd.xlane.f32.xlu0 %v1582
    %v1584 = vpop.xlane.xlu0 %1583
    %v1585 = vadd.f32 %v669, %v670
    %1586 = vadd.xlane.f32.xlu0 %v1585
    %v1587 = vpop.xlane.xlu0 %1586
    %v1588 = vadd.f32 %v671, %v672
    %1589 = vadd.xlane.f32.xlu0 %v1588
    %v1590 = vpop.xlane.xlu0 %1589
    %v1591 = vadd.f32 %v673, %v674
    %1592 = vadd.xlane.f32.xlu0 %v1591
    %v1593 = vpop.xlane.xlu0 %1592
    %v1594 = vadd.f32 %v675, %v676
    %1595 = vadd.xlane.f32.xlu0 %v1594
    %v1596 = vpop.xlane.xlu0 %1595
    %v1597 = vadd.f32 %v677, %v678
    %1598 = vadd.xlane.f32.xlu0 %v1597
    %v1599 = vpop.xlane.xlu0 %1598
    %v1600 = vadd.f32 %v679, %v680
    %1601 = vadd.xlane.f32.xlu0 %v1600
    %v1602 = vpop.xlane.xlu0 %1601
    %v1603 = vadd.f32 %v681, %v682
    %1604 = vadd.xlane.f32.xlu0 %v1603
    %v1605 = vpop.xlane.xlu0 %1604
    %v1606 = vadd.f32 %v683, %v684
    %1607 = vadd.xlane.f32.xlu0 %v1606
    %v1608 = vpop.xlane.xlu0 %1607
    %v1609 = vadd.f32 %v685, %v686
    %1610 = vadd.xlane.f32.xlu0 %v1609
    %v1611 = vpop.xlane.xlu0 %1610
    %v1612 = vadd.f32 %v687, %v688
    %1613 = vadd.xlane.f32.xlu0 %v1612
    %v1614 = vpop.xlane.xlu0 %1613
    %v1615 = vadd.f32 %v689, %v690
    %1616 = vadd.xlane.f32.xlu0 %v1615
    %v1617 = vpop.xlane.xlu0 %1616
    %v1618 = vadd.f32 %v691, %v692
    %1619 = vadd.xlane.f32.xlu0 %v1618
    %v1620 = vpop.xlane.xlu0 %1619
    %v1621 = vadd.f32 %v693, %v694
    %1622 = vadd.xlane.f32.xlu0 %v1621
    %v1623 = vpop.xlane.xlu0 %1622
    %v1624 = vadd.f32 %v695, %v696
    %1625 = vadd.xlane.f32.xlu0 %v1624
    %v1626 = vpop.xlane.xlu0 %1625
    %v1627 = vadd.f32 %v697, %v698
    %1628 = vadd.xlane.f32.xlu0 %v1627
    %v1629 = vpop.xlane.xlu0 %1628
    %v1630 = vadd.f32 %v699, %v700
    %1631 = vadd.xlane.f32.xlu0 %v1630
    %v1632 = vpop.xlane.xlu0 %1631
    %v1633 = vadd.f32 %v701, %v702
    %1634 = vadd.xlane.f32.xlu0 %v1633
    %v1635 = vpop.xlane.xlu0 %1634
    %v1636 = vadd.f32 %v703, %v704
    %1637 = vadd.xlane.f32.xlu0 %v1636
    %v1638 = vpop.xlane.xlu0 %1637
    %v1639 = vadd.f32 %v705, %v706
    %1640 = vadd.xlane.f32.xlu0 %v1639
    %v1641 = vpop.xlane.xlu0 %1640
    %v1642 = vadd.f32 %v707, %v708
    %1643 = vadd.xlane.f32.xlu0 %v1642
    %v1644 = vpop.xlane.xlu0 %1643
    %v1645 = vadd.f32 %v709, %v710
    %1646 = vadd.xlane.f32.xlu0 %v1645
    %v1647 = vpop.xlane.xlu0 %1646
    %v1648 = vadd.f32 %v711, %v712
    %1649 = vadd.xlane.f32.xlu0 %v1648
    %v1650 = vpop.xlane.xlu0 %1649
    %v1651 = vadd.f32 %v713, %v714
    %1652 = vadd.xlane.f32.xlu0 %v1651
    %v1653 = vpop.xlane.xlu0 %1652
    %v1654 = vadd.f32 %v715, %v716
    %1655 = vadd.xlane.f32.xlu0 %v1654
    %v1656 = vpop.xlane.xlu0 %1655
    %v1657 = vadd.f32 %v717, %v718
    %1658 = vadd.xlane.f32.xlu0 %v1657
    %v1659 = vpop.xlane.xlu0 %1658
    %v1660 = vadd.f32 %v719, %v720
    %1661 = vadd.xlane.f32.xlu0 %v1660
    %v1662 = vpop.xlane.xlu0 %1661
    %v1663 = vadd.f32 %v721, %v722
    %1664 = vadd.xlane.f32.xlu0 %v1663
    %v1665 = vpop.xlane.xlu0 %1664
    %v1666 = vadd.f32 %v723, %v724
    %1667 = vadd.xlane.f32.xlu0 %v1666
    %v1668 = vpop.xlane.xlu0 %1667
    %v1669 = vadd.f32 %v725, %v726
    %1670 = vadd.xlane.f32.xlu0 %v1669
    %v1671 = vpop.xlane.xlu0 %1670
    %v1672 = vadd.f32 %v727, %v728
    %1673 = vadd.xlane.f32.xlu0 %v1672
    %v1674 = vpop.xlane.xlu0 %1673
    %v1675 = vadd.f32 %v729, %v730
    %1676 = vadd.xlane.f32.xlu0 %v1675
    %v1677 = vpop.xlane.xlu0 %1676
    %v1678 = vadd.f32 %v731, %v732
    %1679 = vadd.xlane.f32.xlu0 %v1678
    %v1680 = vpop.xlane.xlu0 %1679
    %v1681 = vadd.f32 %v733, %v734
    %1682 = vadd.xlane.f32.xlu0 %v1681
    %v1683 = vpop.xlane.xlu0 %1682
    %v1684 = vadd.f32 %v735, %v736
    %1685 = vadd.xlane.f32.xlu0 %v1684
    %v1686 = vpop.xlane.xlu0 %1685
    %v1687 = vadd.f32 %v737, %v738
    %1688 = vadd.xlane.f32.xlu0 %v1687
    %v1689 = vpop.xlane.xlu0 %1688
    %v1690 = vadd.f32 %v739, %v740
    %1691 = vadd.xlane.f32.xlu0 %v1690
    %v1692 = vpop.xlane.xlu0 %1691
    %v1693 = vadd.f32 %v741, %v742
    %1694 = vadd.xlane.f32.xlu0 %v1693
    %v1695 = vpop.xlane.xlu0 %1694
    %v1696 = vadd.f32 %v743, %v744
    %1697 = vadd.xlane.f32.xlu0 %v1696
    %v1698 = vpop.xlane.xlu0 %1697
    %v1699 = vadd.f32 %v745, %v746
    %1700 = vadd.xlane.f32.xlu0 %v1699
    %v1701 = vpop.xlane.xlu0 %1700
    %v1702 = vadd.f32 %v747, %v748
    %1703 = vadd.xlane.f32.xlu0 %v1702
    %v1704 = vpop.xlane.xlu0 %1703
    %v1705 = vadd.f32 %v749, %v750
    %1706 = vadd.xlane.f32.xlu0 %v1705
    %v1707 = vpop.xlane.xlu0 %1706
    %v1708 = vadd.f32 %v751, %v752
    %1709 = vadd.xlane.f32.xlu0 %v1708
    %v1710 = vpop.xlane.xlu0 %1709
    %v1711 = vadd.f32 %v753, %v754
    %1712 = vadd.xlane.f32.xlu0 %v1711
    %v1713 = vpop.xlane.xlu0 %1712
    %v1714 = vadd.f32 %v755, %v756
    %1715 = vadd.xlane.f32.xlu0 %v1714
    %v1716 = vpop.xlane.xlu0 %1715
    %v1717 = vrcp.pop 256.0
    %v1718 = vmul.f32 %v759, %v1717
    %v1719 = vmul.f32 %v762, %v1717
    %v1720 = vmul.f32 %v765, %v1717
    %v1721 = vmul.f32 %v768, %v1717
    %v1722 = vmul.f32 %v771, %v1717
    %v1723 = vmul.f32 %v774, %v1717
    %v1724 = vmul.f32 %v777, %v1717
    %v1725 = vmul.f32 %v780, %v1717
    %v1726 = vmul.f32 %v783, %v1717
    %v1727 = vmul.f32 %v786, %v1717
    %v1728 = vmul.f32 %v789, %v1717
    %v1729 = vmul.f32 %v792, %v1717
    %v1730 = vmul.f32 %v795, %v1717
    %v1731 = vmul.f32 %v798, %v1717
    %v1732 = vmul.f32 %v801, %v1717
    %v1733 = vmul.f32 %v804, %v1717
    %v1734 = vmul.f32 %v807, %v1717
    %v1735 = vmul.f32 %v810, %v1717
    %v1736 = vmul.f32 %v813, %v1717
    %v1737 = vmul.f32 %v816, %v1717
    %v1738 = vmul.f32 %v819, %v1717
    %v1739 = vmul.f32 %v822, %v1717
    %v1740 = vmul.f32 %v825, %v1717
    %v1741 = vmul.f32 %v828, %v1717
    %v1742 = vmul.f32 %v831, %v1717
    %v1743 = vmul.f32 %v834, %v1717
    %v1744 = vmul.f32 %v837, %v1717
    %v1745 = vmul.f32 %v840, %v1717
    %v1746 = vmul.f32 %v843, %v1717
    %v1747 = vmul.f32 %v846, %v1717
    %v1748 = vmul.f32 %v849, %v1717
    %v1749 = vmul.f32 %v852, %v1717
    %v1750 = vmul.f32 %v855, %v1717
    %v1751 = vmul.f32 %v858, %v1717
    %v1752 = vmul.f32 %v861, %v1717
    %v1753 = vmul.f32 %v864, %v1717
    %v1754 = vmul.f32 %v867, %v1717
    %v1755 = vmul.f32 %v870, %v1717
    %v1756 = vmul.f32 %v873, %v1717
    %v1757 = vmul.f32 %v876, %v1717
    %v1758 = vmul.f32 %v879, %v1717
    %v1759 = vmul.f32 %v882, %v1717
    %v1760 = vmul.f32 %v885, %v1717
    %v1761 = vmul.f32 %v888, %v1717
    %v1762 = vmul.f32 %v891, %v1717
    %v1763 = vmul.f32 %v894, %v1717
    %v1764 = vmul.f32 %v897, %v1717
    %v1765 = vmul.f32 %v900, %v1717
    %v1766 = vmul.f32 %v903, %v1717
    %v1767 = vmul.f32 %v906, %v1717
    %v1768 = vmul.f32 %v909, %v1717
    %v1769 = vmul.f32 %v912, %v1717
    %v1770 = vmul.f32 %v915, %v1717
    %v1771 = vmul.f32 %v918, %v1717
    %v1772 = vmul.f32 %v921, %v1717
    %v1773 = vmul.f32 %v924, %v1717
    %v1774 = vmul.f32 %v927, %v1717
    %v1775 = vmul.f32 %v930, %v1717
    %v1776 = vmul.f32 %v933, %v1717
    %v1777 = vmul.f32 %v936, %v1717
    %v1778 = vmul.f32 %v939, %v1717
    %v1779 = vmul.f32 %v942, %v1717
    %v1780 = vmul.f32 %v945, %v1717
    %v1781 = vmul.f32 %v948, %v1717
    %v1782 = vmul.f32 %v951, %v1717
    %v1783 = vmul.f32 %v954, %v1717
    %v1784 = vmul.f32 %v957, %v1717
    %v1785 = vmul.f32 %v960, %v1717
    %v1786 = vmul.f32 %v963, %v1717
    %v1787 = vmul.f32 %v966, %v1717
    %v1788 = vmul.f32 %v969, %v1717
    %v1789 = vmul.f32 %v972, %v1717
    %v1790 = vmul.f32 %v975, %v1717
    %v1791 = vmul.f32 %v978, %v1717
    %v1792 = vmul.f32 %v981, %v1717
    %v1793 = vmul.f32 %v984, %v1717
    %v1794 = vmul.f32 %v987, %v1717
    %v1795 = vmul.f32 %v990, %v1717
    %v1796 = vmul.f32 %v993, %v1717
    %v1797 = vmul.f32 %v996, %v1717
    %v1798 = vmul.f32 %v999, %v1717
    %v1799 = vmul.f32 %v1002, %v1717
    %v1800 = vmul.f32 %v1005, %v1717
    %v1801 = vmul.f32 %v1008, %v1717
    %v1802 = vmul.f32 %v1011, %v1717
    %v1803 = vmul.f32 %v1014, %v1717
    %v1804 = vmul.f32 %v1017, %v1717
    %v1805 = vmul.f32 %v1020, %v1717
    %v1806 = vmul.f32 %v1023, %v1717
    %v1807 = vmul.f32 %v1026, %v1717
    %v1808 = vmul.f32 %v1029, %v1717
    %v1809 = vmul.f32 %v1032, %v1717
    %v1810 = vmul.f32 %v1035, %v1717
    %v1811 = vmul.f32 %v1038, %v1717
    %v1812 = vmul.f32 %v1041, %v1717
    %v1813 = vmul.f32 %v1044, %v1717
    %v1814 = vmul.f32 %v1047, %v1717
    %v1815 = vmul.f32 %v1050, %v1717
    %v1816 = vmul.f32 %v1053, %v1717
    %v1817 = vmul.f32 %v1056, %v1717
    %v1818 = vmul.f32 %v1059, %v1717
    %v1819 = vmul.f32 %v1062, %v1717
    %v1820 = vmul.f32 %v1065, %v1717
    %v1821 = vmul.f32 %v1068, %v1717
    %v1822 = vmul.f32 %v1071, %v1717
    %v1823 = vmul.f32 %v1074, %v1717
    %v1824 = vmul.f32 %v1077, %v1717
    %v1825 = vmul.f32 %v1080, %v1717
    %v1826 = vmul.f32 %v1083, %v1717
    %v1827 = vmul.f32 %v1086, %v1717
    %v1828 = vmul.f32 %v1089, %v1717
    %v1829 = vmul.f32 %v1092, %v1717
    %v1830 = vmul.f32 %v1095, %v1717
    %v1831 = vmul.f32 %v1098, %v1717
    %v1832 = vmul.f32 %v1101, %v1717
    %v1833 = vmul.f32 %v1104, %v1717
    %v1834 = vmul.f32 %v1107, %v1717
    %v1835 = vmul.f32 %v1110, %v1717
    %v1836 = vmul.f32 %v1113, %v1717
    %v1837 = vmul.f32 %v1116, %v1717
    %v1838 = vmul.f32 %v1119, %v1717
    %v1839 = vmul.f32 %v1122, %v1717
    %v1840 = vmul.f32 %v1125, %v1717
    %v1841 = vmul.f32 %v1128, %v1717
    %v1842 = vmul.f32 %v1131, %v1717
    %v1843 = vmul.f32 %v1134, %v1717
    %v1844 = vmul.f32 %v1137, %v1717
    %v1845 = vmul.f32 %v1140, %v1717
    %v1846 = vmul.f32 %v1143, %v1717
    %v1847 = vmul.f32 %v1146, %v1717
    %v1848 = vmul.f32 %v1149, %v1717
    %v1849 = vmul.f32 %v1152, %v1717
    %v1850 = vmul.f32 %v1155, %v1717
    %v1851 = vmul.f32 %v1158, %v1717
    %v1852 = vmul.f32 %v1161, %v1717
    %v1853 = vmul.f32 %v1164, %v1717
    %v1854 = vmul.f32 %v1167, %v1717
    %v1855 = vmul.f32 %v1170, %v1717
    %v1856 = vmul.f32 %v1173, %v1717
    %v1857 = vmul.f32 %v1176, %v1717
    %v1858 = vmul.f32 %v1179, %v1717
    %v1859 = vmul.f32 %v1182, %v1717
    %v1860 = vmul.f32 %v1185, %v1717
    %v1861 = vmul.f32 %v1188, %v1717
    %v1862 = vmul.f32 %v1191, %v1717
    %v1863 = vmul.f32 %v1194, %v1717
    %v1864 = vmul.f32 %v1197, %v1717
    %v1865 = vmul.f32 %v1200, %v1717
    %v1866 = vmul.f32 %v1203, %v1717
    %v1867 = vmul.f32 %v1206, %v1717
    %v1868 = vmul.f32 %v1209, %v1717
    %v1869 = vmul.f32 %v1212, %v1717
    %v1870 = vmul.f32 %v1215, %v1717
    %v1871 = vmul.f32 %v1218, %v1717
    %v1872 = vmul.f32 %v1221, %v1717
    %v1873 = vmul.f32 %v1224, %v1717
    %v1874 = vmul.f32 %v1227, %v1717
    %v1875 = vmul.f32 %v1230, %v1717
    %v1876 = vmul.f32 %v1233, %v1717
    %v1877 = vmul.f32 %v1236, %v1717
    %v1878 = vmul.f32 %v1239, %v1717
    %v1879 = vmul.f32 %v1242, %v1717
    %v1880 = vmul.f32 %v1245, %v1717
    %v1881 = vmul.f32 %v1248, %v1717
    %v1882 = vmul.f32 %v1251, %v1717
    %v1883 = vmul.f32 %v1254, %v1717
    %v1884 = vmul.f32 %v1257, %v1717
    %v1885 = vmul.f32 %v1260, %v1717
    %v1886 = vmul.f32 %v1263, %v1717
    %v1887 = vmul.f32 %v1266, %v1717
    %v1888 = vmul.f32 %v1269, %v1717
    %v1889 = vmul.f32 %v1272, %v1717
    %v1890 = vmul.f32 %v1275, %v1717
    %v1891 = vmul.f32 %v1278, %v1717
    %v1892 = vmul.f32 %v1281, %v1717
    %v1893 = vmul.f32 %v1284, %v1717
    %v1894 = vmul.f32 %v1287, %v1717
    %v1895 = vmul.f32 %v1290, %v1717
    %v1896 = vmul.f32 %v1293, %v1717
    %v1897 = vmul.f32 %v1296, %v1717
    %v1898 = vmul.f32 %v1299, %v1717
    %v1899 = vmul.f32 %v1302, %v1717
    %v1900 = vmul.f32 %v1305, %v1717
    %v1901 = vmul.f32 %v1308, %v1717
    %v1902 = vmul.f32 %v1311, %v1717
    %v1903 = vmul.f32 %v1314, %v1717
    %v1904 = vmul.f32 %v1317, %v1717
    %v1905 = vmul.f32 %v1320, %v1717
    %v1906 = vmul.f32 %v1323, %v1717
    %v1907 = vmul.f32 %v1326, %v1717
    %v1908 = vmul.f32 %v1329, %v1717
    %v1909 = vmul.f32 %v1332, %v1717
    %v1910 = vmul.f32 %v1335, %v1717
    %v1911 = vmul.f32 %v1338, %v1717
    %v1912 = vmul.f32 %v1341, %v1717
    %v1913 = vmul.f32 %v1344, %v1717
    %v1914 = vmul.f32 %v1347, %v1717
    %v1915 = vmul.f32 %v1350, %v1717
    %v1916 = vmul.f32 %v1353, %v1717
    %v1917 = vmul.f32 %v1356, %v1717
    %v1918 = vmul.f32 %v1359, %v1717
    %v1919 = vmul.f32 %v1362, %v1717
    %v1920 = vmul.f32 %v1365, %v1717
    %v1921 = vmul.f32 %v1368, %v1717
    %v1922 = vmul.f32 %v1371, %v1717
    %v1923 = vmul.f32 %v1374, %v1717
    %v1924 = vmul.f32 %v1377, %v1717
    %v1925 = vmul.f32 %v1380, %v1717
    %v1926 = vmul.f32 %v1383, %v1717
    %v1927 = vmul.f32 %v1386, %v1717
    %v1928 = vmul.f32 %v1389, %v1717
    %v1929 = vmul.f32 %v1392, %v1717
    %v1930 = vmul.f32 %v1395, %v1717
    %v1931 = vmul.f32 %v1398, %v1717
    %v1932 = vmul.f32 %v1401, %v1717
    %v1933 = vmul.f32 %v1404, %v1717
    %v1934 = vmul.f32 %v1407, %v1717
    %v1935 = vmul.f32 %v1410, %v1717
    %v1936 = vmul.f32 %v1413, %v1717
    %v1937 = vmul.f32 %v1416, %v1717
    %v1938 = vmul.f32 %v1419, %v1717
    %v1939 = vmul.f32 %v1422, %v1717
    %v1940 = vmul.f32 %v1425, %v1717
    %v1941 = vmul.f32 %v1428, %v1717
    %v1942 = vmul.f32 %v1431, %v1717
    %v1943 = vmul.f32 %v1434, %v1717
    %v1944 = vmul.f32 %v1437, %v1717
    %v1945 = vmul.f32 %v1440, %v1717
    %v1946 = vmul.f32 %v1443, %v1717
    %v1947 = vmul.f32 %v1446, %v1717
    %v1948 = vmul.f32 %v1449, %v1717
    %v1949 = vmul.f32 %v1452, %v1717
    %v1950 = vmul.f32 %v1455, %v1717
    %v1951 = vmul.f32 %v1458, %v1717
    %v1952 = vmul.f32 %v1461, %v1717
    %v1953 = vmul.f32 %v1464, %v1717
    %v1954 = vmul.f32 %v1467, %v1717
    %v1955 = vmul.f32 %v1470, %v1717
    %v1956 = vmul.f32 %v1473, %v1717
    %v1957 = vmul.f32 %v1476, %v1717
    %v1958 = vmul.f32 %v1479, %v1717
    %v1959 = vmul.f32 %v1482, %v1717
    %v1960 = vmul.f32 %v1485, %v1717
    %v1961 = vmul.f32 %v1488, %v1717
    %v1962 = vmul.f32 %v1491, %v1717
    %v1963 = vmul.f32 %v1494, %v1717
    %v1964 = vmul.f32 %v1497, %v1717
    %v1965 = vmul.f32 %v1500, %v1717
    %v1966 = vmul.f32 %v1503, %v1717
    %v1967 = vmul.f32 %v1506, %v1717
    %v1968 = vmul.f32 %v1509, %v1717
    %v1969 = vmul.f32 %v1512, %v1717
    %v1970 = vmul.f32 %v1515, %v1717
    %v1971 = vmul.f32 %v1518, %v1717
    %v1972 = vmul.f32 %v1521, %v1717
    %v1973 = vmul.f32 %v1524, %v1717
    %v1974 = vmul.f32 %v1527, %v1717
    %v1975 = vmul.f32 %v1530, %v1717
    %v1976 = vmul.f32 %v1533, %v1717
    %v1977 = vmul.f32 %v1536, %v1717
    %v1978 = vmul.f32 %v1539, %v1717
    %v1979 = vmul.f32 %v1542, %v1717
    %v1980 = vmul.f32 %v1545, %v1717
    %v1981 = vmul.f32 %v1548, %v1717
    %v1982 = vmul.f32 %v1551, %v1717
    %v1983 = vmul.f32 %v1554, %v1717
    %v1984 = vmul.f32 %v1557, %v1717
    %v1985 = vmul.f32 %v1560, %v1717
    %v1986 = vmul.f32 %v1563, %v1717
    %v1987 = vmul.f32 %v1566, %v1717
    %v1988 = vmul.f32 %v1569, %v1717
    %v1989 = vmul.f32 %v1572, %v1717
    %v1990 = vmul.f32 %v1575, %v1717
    %v1991 = vmul.f32 %v1578, %v1717
    %v1992 = vmul.f32 %v1581, %v1717
    %v1993 = vmul.f32 %v1584, %v1717
    %v1994 = vmul.f32 %v1587, %v1717
    %v1995 = vmul.f32 %v1590, %v1717
    %v1996 = vmul.f32 %v1593, %v1717
    %v1997 = vmul.f32 %v1596, %v1717
    %v1998 = vmul.f32 %v1599, %v1717
    %v1999 = vmul.f32 %v1602, %v1717
    %v2000 = vmul.f32 %v1605, %v1717
    %v2001 = vmul.f32 %v1608, %v1717
    %v2002 = vmul.f32 %v1611, %v1717
    %v2003 = vmul.f32 %v1614, %v1717
    %v2004 = vmul.f32 %v1617, %v1717
    %v2005 = vmul.f32 %v1620, %v1717
    %v2006 = vmul.f32 %v1623, %v1717
    %v2007 = vmul.f32 %v1626, %v1717
    %v2008 = vmul.f32 %v1629, %v1717
    %v2009 = vmul.f32 %v1632, %v1717
    %v2010 = vmul.f32 %v1635, %v1717
    %v2011 = vmul.f32 %v1638, %v1717
    %v2012 = vmul.f32 %v1641, %v1717
    %v2013 = vmul.f32 %v1644, %v1717
    %v2014 = vmul.f32 %v1647, %v1717
    %v2015 = vmul.f32 %v1650, %v1717
    %v2016 = vmul.f32 %v1653, %v1717
    %v2017 = vmul.f32 %v1656, %v1717
    %v2018 = vmul.f32 %v1659, %v1717
    %v2019 = vmul.f32 %v1662, %v1717
    %v2020 = vmul.f32 %v1665, %v1717
    %v2021 = vmul.f32 %v1668, %v1717
    %v2022 = vmul.f32 %v1671, %v1717
    %v2023 = vmul.f32 %v1674, %v1717
    %v2024 = vmul.f32 %v1677, %v1717
    %v2025 = vmul.f32 %v1680, %v1717
    %v2026 = vmul.f32 %v1683, %v1717
    %v2027 = vmul.f32 %v1686, %v1717
    %v2028 = vmul.f32 %v1689, %v1717
    %v2029 = vmul.f32 %v1692, %v1717
    %v2030 = vmul.f32 %v1695, %v1717
    %v2031 = vmul.f32 %v1698, %v1717
    %v2032 = vmul.f32 %v1701, %v1717
    %v2033 = vmul.f32 %v1704, %v1717
    %v2034 = vmul.f32 %v1707, %v1717
    %v2035 = vmul.f32 %v1710, %v1717
    %v2036 = vmul.f32 %v1713, %v1717
    %v2037 = vmul.f32 %v1716, %v1717
    %v2038 = vpack.c.bf16 %v1719, %v1718
    %v2039 = vpack.c.bf16 %v1721, %v1720
    %v2040 = vpack.c.bf16 %v1723, %v1722
    %v2041 = vpack.c.bf16 %v1725, %v1724
    %v2042 = vpack.c.bf16 %v1727, %v1726
    %v2043 = vpack.c.bf16 %v1729, %v1728
    %v2044 = vpack.c.bf16 %v1731, %v1730
    %v2045 = vpack.c.bf16 %v1733, %v1732
    %v2046 = vpack.c.bf16 %v1735, %v1734
    %v2047 = vpack.c.bf16 %v1737, %v1736
    %v2048 = vpack.c.bf16 %v1739, %v1738
    %v2049 = vpack.c.bf16 %v1741, %v1740
    %v2050 = vpack.c.bf16 %v1743, %v1742
    %v2051 = vpack.c.bf16 %v1745, %v1744
    %v2052 = vpack.c.bf16 %v1747, %v1746
    %v2053 = vpack.c.bf16 %v1749, %v1748
    %v2054 = vpack.c.bf16 %v1751, %v1750
    %v2055 = vpack.c.bf16 %v1753, %v1752
    %v2056 = vpack.c.bf16 %v1755, %v1754
    %v2057 = vpack.c.bf16 %v1757, %v1756
    %v2058 = vpack.c.bf16 %v1759, %v1758
    %v2059 = vpack.c.bf16 %v1761, %v1760
    %v2060 = vpack.c.bf16 %v1763, %v1762
    %v2061 = vpack.c.bf16 %v1765, %v1764
    %v2062 = vpack.c.bf16 %v1767, %v1766
    %v2063 = vpack.c.bf16 %v1769, %v1768
    %v2064 = vpack.c.bf16 %v1771, %v1770
    %v2065 = vpack.c.bf16 %v1773, %v1772
    %v2066 = vpack.c.bf16 %v1775, %v1774
    %v2067 = vpack.c.bf16 %v1777, %v1776
    %v2068 = vpack.c.bf16 %v1779, %v1778
    %v2069 = vpack.c.bf16 %v1781, %v1780
    %v2070 = vpack.c.bf16 %v1783, %v1782
    %v2071 = vpack.c.bf16 %v1785, %v1784
    %v2072 = vpack.c.bf16 %v1787, %v1786
    %v2073 = vpack.c.bf16 %v1789, %v1788
    %v2074 = vpack.c.bf16 %v1791, %v1790
    %v2075 = vpack.c.bf16 %v1793, %v1792
    %v2076 = vpack.c.bf16 %v1795, %v1794
    %v2077 = vpack.c.bf16 %v1797, %v1796
    %v2078 = vpack.c.bf16 %v1799, %v1798
    %v2079 = vpack.c.bf16 %v1801, %v1800
    %v2080 = vpack.c.bf16 %v1803, %v1802
    %v2081 = vpack.c.bf16 %v1805, %v1804
    %v2082 = vpack.c.bf16 %v1807, %v1806
    %v2083 = vpack.c.bf16 %v1809, %v1808
    %v2084 = vpack.c.bf16 %v1811, %v1810
    %v2085 = vpack.c.bf16 %v1813, %v1812
    %v2086 = vpack.c.bf16 %v1815, %v1814
    %v2087 = vpack.c.bf16 %v1817, %v1816
    %v2088 = vpack.c.bf16 %v1819, %v1818
    %v2089 = vpack.c.bf16 %v1821, %v1820
    %v2090 = vpack.c.bf16 %v1823, %v1822
    %v2091 = vpack.c.bf16 %v1825, %v1824
    %v2092 = vpack.c.bf16 %v1827, %v1826
    %v2093 = vpack.c.bf16 %v1829, %v1828
    %v2094 = vpack.c.bf16 %v1831, %v1830
    %v2095 = vpack.c.bf16 %v1833, %v1832
    %v2096 = vpack.c.bf16 %v1835, %v1834
    %v2097 = vpack.c.bf16 %v1837, %v1836
    %v2098 = vpack.c.bf16 %v1839, %v1838
    %v2099 = vpack.c.bf16 %v1841, %v1840
    %v2100 = vpack.c.bf16 %v1843, %v1842
    %v2101 = vpack.c.bf16 %v1845, %v1844
    %v2102 = vpack.c.bf16 %v1847, %v1846
    %v2103 = vpack.c.bf16 %v1849, %v1848
    %v2104 = vpack.c.bf16 %v1851, %v1850
    %v2105 = vpack.c.bf16 %v1853, %v1852
    %v2106 = vpack.c.bf16 %v1855, %v1854
    %v2107 = vpack.c.bf16 %v1857, %v1856
    %v2108 = vpack.c.bf16 %v1859, %v1858
    %v2109 = vpack.c.bf16 %v1861, %v1860
    %v2110 = vpack.c.bf16 %v1863, %v1862
    %v2111 = vpack.c.bf16 %v1865, %v1864
    %v2112 = vpack.c.bf16 %v1867, %v1866
    %v2113 = vpack.c.bf16 %v1869, %v1868
    %v2114 = vpack.c.bf16 %v1871, %v1870
    %v2115 = vpack.c.bf16 %v1873, %v1872
    %v2116 = vpack.c.bf16 %v1875, %v1874
    %v2117 = vpack.c.bf16 %v1877, %v1876
    %v2118 = vpack.c.bf16 %v1879, %v1878
    %v2119 = vpack.c.bf16 %v1881, %v1880
    %v2120 = vpack.c.bf16 %v1883, %v1882
    %v2121 = vpack.c.bf16 %v1885, %v1884
    %v2122 = vpack.c.bf16 %v1887, %v1886
    %v2123 = vpack.c.bf16 %v1889, %v1888
    %v2124 = vpack.c.bf16 %v1891, %v1890
    %v2125 = vpack.c.bf16 %v1893, %v1892
    %v2126 = vpack.c.bf16 %v1895, %v1894
    %v2127 = vpack.c.bf16 %v1897, %v1896
    %v2128 = vpack.c.bf16 %v1899, %v1898
    %v2129 = vpack.c.bf16 %v1901, %v1900
    %v2130 = vpack.c.bf16 %v1903, %v1902
    %v2131 = vpack.c.bf16 %v1905, %v1904
    %v2132 = vpack.c.bf16 %v1907, %v1906
    %v2133 = vpack.c.bf16 %v1909, %v1908
    %v2134 = vpack.c.bf16 %v1911, %v1910
    %v2135 = vpack.c.bf16 %v1913, %v1912
    %v2136 = vpack.c.bf16 %v1915, %v1914
    %v2137 = vpack.c.bf16 %v1917, %v1916
    %v2138 = vpack.c.bf16 %v1919, %v1918
    %v2139 = vpack.c.bf16 %v1921, %v1920
    %v2140 = vpack.c.bf16 %v1923, %v1922
    %v2141 = vpack.c.bf16 %v1925, %v1924
    %v2142 = vpack.c.bf16 %v1927, %v1926
    %v2143 = vpack.c.bf16 %v1929, %v1928
    %v2144 = vpack.c.bf16 %v1931, %v1930
    %v2145 = vpack.c.bf16 %v1933, %v1932
    %v2146 = vpack.c.bf16 %v1935, %v1934
    %v2147 = vpack.c.bf16 %v1937, %v1936
    %v2148 = vpack.c.bf16 %v1939, %v1938
    %v2149 = vpack.c.bf16 %v1941, %v1940
    %v2150 = vpack.c.bf16 %v1943, %v1942
    %v2151 = vpack.c.bf16 %v1945, %v1944
    %v2152 = vpack.c.bf16 %v1947, %v1946
    %v2153 = vpack.c.bf16 %v1949, %v1948
    %v2154 = vpack.c.bf16 %v1951, %v1950
    %v2155 = vpack.c.bf16 %v1953, %v1952
    %v2156 = vpack.c.bf16 %v1955, %v1954
    %v2157 = vpack.c.bf16 %v1957, %v1956
    %v2158 = vpack.c.bf16 %v1959, %v1958
    %v2159 = vpack.c.bf16 %v1961, %v1960
    %v2160 = vpack.c.bf16 %v1963, %v1962
    %v2161 = vpack.c.bf16 %v1965, %v1964
    %v2162 = vpack.c.bf16 %v1967, %v1966
    %v2163 = vpack.c.bf16 %v1969, %v1968
    %v2164 = vpack.c.bf16 %v1971, %v1970
    %v2165 = vpack.c.bf16 %v1973, %v1972
    %v2166 = vpack.c.bf16 %v1975, %v1974
    %v2167 = vpack.c.bf16 %v1977, %v1976
    %v2168 = vpack.c.bf16 %v1979, %v1978
    %v2169 = vpack.c.bf16 %v1981, %v1980
    %v2170 = vpack.c.bf16 %v1983, %v1982
    %v2171 = vpack.c.bf16 %v1985, %v1984
    %v2172 = vpack.c.bf16 %v1987, %v1986
    %v2173 = vpack.c.bf16 %v1989, %v1988
    %v2174 = vpack.c.bf16 %v1991, %v1990
    %v2175 = vpack.c.bf16 %v1993, %v1992
    %v2176 = vpack.c.bf16 %v1995, %v1994
    %v2177 = vpack.c.bf16 %v1997, %v1996
    %v2178 = vpack.c.bf16 %v1999, %v1998
    %v2179 = vpack.c.bf16 %v2001, %v2000
    %v2180 = vpack.c.bf16 %v2003, %v2002
    %v2181 = vpack.c.bf16 %v2005, %v2004
    %v2182 = vpack.c.bf16 %v2007, %v2006
    %v2183 = vpack.c.bf16 %v2009, %v2008
    %v2184 = vpack.c.bf16 %v2011, %v2010
    %v2185 = vpack.c.bf16 %v2013, %v2012
    %v2186 = vpack.c.bf16 %v2015, %v2014
    %v2187 = vpack.c.bf16 %v2017, %v2016
    %v2188 = vpack.c.bf16 %v2019, %v2018
    %v2189 = vpack.c.bf16 %v2021, %v2020
    %v2190 = vpack.c.bf16 %v2023, %v2022
    %v2191 = vpack.c.bf16 %v2025, %v2024
    %v2192 = vpack.c.bf16 %v2027, %v2026
    %v2193 = vpack.c.bf16 %v2029, %v2028
    %v2194 = vpack.c.bf16 %v2031, %v2030
    %v2195 = vpack.c.bf16 %v2033, %v2032
    %v2196 = vpack.c.bf16 %v2035, %v2034
    %v2197 = vpack.c.bf16 %v2037, %v2036
    %v2198 = vld [vmem:[#allocation5] sm:$0xff]
    %v2199 = vld [vmem:[#allocation5 + $0x8] sm:$0xff]
    %v2200 = vld [vmem:[#allocation5 + $0x10] sm:$0xff]
    %v2201 = vld [vmem:[#allocation5 + $0x18] sm:$0xff]
    %v2202 = vld [vmem:[#allocation5 + $0x20] sm:$0xff]
    %v2203 = vld [vmem:[#allocation5 + $0x28] sm:$0xff]
    %v2204 = vld [vmem:[#allocation5 + $0x30] sm:$0xff]
    %v2205 = vld [vmem:[#allocation5 + $0x38] sm:$0xff]
    %v2206 = vld [vmem:[#allocation5 + $0x40] sm:$0xff]
    %v2207 = vld [vmem:[#allocation5 + $0x48] sm:$0xff]
    %v2208 = vld [vmem:[#allocation5 + $0x50] sm:$0xff]
    %v2209 = vld [vmem:[#allocation5 + $0x58] sm:$0xff]
    %v2210 = vld [vmem:[#allocation5 + $0x60] sm:$0xff]
    %v2211 = vld [vmem:[#allocation5 + $0x68] sm:$0xff]
    %v2212 = vld [vmem:[#allocation5 + $0x70] sm:$0xff]
    %v2213 = vld [vmem:[#allocation5 + $0x78] sm:$0xff]
    %v2214 = vld [vmem:[#allocation5 + $0x80] sm:$0xff]
    %v2215 = vld [vmem:[#allocation5 + $0x88] sm:$0xff]
    %v2216 = vld [vmem:[#allocation5 + $0x90] sm:$0xff]
    %v2217 = vld [vmem:[#allocation5 + $0x98] sm:$0xff]
    %v2218 = vld [vmem:[#allocation5 + $0xa0] sm:$0xff]
    %v2219 = vld [vmem:[#allocation5 + $0xa8] sm:$0xff]
    %v2220 = vld [vmem:[#allocation5 + $0xb0] sm:$0xff]
    %v2221 = vld [vmem:[#allocation5 + $0xb8] sm:$0xff]
    %v2222 = vld [vmem:[#allocation5 + $0xc0] sm:$0xff]
    %v2223 = vld [vmem:[#allocation5 + $0xc8] sm:$0xff]
    %v2224 = vld [vmem:[#allocation5 + $0xd0] sm:$0xff]
    %v2225 = vld [vmem:[#allocation5 + $0xd8] sm:$0xff]
    %v2226 = vld [vmem:[#allocation5 + $0xe0] sm:$0xff]
    %v2227 = vld [vmem:[#allocation5 + $0xe8] sm:$0xff]
    %v2228 = vld [vmem:[#allocation5 + $0xf0] sm:$0xff]
    %v2229 = vld [vmem:[#allocation5 + $0xf8] sm:$0xff]
    %v2230 = vld [vmem:[#allocation5 + $0x100] sm:$0xff]
    %v2231 = vld [vmem:[#allocation5 + $0x108] sm:$0xff]
    %v2232 = vld [vmem:[#allocation5 + $0x110] sm:$0xff]
    %v2233 = vld [vmem:[#allocation5 + $0x118] sm:$0xff]
    %v2234 = vld [vmem:[#allocation5 + $0x120] sm:$0xff]
    %v2235 = vld [vmem:[#allocation5 + $0x128] sm:$0xff]
    %v2236 = vld [vmem:[#allocation5 + $0x130] sm:$0xff]
    %v2237 = vld [vmem:[#allocation5 + $0x138] sm:$0xff]
    %v2238 = vld [vmem:[#allocation5 + $0x140] sm:$0xff]
    %v2239 = vld [vmem:[#allocation5 + $0x148] sm:$0xff]
    %v2240 = vld [vmem:[#allocation5 + $0x150] sm:$0xff]
    %v2241 = vld [vmem:[#allocation5 + $0x158] sm:$0xff]
    %v2242 = vld [vmem:[#allocation5 + $0x160] sm:$0xff]
    %v2243 = vld [vmem:[#allocation5 + $0x168] sm:$0xff]
    %v2244 = vld [vmem:[#allocation5 + $0x170] sm:$0xff]
    %v2245 = vld [vmem:[#allocation5 + $0x178] sm:$0xff]
    %v2246 = vld [vmem:[#allocation5 + $0x180] sm:$0xff]
    %v2247 = vld [vmem:[#allocation5 + $0x188] sm:$0xff]
    %v2248 = vld [vmem:[#allocation5 + $0x190] sm:$0xff]
    %v2249 = vld [vmem:[#allocation5 + $0x198] sm:$0xff]
    %v2250 = vld [vmem:[#allocation5 + $0x1a0] sm:$0xff]
    %v2251 = vld [vmem:[#allocation5 + $0x1a8] sm:$0xff]
    %v2252 = vld [vmem:[#allocation5 + $0x1b0] sm:$0xff]
    %v2253 = vld [vmem:[#allocation5 + $0x1b8] sm:$0xff]
    %v2254 = vld [vmem:[#allocation5 + $0x1c0] sm:$0xff]
    %v2255 = vld [vmem:[#allocation5 + $0x1c8] sm:$0xff]
    %v2256 = vld [vmem:[#allocation5 + $0x1d0] sm:$0xff]
    %v2257 = vld [vmem:[#allocation5 + $0x1d8] sm:$0xff]
    %v2258 = vld [vmem:[#allocation5 + $0x1e0] sm:$0xff]
    %v2259 = vld [vmem:[#allocation5 + $0x1e8] sm:$0xff]
    %v2260 = vld [vmem:[#allocation5 + $0x1f0] sm:$0xff]
    %v2261 = vld [vmem:[#allocation5 + $0x1f8] sm:$0xff]
    %v2262 = vld [vmem:[#allocation5 + $0x200] sm:$0xff]
    %v2263 = vld [vmem:[#allocation5 + $0x208] sm:$0xff]
    %v2264 = vld [vmem:[#allocation5 + $0x210] sm:$0xff]
    %v2265 = vld [vmem:[#allocation5 + $0x218] sm:$0xff]
    %v2266 = vld [vmem:[#allocation5 + $0x220] sm:$0xff]
    %v2267 = vld [vmem:[#allocation5 + $0x228] sm:$0xff]
    %v2268 = vld [vmem:[#allocation5 + $0x230] sm:$0xff]
    %v2269 = vld [vmem:[#allocation5 + $0x238] sm:$0xff]
    %v2270 = vld [vmem:[#allocation5 + $0x240] sm:$0xff]
    %v2271 = vld [vmem:[#allocation5 + $0x248] sm:$0xff]
    %v2272 = vld [vmem:[#allocation5 + $0x250] sm:$0xff]
    %v2273 = vld [vmem:[#allocation5 + $0x258] sm:$0xff]
    %v2274 = vld [vmem:[#allocation5 + $0x260] sm:$0xff]
    %v2275 = vld [vmem:[#allocation5 + $0x268] sm:$0xff]
    %v2276 = vld [vmem:[#allocation5 + $0x270] sm:$0xff]
    %v2277 = vld [vmem:[#allocation5 + $0x278] sm:$0xff]
    %v2278 = vld [vmem:[#allocation5 + $0x280] sm:$0xff]
    %v2279 = vld [vmem:[#allocation5 + $0x288] sm:$0xff]
    %v2280 = vld [vmem:[#allocation5 + $0x290] sm:$0xff]
    %v2281 = vld [vmem:[#allocation5 + $0x298] sm:$0xff]
    %v2282 = vld [vmem:[#allocation5 + $0x2a0] sm:$0xff]
    %v2283 = vld [vmem:[#allocation5 + $0x2a8] sm:$0xff]
    %v2284 = vld [vmem:[#allocation5 + $0x2b0] sm:$0xff]
    %v2285 = vld [vmem:[#allocation5 + $0x2b8] sm:$0xff]
    %v2286 = vld [vmem:[#allocation5 + $0x2c0] sm:$0xff]
    %v2287 = vld [vmem:[#allocation5 + $0x2c8] sm:$0xff]
    %v2288 = vld [vmem:[#allocation5 + $0x2d0] sm:$0xff]
    %v2289 = vld [vmem:[#allocation5 + $0x2d8] sm:$0xff]
    %v2290 = vld [vmem:[#allocation5 + $0x2e0] sm:$0xff]
    %v2291 = vld [vmem:[#allocation5 + $0x2e8] sm:$0xff]
    %v2292 = vld [vmem:[#allocation5 + $0x2f0] sm:$0xff]
    %v2293 = vld [vmem:[#allocation5 + $0x2f8] sm:$0xff]
    %v2294 = vld [vmem:[#allocation5 + $0x300] sm:$0xff]
    %v2295 = vld [vmem:[#allocation5 + $0x308] sm:$0xff]
    %v2296 = vld [vmem:[#allocation5 + $0x310] sm:$0xff]
    %v2297 = vld [vmem:[#allocation5 + $0x318] sm:$0xff]
    %v2298 = vld [vmem:[#allocation5 + $0x320] sm:$0xff]
    %v2299 = vld [vmem:[#allocation5 + $0x328] sm:$0xff]
    %v2300 = vld [vmem:[#allocation5 + $0x330] sm:$0xff]
    %v2301 = vld [vmem:[#allocation5 + $0x338] sm:$0xff]
    %v2302 = vld [vmem:[#allocation5 + $0x340] sm:$0xff]
    %v2303 = vld [vmem:[#allocation5 + $0x348] sm:$0xff]
    %v2304 = vld [vmem:[#allocation5 + $0x350] sm:$0xff]
    %v2305 = vld [vmem:[#allocation5 + $0x358] sm:$0xff]
    %v2306 = vld [vmem:[#allocation5 + $0x360] sm:$0xff]
    %v2307 = vld [vmem:[#allocation5 + $0x368] sm:$0xff]
    %v2308 = vld [vmem:[#allocation5 + $0x370] sm:$0xff]
    %v2309 = vld [vmem:[#allocation5 + $0x378] sm:$0xff]
    %v2310 = vld [vmem:[#allocation5 + $0x380] sm:$0xff]
    %v2311 = vld [vmem:[#allocation5 + $0x388] sm:$0xff]
    %v2312 = vld [vmem:[#allocation5 + $0x390] sm:$0xff]
    %v2313 = vld [vmem:[#allocation5 + $0x398] sm:$0xff]
    %v2314 = vld [vmem:[#allocation5 + $0x3a0] sm:$0xff]
    %v2315 = vld [vmem:[#allocation5 + $0x3a8] sm:$0xff]
    %v2316 = vld [vmem:[#allocation5 + $0x3b0] sm:$0xff]
    %v2317 = vld [vmem:[#allocation5 + $0x3b8] sm:$0xff]
    %v2318 = vld [vmem:[#allocation5 + $0x3c0] sm:$0xff]
    %v2319 = vld [vmem:[#allocation5 + $0x3c8] sm:$0xff]
    %v2320 = vld [vmem:[#allocation5 + $0x3d0] sm:$0xff]
    %v2321 = vld [vmem:[#allocation5 + $0x3d8] sm:$0xff]
    %v2322 = vld [vmem:[#allocation5 + $0x3e0] sm:$0xff]
    %v2323 = vld [vmem:[#allocation5 + $0x3e8] sm:$0xff]
    %v2324 = vld [vmem:[#allocation5 + $0x3f0] sm:$0xff]
    %v2325 = vld [vmem:[#allocation5 + $0x3f8] sm:$0xff]
    %v2326 = vld [vmem:[#allocation5 + $0x400] sm:$0xff]
    %v2327 = vld [vmem:[#allocation5 + $0x408] sm:$0xff]
    %v2328 = vld [vmem:[#allocation5 + $0x410] sm:$0xff]
    %v2329 = vld [vmem:[#allocation5 + $0x418] sm:$0xff]
    %v2330 = vld [vmem:[#allocation5 + $0x420] sm:$0xff]
    %v2331 = vld [vmem:[#allocation5 + $0x428] sm:$0xff]
    %v2332 = vld [vmem:[#allocation5 + $0x430] sm:$0xff]
    %v2333 = vld [vmem:[#allocation5 + $0x438] sm:$0xff]
    %v2334 = vld [vmem:[#allocation5 + $0x440] sm:$0xff]
    %v2335 = vld [vmem:[#allocation5 + $0x448] sm:$0xff]
    %v2336 = vld [vmem:[#allocation5 + $0x450] sm:$0xff]
    %v2337 = vld [vmem:[#allocation5 + $0x458] sm:$0xff]
    %v2338 = vld [vmem:[#allocation5 + $0x460] sm:$0xff]
    %v2339 = vld [vmem:[#allocation5 + $0x468] sm:$0xff]
    %v2340 = vld [vmem:[#allocation5 + $0x470] sm:$0xff]
    %v2341 = vld [vmem:[#allocation5 + $0x478] sm:$0xff]
    %v2342 = vld [vmem:[#allocation5 + $0x480] sm:$0xff]
    %v2343 = vld [vmem:[#allocation5 + $0x488] sm:$0xff]
    %v2344 = vld [vmem:[#allocation5 + $0x490] sm:$0xff]
    %v2345 = vld [vmem:[#allocation5 + $0x498] sm:$0xff]
    %v2346 = vld [vmem:[#allocation5 + $0x4a0] sm:$0xff]
    %v2347 = vld [vmem:[#allocation5 + $0x4a8] sm:$0xff]
    %v2348 = vld [vmem:[#allocation5 + $0x4b0] sm:$0xff]
    %v2349 = vld [vmem:[#allocation5 + $0x4b8] sm:$0xff]
    %v2350 = vld [vmem:[#allocation5 + $0x4c0] sm:$0xff]
    %v2351 = vld [vmem:[#allocation5 + $0x4c8] sm:$0xff]
    %v2352 = vld [vmem:[#allocation5 + $0x4d0] sm:$0xff]
    %v2353 = vld [vmem:[#allocation5 + $0x4d8] sm:$0xff]
    %v2354 = vld [vmem:[#allocation5 + $0x4e0] sm:$0xff]
    %v2355 = vld [vmem:[#allocation5 + $0x4e8] sm:$0xff]
    %v2356 = vld [vmem:[#allocation5 + $0x4f0] sm:$0xff]
    %v2357 = vld [vmem:[#allocation5 + $0x4f8] sm:$0xff]
    %v2358 = vld [vmem:[#allocation5 + $0x500] sm:$0xff]
    %v2359 = vld [vmem:[#allocation5 + $0x508] sm:$0xff]
    %v2360 = vld [vmem:[#allocation5 + $0x510] sm:$0xff]
    %v2361 = vld [vmem:[#allocation5 + $0x518] sm:$0xff]
    %v2362 = vld [vmem:[#allocation5 + $0x520] sm:$0xff]
    %v2363 = vld [vmem:[#allocation5 + $0x528] sm:$0xff]
    %v2364 = vld [vmem:[#allocation5 + $0x530] sm:$0xff]
    %v2365 = vld [vmem:[#allocation5 + $0x538] sm:$0xff]
    %v2366 = vld [vmem:[#allocation5 + $0x540] sm:$0xff]
    %v2367 = vld [vmem:[#allocation5 + $0x548] sm:$0xff]
    %v2368 = vld [vmem:[#allocation5 + $0x550] sm:$0xff]
    %v2369 = vld [vmem:[#allocation5 + $0x558] sm:$0xff]
    %v2370 = vld [vmem:[#allocation5 + $0x560] sm:$0xff]
    %v2371 = vld [vmem:[#allocation5 + $0x568] sm:$0xff]
    %v2372 = vld [vmem:[#allocation5 + $0x570] sm:$0xff]
    %v2373 = vld [vmem:[#allocation5 + $0x578] sm:$0xff]
    %v2374 = vld [vmem:[#allocation5 + $0x580] sm:$0xff]
    %v2375 = vld [vmem:[#allocation5 + $0x588] sm:$0xff]
    %v2376 = vld [vmem:[#allocation5 + $0x590] sm:$0xff]
    %v2377 = vld [vmem:[#allocation5 + $0x598] sm:$0xff]
    %v2378 = vld [vmem:[#allocation5 + $0x5a0] sm:$0xff]
    %v2379 = vld [vmem:[#allocation5 + $0x5a8] sm:$0xff]
    %v2380 = vld [vmem:[#allocation5 + $0x5b0] sm:$0xff]
    %v2381 = vld [vmem:[#allocation5 + $0x5b8] sm:$0xff]
    %v2382 = vld [vmem:[#allocation5 + $0x5c0] sm:$0xff]
    %v2383 = vld [vmem:[#allocation5 + $0x5c8] sm:$0xff]
    %v2384 = vld [vmem:[#allocation5 + $0x5d0] sm:$0xff]
    %v2385 = vld [vmem:[#allocation5 + $0x5d8] sm:$0xff]
    %v2386 = vld [vmem:[#allocation5 + $0x5e0] sm:$0xff]
    %v2387 = vld [vmem:[#allocation5 + $0x5e8] sm:$0xff]
    %v2388 = vld [vmem:[#allocation5 + $0x5f0] sm:$0xff]
    %v2389 = vld [vmem:[#allocation5 + $0x5f8] sm:$0xff]
    %v2390 = vld [vmem:[#allocation5 + $0x600] sm:$0xff]
    %v2391 = vld [vmem:[#allocation5 + $0x608] sm:$0xff]
    %v2392 = vld [vmem:[#allocation5 + $0x610] sm:$0xff]
    %v2393 = vld [vmem:[#allocation5 + $0x618] sm:$0xff]
    %v2394 = vld [vmem:[#allocation5 + $0x620] sm:$0xff]
    %v2395 = vld [vmem:[#allocation5 + $0x628] sm:$0xff]
    %v2396 = vld [vmem:[#allocation5 + $0x630] sm:$0xff]
    %v2397 = vld [vmem:[#allocation5 + $0x638] sm:$0xff]
    %v2398 = vld [vmem:[#allocation5 + $0x640] sm:$0xff]
    %v2399 = vld [vmem:[#allocation5 + $0x648] sm:$0xff]
    %v2400 = vld [vmem:[#allocation5 + $0x650] sm:$0xff]
    %v2401 = vld [vmem:[#allocation5 + $0x658] sm:$0xff]
    %v2402 = vld [vmem:[#allocation5 + $0x660] sm:$0xff]
    %v2403 = vld [vmem:[#allocation5 + $0x668] sm:$0xff]
    %v2404 = vld [vmem:[#allocation5 + $0x670] sm:$0xff]
    %v2405 = vld [vmem:[#allocation5 + $0x678] sm:$0xff]
    %v2406 = vld [vmem:[#allocation5 + $0x680] sm:$0xff]
    %v2407 = vld [vmem:[#allocation5 + $0x688] sm:$0xff]
    %v2408 = vld [vmem:[#allocation5 + $0x690] sm:$0xff]
    %v2409 = vld [vmem:[#allocation5 + $0x698] sm:$0xff]
    %v2410 = vld [vmem:[#allocation5 + $0x6a0] sm:$0xff]
    %v2411 = vld [vmem:[#allocation5 + $0x6a8] sm:$0xff]
    %v2412 = vld [vmem:[#allocation5 + $0x6b0] sm:$0xff]
    %v2413 = vld [vmem:[#allocation5 + $0x6b8] sm:$0xff]
    %v2414 = vld [vmem:[#allocation5 + $0x6c0] sm:$0xff]
    %v2415 = vld [vmem:[#allocation5 + $0x6c8] sm:$0xff]
    %v2416 = vld [vmem:[#allocation5 + $0x6d0] sm:$0xff]
    %v2417 = vld [vmem:[#allocation5 + $0x6d8] sm:$0xff]
    %v2418 = vld [vmem:[#allocation5 + $0x6e0] sm:$0xff]
    %v2419 = vld [vmem:[#allocation5 + $0x6e8] sm:$0xff]
    %v2420 = vld [vmem:[#allocation5 + $0x6f0] sm:$0xff]
    %v2421 = vld [vmem:[#allocation5 + $0x6f8] sm:$0xff]
    %v2422 = vld [vmem:[#allocation5 + $0x700] sm:$0xff]
    %v2423 = vld [vmem:[#allocation5 + $0x708] sm:$0xff]
    %v2424 = vld [vmem:[#allocation5 + $0x710] sm:$0xff]
    %v2425 = vld [vmem:[#allocation5 + $0x718] sm:$0xff]
    %v2426 = vld [vmem:[#allocation5 + $0x720] sm:$0xff]
    %v2427 = vld [vmem:[#allocation5 + $0x728] sm:$0xff]
    %v2428 = vld [vmem:[#allocation5 + $0x730] sm:$0xff]
    %v2429 = vld [vmem:[#allocation5 + $0x738] sm:$0xff]
    %v2430 = vld [vmem:[#allocation5 + $0x740] sm:$0xff]
    %v2431 = vld [vmem:[#allocation5 + $0x748] sm:$0xff]
    %v2432 = vld [vmem:[#allocation5 + $0x750] sm:$0xff]
    %v2433 = vld [vmem:[#allocation5 + $0x758] sm:$0xff]
    %v2434 = vld [vmem:[#allocation5 + $0x760] sm:$0xff]
    %v2435 = vld [vmem:[#allocation5 + $0x768] sm:$0xff]
    %v2436 = vld [vmem:[#allocation5 + $0x770] sm:$0xff]
    %v2437 = vld [vmem:[#allocation5 + $0x778] sm:$0xff]
    %v2438 = vld [vmem:[#allocation5 + $0x780] sm:$0xff]
    %v2439 = vld [vmem:[#allocation5 + $0x788] sm:$0xff]
    %v2440 = vld [vmem:[#allocation5 + $0x790] sm:$0xff]
    %v2441 = vld [vmem:[#allocation5 + $0x798] sm:$0xff]
    %v2442 = vld [vmem:[#allocation5 + $0x7a0] sm:$0xff]
    %v2443 = vld [vmem:[#allocation5 + $0x7a8] sm:$0xff]
    %v2444 = vld [vmem:[#allocation5 + $0x7b0] sm:$0xff]
    %v2445 = vld [vmem:[#allocation5 + $0x7b8] sm:$0xff]
    %v2446 = vld [vmem:[#allocation5 + $0x7c0] sm:$0xff]
    %v2447 = vld [vmem:[#allocation5 + $0x7c8] sm:$0xff]
    %v2448 = vld [vmem:[#allocation5 + $0x7d0] sm:$0xff]
    %v2449 = vld [vmem:[#allocation5 + $0x7d8] sm:$0xff]
    %v2450 = vld [vmem:[#allocation5 + $0x7e0] sm:$0xff]
    %v2451 = vld [vmem:[#allocation5 + $0x7e8] sm:$0xff]
    %v2452 = vld [vmem:[#allocation5 + $0x7f0] sm:$0xff]
    %v2453 = vld [vmem:[#allocation5 + $0x7f8] sm:$0xff]
    %v2454 = vld [vmem:[#allocation5 + $0x800] sm:$0xff]
    %v2455 = vld [vmem:[#allocation5 + $0x808] sm:$0xff]
    %v2456 = vld [vmem:[#allocation5 + $0x810] sm:$0xff]
    %v2457 = vld [vmem:[#allocation5 + $0x818] sm:$0xff]
    %v2458 = vld [vmem:[#allocation5 + $0x820] sm:$0xff]
    %v2459 = vld [vmem:[#allocation5 + $0x828] sm:$0xff]
    %v2460 = vld [vmem:[#allocation5 + $0x830] sm:$0xff]
    %v2461 = vld [vmem:[#allocation5 + $0x838] sm:$0xff]
    %v2462 = vld [vmem:[#allocation5 + $0x840] sm:$0xff]
    %v2463 = vld [vmem:[#allocation5 + $0x848] sm:$0xff]
    %v2464 = vld [vmem:[#allocation5 + $0x850] sm:$0xff]
    %v2465 = vld [vmem:[#allocation5 + $0x858] sm:$0xff]
    %v2466 = vld [vmem:[#allocation5 + $0x860] sm:$0xff]
    %v2467 = vld [vmem:[#allocation5 + $0x868] sm:$0xff]
    %v2468 = vld [vmem:[#allocation5 + $0x870] sm:$0xff]
    %v2469 = vld [vmem:[#allocation5 + $0x878] sm:$0xff]
    %v2470 = vld [vmem:[#allocation5 + $0x880] sm:$0xff]
    %v2471 = vld [vmem:[#allocation5 + $0x888] sm:$0xff]
    %v2472 = vld [vmem:[#allocation5 + $0x890] sm:$0xff]
    %v2473 = vld [vmem:[#allocation5 + $0x898] sm:$0xff]
    %v2474 = vld [vmem:[#allocation5 + $0x8a0] sm:$0xff]
    %v2475 = vld [vmem:[#allocation5 + $0x8a8] sm:$0xff]
    %v2476 = vld [vmem:[#allocation5 + $0x8b0] sm:$0xff]
    %v2477 = vld [vmem:[#allocation5 + $0x8b8] sm:$0xff]
    %v2478 = vld [vmem:[#allocation5 + $0x8c0] sm:$0xff]
    %v2479 = vld [vmem:[#allocation5 + $0x8c8] sm:$0xff]
    %v2480 = vld [vmem:[#allocation5 + $0x8d0] sm:$0xff]
    %v2481 = vld [vmem:[#allocation5 + $0x8d8] sm:$0xff]
    %v2482 = vld [vmem:[#allocation5 + $0x8e0] sm:$0xff]
    %v2483 = vld [vmem:[#allocation5 + $0x8e8] sm:$0xff]
    %v2484 = vld [vmem:[#allocation5 + $0x8f0] sm:$0xff]
    %v2485 = vld [vmem:[#allocation5 + $0x8f8] sm:$0xff]
    %v2486 = vld [vmem:[#allocation5 + $0x900] sm:$0xff]
    %v2487 = vld [vmem:[#allocation5 + $0x908] sm:$0xff]
    %v2488 = vld [vmem:[#allocation5 + $0x910] sm:$0xff]
    %v2489 = vld [vmem:[#allocation5 + $0x918] sm:$0xff]
    %v2490 = vld [vmem:[#allocation5 + $0x920] sm:$0xff]
    %v2491 = vld [vmem:[#allocation5 + $0x928] sm:$0xff]
    %v2492 = vld [vmem:[#allocation5 + $0x930] sm:$0xff]
    %v2493 = vld [vmem:[#allocation5 + $0x938] sm:$0xff]
    %v2494 = vld [vmem:[#allocation5 + $0x940] sm:$0xff]
    %v2495 = vld [vmem:[#allocation5 + $0x948] sm:$0xff]
    %v2496 = vld [vmem:[#allocation5 + $0x950] sm:$0xff]
    %v2497 = vld [vmem:[#allocation5 + $0x958] sm:$0xff]
    %v2498 = vld [vmem:[#allocation5 + $0x960] sm:$0xff]
    %v2499 = vld [vmem:[#allocation5 + $0x968] sm:$0xff]
    %v2500 = vld [vmem:[#allocation5 + $0x970] sm:$0xff]
    %v2501 = vld [vmem:[#allocation5 + $0x978] sm:$0xff]
    %v2502 = vld [vmem:[#allocation5 + $0x980] sm:$0xff]
    %v2503 = vld [vmem:[#allocation5 + $0x988] sm:$0xff]
    %v2504 = vld [vmem:[#allocation5 + $0x990] sm:$0xff]
    %v2505 = vld [vmem:[#allocation5 + $0x998] sm:$0xff]
    %v2506 = vld [vmem:[#allocation5 + $0x9a0] sm:$0xff]
    %v2507 = vld [vmem:[#allocation5 + $0x9a8] sm:$0xff]
    %v2508 = vld [vmem:[#allocation5 + $0x9b0] sm:$0xff]
    %v2509 = vld [vmem:[#allocation5 + $0x9b8] sm:$0xff]
    %v2510 = vld [vmem:[#allocation5 + $0x9c0] sm:$0xff]
    %v2511 = vld [vmem:[#allocation5 + $0x9c8] sm:$0xff]
    %v2512 = vld [vmem:[#allocation5 + $0x9d0] sm:$0xff]
    %v2513 = vld [vmem:[#allocation5 + $0x9d8] sm:$0xff]
    %v2514 = vld [vmem:[#allocation5 + $0x9e0] sm:$0xff]
    %v2515 = vld [vmem:[#allocation5 + $0x9e8] sm:$0xff]
    %v2516 = vld [vmem:[#allocation5 + $0x9f0] sm:$0xff]
    %v2517 = vld [vmem:[#allocation5 + $0x9f8] sm:$0xff]
    %v2518 = vld [vmem:[#allocation5 + $0xa00] sm:$0xff]
    %v2519 = vld [vmem:[#allocation5 + $0xa08] sm:$0xff]
    %v2520 = vld [vmem:[#allocation5 + $0xa10] sm:$0xff]
    %v2521 = vld [vmem:[#allocation5 + $0xa18] sm:$0xff]
    %v2522 = vld [vmem:[#allocation5 + $0xa20] sm:$0xff]
    %v2523 = vld [vmem:[#allocation5 + $0xa28] sm:$0xff]
    %v2524 = vld [vmem:[#allocation5 + $0xa30] sm:$0xff]
    %v2525 = vld [vmem:[#allocation5 + $0xa38] sm:$0xff]
    %v2526 = vld [vmem:[#allocation5 + $0xa40] sm:$0xff]
    %v2527 = vld [vmem:[#allocation5 + $0xa48] sm:$0xff]
    %v2528 = vld [vmem:[#allocation5 + $0xa50] sm:$0xff]
    %v2529 = vld [vmem:[#allocation5 + $0xa58] sm:$0xff]
    %v2530 = vld [vmem:[#allocation5 + $0xa60] sm:$0xff]
    %v2531 = vld [vmem:[#allocation5 + $0xa68] sm:$0xff]
    %v2532 = vld [vmem:[#allocation5 + $0xa70] sm:$0xff]
    %v2533 = vld [vmem:[#allocation5 + $0xa78] sm:$0xff]
    %v2534 = vld [vmem:[#allocation5 + $0xa80] sm:$0xff]
    %v2535 = vld [vmem:[#allocation5 + $0xa88] sm:$0xff]
    %v2536 = vld [vmem:[#allocation5 + $0xa90] sm:$0xff]
    %v2537 = vld [vmem:[#allocation5 + $0xa98] sm:$0xff]
    %v2538 = vld [vmem:[#allocation5 + $0xaa0] sm:$0xff]
    %v2539 = vld [vmem:[#allocation5 + $0xaa8] sm:$0xff]
    %v2540 = vld [vmem:[#allocation5 + $0xab0] sm:$0xff]
    %v2541 = vld [vmem:[#allocation5 + $0xab8] sm:$0xff]
    %v2542 = vld [vmem:[#allocation5 + $0xac0] sm:$0xff]
    %v2543 = vld [vmem:[#allocation5 + $0xac8] sm:$0xff]
    %v2544 = vld [vmem:[#allocation5 + $0xad0] sm:$0xff]
    %v2545 = vld [vmem:[#allocation5 + $0xad8] sm:$0xff]
    %v2546 = vld [vmem:[#allocation5 + $0xae0] sm:$0xff]
    %v2547 = vld [vmem:[#allocation5 + $0xae8] sm:$0xff]
    %v2548 = vld [vmem:[#allocation5 + $0xaf0] sm:$0xff]
    %v2549 = vld [vmem:[#allocation5 + $0xaf8] sm:$0xff]
    %v2550 = vld [vmem:[#allocation5 + $0xb00] sm:$0xff]
    %v2551 = vld [vmem:[#allocation5 + $0xb08] sm:$0xff]
    %v2552 = vld [vmem:[#allocation5 + $0xb10] sm:$0xff]
    %v2553 = vld [vmem:[#allocation5 + $0xb18] sm:$0xff]
    %v2554 = vld [vmem:[#allocation5 + $0xb20] sm:$0xff]
    %v2555 = vld [vmem:[#allocation5 + $0xb28] sm:$0xff]
    %v2556 = vld [vmem:[#allocation5 + $0xb30] sm:$0xff]
    %v2557 = vld [vmem:[#allocation5 + $0xb38] sm:$0xff]
    %v2558 = vld [vmem:[#allocation5 + $0xb40] sm:$0xff]
    %v2559 = vld [vmem:[#allocation5 + $0xb48] sm:$0xff]
    %v2560 = vld [vmem:[#allocation5 + $0xb50] sm:$0xff]
    %v2561 = vld [vmem:[#allocation5 + $0xb58] sm:$0xff]
    %v2562 = vld [vmem:[#allocation5 + $0xb60] sm:$0xff]
    %v2563 = vld [vmem:[#allocation5 + $0xb68] sm:$0xff]
    %v2564 = vld [vmem:[#allocation5 + $0xb70] sm:$0xff]
    %v2565 = vld [vmem:[#allocation5 + $0xb78] sm:$0xff]
    %v2566 = vld [vmem:[#allocation5 + $0xb80] sm:$0xff]
    %v2567 = vld [vmem:[#allocation5 + $0xb88] sm:$0xff]
    %v2568 = vld [vmem:[#allocation5 + $0xb90] sm:$0xff]
    %v2569 = vld [vmem:[#allocation5 + $0xb98] sm:$0xff]
    %v2570 = vld [vmem:[#allocation5 + $0xba0] sm:$0xff]
    %v2571 = vld [vmem:[#allocation5 + $0xba8] sm:$0xff]
    %v2572 = vld [vmem:[#allocation5 + $0xbb0] sm:$0xff]
    %v2573 = vld [vmem:[#allocation5 + $0xbb8] sm:$0xff]
    %v2574 = vld [vmem:[#allocation5 + $0xbc0] sm:$0xff]
    %v2575 = vld [vmem:[#allocation5 + $0xbc8] sm:$0xff]
    %v2576 = vld [vmem:[#allocation5 + $0xbd0] sm:$0xff]
    %v2577 = vld [vmem:[#allocation5 + $0xbd8] sm:$0xff]
    %v2578 = vld [vmem:[#allocation5 + $0xbe0] sm:$0xff]
    %v2579 = vld [vmem:[#allocation5 + $0xbe8] sm:$0xff]
    %v2580 = vld [vmem:[#allocation5 + $0xbf0] sm:$0xff]
    %v2581 = vld [vmem:[#allocation5 + $0xbf8] sm:$0xff]
    %v2582 = vld [vmem:[#allocation5 + $0xc00] sm:$0xff]
    %v2583 = vld [vmem:[#allocation5 + $0xc08] sm:$0xff]
    %v2584 = vld [vmem:[#allocation5 + $0xc10] sm:$0xff]
    %v2585 = vld [vmem:[#allocation5 + $0xc18] sm:$0xff]
    %v2586 = vld [vmem:[#allocation5 + $0xc20] sm:$0xff]
    %v2587 = vld [vmem:[#allocation5 + $0xc28] sm:$0xff]
    %v2588 = vld [vmem:[#allocation5 + $0xc30] sm:$0xff]
    %v2589 = vld [vmem:[#allocation5 + $0xc38] sm:$0xff]
    %v2590 = vld [vmem:[#allocation5 + $0xc40] sm:$0xff]
    %v2591 = vld [vmem:[#allocation5 + $0xc48] sm:$0xff]
    %v2592 = vld [vmem:[#allocation5 + $0xc50] sm:$0xff]
    %v2593 = vld [vmem:[#allocation5 + $0xc58] sm:$0xff]
    %v2594 = vld [vmem:[#allocation5 + $0xc60] sm:$0xff]
    %v2595 = vld [vmem:[#allocation5 + $0xc68] sm:$0xff]
    %v2596 = vld [vmem:[#allocation5 + $0xc70] sm:$0xff]
    %v2597 = vld [vmem:[#allocation5 + $0xc78] sm:$0xff]
    %v2598 = vld [vmem:[#allocation5 + $0xc80] sm:$0xff]
    %v2599 = vld [vmem:[#allocation5 + $0xc88] sm:$0xff]
    %v2600 = vld [vmem:[#allocation5 + $0xc90] sm:$0xff]
    %v2601 = vld [vmem:[#allocation5 + $0xc98] sm:$0xff]
    %v2602 = vld [vmem:[#allocation5 + $0xca0] sm:$0xff]
    %v2603 = vld [vmem:[#allocation5 + $0xca8] sm:$0xff]
    %v2604 = vld [vmem:[#allocation5 + $0xcb0] sm:$0xff]
    %v2605 = vld [vmem:[#allocation5 + $0xcb8] sm:$0xff]
    %v2606 = vld [vmem:[#allocation5 + $0xcc0] sm:$0xff]
    %v2607 = vld [vmem:[#allocation5 + $0xcc8] sm:$0xff]
    %v2608 = vld [vmem:[#allocation5 + $0xcd0] sm:$0xff]
    %v2609 = vld [vmem:[#allocation5 + $0xcd8] sm:$0xff]
    %v2610 = vld [vmem:[#allocation5 + $0xce0] sm:$0xff]
    %v2611 = vld [vmem:[#allocation5 + $0xce8] sm:$0xff]
    %v2612 = vld [vmem:[#allocation5 + $0xcf0] sm:$0xff]
    %v2613 = vld [vmem:[#allocation5 + $0xcf8] sm:$0xff]
    %v2614 = vld [vmem:[#allocation5 + $0xd00] sm:$0xff]
    %v2615 = vld [vmem:[#allocation5 + $0xd08] sm:$0xff]
    %v2616 = vld [vmem:[#allocation5 + $0xd10] sm:$0xff]
    %v2617 = vld [vmem:[#allocation5 + $0xd18] sm:$0xff]
    %v2618 = vld [vmem:[#allocation5 + $0xd20] sm:$0xff]
    %v2619 = vld [vmem:[#allocation5 + $0xd28] sm:$0xff]
    %v2620 = vld [vmem:[#allocation5 + $0xd30] sm:$0xff]
    %v2621 = vld [vmem:[#allocation5 + $0xd38] sm:$0xff]
    %v2622 = vld [vmem:[#allocation5 + $0xd40] sm:$0xff]
    %v2623 = vld [vmem:[#allocation5 + $0xd48] sm:$0xff]
    %v2624 = vld [vmem:[#allocation5 + $0xd50] sm:$0xff]
    %v2625 = vld [vmem:[#allocation5 + $0xd58] sm:$0xff]
    %v2626 = vld [vmem:[#allocation5 + $0xd60] sm:$0xff]
    %v2627 = vld [vmem:[#allocation5 + $0xd68] sm:$0xff]
    %v2628 = vld [vmem:[#allocation5 + $0xd70] sm:$0xff]
    %v2629 = vld [vmem:[#allocation5 + $0xd78] sm:$0xff]
    %v2630 = vld [vmem:[#allocation5 + $0xd80] sm:$0xff]
    %v2631 = vld [vmem:[#allocation5 + $0xd88] sm:$0xff]
    %v2632 = vld [vmem:[#allocation5 + $0xd90] sm:$0xff]
    %v2633 = vld [vmem:[#allocation5 + $0xd98] sm:$0xff]
    %v2634 = vld [vmem:[#allocation5 + $0xda0] sm:$0xff]
    %v2635 = vld [vmem:[#allocation5 + $0xda8] sm:$0xff]
    %v2636 = vld [vmem:[#allocation5 + $0xdb0] sm:$0xff]
    %v2637 = vld [vmem:[#allocation5 + $0xdb8] sm:$0xff]
    %v2638 = vld [vmem:[#allocation5 + $0xdc0] sm:$0xff]
    %v2639 = vld [vmem:[#allocation5 + $0xdc8] sm:$0xff]
    %v2640 = vld [vmem:[#allocation5 + $0xdd0] sm:$0xff]
    %v2641 = vld [vmem:[#allocation5 + $0xdd8] sm:$0xff]
    %v2642 = vld [vmem:[#allocation5 + $0xde0] sm:$0xff]
    %v2643 = vld [vmem:[#allocation5 + $0xde8] sm:$0xff]
    %v2644 = vld [vmem:[#allocation5 + $0xdf0] sm:$0xff]
    %v2645 = vld [vmem:[#allocation5 + $0xdf8] sm:$0xff]
    %v2646 = vld [vmem:[#allocation5 + $0xe00] sm:$0xff]
    %v2647 = vld [vmem:[#allocation5 + $0xe08] sm:$0xff]
    %v2648 = vld [vmem:[#allocation5 + $0xe10] sm:$0xff]
    %v2649 = vld [vmem:[#allocation5 + $0xe18] sm:$0xff]
    %v2650 = vld [vmem:[#allocation5 + $0xe20] sm:$0xff]
    %v2651 = vld [vmem:[#allocation5 + $0xe28] sm:$0xff]
    %v2652 = vld [vmem:[#allocation5 + $0xe30] sm:$0xff]
    %v2653 = vld [vmem:[#allocation5 + $0xe38] sm:$0xff]
    %v2654 = vld [vmem:[#allocation5 + $0xe40] sm:$0xff]
    %v2655 = vld [vmem:[#allocation5 + $0xe48] sm:$0xff]
    %v2656 = vld [vmem:[#allocation5 + $0xe50] sm:$0xff]
    %v2657 = vld [vmem:[#allocation5 + $0xe58] sm:$0xff]
    %v2658 = vld [vmem:[#allocation5 + $0xe60] sm:$0xff]
    %v2659 = vld [vmem:[#allocation5 + $0xe68] sm:$0xff]
    %v2660 = vld [vmem:[#allocation5 + $0xe70] sm:$0xff]
    %v2661 = vld [vmem:[#allocation5 + $0xe78] sm:$0xff]
    %v2662 = vld [vmem:[#allocation5 + $0xe80] sm:$0xff]
    %v2663 = vld [vmem:[#allocation5 + $0xe88] sm:$0xff]
    %v2664 = vld [vmem:[#allocation5 + $0xe90] sm:$0xff]
    %v2665 = vld [vmem:[#allocation5 + $0xe98] sm:$0xff]
    %v2666 = vld [vmem:[#allocation5 + $0xea0] sm:$0xff]
    %v2667 = vld [vmem:[#allocation5 + $0xea8] sm:$0xff]
    %v2668 = vld [vmem:[#allocation5 + $0xeb0] sm:$0xff]
    %v2669 = vld [vmem:[#allocation5 + $0xeb8] sm:$0xff]
    %v2670 = vld [vmem:[#allocation5 + $0xec0] sm:$0xff]
    %v2671 = vld [vmem:[#allocation5 + $0xec8] sm:$0xff]
    %v2672 = vld [vmem:[#allocation5 + $0xed0] sm:$0xff]
    %v2673 = vld [vmem:[#allocation5 + $0xed8] sm:$0xff]
    %v2674 = vld [vmem:[#allocation5 + $0xee0] sm:$0xff]
    %v2675 = vld [vmem:[#allocation5 + $0xee8] sm:$0xff]
    %v2676 = vld [vmem:[#allocation5 + $0xef0] sm:$0xff]
    %v2677 = vld [vmem:[#allocation5 + $0xef8] sm:$0xff]
    %v2678 = vld [vmem:[#allocation5 + $0xf00] sm:$0xff]
    %v2679 = vld [vmem:[#allocation5 + $0xf08] sm:$0xff]
    %v2680 = vld [vmem:[#allocation5 + $0xf10] sm:$0xff]
    %v2681 = vld [vmem:[#allocation5 + $0xf18] sm:$0xff]
    %v2682 = vld [vmem:[#allocation5 + $0xf20] sm:$0xff]
    %v2683 = vld [vmem:[#allocation5 + $0xf28] sm:$0xff]
    %v2684 = vld [vmem:[#allocation5 + $0xf30] sm:$0xff]
    %v2685 = vld [vmem:[#allocation5 + $0xf38] sm:$0xff]
    %v2686 = vld [vmem:[#allocation5 + $0xf40] sm:$0xff]
    %v2687 = vld [vmem:[#allocation5 + $0xf48] sm:$0xff]
    %v2688 = vld [vmem:[#allocation5 + $0xf50] sm:$0xff]
    %v2689 = vld [vmem:[#allocation5 + $0xf58] sm:$0xff]
    %v2690 = vld [vmem:[#allocation5 + $0xf60] sm:$0xff]
    %v2691 = vld [vmem:[#allocation5 + $0xf68] sm:$0xff]
    %v2692 = vld [vmem:[#allocation5 + $0xf70] sm:$0xff]
    %v2693 = vld [vmem:[#allocation5 + $0xf78] sm:$0xff]
    %v2694 = vld [vmem:[#allocation5 + $0xf80] sm:$0xff]
    %v2695 = vld [vmem:[#allocation5 + $0xf88] sm:$0xff]
    %v2696 = vld [vmem:[#allocation5 + $0xf90] sm:$0xff]
    %v2697 = vld [vmem:[#allocation5 + $0xf98] sm:$0xff]
    %v2698 = vld [vmem:[#allocation5 + $0xfa0] sm:$0xff]
    %v2699 = vld [vmem:[#allocation5 + $0xfa8] sm:$0xff]
    %v2700 = vld [vmem:[#allocation5 + $0xfb0] sm:$0xff]
    %v2701 = vld [vmem:[#allocation5 + $0xfb8] sm:$0xff]
    %v2702 = vld [vmem:[#allocation5 + $0xfc0] sm:$0xff]
    %v2703 = vld [vmem:[#allocation5 + $0xfc8] sm:$0xff]
    %v2704 = vld [vmem:[#allocation5 + $0xfd0] sm:$0xff]
    %v2705 = vld [vmem:[#allocation5 + $0xfd8] sm:$0xff]
    %v2706 = vld [vmem:[#allocation5 + $0xfe0] sm:$0xff]
    %v2707 = vld [vmem:[#allocation5 + $0xfe8] sm:$0xff]
    %v2708 = vld [vmem:[#allocation5 + $0xff0] sm:$0xff]
    %v2709 = vld [vmem:[#allocation5 + $0xff8] sm:$0xff]
    %v2710 = vld [vmem:[#allocation5 + $0x1000] sm:$0xff]
    %v2711 = vld [vmem:[#allocation5 + $0x1008] sm:$0xff]
    %v2712 = vld [vmem:[#allocation5 + $0x1010] sm:$0xff]
    %v2713 = vld [vmem:[#allocation5 + $0x1018] sm:$0xff]
    %v2714 = vld [vmem:[#allocation5 + $0x1020] sm:$0xff]
    %v2715 = vld [vmem:[#allocation5 + $0x1028] sm:$0xff]
    %v2716 = vld [vmem:[#allocation5 + $0x1030] sm:$0xff]
    %v2717 = vld [vmem:[#allocation5 + $0x1038] sm:$0xff]
    %v2718 = vld [vmem:[#allocation5 + $0x1040] sm:$0xff]
    %v2719 = vld [vmem:[#allocation5 + $0x1048] sm:$0xff]
    %v2720 = vld [vmem:[#allocation5 + $0x1050] sm:$0xff]
    %v2721 = vld [vmem:[#allocation5 + $0x1058] sm:$0xff]
    %v2722 = vld [vmem:[#allocation5 + $0x1060] sm:$0xff]
    %v2723 = vld [vmem:[#allocation5 + $0x1068] sm:$0xff]
    %v2724 = vld [vmem:[#allocation5 + $0x1070] sm:$0xff]
    %v2725 = vld [vmem:[#allocation5 + $0x1078] sm:$0xff]
    %v2726 = vld [vmem:[#allocation5 + $0x1080] sm:$0xff]
    %v2727 = vld [vmem:[#allocation5 + $0x1088] sm:$0xff]
    %v2728 = vld [vmem:[#allocation5 + $0x1090] sm:$0xff]
    %v2729 = vld [vmem:[#allocation5 + $0x1098] sm:$0xff]
    %v2730 = vld [vmem:[#allocation5 + $0x10a0] sm:$0xff]
    %v2731 = vld [vmem:[#allocation5 + $0x10a8] sm:$0xff]
    %v2732 = vld [vmem:[#allocation5 + $0x10b0] sm:$0xff]
    %v2733 = vld [vmem:[#allocation5 + $0x10b8] sm:$0xff]
    %v2734 = vld [vmem:[#allocation5 + $0x10c0] sm:$0xff]
    %v2735 = vld [vmem:[#allocation5 + $0x10c8] sm:$0xff]
    %v2736 = vld [vmem:[#allocation5 + $0x10d0] sm:$0xff]
    %v2737 = vld [vmem:[#allocation5 + $0x10d8] sm:$0xff]
    %v2738 = vld [vmem:[#allocation5 + $0x10e0] sm:$0xff]
    %v2739 = vld [vmem:[#allocation5 + $0x10e8] sm:$0xff]
    %v2740 = vld [vmem:[#allocation5 + $0x10f0] sm:$0xff]
    %v2741 = vld [vmem:[#allocation5 + $0x10f8] sm:$0xff]
    %v2742 = vld [vmem:[#allocation5 + $0x1100] sm:$0xff]
    %v2743 = vld [vmem:[#allocation5 + $0x1108] sm:$0xff]
    %v2744 = vld [vmem:[#allocation5 + $0x1110] sm:$0xff]
    %v2745 = vld [vmem:[#allocation5 + $0x1118] sm:$0xff]
    %v2746 = vld [vmem:[#allocation5 + $0x1120] sm:$0xff]
    %v2747 = vld [vmem:[#allocation5 + $0x1128] sm:$0xff]
    %v2748 = vld [vmem:[#allocation5 + $0x1130] sm:$0xff]
    %v2749 = vld [vmem:[#allocation5 + $0x1138] sm:$0xff]
    %v2750 = vld [vmem:[#allocation5 + $0x1140] sm:$0xff]
    %v2751 = vld [vmem:[#allocation5 + $0x1148] sm:$0xff]
    %v2752 = vld [vmem:[#allocation5 + $0x1150] sm:$0xff]
    %v2753 = vld [vmem:[#allocation5 + $0x1158] sm:$0xff]
    %v2754 = vld [vmem:[#allocation5 + $0x1160] sm:$0xff]
    %v2755 = vld [vmem:[#allocation5 + $0x1168] sm:$0xff]
    %v2756 = vld [vmem:[#allocation5 + $0x1170] sm:$0xff]
    %v2757 = vld [vmem:[#allocation5 + $0x1178] sm:$0xff]
    %v2758 = vld [vmem:[#allocation5 + $0x1180] sm:$0xff]
    %v2759 = vld [vmem:[#allocation5 + $0x1188] sm:$0xff]
    %v2760 = vld [vmem:[#allocation5 + $0x1190] sm:$0xff]
    %v2761 = vld [vmem:[#allocation5 + $0x1198] sm:$0xff]
    %v2762 = vld [vmem:[#allocation5 + $0x11a0] sm:$0xff]
    %v2763 = vld [vmem:[#allocation5 + $0x11a8] sm:$0xff]
    %v2764 = vld [vmem:[#allocation5 + $0x11b0] sm:$0xff]
    %v2765 = vld [vmem:[#allocation5 + $0x11b8] sm:$0xff]
    %v2766 = vld [vmem:[#allocation5 + $0x11c0] sm:$0xff]
    %v2767 = vld [vmem:[#allocation5 + $0x11c8] sm:$0xff]
    %v2768 = vld [vmem:[#allocation5 + $0x11d0] sm:$0xff]
    %v2769 = vld [vmem:[#allocation5 + $0x11d8] sm:$0xff]
    %v2770 = vld [vmem:[#allocation5 + $0x11e0] sm:$0xff]
    %v2771 = vld [vmem:[#allocation5 + $0x11e8] sm:$0xff]
    %v2772 = vld [vmem:[#allocation5 + $0x11f0] sm:$0xff]
    %v2773 = vld [vmem:[#allocation5 + $0x11f8] sm:$0xff]
    %v2774 = vld [vmem:[#allocation5 + $0x1200] sm:$0xff]
    %v2775 = vld [vmem:[#allocation5 + $0x1208] sm:$0xff]
    %v2776 = vld [vmem:[#allocation5 + $0x1210] sm:$0xff]
    %v2777 = vld [vmem:[#allocation5 + $0x1218] sm:$0xff]
    %v2778 = vld [vmem:[#allocation5 + $0x1220] sm:$0xff]
    %v2779 = vld [vmem:[#allocation5 + $0x1228] sm:$0xff]
    %v2780 = vld [vmem:[#allocation5 + $0x1230] sm:$0xff]
    %v2781 = vld [vmem:[#allocation5 + $0x1238] sm:$0xff]
    %v2782 = vld [vmem:[#allocation5 + $0x1240] sm:$0xff]
    %v2783 = vld [vmem:[#allocation5 + $0x1248] sm:$0xff]
    %v2784 = vld [vmem:[#allocation5 + $0x1250] sm:$0xff]
    %v2785 = vld [vmem:[#allocation5 + $0x1258] sm:$0xff]
    %v2786 = vld [vmem:[#allocation5 + $0x1260] sm:$0xff]
    %v2787 = vld [vmem:[#allocation5 + $0x1268] sm:$0xff]
    %v2788 = vld [vmem:[#allocation5 + $0x1270] sm:$0xff]
    %v2789 = vld [vmem:[#allocation5 + $0x1278] sm:$0xff]
    %v2790 = vld [vmem:[#allocation5 + $0x1280] sm:$0xff]
    %v2791 = vld [vmem:[#allocation5 + $0x1288] sm:$0xff]
    %v2792 = vld [vmem:[#allocation5 + $0x1290] sm:$0xff]
    %v2793 = vld [vmem:[#allocation5 + $0x1298] sm:$0xff]
    %v2794 = vld [vmem:[#allocation5 + $0x12a0] sm:$0xff]
    %v2795 = vld [vmem:[#allocation5 + $0x12a8] sm:$0xff]
    %v2796 = vld [vmem:[#allocation5 + $0x12b0] sm:$0xff]
    %v2797 = vld [vmem:[#allocation5 + $0x12b8] sm:$0xff]
    %v2798 = vld [vmem:[#allocation5 + $0x12c0] sm:$0xff]
    %v2799 = vld [vmem:[#allocation5 + $0x12c8] sm:$0xff]
    %v2800 = vld [vmem:[#allocation5 + $0x12d0] sm:$0xff]
    %v2801 = vld [vmem:[#allocation5 + $0x12d8] sm:$0xff]
    %v2802 = vld [vmem:[#allocation5 + $0x12e0] sm:$0xff]
    %v2803 = vld [vmem:[#allocation5 + $0x12e8] sm:$0xff]
    %v2804 = vld [vmem:[#allocation5 + $0x12f0] sm:$0xff]
    %v2805 = vld [vmem:[#allocation5 + $0x12f8] sm:$0xff]
    %v2806 = vld [vmem:[#allocation5 + $0x1300] sm:$0xff]
    %v2807 = vld [vmem:[#allocation5 + $0x1308] sm:$0xff]
    %v2808 = vld [vmem:[#allocation5 + $0x1310] sm:$0xff]
    %v2809 = vld [vmem:[#allocation5 + $0x1318] sm:$0xff]
    %v2810 = vld [vmem:[#allocation5 + $0x1320] sm:$0xff]
    %v2811 = vld [vmem:[#allocation5 + $0x1328] sm:$0xff]
    %v2812 = vld [vmem:[#allocation5 + $0x1330] sm:$0xff]
    %v2813 = vld [vmem:[#allocation5 + $0x1338] sm:$0xff]
    %v2814 = vld [vmem:[#allocation5 + $0x1340] sm:$0xff]
    %v2815 = vld [vmem:[#allocation5 + $0x1348] sm:$0xff]
    %v2816 = vld [vmem:[#allocation5 + $0x1350] sm:$0xff]
    %v2817 = vld [vmem:[#allocation5 + $0x1358] sm:$0xff]
    %v2818 = vld [vmem:[#allocation5 + $0x1360] sm:$0xff]
    %v2819 = vld [vmem:[#allocation5 + $0x1368] sm:$0xff]
    %v2820 = vld [vmem:[#allocation5 + $0x1370] sm:$0xff]
    %v2821 = vld [vmem:[#allocation5 + $0x1378] sm:$0xff]
    %v2822 = vld [vmem:[#allocation5 + $0x1380] sm:$0xff]
    %v2823 = vld [vmem:[#allocation5 + $0x1388] sm:$0xff]
    %v2824 = vld [vmem:[#allocation5 + $0x1390] sm:$0xff]
    %v2825 = vld [vmem:[#allocation5 + $0x1398] sm:$0xff]
    %v2826 = vld [vmem:[#allocation5 + $0x13a0] sm:$0xff]
    %v2827 = vld [vmem:[#allocation5 + $0x13a8] sm:$0xff]
    %v2828 = vld [vmem:[#allocation5 + $0x13b0] sm:$0xff]
    %v2829 = vld [vmem:[#allocation5 + $0x13b8] sm:$0xff]
    %v2830 = vld [vmem:[#allocation5 + $0x13c0] sm:$0xff]
    %v2831 = vld [vmem:[#allocation5 + $0x13c8] sm:$0xff]
    %v2832 = vld [vmem:[#allocation5 + $0x13d0] sm:$0xff]
    %v2833 = vld [vmem:[#allocation5 + $0x13d8] sm:$0xff]
    %v2834 = vld [vmem:[#allocation5 + $0x13e0] sm:$0xff]
    %v2835 = vld [vmem:[#allocation5 + $0x13e8] sm:$0xff]
    %v2836 = vld [vmem:[#allocation5 + $0x13f0] sm:$0xff]
    %v2837 = vld [vmem:[#allocation5 + $0x13f8] sm:$0xff]
    %v2838 = vld [vmem:[#allocation7] sm:$0xff]
    %v2840 = vlaneseq
    %v2841 = vshrl.u32 %v2840, 7
    %v2842 = vsub.s32 0, %v2841
    %v2843 = vrot.slane %v2838, %v2842
    %v2844 = vlaneseq
    %v2845 = vshrl.u32 %v2844, 7
    %v2846 = vsub.s32 1, %v2845
    %v2847 = vrot.slane %v2838, %v2846
    %v2848 = vlaneseq
    %v2849 = vshrl.u32 %v2848, 7
    %v2850 = vsub.s32 2, %v2849
    %v2851 = vrot.slane %v2838, %v2850
    %v2852 = vlaneseq
    %v2853 = vshrl.u32 %v2852, 7
    %v2854 = vsub.s32 3, %v2853
    %v2855 = vrot.slane %v2838, %v2854
    %v2856 = vlaneseq
    %v2857 = vshrl.u32 %v2856, 7
    %v2858 = vsub.s32 4, %v2857
    %v2859 = vrot.slane %v2838, %v2858
    %v2860 = vlaneseq
    %v2861 = vshrl.u32 %v2860, 7
    %v2862 = vsub.s32 5, %v2861
    %v2863 = vrot.slane %v2838, %v2862
    %v2864 = vlaneseq
    %v2865 = vshrl.u32 %v2864, 7
    %v2866 = vsub.s32 6, %v2865
    %v2867 = vrot.slane %v2838, %v2866
    %v2868 = vlaneseq
    %v2869 = vshrl.u32 %v2868, 7
    %v2870 = vsub.s32 7, %v2869
    %v2871 = vrot.slane %v2838, %v2870
    %v3040 = vunpack.c.l.b16 %v2038
    %v3041 = vunpack.c.h.b16 %v2038
    %v3042 = vunpack.c.l.b16 %v2039
    %v3043 = vunpack.c.h.b16 %v2039
    %v3044 = vunpack.c.l.b16 %v2040
    %v3045 = vunpack.c.h.b16 %v2040
    %v3046 = vunpack.c.l.b16 %v2041
    %v3047 = vunpack.c.h.b16 %v2041
    %v3048 = vunpack.c.l.b16 %v2042
    %v3049 = vunpack.c.h.b16 %v2042
    %v3050 = vunpack.c.l.b16 %v2043
    %v3051 = vunpack.c.h.b16 %v2043
    %v3052 = vunpack.c.l.b16 %v2044
    %v3053 = vunpack.c.h.b16 %v2044
    %v3054 = vunpack.c.l.b16 %v2045
    %v3055 = vunpack.c.h.b16 %v2045
    %v3056 = vunpack.c.l.b16 %v2046
    %v3057 = vunpack.c.h.b16 %v2046
    %v3058 = vunpack.c.l.b16 %v2047
    %v3059 = vunpack.c.h.b16 %v2047
    %v3060 = vunpack.c.l.b16 %v2048
    %v3061 = vunpack.c.h.b16 %v2048
    %v3062 = vunpack.c.l.b16 %v2049
    %v3063 = vunpack.c.h.b16 %v2049
    %v3064 = vunpack.c.l.b16 %v2050
    %v3065 = vunpack.c.h.b16 %v2050
    %v3066 = vunpack.c.l.b16 %v2051
    %v3067 = vunpack.c.h.b16 %v2051
    %v3068 = vunpack.c.l.b16 %v2052
    %v3069 = vunpack.c.h.b16 %v2052
    %v3070 = vunpack.c.l.b16 %v2053
    %v3071 = vunpack.c.h.b16 %v2053
    %v3072 = vunpack.c.l.b16 %v2054
    %v3073 = vunpack.c.h.b16 %v2054
    %v3074 = vunpack.c.l.b16 %v2055
    %v3075 = vunpack.c.h.b16 %v2055
    %v3076 = vunpack.c.l.b16 %v2056
    %v3077 = vunpack.c.h.b16 %v2056
    %v3078 = vunpack.c.l.b16 %v2057
    %v3079 = vunpack.c.h.b16 %v2057
    %v3080 = vunpack.c.l.b16 %v2058
    %v3081 = vunpack.c.h.b16 %v2058
    %v3082 = vunpack.c.l.b16 %v2059
    %v3083 = vunpack.c.h.b16 %v2059
    %v3084 = vunpack.c.l.b16 %v2060
    %v3085 = vunpack.c.h.b16 %v2060
    %v3086 = vunpack.c.l.b16 %v2061
    %v3087 = vunpack.c.h.b16 %v2061
    %v3088 = vunpack.c.l.b16 %v2062
    %v3089 = vunpack.c.h.b16 %v2062
    %v3090 = vunpack.c.l.b16 %v2063
    %v3091 = vunpack.c.h.b16 %v2063
    %v3092 = vunpack.c.l.b16 %v2064
    %v3093 = vunpack.c.h.b16 %v2064
    %v3094 = vunpack.c.l.b16 %v2065
    %v3095 = vunpack.c.h.b16 %v2065
    %v3096 = vunpack.c.l.b16 %v2066
    %v3097 = vunpack.c.h.b16 %v2066
    %v3098 = vunpack.c.l.b16 %v2067
    %v3099 = vunpack.c.h.b16 %v2067
    %v3100 = vunpack.c.l.b16 %v2068
    %v3101 = vunpack.c.h.b16 %v2068
    %v3102 = vunpack.c.l.b16 %v2069
    %v3103 = vunpack.c.h.b16 %v2069
    %v3104 = vunpack.c.l.b16 %v2070
    %v3105 = vunpack.c.h.b16 %v2070
    %v3106 = vunpack.c.l.b16 %v2071
    %v3107 = vunpack.c.h.b16 %v2071
    %v3108 = vunpack.c.l.b16 %v2072
    %v3109 = vunpack.c.h.b16 %v2072
    %v3110 = vunpack.c.l.b16 %v2073
    %v3111 = vunpack.c.h.b16 %v2073
    %v3112 = vunpack.c.l.b16 %v2074
    %v3113 = vunpack.c.h.b16 %v2074
    %v3114 = vunpack.c.l.b16 %v2075
    %v3115 = vunpack.c.h.b16 %v2075
    %v3116 = vunpack.c.l.b16 %v2076
    %v3117 = vunpack.c.h.b16 %v2076
    %v3118 = vunpack.c.l.b16 %v2077
    %v3119 = vunpack.c.h.b16 %v2077
    %v3120 = vunpack.c.l.b16 %v2078
    %v3121 = vunpack.c.h.b16 %v2078
    %v3122 = vunpack.c.l.b16 %v2079
    %v3123 = vunpack.c.h.b16 %v2079
    %v3124 = vunpack.c.l.b16 %v2080
    %v3125 = vunpack.c.h.b16 %v2080
    %v3126 = vunpack.c.l.b16 %v2081
    %v3127 = vunpack.c.h.b16 %v2081
    %v3128 = vunpack.c.l.b16 %v2082
    %v3129 = vunpack.c.h.b16 %v2082
    %v3130 = vunpack.c.l.b16 %v2083
    %v3131 = vunpack.c.h.b16 %v2083
    %v3132 = vunpack.c.l.b16 %v2084
    %v3133 = vunpack.c.h.b16 %v2084
    %v3134 = vunpack.c.l.b16 %v2085
    %v3135 = vunpack.c.h.b16 %v2085
    %v3136 = vunpack.c.l.b16 %v2086
    %v3137 = vunpack.c.h.b16 %v2086
    %v3138 = vunpack.c.l.b16 %v2087
    %v3139 = vunpack.c.h.b16 %v2087
    %v3140 = vunpack.c.l.b16 %v2088
    %v3141 = vunpack.c.h.b16 %v2088
    %v3142 = vunpack.c.l.b16 %v2089
    %v3143 = vunpack.c.h.b16 %v2089
    %v3144 = vunpack.c.l.b16 %v2090
    %v3145 = vunpack.c.h.b16 %v2090
    %v3146 = vunpack.c.l.b16 %v2091
    %v3147 = vunpack.c.h.b16 %v2091
    %v3148 = vunpack.c.l.b16 %v2092
    %v3149 = vunpack.c.h.b16 %v2092
    %v3150 = vunpack.c.l.b16 %v2093
    %v3151 = vunpack.c.h.b16 %v2093
    %v3152 = vunpack.c.l.b16 %v2094
    %v3153 = vunpack.c.h.b16 %v2094
    %v3154 = vunpack.c.l.b16 %v2095
    %v3155 = vunpack.c.h.b16 %v2095
    %v3156 = vunpack.c.l.b16 %v2096
    %v3157 = vunpack.c.h.b16 %v2096
    %v3158 = vunpack.c.l.b16 %v2097
    %v3159 = vunpack.c.h.b16 %v2097
    %v3160 = vunpack.c.l.b16 %v2098
    %v3161 = vunpack.c.h.b16 %v2098
    %v3162 = vunpack.c.l.b16 %v2099
    %v3163 = vunpack.c.h.b16 %v2099
    %v3164 = vunpack.c.l.b16 %v2100
    %v3165 = vunpack.c.h.b16 %v2100
    %v3166 = vunpack.c.l.b16 %v2101
    %v3167 = vunpack.c.h.b16 %v2101
    %v3168 = vunpack.c.l.b16 %v2102
    %v3169 = vunpack.c.h.b16 %v2102
    %v3170 = vunpack.c.l.b16 %v2103
    %v3171 = vunpack.c.h.b16 %v2103
    %v3172 = vunpack.c.l.b16 %v2104
    %v3173 = vunpack.c.h.b16 %v2104
    %v3174 = vunpack.c.l.b16 %v2105
    %v3175 = vunpack.c.h.b16 %v2105
    %v3176 = vunpack.c.l.b16 %v2106
    %v3177 = vunpack.c.h.b16 %v2106
    %v3178 = vunpack.c.l.b16 %v2107
    %v3179 = vunpack.c.h.b16 %v2107
    %v3180 = vunpack.c.l.b16 %v2108
    %v3181 = vunpack.c.h.b16 %v2108
    %v3182 = vunpack.c.l.b16 %v2109
    %v3183 = vunpack.c.h.b16 %v2109
    %v3184 = vunpack.c.l.b16 %v2110
    %v3185 = vunpack.c.h.b16 %v2110
    %v3186 = vunpack.c.l.b16 %v2111
    %v3187 = vunpack.c.h.b16 %v2111
    %v3188 = vunpack.c.l.b16 %v2112
    %v3189 = vunpack.c.h.b16 %v2112
    %v3190 = vunpack.c.l.b16 %v2113
    %v3191 = vunpack.c.h.b16 %v2113
    %v3192 = vunpack.c.l.b16 %v2114
    %v3193 = vunpack.c.h.b16 %v2114
    %v3194 = vunpack.c.l.b16 %v2115
    %v3195 = vunpack.c.h.b16 %v2115
    %v3196 = vunpack.c.l.b16 %v2116
    %v3197 = vunpack.c.h.b16 %v2116
    %v3198 = vunpack.c.l.b16 %v2117
    %v3199 = vunpack.c.h.b16 %v2117
    %v3200 = vunpack.c.l.b16 %v2118
    %v3201 = vunpack.c.h.b16 %v2118
    %v3202 = vunpack.c.l.b16 %v2119
    %v3203 = vunpack.c.h.b16 %v2119
    %v3204 = vunpack.c.l.b16 %v2120
    %v3205 = vunpack.c.h.b16 %v2120
    %v3206 = vunpack.c.l.b16 %v2121
    %v3207 = vunpack.c.h.b16 %v2121
    %v3208 = vunpack.c.l.b16 %v2122
    %v3209 = vunpack.c.h.b16 %v2122
    %v3210 = vunpack.c.l.b16 %v2123
    %v3211 = vunpack.c.h.b16 %v2123
    %v3212 = vunpack.c.l.b16 %v2124
    %v3213 = vunpack.c.h.b16 %v2124
    %v3214 = vunpack.c.l.b16 %v2125
    %v3215 = vunpack.c.h.b16 %v2125
    %v3216 = vunpack.c.l.b16 %v2126
    %v3217 = vunpack.c.h.b16 %v2126
    %v3218 = vunpack.c.l.b16 %v2127
    %v3219 = vunpack.c.h.b16 %v2127
    %v3220 = vunpack.c.l.b16 %v2128
    %v3221 = vunpack.c.h.b16 %v2128
    %v3222 = vunpack.c.l.b16 %v2129
    %v3223 = vunpack.c.h.b16 %v2129
    %v3224 = vunpack.c.l.b16 %v2130
    %v3225 = vunpack.c.h.b16 %v2130
    %v3226 = vunpack.c.l.b16 %v2131
    %v3227 = vunpack.c.h.b16 %v2131
    %v3228 = vunpack.c.l.b16 %v2132
    %v3229 = vunpack.c.h.b16 %v2132
    %v3230 = vunpack.c.l.b16 %v2133
    %v3231 = vunpack.c.h.b16 %v2133
    %v3232 = vunpack.c.l.b16 %v2134
    %v3233 = vunpack.c.h.b16 %v2134
    %v3234 = vunpack.c.l.b16 %v2135
    %v3235 = vunpack.c.h.b16 %v2135
    %v3236 = vunpack.c.l.b16 %v2136
    %v3237 = vunpack.c.h.b16 %v2136
    %v3238 = vunpack.c.l.b16 %v2137
    %v3239 = vunpack.c.h.b16 %v2137
    %v3240 = vunpack.c.l.b16 %v2138
    %v3241 = vunpack.c.h.b16 %v2138
    %v3242 = vunpack.c.l.b16 %v2139
    %v3243 = vunpack.c.h.b16 %v2139
    %v3244 = vunpack.c.l.b16 %v2140
    %v3245 = vunpack.c.h.b16 %v2140
    %v3246 = vunpack.c.l.b16 %v2141
    %v3247 = vunpack.c.h.b16 %v2141
    %v3248 = vunpack.c.l.b16 %v2142
    %v3249 = vunpack.c.h.b16 %v2142
    %v3250 = vunpack.c.l.b16 %v2143
    %v3251 = vunpack.c.h.b16 %v2143
    %v3252 = vunpack.c.l.b16 %v2144
    %v3253 = vunpack.c.h.b16 %v2144
    %v3254 = vunpack.c.l.b16 %v2145
    %v3255 = vunpack.c.h.b16 %v2145
    %v3256 = vunpack.c.l.b16 %v2146
    %v3257 = vunpack.c.h.b16 %v2146
    %v3258 = vunpack.c.l.b16 %v2147
    %v3259 = vunpack.c.h.b16 %v2147
    %v3260 = vunpack.c.l.b16 %v2148
    %v3261 = vunpack.c.h.b16 %v2148
    %v3262 = vunpack.c.l.b16 %v2149
    %v3263 = vunpack.c.h.b16 %v2149
    %v3264 = vunpack.c.l.b16 %v2150
    %v3265 = vunpack.c.h.b16 %v2150
    %v3266 = vunpack.c.l.b16 %v2151
    %v3267 = vunpack.c.h.b16 %v2151
    %v3268 = vunpack.c.l.b16 %v2152
    %v3269 = vunpack.c.h.b16 %v2152
    %v3270 = vunpack.c.l.b16 %v2153
    %v3271 = vunpack.c.h.b16 %v2153
    %v3272 = vunpack.c.l.b16 %v2154
    %v3273 = vunpack.c.h.b16 %v2154
    %v3274 = vunpack.c.l.b16 %v2155
    %v3275 = vunpack.c.h.b16 %v2155
    %v3276 = vunpack.c.l.b16 %v2156
    %v3277 = vunpack.c.h.b16 %v2156
    %v3278 = vunpack.c.l.b16 %v2157
    %v3279 = vunpack.c.h.b16 %v2157
    %v3280 = vunpack.c.l.b16 %v2158
    %v3281 = vunpack.c.h.b16 %v2158
    %v3282 = vunpack.c.l.b16 %v2159
    %v3283 = vunpack.c.h.b16 %v2159
    %v3284 = vunpack.c.l.b16 %v2160
    %v3285 = vunpack.c.h.b16 %v2160
    %v3286 = vunpack.c.l.b16 %v2161
    %v3287 = vunpack.c.h.b16 %v2161
    %v3288 = vunpack.c.l.b16 %v2162
    %v3289 = vunpack.c.h.b16 %v2162
    %v3290 = vunpack.c.l.b16 %v2163
    %v3291 = vunpack.c.h.b16 %v2163
    %v3292 = vunpack.c.l.b16 %v2164
    %v3293 = vunpack.c.h.b16 %v2164
    %v3294 = vunpack.c.l.b16 %v2165
    %v3295 = vunpack.c.h.b16 %v2165
    %v3296 = vunpack.c.l.b16 %v2166
    %v3297 = vunpack.c.h.b16 %v2166
    %v3298 = vunpack.c.l.b16 %v2167
    %v3299 = vunpack.c.h.b16 %v2167
    %v3300 = vunpack.c.l.b16 %v2168
    %v3301 = vunpack.c.h.b16 %v2168
    %v3302 = vunpack.c.l.b16 %v2169
    %v3303 = vunpack.c.h.b16 %v2169
    %v3304 = vunpack.c.l.b16 %v2170
    %v3305 = vunpack.c.h.b16 %v2170
    %v3306 = vunpack.c.l.b16 %v2171
    %v3307 = vunpack.c.h.b16 %v2171
    %v3308 = vunpack.c.l.b16 %v2172
    %v3309 = vunpack.c.h.b16 %v2172
    %v3310 = vunpack.c.l.b16 %v2173
    %v3311 = vunpack.c.h.b16 %v2173
    %v3312 = vunpack.c.l.b16 %v2174
    %v3313 = vunpack.c.h.b16 %v2174
    %v3314 = vunpack.c.l.b16 %v2175
    %v3315 = vunpack.c.h.b16 %v2175
    %v3316 = vunpack.c.l.b16 %v2176
    %v3317 = vunpack.c.h.b16 %v2176
    %v3318 = vunpack.c.l.b16 %v2177
    %v3319 = vunpack.c.h.b16 %v2177
    %v3320 = vunpack.c.l.b16 %v2178
    %v3321 = vunpack.c.h.b16 %v2178
    %v3322 = vunpack.c.l.b16 %v2179
    %v3323 = vunpack.c.h.b16 %v2179
    %v3324 = vunpack.c.l.b16 %v2180
    %v3325 = vunpack.c.h.b16 %v2180
    %v3326 = vunpack.c.l.b16 %v2181
    %v3327 = vunpack.c.h.b16 %v2181
    %v3328 = vunpack.c.l.b16 %v2182
    %v3329 = vunpack.c.h.b16 %v2182
    %v3330 = vunpack.c.l.b16 %v2183
    %v3331 = vunpack.c.h.b16 %v2183
    %v3332 = vunpack.c.l.b16 %v2184
    %v3333 = vunpack.c.h.b16 %v2184
    %v3334 = vunpack.c.l.b16 %v2185
    %v3335 = vunpack.c.h.b16 %v2185
    %v3336 = vunpack.c.l.b16 %v2186
    %v3337 = vunpack.c.h.b16 %v2186
    %v3338 = vunpack.c.l.b16 %v2187
    %v3339 = vunpack.c.h.b16 %v2187
    %v3340 = vunpack.c.l.b16 %v2188
    %v3341 = vunpack.c.h.b16 %v2188
    %v3342 = vunpack.c.l.b16 %v2189
    %v3343 = vunpack.c.h.b16 %v2189
    %v3344 = vunpack.c.l.b16 %v2190
    %v3345 = vunpack.c.h.b16 %v2190
    %v3346 = vunpack.c.l.b16 %v2191
    %v3347 = vunpack.c.h.b16 %v2191
    %v3348 = vunpack.c.l.b16 %v2192
    %v3349 = vunpack.c.h.b16 %v2192
    %v3350 = vunpack.c.l.b16 %v2193
    %v3351 = vunpack.c.h.b16 %v2193
    %v3352 = vunpack.c.l.b16 %v2194
    %v3353 = vunpack.c.h.b16 %v2194
    %v3354 = vunpack.c.l.b16 %v2195
    %v3355 = vunpack.c.h.b16 %v2195
    %v3356 = vunpack.c.l.b16 %v2196
    %v3357 = vunpack.c.h.b16 %v2196
    %v3358 = vunpack.c.l.b16 %v2197
    %v3359 = vunpack.c.h.b16 %v2197
    %v3360 = vlaneseq
    %v3361 = vand.u32 %v3360, 127
    %v3362 = vlaneseq
    %v3363 = vshrl.u32 %v3362, 7
    %v3364 = vsub.s32 %v3361, %v3363
    %v3365 = vrot.slane %v3040, %v3364
    %v3366 = vadd.s32 %v3361, 4294967288
    %v3367 = vlaneseq
    %v3368 = vshrl.u32 %v3367, 7
    %v3369 = vsub.s32 %v3366, %v3368
    %v3370 = vrot.slane %v3041, %v3369
    %vm3371 = vcmask 130112
    %v3372 = vsel %vm3371, %v3370, %v3365
    %v3373 = vadd.s32 %v3361, 4294967280
    %v3374 = vlaneseq
    %v3375 = vshrl.u32 %v3374, 7
    %v3376 = vsub.s32 %v3373, %v3375
    %v3377 = vrot.slane %v3042, %v3376
    %vm3378 = vcmask 195712
    %v3379 = vsel %vm3378, %v3377, %v3372
    %v3380 = vadd.s32 %v3361, 4294967272
    %v3381 = vlaneseq
    %v3382 = vshrl.u32 %v3381, 7
    %v3383 = vsub.s32 %v3380, %v3382
    %v3384 = vrot.slane %v3043, %v3383
    %vm3385 = vcmask 261312
    %v3386 = vsel %vm3385, %v3384, %v3379
    %v3387 = vadd.s32 %v3361, 4294967264
    %v3388 = vlaneseq
    %v3389 = vshrl.u32 %v3388, 7
    %v3390 = vsub.s32 %v3387, %v3389
    %v3391 = vrot.slane %v3044, %v3390
    %vm3392 = vcmask 326912
    %v3393 = vsel %vm3392, %v3391, %v3386
    %v3394 = vadd.s32 %v3361, 4294967256
    %v3395 = vlaneseq
    %v3396 = vshrl.u32 %v3395, 7
    %v3397 = vsub.s32 %v3394, %v3396
    %v3398 = vrot.slane %v3045, %v3397
    %vm3399 = vcmask 392512
    %v3400 = vsel %vm3399, %v3398, %v3393
    %v3401 = vadd.s32 %v3361, 4294967248
    %v3402 = vlaneseq
    %v3403 = vshrl.u32 %v3402, 7
    %v3404 = vsub.s32 %v3401, %v3403
    %v3405 = vrot.slane %v3046, %v3404
    %vm3406 = vcmask 458112
    %v3407 = vsel %vm3406, %v3405, %v3400
    %v3408 = vadd.s32 %v3361, 4294967240
    %v3409 = vlaneseq
    %v3410 = vshrl.u32 %v3409, 7
    %v3411 = vsub.s32 %v3408, %v3410
    %v3412 = vrot.slane %v3047, %v3411
    %vm3413 = vcmask 523712
    %v3414 = vsel %vm3413, %v3412, %v3407
    %v3415 = vadd.s32 %v3361, 4294967232
    %v3416 = vlaneseq
    %v3417 = vshrl.u32 %v3416, 7
    %v3418 = vsub.s32 %v3415, %v3417
    %v3419 = vrot.slane %v3048, %v3418
    %vm3420 = vcmask 589312
    %v3421 = vsel %vm3420, %v3419, %v3414
    %v3422 = vadd.s32 %v3361, 4294967224
    %v3423 = vlaneseq
    %v3424 = vshrl.u32 %v3423, 7
    %v3425 = vsub.s32 %v3422, %v3424
    %v3426 = vrot.slane %v3049, %v3425
    %vm3427 = vcmask 654912
    %v3428 = vsel %vm3427, %v3426, %v3421
    %v3429 = vadd.s32 %v3361, 4294967216
    %v3430 = vlaneseq
    %v3431 = vshrl.u32 %v3430, 7
    %v3432 = vsub.s32 %v3429, %v3431
    %v3433 = vrot.slane %v3050, %v3432
    %vm3434 = vcmask 720512
    %v3435 = vsel %vm3434, %v3433, %v3428
    %v3436 = vadd.s32 %v3361, 4294967208
    %v3437 = vlaneseq
    %v3438 = vshrl.u32 %v3437, 7
    %v3439 = vsub.s32 %v3436, %v3438
    %v3440 = vrot.slane %v3051, %v3439
    %vm3441 = vcmask 786112
    %v3442 = vsel %vm3441, %v3440, %v3435
    %v3443 = vadd.s32 %v3361, 4294967200
    %v3444 = vlaneseq
    %v3445 = vshrl.u32 %v3444, 7
    %v3446 = vsub.s32 %v3443, %v3445
    %v3447 = vrot.slane %v3052, %v3446
    %vm3448 = vcmask 851712
    %v3449 = vsel %vm3448, %v3447, %v3442
    %v3450 = vadd.s32 %v3361, 4294967192
    %v3451 = vlaneseq
    %v3452 = vshrl.u32 %v3451, 7
    %v3453 = vsub.s32 %v3450, %v3452
    %v3454 = vrot.slane %v3053, %v3453
    %vm3455 = vcmask 917312
    %v3456 = vsel %vm3455, %v3454, %v3449
    %v3457 = vadd.s32 %v3361, 4294967184
    %v3458 = vlaneseq
    %v3459 = vshrl.u32 %v3458, 7
    %v3460 = vsub.s32 %v3457, %v3459
    %v3461 = vrot.slane %v3054, %v3460
    %vm3462 = vcmask 982912
    %v3463 = vsel %vm3462, %v3461, %v3456
    %v3464 = vadd.s32 %v3361, 4294967176
    %v3465 = vlaneseq
    %v3466 = vshrl.u32 %v3465, 7
    %v3467 = vsub.s32 %v3464, %v3466
    %v3468 = vrot.slane %v3055, %v3467
    %vm3469 = vcmask 1048512
    %v3470 = vsel %vm3469, %v3468, %v3463
    %v3471 = vlaneseq
    %v3472 = vshrl.u32 %v3471, 7
    %v3473 = vsub.s32 %v3361, %v3472
    %v3474 = vrot.slane %v3056, %v3473
    %v3475 = vlaneseq
    %v3476 = vshrl.u32 %v3475, 7
    %v3477 = vsub.s32 %v3366, %v3476
    %v3478 = vrot.slane %v3057, %v3477
    %v3479 = vsel %vm3371, %v3478, %v3474
    %v3480 = vlaneseq
    %v3481 = vshrl.u32 %v3480, 7
    %v3482 = vsub.s32 %v3373, %v3481
    %v3483 = vrot.slane %v3058, %v3482
    %v3484 = vsel %vm3378, %v3483, %v3479
    %v3485 = vlaneseq
    %v3486 = vshrl.u32 %v3485, 7
    %v3487 = vsub.s32 %v3380, %v3486
    %v3488 = vrot.slane %v3059, %v3487
    %v3489 = vsel %vm3385, %v3488, %v3484
    %v3490 = vlaneseq
    %v3491 = vshrl.u32 %v3490, 7
    %v3492 = vsub.s32 %v3387, %v3491
    %v3493 = vrot.slane %v3060, %v3492
    %v3494 = vsel %vm3392, %v3493, %v3489
    %v3495 = vlaneseq
    %v3496 = vshrl.u32 %v3495, 7
    %v3497 = vsub.s32 %v3394, %v3496
    %v3498 = vrot.slane %v3061, %v3497
    %v3499 = vsel %vm3399, %v3498, %v3494
    %v3500 = vlaneseq
    %v3501 = vshrl.u32 %v3500, 7
    %v3502 = vsub.s32 %v3401, %v3501
    %v3503 = vrot.slane %v3062, %v3502
    %v3504 = vsel %vm3406, %v3503, %v3499
    %v3505 = vlaneseq
    %v3506 = vshrl.u32 %v3505, 7
    %v3507 = vsub.s32 %v3408, %v3506
    %v3508 = vrot.slane %v3063, %v3507
    %v3509 = vsel %vm3413, %v3508, %v3504
    %v3510 = vlaneseq
    %v3511 = vshrl.u32 %v3510, 7
    %v3512 = vsub.s32 %v3415, %v3511
    %v3513 = vrot.slane %v3064, %v3512
    %v3514 = vsel %vm3420, %v3513, %v3509
    %v3515 = vlaneseq
    %v3516 = vshrl.u32 %v3515, 7
    %v3517 = vsub.s32 %v3422, %v3516
    %v3518 = vrot.slane %v3065, %v3517
    %v3519 = vsel %vm3427, %v3518, %v3514
    %v3520 = vlaneseq
    %v3521 = vshrl.u32 %v3520, 7
    %v3522 = vsub.s32 %v3429, %v3521
    %v3523 = vrot.slane %v3066, %v3522
    %v3524 = vsel %vm3434, %v3523, %v3519
    %v3525 = vlaneseq
    %v3526 = vshrl.u32 %v3525, 7
    %v3527 = vsub.s32 %v3436, %v3526
    %v3528 = vrot.slane %v3067, %v3527
    %v3529 = vsel %vm3441, %v3528, %v3524
    %v3530 = vlaneseq
    %v3531 = vshrl.u32 %v3530, 7
    %v3532 = vsub.s32 %v3443, %v3531
    %v3533 = vrot.slane %v3068, %v3532
    %v3534 = vsel %vm3448, %v3533, %v3529
    %v3535 = vlaneseq
    %v3536 = vshrl.u32 %v3535, 7
    %v3537 = vsub.s32 %v3450, %v3536
    %v3538 = vrot.slane %v3069, %v3537
    %v3539 = vsel %vm3455, %v3538, %v3534
    %v3540 = vlaneseq
    %v3541 = vshrl.u32 %v3540, 7
    %v3542 = vsub.s32 %v3457, %v3541
    %v3543 = vrot.slane %v3070, %v3542
    %v3544 = vsel %vm3462, %v3543, %v3539
    %v3545 = vlaneseq
    %v3546 = vshrl.u32 %v3545, 7
    %v3547 = vsub.s32 %v3464, %v3546
    %v3548 = vrot.slane %v3071, %v3547
    %v3549 = vsel %vm3469, %v3548, %v3544
    %v3550 = vlaneseq
    %v3551 = vshrl.u32 %v3550, 7
    %v3552 = vsub.s32 %v3361, %v3551
    %v3553 = vrot.slane %v3072, %v3552
    %v3554 = vlaneseq
    %v3555 = vshrl.u32 %v3554, 7
    %v3556 = vsub.s32 %v3366, %v3555
    %v3557 = vrot.slane %v3073, %v3556
    %v3558 = vsel %vm3371, %v3557, %v3553
    %v3559 = vlaneseq
    %v3560 = vshrl.u32 %v3559, 7
    %v3561 = vsub.s32 %v3373, %v3560
    %v3562 = vrot.slane %v3074, %v3561
    %v3563 = vsel %vm3378, %v3562, %v3558
    %v3564 = vlaneseq
    %v3565 = vshrl.u32 %v3564, 7
    %v3566 = vsub.s32 %v3380, %v3565
    %v3567 = vrot.slane %v3075, %v3566
    %v3568 = vsel %vm3385, %v3567, %v3563
    %v3569 = vlaneseq
    %v3570 = vshrl.u32 %v3569, 7
    %v3571 = vsub.s32 %v3387, %v3570
    %v3572 = vrot.slane %v3076, %v3571
    %v3573 = vsel %vm3392, %v3572, %v3568
    %v3574 = vlaneseq
    %v3575 = vshrl.u32 %v3574, 7
    %v3576 = vsub.s32 %v3394, %v3575
    %v3577 = vrot.slane %v3077, %v3576
    %v3578 = vsel %vm3399, %v3577, %v3573
    %v3579 = vlaneseq
    %v3580 = vshrl.u32 %v3579, 7
    %v3581 = vsub.s32 %v3401, %v3580
    %v3582 = vrot.slane %v3078, %v3581
    %v3583 = vsel %vm3406, %v3582, %v3578
    %v3584 = vlaneseq
    %v3585 = vshrl.u32 %v3584, 7
    %v3586 = vsub.s32 %v3408, %v3585
    %v3587 = vrot.slane %v3079, %v3586
    %v3588 = vsel %vm3413, %v3587, %v3583
    %v3589 = vlaneseq
    %v3590 = vshrl.u32 %v3589, 7
    %v3591 = vsub.s32 %v3415, %v3590
    %v3592 = vrot.slane %v3080, %v3591
    %v3593 = vsel %vm3420, %v3592, %v3588
    %v3594 = vlaneseq
    %v3595 = vshrl.u32 %v3594, 7
    %v3596 = vsub.s32 %v3422, %v3595
    %v3597 = vrot.slane %v3081, %v3596
    %v3598 = vsel %vm3427, %v3597, %v3593
    %v3599 = vlaneseq
    %v3600 = vshrl.u32 %v3599, 7
    %v3601 = vsub.s32 %v3429, %v3600
    %v3602 = vrot.slane %v3082, %v3601
    %v3603 = vsel %vm3434, %v3602, %v3598
    %v3604 = vlaneseq
    %v3605 = vshrl.u32 %v3604, 7
    %v3606 = vsub.s32 %v3436, %v3605
    %v3607 = vrot.slane %v3083, %v3606
    %v3608 = vsel %vm3441, %v3607, %v3603
    %v3609 = vlaneseq
    %v3610 = vshrl.u32 %v3609, 7
    %v3611 = vsub.s32 %v3443, %v3610
    %v3612 = vrot.slane %v3084, %v3611
    %v3613 = vsel %vm3448, %v3612, %v3608
    %v3614 = vlaneseq
    %v3615 = vshrl.u32 %v3614, 7
    %v3616 = vsub.s32 %v3450, %v3615
    %v3617 = vrot.slane %v3085, %v3616
    %v3618 = vsel %vm3455, %v3617, %v3613
    %v3619 = vlaneseq
    %v3620 = vshrl.u32 %v3619, 7
    %v3621 = vsub.s32 %v3457, %v3620
    %v3622 = vrot.slane %v3086, %v3621
    %v3623 = vsel %vm3462, %v3622, %v3618
    %v3624 = vlaneseq
    %v3625 = vshrl.u32 %v3624, 7
    %v3626 = vsub.s32 %v3464, %v3625
    %v3627 = vrot.slane %v3087, %v3626
    %v3628 = vsel %vm3469, %v3627, %v3623
    %v3629 = vlaneseq
    %v3630 = vshrl.u32 %v3629, 7
    %v3631 = vsub.s32 %v3361, %v3630
    %v3632 = vrot.slane %v3088, %v3631
    %v3633 = vlaneseq
    %v3634 = vshrl.u32 %v3633, 7
    %v3635 = vsub.s32 %v3366, %v3634
    %v3636 = vrot.slane %v3089, %v3635
    %v3637 = vsel %vm3371, %v3636, %v3632
    %v3638 = vlaneseq
    %v3639 = vshrl.u32 %v3638, 7
    %v3640 = vsub.s32 %v3373, %v3639
    %v3641 = vrot.slane %v3090, %v3640
    %v3642 = vsel %vm3378, %v3641, %v3637
    %v3643 = vlaneseq
    %v3644 = vshrl.u32 %v3643, 7
    %v3645 = vsub.s32 %v3380, %v3644
    %v3646 = vrot.slane %v3091, %v3645
    %v3647 = vsel %vm3385, %v3646, %v3642
    %v3648 = vlaneseq
    %v3649 = vshrl.u32 %v3648, 7
    %v3650 = vsub.s32 %v3387, %v3649
    %v3651 = vrot.slane %v3092, %v3650
    %v3652 = vsel %vm3392, %v3651, %v3647
    %v3653 = vlaneseq
    %v3654 = vshrl.u32 %v3653, 7
    %v3655 = vsub.s32 %v3394, %v3654
    %v3656 = vrot.slane %v3093, %v3655
    %v3657 = vsel %vm3399, %v3656, %v3652
    %v3658 = vlaneseq
    %v3659 = vshrl.u32 %v3658, 7
    %v3660 = vsub.s32 %v3401, %v3659
    %v3661 = vrot.slane %v3094, %v3660
    %v3662 = vsel %vm3406, %v3661, %v3657
    %v3663 = vlaneseq
    %v3664 = vshrl.u32 %v3663, 7
    %v3665 = vsub.s32 %v3408, %v3664
    %v3666 = vrot.slane %v3095, %v3665
    %v3667 = vsel %vm3413, %v3666, %v3662
    %v3668 = vlaneseq
    %v3669 = vshrl.u32 %v3668, 7
    %v3670 = vsub.s32 %v3415, %v3669
    %v3671 = vrot.slane %v3096, %v3670
    %v3672 = vsel %vm3420, %v3671, %v3667
    %v3673 = vlaneseq
    %v3674 = vshrl.u32 %v3673, 7
    %v3675 = vsub.s32 %v3422, %v3674
    %v3676 = vrot.slane %v3097, %v3675
    %v3677 = vsel %vm3427, %v3676, %v3672
    %v3678 = vlaneseq
    %v3679 = vshrl.u32 %v3678, 7
    %v3680 = vsub.s32 %v3429, %v3679
    %v3681 = vrot.slane %v3098, %v3680
    %v3682 = vsel %vm3434, %v3681, %v3677
    %v3683 = vlaneseq
    %v3684 = vshrl.u32 %v3683, 7
    %v3685 = vsub.s32 %v3436, %v3684
    %v3686 = vrot.slane %v3099, %v3685
    %v3687 = vsel %vm3441, %v3686, %v3682
    %v3688 = vlaneseq
    %v3689 = vshrl.u32 %v3688, 7
    %v3690 = vsub.s32 %v3443, %v3689
    %v3691 = vrot.slane %v3100, %v3690
    %v3692 = vsel %vm3448, %v3691, %v3687
    %v3693 = vlaneseq
    %v3694 = vshrl.u32 %v3693, 7
    %v3695 = vsub.s32 %v3450, %v3694
    %v3696 = vrot.slane %v3101, %v3695
    %v3697 = vsel %vm3455, %v3696, %v3692
    %v3698 = vlaneseq
    %v3699 = vshrl.u32 %v3698, 7
    %v3700 = vsub.s32 %v3457, %v3699
    %v3701 = vrot.slane %v3102, %v3700
    %v3702 = vsel %vm3462, %v3701, %v3697
    %v3703 = vlaneseq
    %v3704 = vshrl.u32 %v3703, 7
    %v3705 = vsub.s32 %v3464, %v3704
    %v3706 = vrot.slane %v3103, %v3705
    %v3707 = vsel %vm3469, %v3706, %v3702
    %v3708 = vlaneseq
    %v3709 = vshrl.u32 %v3708, 7
    %v3710 = vsub.s32 %v3361, %v3709
    %v3711 = vrot.slane %v3104, %v3710
    %v3712 = vlaneseq
    %v3713 = vshrl.u32 %v3712, 7
    %v3714 = vsub.s32 %v3366, %v3713
    %v3715 = vrot.slane %v3105, %v3714
    %v3716 = vsel %vm3371, %v3715, %v3711
    %v3717 = vlaneseq
    %v3718 = vshrl.u32 %v3717, 7
    %v3719 = vsub.s32 %v3373, %v3718
    %v3720 = vrot.slane %v3106, %v3719
    %v3721 = vsel %vm3378, %v3720, %v3716
    %v3722 = vlaneseq
    %v3723 = vshrl.u32 %v3722, 7
    %v3724 = vsub.s32 %v3380, %v3723
    %v3725 = vrot.slane %v3107, %v3724
    %v3726 = vsel %vm3385, %v3725, %v3721
    %v3727 = vlaneseq
    %v3728 = vshrl.u32 %v3727, 7
    %v3729 = vsub.s32 %v3387, %v3728
    %v3730 = vrot.slane %v3108, %v3729
    %v3731 = vsel %vm3392, %v3730, %v3726
    %v3732 = vlaneseq
    %v3733 = vshrl.u32 %v3732, 7
    %v3734 = vsub.s32 %v3394, %v3733
    %v3735 = vrot.slane %v3109, %v3734
    %v3736 = vsel %vm3399, %v3735, %v3731
    %v3737 = vlaneseq
    %v3738 = vshrl.u32 %v3737, 7
    %v3739 = vsub.s32 %v3401, %v3738
    %v3740 = vrot.slane %v3110, %v3739
    %v3741 = vsel %vm3406, %v3740, %v3736
    %v3742 = vlaneseq
    %v3743 = vshrl.u32 %v3742, 7
    %v3744 = vsub.s32 %v3408, %v3743
    %v3745 = vrot.slane %v3111, %v3744
    %v3746 = vsel %vm3413, %v3745, %v3741
    %v3747 = vlaneseq
    %v3748 = vshrl.u32 %v3747, 7
    %v3749 = vsub.s32 %v3415, %v3748
    %v3750 = vrot.slane %v3112, %v3749
    %v3751 = vsel %vm3420, %v3750, %v3746
    %v3752 = vlaneseq
    %v3753 = vshrl.u32 %v3752, 7
    %v3754 = vsub.s32 %v3422, %v3753
    %v3755 = vrot.slane %v3113, %v3754
    %v3756 = vsel %vm3427, %v3755, %v3751
    %v3757 = vlaneseq
    %v3758 = vshrl.u32 %v3757, 7
    %v3759 = vsub.s32 %v3429, %v3758
    %v3760 = vrot.slane %v3114, %v3759
    %v3761 = vsel %vm3434, %v3760, %v3756
    %v3762 = vlaneseq
    %v3763 = vshrl.u32 %v3762, 7
    %v3764 = vsub.s32 %v3436, %v3763
    %v3765 = vrot.slane %v3115, %v3764
    %v3766 = vsel %vm3441, %v3765, %v3761
    %v3767 = vlaneseq
    %v3768 = vshrl.u32 %v3767, 7
    %v3769 = vsub.s32 %v3443, %v3768
    %v3770 = vrot.slane %v3116, %v3769
    %v3771 = vsel %vm3448, %v3770, %v3766
    %v3772 = vlaneseq
    %v3773 = vshrl.u32 %v3772, 7
    %v3774 = vsub.s32 %v3450, %v3773
    %v3775 = vrot.slane %v3117, %v3774
    %v3776 = vsel %vm3455, %v3775, %v3771
    %v3777 = vlaneseq
    %v3778 = vshrl.u32 %v3777, 7
    %v3779 = vsub.s32 %v3457, %v3778
    %v3780 = vrot.slane %v3118, %v3779
    %v3781 = vsel %vm3462, %v3780, %v3776
    %v3782 = vlaneseq
    %v3783 = vshrl.u32 %v3782, 7
    %v3784 = vsub.s32 %v3464, %v3783
    %v3785 = vrot.slane %v3119, %v3784
    %v3786 = vsel %vm3469, %v3785, %v3781
    %v3787 = vlaneseq
    %v3788 = vshrl.u32 %v3787, 7
    %v3789 = vsub.s32 %v3361, %v3788
    %v3790 = vrot.slane %v3120, %v3789
    %v3791 = vlaneseq
    %v3792 = vshrl.u32 %v3791, 7
    %v3793 = vsub.s32 %v3366, %v3792
    %v3794 = vrot.slane %v3121, %v3793
    %v3795 = vsel %vm3371, %v3794, %v3790
    %v3796 = vlaneseq
    %v3797 = vshrl.u32 %v3796, 7
    %v3798 = vsub.s32 %v3373, %v3797
    %v3799 = vrot.slane %v3122, %v3798
    %v3800 = vsel %vm3378, %v3799, %v3795
    %v3801 = vlaneseq
    %v3802 = vshrl.u32 %v3801, 7
    %v3803 = vsub.s32 %v3380, %v3802
    %v3804 = vrot.slane %v3123, %v3803
    %v3805 = vsel %vm3385, %v3804, %v3800
    %v3806 = vlaneseq
    %v3807 = vshrl.u32 %v3806, 7
    %v3808 = vsub.s32 %v3387, %v3807
    %v3809 = vrot.slane %v3124, %v3808
    %v3810 = vsel %vm3392, %v3809, %v3805
    %v3811 = vlaneseq
    %v3812 = vshrl.u32 %v3811, 7
    %v3813 = vsub.s32 %v3394, %v3812
    %v3814 = vrot.slane %v3125, %v3813
    %v3815 = vsel %vm3399, %v3814, %v3810
    %v3816 = vlaneseq
    %v3817 = vshrl.u32 %v3816, 7
    %v3818 = vsub.s32 %v3401, %v3817
    %v3819 = vrot.slane %v3126, %v3818
    %v3820 = vsel %vm3406, %v3819, %v3815
    %v3821 = vlaneseq
    %v3822 = vshrl.u32 %v3821, 7
    %v3823 = vsub.s32 %v3408, %v3822
    %v3824 = vrot.slane %v3127, %v3823
    %v3825 = vsel %vm3413, %v3824, %v3820
    %v3826 = vlaneseq
    %v3827 = vshrl.u32 %v3826, 7
    %v3828 = vsub.s32 %v3415, %v3827
    %v3829 = vrot.slane %v3128, %v3828
    %v3830 = vsel %vm3420, %v3829, %v3825
    %v3831 = vlaneseq
    %v3832 = vshrl.u32 %v3831, 7
    %v3833 = vsub.s32 %v3422, %v3832
    %v3834 = vrot.slane %v3129, %v3833
    %v3835 = vsel %vm3427, %v3834, %v3830
    %v3836 = vlaneseq
    %v3837 = vshrl.u32 %v3836, 7
    %v3838 = vsub.s32 %v3429, %v3837
    %v3839 = vrot.slane %v3130, %v3838
    %v3840 = vsel %vm3434, %v3839, %v3835
    %v3841 = vlaneseq
    %v3842 = vshrl.u32 %v3841, 7
    %v3843 = vsub.s32 %v3436, %v3842
    %v3844 = vrot.slane %v3131, %v3843
    %v3845 = vsel %vm3441, %v3844, %v3840
    %v3846 = vlaneseq
    %v3847 = vshrl.u32 %v3846, 7
    %v3848 = vsub.s32 %v3443, %v3847
    %v3849 = vrot.slane %v3132, %v3848
    %v3850 = vsel %vm3448, %v3849, %v3845
    %v3851 = vlaneseq
    %v3852 = vshrl.u32 %v3851, 7
    %v3853 = vsub.s32 %v3450, %v3852
    %v3854 = vrot.slane %v3133, %v3853
    %v3855 = vsel %vm3455, %v3854, %v3850
    %v3856 = vlaneseq
    %v3857 = vshrl.u32 %v3856, 7
    %v3858 = vsub.s32 %v3457, %v3857
    %v3859 = vrot.slane %v3134, %v3858
    %v3860 = vsel %vm3462, %v3859, %v3855
    %v3861 = vlaneseq
    %v3862 = vshrl.u32 %v3861, 7
    %v3863 = vsub.s32 %v3464, %v3862
    %v3864 = vrot.slane %v3135, %v3863
    %v3865 = vsel %vm3469, %v3864, %v3860
    %v3866 = vlaneseq
    %v3867 = vshrl.u32 %v3866, 7
    %v3868 = vsub.s32 %v3361, %v3867
    %v3869 = vrot.slane %v3136, %v3868
    %v3870 = vlaneseq
    %v3871 = vshrl.u32 %v3870, 7
    %v3872 = vsub.s32 %v3366, %v3871
    %v3873 = vrot.slane %v3137, %v3872
    %v3874 = vsel %vm3371, %v3873, %v3869
    %v3875 = vlaneseq
    %v3876 = vshrl.u32 %v3875, 7
    %v3877 = vsub.s32 %v3373, %v3876
    %v3878 = vrot.slane %v3138, %v3877
    %v3879 = vsel %vm3378, %v3878, %v3874
    %v3880 = vlaneseq
    %v3881 = vshrl.u32 %v3880, 7
    %v3882 = vsub.s32 %v3380, %v3881
    %v3883 = vrot.slane %v3139, %v3882
    %v3884 = vsel %vm3385, %v3883, %v3879
    %v3885 = vlaneseq
    %v3886 = vshrl.u32 %v3885, 7
    %v3887 = vsub.s32 %v3387, %v3886
    %v3888 = vrot.slane %v3140, %v3887
    %v3889 = vsel %vm3392, %v3888, %v3884
    %v3890 = vlaneseq
    %v3891 = vshrl.u32 %v3890, 7
    %v3892 = vsub.s32 %v3394, %v3891
    %v3893 = vrot.slane %v3141, %v3892
    %v3894 = vsel %vm3399, %v3893, %v3889
    %v3895 = vlaneseq
    %v3896 = vshrl.u32 %v3895, 7
    %v3897 = vsub.s32 %v3401, %v3896
    %v3898 = vrot.slane %v3142, %v3897
    %v3899 = vsel %vm3406, %v3898, %v3894
    %v3900 = vlaneseq
    %v3901 = vshrl.u32 %v3900, 7
    %v3902 = vsub.s32 %v3408, %v3901
    %v3903 = vrot.slane %v3143, %v3902
    %v3904 = vsel %vm3413, %v3903, %v3899
    %v3905 = vlaneseq
    %v3906 = vshrl.u32 %v3905, 7
    %v3907 = vsub.s32 %v3415, %v3906
    %v3908 = vrot.slane %v3144, %v3907
    %v3909 = vsel %vm3420, %v3908, %v3904
    %v3910 = vlaneseq
    %v3911 = vshrl.u32 %v3910, 7
    %v3912 = vsub.s32 %v3422, %v3911
    %v3913 = vrot.slane %v3145, %v3912
    %v3914 = vsel %vm3427, %v3913, %v3909
    %v3915 = vlaneseq
    %v3916 = vshrl.u32 %v3915, 7
    %v3917 = vsub.s32 %v3429, %v3916
    %v3918 = vrot.slane %v3146, %v3917
    %v3919 = vsel %vm3434, %v3918, %v3914
    %v3920 = vlaneseq
    %v3921 = vshrl.u32 %v3920, 7
    %v3922 = vsub.s32 %v3436, %v3921
    %v3923 = vrot.slane %v3147, %v3922
    %v3924 = vsel %vm3441, %v3923, %v3919
    %v3925 = vlaneseq
    %v3926 = vshrl.u32 %v3925, 7
    %v3927 = vsub.s32 %v3443, %v3926
    %v3928 = vrot.slane %v3148, %v3927
    %v3929 = vsel %vm3448, %v3928, %v3924
    %v3930 = vlaneseq
    %v3931 = vshrl.u32 %v3930, 7
    %v3932 = vsub.s32 %v3450, %v3931
    %v3933 = vrot.slane %v3149, %v3932
    %v3934 = vsel %vm3455, %v3933, %v3929
    %v3935 = vlaneseq
    %v3936 = vshrl.u32 %v3935, 7
    %v3937 = vsub.s32 %v3457, %v3936
    %v3938 = vrot.slane %v3150, %v3937
    %v3939 = vsel %vm3462, %v3938, %v3934
    %v3940 = vlaneseq
    %v3941 = vshrl.u32 %v3940, 7
    %v3942 = vsub.s32 %v3464, %v3941
    %v3943 = vrot.slane %v3151, %v3942
    %v3944 = vsel %vm3469, %v3943, %v3939
    %v3945 = vlaneseq
    %v3946 = vshrl.u32 %v3945, 7
    %v3947 = vsub.s32 %v3361, %v3946
    %v3948 = vrot.slane %v3152, %v3947
    %v3949 = vlaneseq
    %v3950 = vshrl.u32 %v3949, 7
    %v3951 = vsub.s32 %v3366, %v3950
    %v3952 = vrot.slane %v3153, %v3951
    %v3953 = vsel %vm3371, %v3952, %v3948
    %v3954 = vlaneseq
    %v3955 = vshrl.u32 %v3954, 7
    %v3956 = vsub.s32 %v3373, %v3955
    %v3957 = vrot.slane %v3154, %v3956
    %v3958 = vsel %vm3378, %v3957, %v3953
    %v3959 = vlaneseq
    %v3960 = vshrl.u32 %v3959, 7
    %v3961 = vsub.s32 %v3380, %v3960
    %v3962 = vrot.slane %v3155, %v3961
    %v3963 = vsel %vm3385, %v3962, %v3958
    %v3964 = vlaneseq
    %v3965 = vshrl.u32 %v3964, 7
    %v3966 = vsub.s32 %v3387, %v3965
    %v3967 = vrot.slane %v3156, %v3966
    %v3968 = vsel %vm3392, %v3967, %v3963
    %v3969 = vlaneseq
    %v3970 = vshrl.u32 %v3969, 7
    %v3971 = vsub.s32 %v3394, %v3970
    %v3972 = vrot.slane %v3157, %v3971
    %v3973 = vsel %vm3399, %v3972, %v3968
    %v3974 = vlaneseq
    %v3975 = vshrl.u32 %v3974, 7
    %v3976 = vsub.s32 %v3401, %v3975
    %v3977 = vrot.slane %v3158, %v3976
    %v3978 = vsel %vm3406, %v3977, %v3973
    %v3979 = vlaneseq
    %v3980 = vshrl.u32 %v3979, 7
    %v3981 = vsub.s32 %v3408, %v3980
    %v3982 = vrot.slane %v3159, %v3981
    %v3983 = vsel %vm3413, %v3982, %v3978
    %v3984 = vlaneseq
    %v3985 = vshrl.u32 %v3984, 7
    %v3986 = vsub.s32 %v3415, %v3985
    %v3987 = vrot.slane %v3160, %v3986
    %v3988 = vsel %vm3420, %v3987, %v3983
    %v3989 = vlaneseq
    %v3990 = vshrl.u32 %v3989, 7
    %v3991 = vsub.s32 %v3422, %v3990
    %v3992 = vrot.slane %v3161, %v3991
    %v3993 = vsel %vm3427, %v3992, %v3988
    %v3994 = vlaneseq
    %v3995 = vshrl.u32 %v3994, 7
    %v3996 = vsub.s32 %v3429, %v3995
    %v3997 = vrot.slane %v3162, %v3996
    %v3998 = vsel %vm3434, %v3997, %v3993
    %v3999 = vlaneseq
    %v4000 = vshrl.u32 %v3999, 7
    %v4001 = vsub.s32 %v3436, %v4000
    %v4002 = vrot.slane %v3163, %v4001
    %v4003 = vsel %vm3441, %v4002, %v3998
    %v4004 = vlaneseq
    %v4005 = vshrl.u32 %v4004, 7
    %v4006 = vsub.s32 %v3443, %v4005
    %v4007 = vrot.slane %v3164, %v4006
    %v4008 = vsel %vm3448, %v4007, %v4003
    %v4009 = vlaneseq
    %v4010 = vshrl.u32 %v4009, 7
    %v4011 = vsub.s32 %v3450, %v4010
    %v4012 = vrot.slane %v3165, %v4011
    %v4013 = vsel %vm3455, %v4012, %v4008
    %v4014 = vlaneseq
    %v4015 = vshrl.u32 %v4014, 7
    %v4016 = vsub.s32 %v3457, %v4015
    %v4017 = vrot.slane %v3166, %v4016
    %v4018 = vsel %vm3462, %v4017, %v4013
    %v4019 = vlaneseq
    %v4020 = vshrl.u32 %v4019, 7
    %v4021 = vsub.s32 %v3464, %v4020
    %v4022 = vrot.slane %v3167, %v4021
    %v4023 = vsel %vm3469, %v4022, %v4018
    %v4024 = vlaneseq
    %v4025 = vshrl.u32 %v4024, 7
    %v4026 = vsub.s32 %v3361, %v4025
    %v4027 = vrot.slane %v3168, %v4026
    %v4028 = vlaneseq
    %v4029 = vshrl.u32 %v4028, 7
    %v4030 = vsub.s32 %v3366, %v4029
    %v4031 = vrot.slane %v3169, %v4030
    %v4032 = vsel %vm3371, %v4031, %v4027
    %v4033 = vlaneseq
    %v4034 = vshrl.u32 %v4033, 7
    %v4035 = vsub.s32 %v3373, %v4034
    %v4036 = vrot.slane %v3170, %v4035
    %v4037 = vsel %vm3378, %v4036, %v4032
    %v4038 = vlaneseq
    %v4039 = vshrl.u32 %v4038, 7
    %v4040 = vsub.s32 %v3380, %v4039
    %v4041 = vrot.slane %v3171, %v4040
    %v4042 = vsel %vm3385, %v4041, %v4037
    %v4043 = vlaneseq
    %v4044 = vshrl.u32 %v4043, 7
    %v4045 = vsub.s32 %v3387, %v4044
    %v4046 = vrot.slane %v3172, %v4045
    %v4047 = vsel %vm3392, %v4046, %v4042
    %v4048 = vlaneseq
    %v4049 = vshrl.u32 %v4048, 7
    %v4050 = vsub.s32 %v3394, %v4049
    %v4051 = vrot.slane %v3173, %v4050
    %v4052 = vsel %vm3399, %v4051, %v4047
    %v4053 = vlaneseq
    %v4054 = vshrl.u32 %v4053, 7
    %v4055 = vsub.s32 %v3401, %v4054
    %v4056 = vrot.slane %v3174, %v4055
    %v4057 = vsel %vm3406, %v4056, %v4052
    %v4058 = vlaneseq
    %v4059 = vshrl.u32 %v4058, 7
    %v4060 = vsub.s32 %v3408, %v4059
    %v4061 = vrot.slane %v3175, %v4060
    %v4062 = vsel %vm3413, %v4061, %v4057
    %v4063 = vlaneseq
    %v4064 = vshrl.u32 %v4063, 7
    %v4065 = vsub.s32 %v3415, %v4064
    %v4066 = vrot.slane %v3176, %v4065
    %v4067 = vsel %vm3420, %v4066, %v4062
    %v4068 = vlaneseq
    %v4069 = vshrl.u32 %v4068, 7
    %v4070 = vsub.s32 %v3422, %v4069
    %v4071 = vrot.slane %v3177, %v4070
    %v4072 = vsel %vm3427, %v4071, %v4067
    %v4073 = vlaneseq
    %v4074 = vshrl.u32 %v4073, 7
    %v4075 = vsub.s32 %v3429, %v4074
    %v4076 = vrot.slane %v3178, %v4075
    %v4077 = vsel %vm3434, %v4076, %v4072
    %v4078 = vlaneseq
    %v4079 = vshrl.u32 %v4078, 7
    %v4080 = vsub.s32 %v3436, %v4079
    %v4081 = vrot.slane %v3179, %v4080
    %v4082 = vsel %vm3441, %v4081, %v4077
    %v4083 = vlaneseq
    %v4084 = vshrl.u32 %v4083, 7
    %v4085 = vsub.s32 %v3443, %v4084
    %v4086 = vrot.slane %v3180, %v4085
    %v4087 = vsel %vm3448, %v4086, %v4082
    %v4088 = vlaneseq
    %v4089 = vshrl.u32 %v4088, 7
    %v4090 = vsub.s32 %v3450, %v4089
    %v4091 = vrot.slane %v3181, %v4090
    %v4092 = vsel %vm3455, %v4091, %v4087
    %v4093 = vlaneseq
    %v4094 = vshrl.u32 %v4093, 7
    %v4095 = vsub.s32 %v3457, %v4094
    %v4096 = vrot.slane %v3182, %v4095
    %v4097 = vsel %vm3462, %v4096, %v4092
    %v4098 = vlaneseq
    %v4099 = vshrl.u32 %v4098, 7
    %v4100 = vsub.s32 %v3464, %v4099
    %v4101 = vrot.slane %v3183, %v4100
    %v4102 = vsel %vm3469, %v4101, %v4097
    %v4103 = vlaneseq
    %v4104 = vshrl.u32 %v4103, 7
    %v4105 = vsub.s32 %v3361, %v4104
    %v4106 = vrot.slane %v3184, %v4105
    %v4107 = vlaneseq
    %v4108 = vshrl.u32 %v4107, 7
    %v4109 = vsub.s32 %v3366, %v4108
    %v4110 = vrot.slane %v3185, %v4109
    %v4111 = vsel %vm3371, %v4110, %v4106
    %v4112 = vlaneseq
    %v4113 = vshrl.u32 %v4112, 7
    %v4114 = vsub.s32 %v3373, %v4113
    %v4115 = vrot.slane %v3186, %v4114
    %v4116 = vsel %vm3378, %v4115, %v4111
    %v4117 = vlaneseq
    %v4118 = vshrl.u32 %v4117, 7
    %v4119 = vsub.s32 %v3380, %v4118
    %v4120 = vrot.slane %v3187, %v4119
    %v4121 = vsel %vm3385, %v4120, %v4116
    %v4122 = vlaneseq
    %v4123 = vshrl.u32 %v4122, 7
    %v4124 = vsub.s32 %v3387, %v4123
    %v4125 = vrot.slane %v3188, %v4124
    %v4126 = vsel %vm3392, %v4125, %v4121
    %v4127 = vlaneseq
    %v4128 = vshrl.u32 %v4127, 7
    %v4129 = vsub.s32 %v3394, %v4128
    %v4130 = vrot.slane %v3189, %v4129
    %v4131 = vsel %vm3399, %v4130, %v4126
    %v4132 = vlaneseq
    %v4133 = vshrl.u32 %v4132, 7
    %v4134 = vsub.s32 %v3401, %v4133
    %v4135 = vrot.slane %v3190, %v4134
    %v4136 = vsel %vm3406, %v4135, %v4131
    %v4137 = vlaneseq
    %v4138 = vshrl.u32 %v4137, 7
    %v4139 = vsub.s32 %v3408, %v4138
    %v4140 = vrot.slane %v3191, %v4139
    %v4141 = vsel %vm3413, %v4140, %v4136
    %v4142 = vlaneseq
    %v4143 = vshrl.u32 %v4142, 7
    %v4144 = vsub.s32 %v3415, %v4143
    %v4145 = vrot.slane %v3192, %v4144
    %v4146 = vsel %vm3420, %v4145, %v4141
    %v4147 = vlaneseq
    %v4148 = vshrl.u32 %v4147, 7
    %v4149 = vsub.s32 %v3422, %v4148
    %v4150 = vrot.slane %v3193, %v4149
    %v4151 = vsel %vm3427, %v4150, %v4146
    %v4152 = vlaneseq
    %v4153 = vshrl.u32 %v4152, 7
    %v4154 = vsub.s32 %v3429, %v4153
    %v4155 = vrot.slane %v3194, %v4154
    %v4156 = vsel %vm3434, %v4155, %v4151
    %v4157 = vlaneseq
    %v4158 = vshrl.u32 %v4157, 7
    %v4159 = vsub.s32 %v3436, %v4158
    %v4160 = vrot.slane %v3195, %v4159
    %v4161 = vsel %vm3441, %v4160, %v4156
    %v4162 = vlaneseq
    %v4163 = vshrl.u32 %v4162, 7
    %v4164 = vsub.s32 %v3443, %v4163
    %v4165 = vrot.slane %v3196, %v4164
    %v4166 = vsel %vm3448, %v4165, %v4161
    %v4167 = vlaneseq
    %v4168 = vshrl.u32 %v4167, 7
    %v4169 = vsub.s32 %v3450, %v4168
    %v4170 = vrot.slane %v3197, %v4169
    %v4171 = vsel %vm3455, %v4170, %v4166
    %v4172 = vlaneseq
    %v4173 = vshrl.u32 %v4172, 7
    %v4174 = vsub.s32 %v3457, %v4173
    %v4175 = vrot.slane %v3198, %v4174
    %v4176 = vsel %vm3462, %v4175, %v4171
    %v4177 = vlaneseq
    %v4178 = vshrl.u32 %v4177, 7
    %v4179 = vsub.s32 %v3464, %v4178
    %v4180 = vrot.slane %v3199, %v4179
    %v4181 = vsel %vm3469, %v4180, %v4176
    %v4182 = vlaneseq
    %v4183 = vshrl.u32 %v4182, 7
    %v4184 = vsub.s32 %v3361, %v4183
    %v4185 = vrot.slane %v3200, %v4184
    %v4186 = vlaneseq
    %v4187 = vshrl.u32 %v4186, 7
    %v4188 = vsub.s32 %v3366, %v4187
    %v4189 = vrot.slane %v3201, %v4188
    %v4190 = vsel %vm3371, %v4189, %v4185
    %v4191 = vlaneseq
    %v4192 = vshrl.u32 %v4191, 7
    %v4193 = vsub.s32 %v3373, %v4192
    %v4194 = vrot.slane %v3202, %v4193
    %v4195 = vsel %vm3378, %v4194, %v4190
    %v4196 = vlaneseq
    %v4197 = vshrl.u32 %v4196, 7
    %v4198 = vsub.s32 %v3380, %v4197
    %v4199 = vrot.slane %v3203, %v4198
    %v4200 = vsel %vm3385, %v4199, %v4195
    %v4201 = vlaneseq
    %v4202 = vshrl.u32 %v4201, 7
    %v4203 = vsub.s32 %v3387, %v4202
    %v4204 = vrot.slane %v3204, %v4203
    %v4205 = vsel %vm3392, %v4204, %v4200
    %v4206 = vlaneseq
    %v4207 = vshrl.u32 %v4206, 7
    %v4208 = vsub.s32 %v3394, %v4207
    %v4209 = vrot.slane %v3205, %v4208
    %v4210 = vsel %vm3399, %v4209, %v4205
    %v4211 = vlaneseq
    %v4212 = vshrl.u32 %v4211, 7
    %v4213 = vsub.s32 %v3401, %v4212
    %v4214 = vrot.slane %v3206, %v4213
    %v4215 = vsel %vm3406, %v4214, %v4210
    %v4216 = vlaneseq
    %v4217 = vshrl.u32 %v4216, 7
    %v4218 = vsub.s32 %v3408, %v4217
    %v4219 = vrot.slane %v3207, %v4218
    %v4220 = vsel %vm3413, %v4219, %v4215
    %v4221 = vlaneseq
    %v4222 = vshrl.u32 %v4221, 7
    %v4223 = vsub.s32 %v3415, %v4222
    %v4224 = vrot.slane %v3208, %v4223
    %v4225 = vsel %vm3420, %v4224, %v4220
    %v4226 = vlaneseq
    %v4227 = vshrl.u32 %v4226, 7
    %v4228 = vsub.s32 %v3422, %v4227
    %v4229 = vrot.slane %v3209, %v4228
    %v4230 = vsel %vm3427, %v4229, %v4225
    %v4231 = vlaneseq
    %v4232 = vshrl.u32 %v4231, 7
    %v4233 = vsub.s32 %v3429, %v4232
    %v4234 = vrot.slane %v3210, %v4233
    %v4235 = vsel %vm3434, %v4234, %v4230
    %v4236 = vlaneseq
    %v4237 = vshrl.u32 %v4236, 7
    %v4238 = vsub.s32 %v3436, %v4237
    %v4239 = vrot.slane %v3211, %v4238
    %v4240 = vsel %vm3441, %v4239, %v4235
    %v4241 = vlaneseq
    %v4242 = vshrl.u32 %v4241, 7
    %v4243 = vsub.s32 %v3443, %v4242
    %v4244 = vrot.slane %v3212, %v4243
    %v4245 = vsel %vm3448, %v4244, %v4240
    %v4246 = vlaneseq
    %v4247 = vshrl.u32 %v4246, 7
    %v4248 = vsub.s32 %v3450, %v4247
    %v4249 = vrot.slane %v3213, %v4248
    %v4250 = vsel %vm3455, %v4249, %v4245
    %v4251 = vlaneseq
    %v4252 = vshrl.u32 %v4251, 7
    %v4253 = vsub.s32 %v3457, %v4252
    %v4254 = vrot.slane %v3214, %v4253
    %v4255 = vsel %vm3462, %v4254, %v4250
    %v4256 = vlaneseq
    %v4257 = vshrl.u32 %v4256, 7
    %v4258 = vsub.s32 %v3464, %v4257
    %v4259 = vrot.slane %v3215, %v4258
    %v4260 = vsel %vm3469, %v4259, %v4255
    %v4261 = vlaneseq
    %v4262 = vshrl.u32 %v4261, 7
    %v4263 = vsub.s32 %v3361, %v4262
    %v4264 = vrot.slane %v3216, %v4263
    %v4265 = vlaneseq
    %v4266 = vshrl.u32 %v4265, 7
    %v4267 = vsub.s32 %v3366, %v4266
    %v4268 = vrot.slane %v3217, %v4267
    %v4269 = vsel %vm3371, %v4268, %v4264
    %v4270 = vlaneseq
    %v4271 = vshrl.u32 %v4270, 7
    %v4272 = vsub.s32 %v3373, %v4271
    %v4273 = vrot.slane %v3218, %v4272
    %v4274 = vsel %vm3378, %v4273, %v4269
    %v4275 = vlaneseq
    %v4276 = vshrl.u32 %v4275, 7
    %v4277 = vsub.s32 %v3380, %v4276
    %v4278 = vrot.slane %v3219, %v4277
    %v4279 = vsel %vm3385, %v4278, %v4274
    %v4280 = vlaneseq
    %v4281 = vshrl.u32 %v4280, 7
    %v4282 = vsub.s32 %v3387, %v4281
    %v4283 = vrot.slane %v3220, %v4282
    %v4284 = vsel %vm3392, %v4283, %v4279
    %v4285 = vlaneseq
    %v4286 = vshrl.u32 %v4285, 7
    %v4287 = vsub.s32 %v3394, %v4286
    %v4288 = vrot.slane %v3221, %v4287
    %v4289 = vsel %vm3399, %v4288, %v4284
    %v4290 = vlaneseq
    %v4291 = vshrl.u32 %v4290, 7
    %v4292 = vsub.s32 %v3401, %v4291
    %v4293 = vrot.slane %v3222, %v4292
    %v4294 = vsel %vm3406, %v4293, %v4289
    %v4295 = vlaneseq
    %v4296 = vshrl.u32 %v4295, 7
    %v4297 = vsub.s32 %v3408, %v4296
    %v4298 = vrot.slane %v3223, %v4297
    %v4299 = vsel %vm3413, %v4298, %v4294
    %v4300 = vlaneseq
    %v4301 = vshrl.u32 %v4300, 7
    %v4302 = vsub.s32 %v3415, %v4301
    %v4303 = vrot.slane %v3224, %v4302
    %v4304 = vsel %vm3420, %v4303, %v4299
    %v4305 = vlaneseq
    %v4306 = vshrl.u32 %v4305, 7
    %v4307 = vsub.s32 %v3422, %v4306
    %v4308 = vrot.slane %v3225, %v4307
    %v4309 = vsel %vm3427, %v4308, %v4304
    %v4310 = vlaneseq
    %v4311 = vshrl.u32 %v4310, 7
    %v4312 = vsub.s32 %v3429, %v4311
    %v4313 = vrot.slane %v3226, %v4312
    %v4314 = vsel %vm3434, %v4313, %v4309
    %v4315 = vlaneseq
    %v4316 = vshrl.u32 %v4315, 7
    %v4317 = vsub.s32 %v3436, %v4316
    %v4318 = vrot.slane %v3227, %v4317
    %v4319 = vsel %vm3441, %v4318, %v4314
    %v4320 = vlaneseq
    %v4321 = vshrl.u32 %v4320, 7
    %v4322 = vsub.s32 %v3443, %v4321
    %v4323 = vrot.slane %v3228, %v4322
    %v4324 = vsel %vm3448, %v4323, %v4319
    %v4325 = vlaneseq
    %v4326 = vshrl.u32 %v4325, 7
    %v4327 = vsub.s32 %v3450, %v4326
    %v4328 = vrot.slane %v3229, %v4327
    %v4329 = vsel %vm3455, %v4328, %v4324
    %v4330 = vlaneseq
    %v4331 = vshrl.u32 %v4330, 7
    %v4332 = vsub.s32 %v3457, %v4331
    %v4333 = vrot.slane %v3230, %v4332
    %v4334 = vsel %vm3462, %v4333, %v4329
    %v4335 = vlaneseq
    %v4336 = vshrl.u32 %v4335, 7
    %v4337 = vsub.s32 %v3464, %v4336
    %v4338 = vrot.slane %v3231, %v4337
    %v4339 = vsel %vm3469, %v4338, %v4334
    %v4340 = vlaneseq
    %v4341 = vshrl.u32 %v4340, 7
    %v4342 = vsub.s32 %v3361, %v4341
    %v4343 = vrot.slane %v3232, %v4342
    %v4344 = vlaneseq
    %v4345 = vshrl.u32 %v4344, 7
    %v4346 = vsub.s32 %v3366, %v4345
    %v4347 = vrot.slane %v3233, %v4346
    %v4348 = vsel %vm3371, %v4347, %v4343
    %v4349 = vlaneseq
    %v4350 = vshrl.u32 %v4349, 7
    %v4351 = vsub.s32 %v3373, %v4350
    %v4352 = vrot.slane %v3234, %v4351
    %v4353 = vsel %vm3378, %v4352, %v4348
    %v4354 = vlaneseq
    %v4355 = vshrl.u32 %v4354, 7
    %v4356 = vsub.s32 %v3380, %v4355
    %v4357 = vrot.slane %v3235, %v4356
    %v4358 = vsel %vm3385, %v4357, %v4353
    %v4359 = vlaneseq
    %v4360 = vshrl.u32 %v4359, 7
    %v4361 = vsub.s32 %v3387, %v4360
    %v4362 = vrot.slane %v3236, %v4361
    %v4363 = vsel %vm3392, %v4362, %v4358
    %v4364 = vlaneseq
    %v4365 = vshrl.u32 %v4364, 7
    %v4366 = vsub.s32 %v3394, %v4365
    %v4367 = vrot.slane %v3237, %v4366
    %v4368 = vsel %vm3399, %v4367, %v4363
    %v4369 = vlaneseq
    %v4370 = vshrl.u32 %v4369, 7
    %v4371 = vsub.s32 %v3401, %v4370
    %v4372 = vrot.slane %v3238, %v4371
    %v4373 = vsel %vm3406, %v4372, %v4368
    %v4374 = vlaneseq
    %v4375 = vshrl.u32 %v4374, 7
    %v4376 = vsub.s32 %v3408, %v4375
    %v4377 = vrot.slane %v3239, %v4376
    %v4378 = vsel %vm3413, %v4377, %v4373
    %v4379 = vlaneseq
    %v4380 = vshrl.u32 %v4379, 7
    %v4381 = vsub.s32 %v3415, %v4380
    %v4382 = vrot.slane %v3240, %v4381
    %v4383 = vsel %vm3420, %v4382, %v4378
    %v4384 = vlaneseq
    %v4385 = vshrl.u32 %v4384, 7
    %v4386 = vsub.s32 %v3422, %v4385
    %v4387 = vrot.slane %v3241, %v4386
    %v4388 = vsel %vm3427, %v4387, %v4383
    %v4389 = vlaneseq
    %v4390 = vshrl.u32 %v4389, 7
    %v4391 = vsub.s32 %v3429, %v4390
    %v4392 = vrot.slane %v3242, %v4391
    %v4393 = vsel %vm3434, %v4392, %v4388
    %v4394 = vlaneseq
    %v4395 = vshrl.u32 %v4394, 7
    %v4396 = vsub.s32 %v3436, %v4395
    %v4397 = vrot.slane %v3243, %v4396
    %v4398 = vsel %vm3441, %v4397, %v4393
    %v4399 = vlaneseq
    %v4400 = vshrl.u32 %v4399, 7
    %v4401 = vsub.s32 %v3443, %v4400
    %v4402 = vrot.slane %v3244, %v4401
    %v4403 = vsel %vm3448, %v4402, %v4398
    %v4404 = vlaneseq
    %v4405 = vshrl.u32 %v4404, 7
    %v4406 = vsub.s32 %v3450, %v4405
    %v4407 = vrot.slane %v3245, %v4406
    %v4408 = vsel %vm3455, %v4407, %v4403
    %v4409 = vlaneseq
    %v4410 = vshrl.u32 %v4409, 7
    %v4411 = vsub.s32 %v3457, %v4410
    %v4412 = vrot.slane %v3246, %v4411
    %v4413 = vsel %vm3462, %v4412, %v4408
    %v4414 = vlaneseq
    %v4415 = vshrl.u32 %v4414, 7
    %v4416 = vsub.s32 %v3464, %v4415
    %v4417 = vrot.slane %v3247, %v4416
    %v4418 = vsel %vm3469, %v4417, %v4413
    %v4419 = vlaneseq
    %v4420 = vshrl.u32 %v4419, 7
    %v4421 = vsub.s32 %v3361, %v4420
    %v4422 = vrot.slane %v3248, %v4421
    %v4423 = vlaneseq
    %v4424 = vshrl.u32 %v4423, 7
    %v4425 = vsub.s32 %v3366, %v4424
    %v4426 = vrot.slane %v3249, %v4425
    %v4427 = vsel %vm3371, %v4426, %v4422
    %v4428 = vlaneseq
    %v4429 = vshrl.u32 %v4428, 7
    %v4430 = vsub.s32 %v3373, %v4429
    %v4431 = vrot.slane %v3250, %v4430
    %v4432 = vsel %vm3378, %v4431, %v4427
    %v4433 = vlaneseq
    %v4434 = vshrl.u32 %v4433, 7
    %v4435 = vsub.s32 %v3380, %v4434
    %v4436 = vrot.slane %v3251, %v4435
    %v4437 = vsel %vm3385, %v4436, %v4432
    %v4438 = vlaneseq
    %v4439 = vshrl.u32 %v4438, 7
    %v4440 = vsub.s32 %v3387, %v4439
    %v4441 = vrot.slane %v3252, %v4440
    %v4442 = vsel %vm3392, %v4441, %v4437
    %v4443 = vlaneseq
    %v4444 = vshrl.u32 %v4443, 7
    %v4445 = vsub.s32 %v3394, %v4444
    %v4446 = vrot.slane %v3253, %v4445
    %v4447 = vsel %vm3399, %v4446, %v4442
    %v4448 = vlaneseq
    %v4449 = vshrl.u32 %v4448, 7
    %v4450 = vsub.s32 %v3401, %v4449
    %v4451 = vrot.slane %v3254, %v4450
    %v4452 = vsel %vm3406, %v4451, %v4447
    %v4453 = vlaneseq
    %v4454 = vshrl.u32 %v4453, 7
    %v4455 = vsub.s32 %v3408, %v4454
    %v4456 = vrot.slane %v3255, %v4455
    %v4457 = vsel %vm3413, %v4456, %v4452
    %v4458 = vlaneseq
    %v4459 = vshrl.u32 %v4458, 7
    %v4460 = vsub.s32 %v3415, %v4459
    %v4461 = vrot.slane %v3256, %v4460
    %v4462 = vsel %vm3420, %v4461, %v4457
    %v4463 = vlaneseq
    %v4464 = vshrl.u32 %v4463, 7
    %v4465 = vsub.s32 %v3422, %v4464
    %v4466 = vrot.slane %v3257, %v4465
    %v4467 = vsel %vm3427, %v4466, %v4462
    %v4468 = vlaneseq
    %v4469 = vshrl.u32 %v4468, 7
    %v4470 = vsub.s32 %v3429, %v4469
    %v4471 = vrot.slane %v3258, %v4470
    %v4472 = vsel %vm3434, %v4471, %v4467
    %v4473 = vlaneseq
    %v4474 = vshrl.u32 %v4473, 7
    %v4475 = vsub.s32 %v3436, %v4474
    %v4476 = vrot.slane %v3259, %v4475
    %v4477 = vsel %vm3441, %v4476, %v4472
    %v4478 = vlaneseq
    %v4479 = vshrl.u32 %v4478, 7
    %v4480 = vsub.s32 %v3443, %v4479
    %v4481 = vrot.slane %v3260, %v4480
    %v4482 = vsel %vm3448, %v4481, %v4477
    %v4483 = vlaneseq
    %v4484 = vshrl.u32 %v4483, 7
    %v4485 = vsub.s32 %v3450, %v4484
    %v4486 = vrot.slane %v3261, %v4485
    %v4487 = vsel %vm3455, %v4486, %v4482
    %v4488 = vlaneseq
    %v4489 = vshrl.u32 %v4488, 7
    %v4490 = vsub.s32 %v3457, %v4489
    %v4491 = vrot.slane %v3262, %v4490
    %v4492 = vsel %vm3462, %v4491, %v4487
    %v4493 = vlaneseq
    %v4494 = vshrl.u32 %v4493, 7
    %v4495 = vsub.s32 %v3464, %v4494
    %v4496 = vrot.slane %v3263, %v4495
    %v4497 = vsel %vm3469, %v4496, %v4492
    %v4498 = vlaneseq
    %v4499 = vshrl.u32 %v4498, 7
    %v4500 = vsub.s32 %v3361, %v4499
    %v4501 = vrot.slane %v3264, %v4500
    %v4502 = vlaneseq
    %v4503 = vshrl.u32 %v4502, 7
    %v4504 = vsub.s32 %v3366, %v4503
    %v4505 = vrot.slane %v3265, %v4504
    %v4506 = vsel %vm3371, %v4505, %v4501
    %v4507 = vlaneseq
    %v4508 = vshrl.u32 %v4507, 7
    %v4509 = vsub.s32 %v3373, %v4508
    %v4510 = vrot.slane %v3266, %v4509
    %v4511 = vsel %vm3378, %v4510, %v4506
    %v4512 = vlaneseq
    %v4513 = vshrl.u32 %v4512, 7
    %v4514 = vsub.s32 %v3380, %v4513
    %v4515 = vrot.slane %v3267, %v4514
    %v4516 = vsel %vm3385, %v4515, %v4511
    %v4517 = vlaneseq
    %v4518 = vshrl.u32 %v4517, 7
    %v4519 = vsub.s32 %v3387, %v4518
    %v4520 = vrot.slane %v3268, %v4519
    %v4521 = vsel %vm3392, %v4520, %v4516
    %v4522 = vlaneseq
    %v4523 = vshrl.u32 %v4522, 7
    %v4524 = vsub.s32 %v3394, %v4523
    %v4525 = vrot.slane %v3269, %v4524
    %v4526 = vsel %vm3399, %v4525, %v4521
    %v4527 = vlaneseq
    %v4528 = vshrl.u32 %v4527, 7
    %v4529 = vsub.s32 %v3401, %v4528
    %v4530 = vrot.slane %v3270, %v4529
    %v4531 = vsel %vm3406, %v4530, %v4526
    %v4532 = vlaneseq
    %v4533 = vshrl.u32 %v4532, 7
    %v4534 = vsub.s32 %v3408, %v4533
    %v4535 = vrot.slane %v3271, %v4534
    %v4536 = vsel %vm3413, %v4535, %v4531
    %v4537 = vlaneseq
    %v4538 = vshrl.u32 %v4537, 7
    %v4539 = vsub.s32 %v3415, %v4538
    %v4540 = vrot.slane %v3272, %v4539
    %v4541 = vsel %vm3420, %v4540, %v4536
    %v4542 = vlaneseq
    %v4543 = vshrl.u32 %v4542, 7
    %v4544 = vsub.s32 %v3422, %v4543
    %v4545 = vrot.slane %v3273, %v4544
    %v4546 = vsel %vm3427, %v4545, %v4541
    %v4547 = vlaneseq
    %v4548 = vshrl.u32 %v4547, 7
    %v4549 = vsub.s32 %v3429, %v4548
    %v4550 = vrot.slane %v3274, %v4549
    %v4551 = vsel %vm3434, %v4550, %v4546
    %v4552 = vlaneseq
    %v4553 = vshrl.u32 %v4552, 7
    %v4554 = vsub.s32 %v3436, %v4553
    %v4555 = vrot.slane %v3275, %v4554
    %v4556 = vsel %vm3441, %v4555, %v4551
    %v4557 = vlaneseq
    %v4558 = vshrl.u32 %v4557, 7
    %v4559 = vsub.s32 %v3443, %v4558
    %v4560 = vrot.slane %v3276, %v4559
    %v4561 = vsel %vm3448, %v4560, %v4556
    %v4562 = vlaneseq
    %v4563 = vshrl.u32 %v4562, 7
    %v4564 = vsub.s32 %v3450, %v4563
    %v4565 = vrot.slane %v3277, %v4564
    %v4566 = vsel %vm3455, %v4565, %v4561
    %v4567 = vlaneseq
    %v4568 = vshrl.u32 %v4567, 7
    %v4569 = vsub.s32 %v3457, %v4568
    %v4570 = vrot.slane %v3278, %v4569
    %v4571 = vsel %vm3462, %v4570, %v4566
    %v4572 = vlaneseq
    %v4573 = vshrl.u32 %v4572, 7
    %v4574 = vsub.s32 %v3464, %v4573
    %v4575 = vrot.slane %v3279, %v4574
    %v4576 = vsel %vm3469, %v4575, %v4571
    %v4577 = vlaneseq
    %v4578 = vshrl.u32 %v4577, 7
    %v4579 = vsub.s32 %v3361, %v4578
    %v4580 = vrot.slane %v3280, %v4579
    %v4581 = vlaneseq
    %v4582 = vshrl.u32 %v4581, 7
    %v4583 = vsub.s32 %v3366, %v4582
    %v4584 = vrot.slane %v3281, %v4583
    %v4585 = vsel %vm3371, %v4584, %v4580
    %v4586 = vlaneseq
    %v4587 = vshrl.u32 %v4586, 7
    %v4588 = vsub.s32 %v3373, %v4587
    %v4589 = vrot.slane %v3282, %v4588
    %v4590 = vsel %vm3378, %v4589, %v4585
    %v4591 = vlaneseq
    %v4592 = vshrl.u32 %v4591, 7
    %v4593 = vsub.s32 %v3380, %v4592
    %v4594 = vrot.slane %v3283, %v4593
    %v4595 = vsel %vm3385, %v4594, %v4590
    %v4596 = vlaneseq
    %v4597 = vshrl.u32 %v4596, 7
    %v4598 = vsub.s32 %v3387, %v4597
    %v4599 = vrot.slane %v3284, %v4598
    %v4600 = vsel %vm3392, %v4599, %v4595
    %v4601 = vlaneseq
    %v4602 = vshrl.u32 %v4601, 7
    %v4603 = vsub.s32 %v3394, %v4602
    %v4604 = vrot.slane %v3285, %v4603
    %v4605 = vsel %vm3399, %v4604, %v4600
    %v4606 = vlaneseq
    %v4607 = vshrl.u32 %v4606, 7
    %v4608 = vsub.s32 %v3401, %v4607
    %v4609 = vrot.slane %v3286, %v4608
    %v4610 = vsel %vm3406, %v4609, %v4605
    %v4611 = vlaneseq
    %v4612 = vshrl.u32 %v4611, 7
    %v4613 = vsub.s32 %v3408, %v4612
    %v4614 = vrot.slane %v3287, %v4613
    %v4615 = vsel %vm3413, %v4614, %v4610
    %v4616 = vlaneseq
    %v4617 = vshrl.u32 %v4616, 7
    %v4618 = vsub.s32 %v3415, %v4617
    %v4619 = vrot.slane %v3288, %v4618
    %v4620 = vsel %vm3420, %v4619, %v4615
    %v4621 = vlaneseq
    %v4622 = vshrl.u32 %v4621, 7
    %v4623 = vsub.s32 %v3422, %v4622
    %v4624 = vrot.slane %v3289, %v4623
    %v4625 = vsel %vm3427, %v4624, %v4620
    %v4626 = vlaneseq
    %v4627 = vshrl.u32 %v4626, 7
    %v4628 = vsub.s32 %v3429, %v4627
    %v4629 = vrot.slane %v3290, %v4628
    %v4630 = vsel %vm3434, %v4629, %v4625
    %v4631 = vlaneseq
    %v4632 = vshrl.u32 %v4631, 7
    %v4633 = vsub.s32 %v3436, %v4632
    %v4634 = vrot.slane %v3291, %v4633
    %v4635 = vsel %vm3441, %v4634, %v4630
    %v4636 = vlaneseq
    %v4637 = vshrl.u32 %v4636, 7
    %v4638 = vsub.s32 %v3443, %v4637
    %v4639 = vrot.slane %v3292, %v4638
    %v4640 = vsel %vm3448, %v4639, %v4635
    %v4641 = vlaneseq
    %v4642 = vshrl.u32 %v4641, 7
    %v4643 = vsub.s32 %v3450, %v4642
    %v4644 = vrot.slane %v3293, %v4643
    %v4645 = vsel %vm3455, %v4644, %v4640
    %v4646 = vlaneseq
    %v4647 = vshrl.u32 %v4646, 7
    %v4648 = vsub.s32 %v3457, %v4647
    %v4649 = vrot.slane %v3294, %v4648
    %v4650 = vsel %vm3462, %v4649, %v4645
    %v4651 = vlaneseq
    %v4652 = vshrl.u32 %v4651, 7
    %v4653 = vsub.s32 %v3464, %v4652
    %v4654 = vrot.slane %v3295, %v4653
    %v4655 = vsel %vm3469, %v4654, %v4650
    %v4656 = vlaneseq
    %v4657 = vshrl.u32 %v4656, 7
    %v4658 = vsub.s32 %v3361, %v4657
    %v4659 = vrot.slane %v3296, %v4658
    %v4660 = vlaneseq
    %v4661 = vshrl.u32 %v4660, 7
    %v4662 = vsub.s32 %v3366, %v4661
    %v4663 = vrot.slane %v3297, %v4662
    %v4664 = vsel %vm3371, %v4663, %v4659
    %v4665 = vlaneseq
    %v4666 = vshrl.u32 %v4665, 7
    %v4667 = vsub.s32 %v3373, %v4666
    %v4668 = vrot.slane %v3298, %v4667
    %v4669 = vsel %vm3378, %v4668, %v4664
    %v4670 = vlaneseq
    %v4671 = vshrl.u32 %v4670, 7
    %v4672 = vsub.s32 %v3380, %v4671
    %v4673 = vrot.slane %v3299, %v4672
    %v4674 = vsel %vm3385, %v4673, %v4669
    %v4675 = vlaneseq
    %v4676 = vshrl.u32 %v4675, 7
    %v4677 = vsub.s32 %v3387, %v4676
    %v4678 = vrot.slane %v3300, %v4677
    %v4679 = vsel %vm3392, %v4678, %v4674
    %v4680 = vlaneseq
    %v4681 = vshrl.u32 %v4680, 7
    %v4682 = vsub.s32 %v3394, %v4681
    %v4683 = vrot.slane %v3301, %v4682
    %v4684 = vsel %vm3399, %v4683, %v4679
    %v4685 = vlaneseq
    %v4686 = vshrl.u32 %v4685, 7
    %v4687 = vsub.s32 %v3401, %v4686
    %v4688 = vrot.slane %v3302, %v4687
    %v4689 = vsel %vm3406, %v4688, %v4684
    %v4690 = vlaneseq
    %v4691 = vshrl.u32 %v4690, 7
    %v4692 = vsub.s32 %v3408, %v4691
    %v4693 = vrot.slane %v3303, %v4692
    %v4694 = vsel %vm3413, %v4693, %v4689
    %v4695 = vlaneseq
    %v4696 = vshrl.u32 %v4695, 7
    %v4697 = vsub.s32 %v3415, %v4696
    %v4698 = vrot.slane %v3304, %v4697
    %v4699 = vsel %vm3420, %v4698, %v4694
    %v4700 = vlaneseq
    %v4701 = vshrl.u32 %v4700, 7
    %v4702 = vsub.s32 %v3422, %v4701
    %v4703 = vrot.slane %v3305, %v4702
    %v4704 = vsel %vm3427, %v4703, %v4699
    %v4705 = vlaneseq
    %v4706 = vshrl.u32 %v4705, 7
    %v4707 = vsub.s32 %v3429, %v4706
    %v4708 = vrot.slane %v3306, %v4707
    %v4709 = vsel %vm3434, %v4708, %v4704
    %v4710 = vlaneseq
    %v4711 = vshrl.u32 %v4710, 7
    %v4712 = vsub.s32 %v3436, %v4711
    %v4713 = vrot.slane %v3307, %v4712
    %v4714 = vsel %vm3441, %v4713, %v4709
    %v4715 = vlaneseq
    %v4716 = vshrl.u32 %v4715, 7
    %v4717 = vsub.s32 %v3443, %v4716
    %v4718 = vrot.slane %v3308, %v4717
    %v4719 = vsel %vm3448, %v4718, %v4714
    %v4720 = vlaneseq
    %v4721 = vshrl.u32 %v4720, 7
    %v4722 = vsub.s32 %v3450, %v4721
    %v4723 = vrot.slane %v3309, %v4722
    %v4724 = vsel %vm3455, %v4723, %v4719
    %v4725 = vlaneseq
    %v4726 = vshrl.u32 %v4725, 7
    %v4727 = vsub.s32 %v3457, %v4726
    %v4728 = vrot.slane %v3310, %v4727
    %v4729 = vsel %vm3462, %v4728, %v4724
    %v4730 = vlaneseq
    %v4731 = vshrl.u32 %v4730, 7
    %v4732 = vsub.s32 %v3464, %v4731
    %v4733 = vrot.slane %v3311, %v4732
    %v4734 = vsel %vm3469, %v4733, %v4729
    %v4735 = vlaneseq
    %v4736 = vshrl.u32 %v4735, 7
    %v4737 = vsub.s32 %v3361, %v4736
    %v4738 = vrot.slane %v3312, %v4737
    %v4739 = vlaneseq
    %v4740 = vshrl.u32 %v4739, 7
    %v4741 = vsub.s32 %v3366, %v4740
    %v4742 = vrot.slane %v3313, %v4741
    %v4743 = vsel %vm3371, %v4742, %v4738
    %v4744 = vlaneseq
    %v4745 = vshrl.u32 %v4744, 7
    %v4746 = vsub.s32 %v3373, %v4745
    %v4747 = vrot.slane %v3314, %v4746
    %v4748 = vsel %vm3378, %v4747, %v4743
    %v4749 = vlaneseq
    %v4750 = vshrl.u32 %v4749, 7
    %v4751 = vsub.s32 %v3380, %v4750
    %v4752 = vrot.slane %v3315, %v4751
    %v4753 = vsel %vm3385, %v4752, %v4748
    %v4754 = vlaneseq
    %v4755 = vshrl.u32 %v4754, 7
    %v4756 = vsub.s32 %v3387, %v4755
    %v4757 = vrot.slane %v3316, %v4756
    %v4758 = vsel %vm3392, %v4757, %v4753
    %v4759 = vlaneseq
    %v4760 = vshrl.u32 %v4759, 7
    %v4761 = vsub.s32 %v3394, %v4760
    %v4762 = vrot.slane %v3317, %v4761
    %v4763 = vsel %vm3399, %v4762, %v4758
    %v4764 = vlaneseq
    %v4765 = vshrl.u32 %v4764, 7
    %v4766 = vsub.s32 %v3401, %v4765
    %v4767 = vrot.slane %v3318, %v4766
    %v4768 = vsel %vm3406, %v4767, %v4763
    %v4769 = vlaneseq
    %v4770 = vshrl.u32 %v4769, 7
    %v4771 = vsub.s32 %v3408, %v4770
    %v4772 = vrot.slane %v3319, %v4771
    %v4773 = vsel %vm3413, %v4772, %v4768
    %v4774 = vlaneseq
    %v4775 = vshrl.u32 %v4774, 7
    %v4776 = vsub.s32 %v3415, %v4775
    %v4777 = vrot.slane %v3320, %v4776
    %v4778 = vsel %vm3420, %v4777, %v4773
    %v4779 = vlaneseq
    %v4780 = vshrl.u32 %v4779, 7
    %v4781 = vsub.s32 %v3422, %v4780
    %v4782 = vrot.slane %v3321, %v4781
    %v4783 = vsel %vm3427, %v4782, %v4778
    %v4784 = vlaneseq
    %v4785 = vshrl.u32 %v4784, 7
    %v4786 = vsub.s32 %v3429, %v4785
    %v4787 = vrot.slane %v3322, %v4786
    %v4788 = vsel %vm3434, %v4787, %v4783
    %v4789 = vlaneseq
    %v4790 = vshrl.u32 %v4789, 7
    %v4791 = vsub.s32 %v3436, %v4790
    %v4792 = vrot.slane %v3323, %v4791
    %v4793 = vsel %vm3441, %v4792, %v4788
    %v4794 = vlaneseq
    %v4795 = vshrl.u32 %v4794, 7
    %v4796 = vsub.s32 %v3443, %v4795
    %v4797 = vrot.slane %v3324, %v4796
    %v4798 = vsel %vm3448, %v4797, %v4793
    %v4799 = vlaneseq
    %v4800 = vshrl.u32 %v4799, 7
    %v4801 = vsub.s32 %v3450, %v4800
    %v4802 = vrot.slane %v3325, %v4801
    %v4803 = vsel %vm3455, %v4802, %v4798
    %v4804 = vlaneseq
    %v4805 = vshrl.u32 %v4804, 7
    %v4806 = vsub.s32 %v3457, %v4805
    %v4807 = vrot.slane %v3326, %v4806
    %v4808 = vsel %vm3462, %v4807, %v4803
    %v4809 = vlaneseq
    %v4810 = vshrl.u32 %v4809, 7
    %v4811 = vsub.s32 %v3464, %v4810
    %v4812 = vrot.slane %v3327, %v4811
    %v4813 = vsel %vm3469, %v4812, %v4808
    %v4814 = vlaneseq
    %v4815 = vshrl.u32 %v4814, 7
    %v4816 = vsub.s32 %v3361, %v4815
    %v4817 = vrot.slane %v3328, %v4816
    %v4818 = vlaneseq
    %v4819 = vshrl.u32 %v4818, 7
    %v4820 = vsub.s32 %v3366, %v4819
    %v4821 = vrot.slane %v3329, %v4820
    %v4822 = vsel %vm3371, %v4821, %v4817
    %v4823 = vlaneseq
    %v4824 = vshrl.u32 %v4823, 7
    %v4825 = vsub.s32 %v3373, %v4824
    %v4826 = vrot.slane %v3330, %v4825
    %v4827 = vsel %vm3378, %v4826, %v4822
    %v4828 = vlaneseq
    %v4829 = vshrl.u32 %v4828, 7
    %v4830 = vsub.s32 %v3380, %v4829
    %v4831 = vrot.slane %v3331, %v4830
    %v4832 = vsel %vm3385, %v4831, %v4827
    %v4833 = vlaneseq
    %v4834 = vshrl.u32 %v4833, 7
    %v4835 = vsub.s32 %v3387, %v4834
    %v4836 = vrot.slane %v3332, %v4835
    %v4837 = vsel %vm3392, %v4836, %v4832
    %v4838 = vlaneseq
    %v4839 = vshrl.u32 %v4838, 7
    %v4840 = vsub.s32 %v3394, %v4839
    %v4841 = vrot.slane %v3333, %v4840
    %v4842 = vsel %vm3399, %v4841, %v4837
    %v4843 = vlaneseq
    %v4844 = vshrl.u32 %v4843, 7
    %v4845 = vsub.s32 %v3401, %v4844
    %v4846 = vrot.slane %v3334, %v4845
    %v4847 = vsel %vm3406, %v4846, %v4842
    %v4848 = vlaneseq
    %v4849 = vshrl.u32 %v4848, 7
    %v4850 = vsub.s32 %v3408, %v4849
    %v4851 = vrot.slane %v3335, %v4850
    %v4852 = vsel %vm3413, %v4851, %v4847
    %v4853 = vlaneseq
    %v4854 = vshrl.u32 %v4853, 7
    %v4855 = vsub.s32 %v3415, %v4854
    %v4856 = vrot.slane %v3336, %v4855
    %v4857 = vsel %vm3420, %v4856, %v4852
    %v4858 = vlaneseq
    %v4859 = vshrl.u32 %v4858, 7
    %v4860 = vsub.s32 %v3422, %v4859
    %v4861 = vrot.slane %v3337, %v4860
    %v4862 = vsel %vm3427, %v4861, %v4857
    %v4863 = vlaneseq
    %v4864 = vshrl.u32 %v4863, 7
    %v4865 = vsub.s32 %v3429, %v4864
    %v4866 = vrot.slane %v3338, %v4865
    %v4867 = vsel %vm3434, %v4866, %v4862
    %v4868 = vlaneseq
    %v4869 = vshrl.u32 %v4868, 7
    %v4870 = vsub.s32 %v3436, %v4869
    %v4871 = vrot.slane %v3339, %v4870
    %v4872 = vsel %vm3441, %v4871, %v4867
    %v4873 = vlaneseq
    %v4874 = vshrl.u32 %v4873, 7
    %v4875 = vsub.s32 %v3443, %v4874
    %v4876 = vrot.slane %v3340, %v4875
    %v4877 = vsel %vm3448, %v4876, %v4872
    %v4878 = vlaneseq
    %v4879 = vshrl.u32 %v4878, 7
    %v4880 = vsub.s32 %v3450, %v4879
    %v4881 = vrot.slane %v3341, %v4880
    %v4882 = vsel %vm3455, %v4881, %v4877
    %v4883 = vlaneseq
    %v4884 = vshrl.u32 %v4883, 7
    %v4885 = vsub.s32 %v3457, %v4884
    %v4886 = vrot.slane %v3342, %v4885
    %v4887 = vsel %vm3462, %v4886, %v4882
    %v4888 = vlaneseq
    %v4889 = vshrl.u32 %v4888, 7
    %v4890 = vsub.s32 %v3464, %v4889
    %v4891 = vrot.slane %v3343, %v4890
    %v4892 = vsel %vm3469, %v4891, %v4887
    %v4893 = vlaneseq
    %v4894 = vshrl.u32 %v4893, 7
    %v4895 = vsub.s32 %v3361, %v4894
    %v4896 = vrot.slane %v3344, %v4895
    %v4897 = vlaneseq
    %v4898 = vshrl.u32 %v4897, 7
    %v4899 = vsub.s32 %v3366, %v4898
    %v4900 = vrot.slane %v3345, %v4899
    %v4901 = vsel %vm3371, %v4900, %v4896
    %v4902 = vlaneseq
    %v4903 = vshrl.u32 %v4902, 7
    %v4904 = vsub.s32 %v3373, %v4903
    %v4905 = vrot.slane %v3346, %v4904
    %v4906 = vsel %vm3378, %v4905, %v4901
    %v4907 = vlaneseq
    %v4908 = vshrl.u32 %v4907, 7
    %v4909 = vsub.s32 %v3380, %v4908
    %v4910 = vrot.slane %v3347, %v4909
    %v4911 = vsel %vm3385, %v4910, %v4906
    %v4912 = vlaneseq
    %v4913 = vshrl.u32 %v4912, 7
    %v4914 = vsub.s32 %v3387, %v4913
    %v4915 = vrot.slane %v3348, %v4914
    %v4916 = vsel %vm3392, %v4915, %v4911
    %v4917 = vlaneseq
    %v4918 = vshrl.u32 %v4917, 7
    %v4919 = vsub.s32 %v3394, %v4918
    %v4920 = vrot.slane %v3349, %v4919
    %v4921 = vsel %vm3399, %v4920, %v4916
    %v4922 = vlaneseq
    %v4923 = vshrl.u32 %v4922, 7
    %v4924 = vsub.s32 %v3401, %v4923
    %v4925 = vrot.slane %v3350, %v4924
    %v4926 = vsel %vm3406, %v4925, %v4921
    %v4927 = vlaneseq
    %v4928 = vshrl.u32 %v4927, 7
    %v4929 = vsub.s32 %v3408, %v4928
    %v4930 = vrot.slane %v3351, %v4929
    %v4931 = vsel %vm3413, %v4930, %v4926
    %v4932 = vlaneseq
    %v4933 = vshrl.u32 %v4932, 7
    %v4934 = vsub.s32 %v3415, %v4933
    %v4935 = vrot.slane %v3352, %v4934
    %v4936 = vsel %vm3420, %v4935, %v4931
    %v4937 = vlaneseq
    %v4938 = vshrl.u32 %v4937, 7
    %v4939 = vsub.s32 %v3422, %v4938
    %v4940 = vrot.slane %v3353, %v4939
    %v4941 = vsel %vm3427, %v4940, %v4936
    %v4942 = vlaneseq
    %v4943 = vshrl.u32 %v4942, 7
    %v4944 = vsub.s32 %v3429, %v4943
    %v4945 = vrot.slane %v3354, %v4944
    %v4946 = vsel %vm3434, %v4945, %v4941
    %v4947 = vlaneseq
    %v4948 = vshrl.u32 %v4947, 7
    %v4949 = vsub.s32 %v3436, %v4948
    %v4950 = vrot.slane %v3355, %v4949
    %v4951 = vsel %vm3441, %v4950, %v4946
    %v4952 = vlaneseq
    %v4953 = vshrl.u32 %v4952, 7
    %v4954 = vsub.s32 %v3443, %v4953
    %v4955 = vrot.slane %v3356, %v4954
    %v4956 = vsel %vm3448, %v4955, %v4951
    %v4957 = vlaneseq
    %v4958 = vshrl.u32 %v4957, 7
    %v4959 = vsub.s32 %v3450, %v4958
    %v4960 = vrot.slane %v3357, %v4959
    %v4961 = vsel %vm3455, %v4960, %v4956
    %v4962 = vlaneseq
    %v4963 = vshrl.u32 %v4962, 7
    %v4964 = vsub.s32 %v3457, %v4963
    %v4965 = vrot.slane %v3358, %v4964
    %v4966 = vsel %vm3462, %v4965, %v4961
    %v4967 = vlaneseq
    %v4968 = vshrl.u32 %v4967, 7
    %v4969 = vsub.s32 %v3464, %v4968
    %v4970 = vrot.slane %v3359, %v4969
    %v4971 = vsel %vm3469, %v4970, %v4966
    %vm4972 = vcmask 1041409
    %v4973 = vsel %vm4972, %v4260, %v3470
    %v4974 = vsel %vm4972, %v4339, %v3549
    %v4975 = vsel %vm4972, %v4418, %v3628
    %v4976 = vsel %vm4972, %v4497, %v3707
    %v4977 = vsel %vm4972, %v4576, %v3786
    %v4978 = vsel %vm4972, %v4655, %v3865
    %v4979 = vsel %vm4972, %v4734, %v3944
    %v4980 = vsel %vm4972, %v4813, %v4023
    %v4981 = vsel %vm4972, %v4892, %v4102
    %v4982 = vsel %vm4972, %v4971, %v4181
    %v4983 = vpack.c.b16 %v4973, %v4973
    %v4984 = vpack.c.b16 %v4974, %v4974
    %v4985 = vpack.c.b16 %v4975, %v4975
    %v4986 = vpack.c.b16 %v4976, %v4976
    %v4987 = vpack.c.b16 %v4977, %v4977
    %v4988 = vpack.c.b16 %v4978, %v4978
    %v4989 = vpack.c.b16 %v4979, %v4979
    %v4990 = vpack.c.b16 %v4980, %v4980
    %v4991 = vpack.c.b16 %v4981, %v4981
    %v4992 = vpack.c.b16 %v4982, %v4982
    %v5643 = vunpack.c.l.b16 %v2198
    %v5644 = vunpack.c.h.b16 %v2198
    %v5645 = vunpack.c.l.b16 %v2199
    %v5646 = vunpack.c.h.b16 %v2199
    %v5647 = vunpack.c.l.b16 %v2200
    %v5648 = vunpack.c.h.b16 %v2200
    %v5649 = vunpack.c.l.b16 %v2201
    %v5650 = vunpack.c.h.b16 %v2201
    %v5651 = vunpack.c.l.b16 %v2202
    %v5652 = vunpack.c.h.b16 %v2202
    %v5653 = vunpack.c.l.b16 %v2203
    %v5654 = vunpack.c.h.b16 %v2203
    %v5655 = vunpack.c.l.b16 %v2204
    %v5656 = vunpack.c.h.b16 %v2204
    %v5657 = vunpack.c.l.b16 %v2205
    %v5658 = vunpack.c.h.b16 %v2205
    %v5659 = vunpack.c.l.b16 %v2206
    %v5660 = vunpack.c.h.b16 %v2206
    %v5661 = vunpack.c.l.b16 %v2207
    %v5662 = vunpack.c.h.b16 %v2207
    %v5663 = vunpack.c.l.b16 %v2208
    %v5664 = vunpack.c.h.b16 %v2208
    %v5665 = vunpack.c.l.b16 %v2209
    %v5666 = vunpack.c.h.b16 %v2209
    %v5667 = vunpack.c.l.b16 %v2210
    %v5668 = vunpack.c.h.b16 %v2210
    %v5669 = vunpack.c.l.b16 %v2211
    %v5670 = vunpack.c.h.b16 %v2211
    %v5671 = vunpack.c.l.b16 %v2212
    %v5672 = vunpack.c.h.b16 %v2212
    %v5673 = vunpack.c.l.b16 %v2213
    %v5674 = vunpack.c.h.b16 %v2213
    %v5675 = vunpack.c.l.b16 %v2214
    %v5676 = vunpack.c.h.b16 %v2214
    %v5677 = vunpack.c.l.b16 %v2215
    %v5678 = vunpack.c.h.b16 %v2215
    %v5679 = vunpack.c.l.b16 %v2216
    %v5680 = vunpack.c.h.b16 %v2216
    %v5681 = vunpack.c.l.b16 %v2217
    %v5682 = vunpack.c.h.b16 %v2217
    %v5683 = vunpack.c.l.b16 %v2218
    %v5684 = vunpack.c.h.b16 %v2218
    %v5685 = vunpack.c.l.b16 %v2219
    %v5686 = vunpack.c.h.b16 %v2219
    %v5687 = vunpack.c.l.b16 %v2220
    %v5688 = vunpack.c.h.b16 %v2220
    %v5689 = vunpack.c.l.b16 %v2221
    %v5690 = vunpack.c.h.b16 %v2221
    %v5691 = vunpack.c.l.b16 %v2222
    %v5692 = vunpack.c.h.b16 %v2222
    %v5693 = vunpack.c.l.b16 %v2223
    %v5694 = vunpack.c.h.b16 %v2223
    %v5695 = vunpack.c.l.b16 %v2224
    %v5696 = vunpack.c.h.b16 %v2224
    %v5697 = vunpack.c.l.b16 %v2225
    %v5698 = vunpack.c.h.b16 %v2225
    %v5699 = vunpack.c.l.b16 %v2226
    %v5700 = vunpack.c.h.b16 %v2226
    %v5701 = vunpack.c.l.b16 %v2227
    %v5702 = vunpack.c.h.b16 %v2227
    %v5703 = vunpack.c.l.b16 %v2228
    %v5704 = vunpack.c.h.b16 %v2228
    %v5705 = vunpack.c.l.b16 %v2229
    %v5706 = vunpack.c.h.b16 %v2229
    %v5707 = vunpack.c.l.b16 %v2230
    %v5708 = vunpack.c.h.b16 %v2230
    %v5709 = vunpack.c.l.b16 %v2231
    %v5710 = vunpack.c.h.b16 %v2231
    %v5711 = vunpack.c.l.b16 %v2232
    %v5712 = vunpack.c.h.b16 %v2232
    %v5713 = vunpack.c.l.b16 %v2233
    %v5714 = vunpack.c.h.b16 %v2233
    %v5715 = vunpack.c.l.b16 %v2234
    %v5716 = vunpack.c.h.b16 %v2234
    %v5717 = vunpack.c.l.b16 %v2235
    %v5718 = vunpack.c.h.b16 %v2235
    %v5719 = vunpack.c.l.b16 %v2236
    %v5720 = vunpack.c.h.b16 %v2236
    %v5721 = vunpack.c.l.b16 %v2237
    %v5722 = vunpack.c.h.b16 %v2237
    %v5723 = vunpack.c.l.b16 %v2238
    %v5724 = vunpack.c.h.b16 %v2238
    %v5725 = vunpack.c.l.b16 %v2239
    %v5726 = vunpack.c.h.b16 %v2239
    %v5727 = vunpack.c.l.b16 %v2240
    %v5728 = vunpack.c.h.b16 %v2240
    %v5729 = vunpack.c.l.b16 %v2241
    %v5730 = vunpack.c.h.b16 %v2241
    %v5731 = vunpack.c.l.b16 %v2242
    %v5732 = vunpack.c.h.b16 %v2242
    %v5733 = vunpack.c.l.b16 %v2243
    %v5734 = vunpack.c.h.b16 %v2243
    %v5735 = vunpack.c.l.b16 %v2244
    %v5736 = vunpack.c.h.b16 %v2244
    %v5737 = vunpack.c.l.b16 %v2245
    %v5738 = vunpack.c.h.b16 %v2245
    %v5739 = vunpack.c.l.b16 %v2246
    %v5740 = vunpack.c.h.b16 %v2246
    %v5741 = vunpack.c.l.b16 %v2247
    %v5742 = vunpack.c.h.b16 %v2247
    %v5743 = vunpack.c.l.b16 %v2248
    %v5744 = vunpack.c.h.b16 %v2248
    %v5745 = vunpack.c.l.b16 %v2249
    %v5746 = vunpack.c.h.b16 %v2249
    %v5747 = vunpack.c.l.b16 %v2250
    %v5748 = vunpack.c.h.b16 %v2250
    %v5749 = vunpack.c.l.b16 %v2251
    %v5750 = vunpack.c.h.b16 %v2251
    %v5751 = vunpack.c.l.b16 %v2252
    %v5752 = vunpack.c.h.b16 %v2252
    %v5753 = vunpack.c.l.b16 %v2253
    %v5754 = vunpack.c.h.b16 %v2253
    %v5755 = vunpack.c.l.b16 %v2254
    %v5756 = vunpack.c.h.b16 %v2254
    %v5757 = vunpack.c.l.b16 %v2255
    %v5758 = vunpack.c.h.b16 %v2255
    %v5759 = vunpack.c.l.b16 %v2256
    %v5760 = vunpack.c.h.b16 %v2256
    %v5761 = vunpack.c.l.b16 %v2257
    %v5762 = vunpack.c.h.b16 %v2257
    %v5763 = vunpack.c.l.b16 %v2258
    %v5764 = vunpack.c.h.b16 %v2258
    %v5765 = vunpack.c.l.b16 %v2259
    %v5766 = vunpack.c.h.b16 %v2259
    %v5767 = vunpack.c.l.b16 %v2260
    %v5768 = vunpack.c.h.b16 %v2260
    %v5769 = vunpack.c.l.b16 %v2261
    %v5770 = vunpack.c.h.b16 %v2261
    %v5771 = vunpack.c.l.b16 %v2262
    %v5772 = vunpack.c.h.b16 %v2262
    %v5773 = vunpack.c.l.b16 %v2263
    %v5774 = vunpack.c.h.b16 %v2263
    %v5775 = vunpack.c.l.b16 %v2264
    %v5776 = vunpack.c.h.b16 %v2264
    %v5777 = vunpack.c.l.b16 %v2265
    %v5778 = vunpack.c.h.b16 %v2265
    %v5779 = vunpack.c.l.b16 %v2266
    %v5780 = vunpack.c.h.b16 %v2266
    %v5781 = vunpack.c.l.b16 %v2267
    %v5782 = vunpack.c.h.b16 %v2267
    %v5783 = vunpack.c.l.b16 %v2268
    %v5784 = vunpack.c.h.b16 %v2268
    %v5785 = vunpack.c.l.b16 %v2269
    %v5786 = vunpack.c.h.b16 %v2269
    %v5787 = vunpack.c.l.b16 %v2270
    %v5788 = vunpack.c.h.b16 %v2270
    %v5789 = vunpack.c.l.b16 %v2271
    %v5790 = vunpack.c.h.b16 %v2271
    %v5791 = vunpack.c.l.b16 %v2272
    %v5792 = vunpack.c.h.b16 %v2272
    %v5793 = vunpack.c.l.b16 %v2273
    %v5794 = vunpack.c.h.b16 %v2273
    %v5795 = vunpack.c.l.b16 %v2274
    %v5796 = vunpack.c.h.b16 %v2274
    %v5797 = vunpack.c.l.b16 %v2275
    %v5798 = vunpack.c.h.b16 %v2275
    %v5799 = vunpack.c.l.b16 %v2276
    %v5800 = vunpack.c.h.b16 %v2276
    %v5801 = vunpack.c.l.b16 %v2277
    %v5802 = vunpack.c.h.b16 %v2277
    %v5803 = vunpack.c.l.b16 %v2278
    %v5804 = vunpack.c.h.b16 %v2278
    %v5805 = vunpack.c.l.b16 %v2279
    %v5806 = vunpack.c.h.b16 %v2279
    %v5807 = vunpack.c.l.b16 %v2280
    %v5808 = vunpack.c.h.b16 %v2280
    %v5809 = vunpack.c.l.b16 %v2281
    %v5810 = vunpack.c.h.b16 %v2281
    %v5811 = vunpack.c.l.b16 %v2282
    %v5812 = vunpack.c.h.b16 %v2282
    %v5813 = vunpack.c.l.b16 %v2283
    %v5814 = vunpack.c.h.b16 %v2283
    %v5815 = vunpack.c.l.b16 %v2284
    %v5816 = vunpack.c.h.b16 %v2284
    %v5817 = vunpack.c.l.b16 %v2285
    %v5818 = vunpack.c.h.b16 %v2285
    %v5819 = vunpack.c.l.b16 %v2286
    %v5820 = vunpack.c.h.b16 %v2286
    %v5821 = vunpack.c.l.b16 %v2287
    %v5822 = vunpack.c.h.b16 %v2287
    %v5823 = vunpack.c.l.b16 %v2288
    %v5824 = vunpack.c.h.b16 %v2288
    %v5825 = vunpack.c.l.b16 %v2289
    %v5826 = vunpack.c.h.b16 %v2289
    %v5827 = vunpack.c.l.b16 %v2290
    %v5828 = vunpack.c.h.b16 %v2290
    %v5829 = vunpack.c.l.b16 %v2291
    %v5830 = vunpack.c.h.b16 %v2291
    %v5831 = vunpack.c.l.b16 %v2292
    %v5832 = vunpack.c.h.b16 %v2292
    %v5833 = vunpack.c.l.b16 %v2293
    %v5834 = vunpack.c.h.b16 %v2293
    %v5835 = vunpack.c.l.b16 %v2294
    %v5836 = vunpack.c.h.b16 %v2294
    %v5837 = vunpack.c.l.b16 %v2295
    %v5838 = vunpack.c.h.b16 %v2295
    %v5839 = vunpack.c.l.b16 %v2296
    %v5840 = vunpack.c.h.b16 %v2296
    %v5841 = vunpack.c.l.b16 %v2297
    %v5842 = vunpack.c.h.b16 %v2297
    %v5843 = vunpack.c.l.b16 %v2298
    %v5844 = vunpack.c.h.b16 %v2298
    %v5845 = vunpack.c.l.b16 %v2299
    %v5846 = vunpack.c.h.b16 %v2299
    %v5847 = vunpack.c.l.b16 %v2300
    %v5848 = vunpack.c.h.b16 %v2300
    %v5849 = vunpack.c.l.b16 %v2301
    %v5850 = vunpack.c.h.b16 %v2301
    %v5851 = vunpack.c.l.b16 %v2302
    %v5852 = vunpack.c.h.b16 %v2302
    %v5853 = vunpack.c.l.b16 %v2303
    %v5854 = vunpack.c.h.b16 %v2303
    %v5855 = vunpack.c.l.b16 %v2304
    %v5856 = vunpack.c.h.b16 %v2304
    %v5857 = vunpack.c.l.b16 %v2305
    %v5858 = vunpack.c.h.b16 %v2305
    %v5859 = vunpack.c.l.b16 %v2306
    %v5860 = vunpack.c.h.b16 %v2306
    %v5861 = vunpack.c.l.b16 %v2307
    %v5862 = vunpack.c.h.b16 %v2307
    %v5863 = vunpack.c.l.b16 %v2308
    %v5864 = vunpack.c.h.b16 %v2308
    %v5865 = vunpack.c.l.b16 %v2309
    %v5866 = vunpack.c.h.b16 %v2309
    %v5867 = vunpack.c.l.b16 %v2310
    %v5868 = vunpack.c.h.b16 %v2310
    %v5869 = vunpack.c.l.b16 %v2311
    %v5870 = vunpack.c.h.b16 %v2311
    %v5871 = vunpack.c.l.b16 %v2312
    %v5872 = vunpack.c.h.b16 %v2312
    %v5873 = vunpack.c.l.b16 %v2313
    %v5874 = vunpack.c.h.b16 %v2313
    %v5875 = vunpack.c.l.b16 %v2314
    %v5876 = vunpack.c.h.b16 %v2314
    %v5877 = vunpack.c.l.b16 %v2315
    %v5878 = vunpack.c.h.b16 %v2315
    %v5879 = vunpack.c.l.b16 %v2316
    %v5880 = vunpack.c.h.b16 %v2316
    %v5881 = vunpack.c.l.b16 %v2317
    %v5882 = vunpack.c.h.b16 %v2317
    %v5883 = vunpack.c.l.b16 %v2318
    %v5884 = vunpack.c.h.b16 %v2318
    %v5885 = vunpack.c.l.b16 %v2319
    %v5886 = vunpack.c.h.b16 %v2319
    %v5887 = vunpack.c.l.b16 %v2320
    %v5888 = vunpack.c.h.b16 %v2320
    %v5889 = vunpack.c.l.b16 %v2321
    %v5890 = vunpack.c.h.b16 %v2321
    %v5891 = vunpack.c.l.b16 %v2322
    %v5892 = vunpack.c.h.b16 %v2322
    %v5893 = vunpack.c.l.b16 %v2323
    %v5894 = vunpack.c.h.b16 %v2323
    %v5895 = vunpack.c.l.b16 %v2324
    %v5896 = vunpack.c.h.b16 %v2324
    %v5897 = vunpack.c.l.b16 %v2325
    %v5898 = vunpack.c.h.b16 %v2325
    %v5899 = vunpack.c.l.b16 %v2326
    %v5900 = vunpack.c.h.b16 %v2326
    %v5901 = vunpack.c.l.b16 %v2327
    %v5902 = vunpack.c.h.b16 %v2327
    %v5903 = vunpack.c.l.b16 %v2328
    %v5904 = vunpack.c.h.b16 %v2328
    %v5905 = vunpack.c.l.b16 %v2329
    %v5906 = vunpack.c.h.b16 %v2329
    %v5907 = vunpack.c.l.b16 %v2330
    %v5908 = vunpack.c.h.b16 %v2330
    %v5909 = vunpack.c.l.b16 %v2331
    %v5910 = vunpack.c.h.b16 %v2331
    %v5911 = vunpack.c.l.b16 %v2332
    %v5912 = vunpack.c.h.b16 %v2332
    %v5913 = vunpack.c.l.b16 %v2333
    %v5914 = vunpack.c.h.b16 %v2333
    %v5915 = vunpack.c.l.b16 %v2334
    %v5916 = vunpack.c.h.b16 %v2334
    %v5917 = vunpack.c.l.b16 %v2335
    %v5918 = vunpack.c.h.b16 %v2335
    %v5919 = vunpack.c.l.b16 %v2336
    %v5920 = vunpack.c.h.b16 %v2336
    %v5921 = vunpack.c.l.b16 %v2337
    %v5922 = vunpack.c.h.b16 %v2337
    %v5923 = vunpack.c.l.b16 %v2338
    %v5924 = vunpack.c.h.b16 %v2338
    %v5925 = vunpack.c.l.b16 %v2339
    %v5926 = vunpack.c.h.b16 %v2339
    %v5927 = vunpack.c.l.b16 %v2340
    %v5928 = vunpack.c.h.b16 %v2340
    %v5929 = vunpack.c.l.b16 %v2341
    %v5930 = vunpack.c.h.b16 %v2341
    %v5931 = vunpack.c.l.b16 %v2342
    %v5932 = vunpack.c.h.b16 %v2342
    %v5933 = vunpack.c.l.b16 %v2343
    %v5934 = vunpack.c.h.b16 %v2343
    %v5935 = vunpack.c.l.b16 %v2344
    %v5936 = vunpack.c.h.b16 %v2344
    %v5937 = vunpack.c.l.b16 %v2345
    %v5938 = vunpack.c.h.b16 %v2345
    %v5939 = vunpack.c.l.b16 %v2346
    %v5940 = vunpack.c.h.b16 %v2346
    %v5941 = vunpack.c.l.b16 %v2347
    %v5942 = vunpack.c.h.b16 %v2347
    %v5943 = vunpack.c.l.b16 %v2348
    %v5944 = vunpack.c.h.b16 %v2348
    %v5945 = vunpack.c.l.b16 %v2349
    %v5946 = vunpack.c.h.b16 %v2349
    %v5947 = vunpack.c.l.b16 %v2350
    %v5948 = vunpack.c.h.b16 %v2350
    %v5949 = vunpack.c.l.b16 %v2351
    %v5950 = vunpack.c.h.b16 %v2351
    %v5951 = vunpack.c.l.b16 %v2352
    %v5952 = vunpack.c.h.b16 %v2352
    %v5953 = vunpack.c.l.b16 %v2353
    %v5954 = vunpack.c.h.b16 %v2353
    %v5955 = vunpack.c.l.b16 %v2354
    %v5956 = vunpack.c.h.b16 %v2354
    %v5957 = vunpack.c.l.b16 %v2355
    %v5958 = vunpack.c.h.b16 %v2355
    %v5959 = vunpack.c.l.b16 %v2356
    %v5960 = vunpack.c.h.b16 %v2356
    %v5961 = vunpack.c.l.b16 %v2357
    %v5962 = vunpack.c.h.b16 %v2357
    %v5963 = vunpack.c.l.b16 %v2358
    %v5964 = vunpack.c.h.b16 %v2358
    %v5965 = vunpack.c.l.b16 %v2359
    %v5966 = vunpack.c.h.b16 %v2359
    %v5967 = vunpack.c.l.b16 %v2360
    %v5968 = vunpack.c.h.b16 %v2360
    %v5969 = vunpack.c.l.b16 %v2361
    %v5970 = vunpack.c.h.b16 %v2361
    %v5971 = vunpack.c.l.b16 %v2362
    %v5972 = vunpack.c.h.b16 %v2362
    %v5973 = vunpack.c.l.b16 %v2363
    %v5974 = vunpack.c.h.b16 %v2363
    %v5975 = vunpack.c.l.b16 %v2364
    %v5976 = vunpack.c.h.b16 %v2364
    %v5977 = vunpack.c.l.b16 %v2365
    %v5978 = vunpack.c.h.b16 %v2365
    %v5979 = vunpack.c.l.b16 %v2366
    %v5980 = vunpack.c.h.b16 %v2366
    %v5981 = vunpack.c.l.b16 %v2367
    %v5982 = vunpack.c.h.b16 %v2367
    %v5983 = vunpack.c.l.b16 %v2368
    %v5984 = vunpack.c.h.b16 %v2368
    %v5985 = vunpack.c.l.b16 %v2369
    %v5986 = vunpack.c.h.b16 %v2369
    %v5987 = vunpack.c.l.b16 %v2370
    %v5988 = vunpack.c.h.b16 %v2370
    %v5989 = vunpack.c.l.b16 %v2371
    %v5990 = vunpack.c.h.b16 %v2371
    %v5991 = vunpack.c.l.b16 %v2372
    %v5992 = vunpack.c.h.b16 %v2372
    %v5993 = vunpack.c.l.b16 %v2373
    %v5994 = vunpack.c.h.b16 %v2373
    %v5995 = vunpack.c.l.b16 %v2374
    %v5996 = vunpack.c.h.b16 %v2374
    %v5997 = vunpack.c.l.b16 %v2375
    %v5998 = vunpack.c.h.b16 %v2375
    %v5999 = vunpack.c.l.b16 %v2376
    %v6000 = vunpack.c.h.b16 %v2376
    %v6001 = vunpack.c.l.b16 %v2377
    %v6002 = vunpack.c.h.b16 %v2377
    %v6003 = vunpack.c.l.b16 %v2378
    %v6004 = vunpack.c.h.b16 %v2378
    %v6005 = vunpack.c.l.b16 %v2379
    %v6006 = vunpack.c.h.b16 %v2379
    %v6007 = vunpack.c.l.b16 %v2380
    %v6008 = vunpack.c.h.b16 %v2380
    %v6009 = vunpack.c.l.b16 %v2381
    %v6010 = vunpack.c.h.b16 %v2381
    %v6011 = vunpack.c.l.b16 %v2382
    %v6012 = vunpack.c.h.b16 %v2382
    %v6013 = vunpack.c.l.b16 %v2383
    %v6014 = vunpack.c.h.b16 %v2383
    %v6015 = vunpack.c.l.b16 %v2384
    %v6016 = vunpack.c.h.b16 %v2384
    %v6017 = vunpack.c.l.b16 %v2385
    %v6018 = vunpack.c.h.b16 %v2385
    %v6019 = vunpack.c.l.b16 %v2386
    %v6020 = vunpack.c.h.b16 %v2386
    %v6021 = vunpack.c.l.b16 %v2387
    %v6022 = vunpack.c.h.b16 %v2387
    %v6023 = vunpack.c.l.b16 %v2388
    %v6024 = vunpack.c.h.b16 %v2388
    %v6025 = vunpack.c.l.b16 %v2389
    %v6026 = vunpack.c.h.b16 %v2389
    %v6027 = vunpack.c.l.b16 %v2390
    %v6028 = vunpack.c.h.b16 %v2390
    %v6029 = vunpack.c.l.b16 %v2391
    %v6030 = vunpack.c.h.b16 %v2391
    %v6031 = vunpack.c.l.b16 %v2392
    %v6032 = vunpack.c.h.b16 %v2392
    %v6033 = vunpack.c.l.b16 %v2393
    %v6034 = vunpack.c.h.b16 %v2393
    %v6035 = vunpack.c.l.b16 %v2394
    %v6036 = vunpack.c.h.b16 %v2394
    %v6037 = vunpack.c.l.b16 %v2395
    %v6038 = vunpack.c.h.b16 %v2395
    %v6039 = vunpack.c.l.b16 %v2396
    %v6040 = vunpack.c.h.b16 %v2396
    %v6041 = vunpack.c.l.b16 %v2397
    %v6042 = vunpack.c.h.b16 %v2397
    %v6043 = vunpack.c.l.b16 %v2398
    %v6044 = vunpack.c.h.b16 %v2398
    %v6045 = vunpack.c.l.b16 %v2399
    %v6046 = vunpack.c.h.b16 %v2399
    %v6047 = vunpack.c.l.b16 %v2400
    %v6048 = vunpack.c.h.b16 %v2400
    %v6049 = vunpack.c.l.b16 %v2401
    %v6050 = vunpack.c.h.b16 %v2401
    %v6051 = vunpack.c.l.b16 %v2402
    %v6052 = vunpack.c.h.b16 %v2402
    %v6053 = vunpack.c.l.b16 %v2403
    %v6054 = vunpack.c.h.b16 %v2403
    %v6055 = vunpack.c.l.b16 %v2404
    %v6056 = vunpack.c.h.b16 %v2404
    %v6057 = vunpack.c.l.b16 %v2405
    %v6058 = vunpack.c.h.b16 %v2405
    %v6059 = vunpack.c.l.b16 %v2406
    %v6060 = vunpack.c.h.b16 %v2406
    %v6061 = vunpack.c.l.b16 %v2407
    %v6062 = vunpack.c.h.b16 %v2407
    %v6063 = vunpack.c.l.b16 %v2408
    %v6064 = vunpack.c.h.b16 %v2408
    %v6065 = vunpack.c.l.b16 %v2409
    %v6066 = vunpack.c.h.b16 %v2409
    %v6067 = vunpack.c.l.b16 %v2410
    %v6068 = vunpack.c.h.b16 %v2410
    %v6069 = vunpack.c.l.b16 %v2411
    %v6070 = vunpack.c.h.b16 %v2411
    %v6071 = vunpack.c.l.b16 %v2412
    %v6072 = vunpack.c.h.b16 %v2412
    %v6073 = vunpack.c.l.b16 %v2413
    %v6074 = vunpack.c.h.b16 %v2413
    %v6075 = vunpack.c.l.b16 %v2414
    %v6076 = vunpack.c.h.b16 %v2414
    %v6077 = vunpack.c.l.b16 %v2415
    %v6078 = vunpack.c.h.b16 %v2415
    %v6079 = vunpack.c.l.b16 %v2416
    %v6080 = vunpack.c.h.b16 %v2416
    %v6081 = vunpack.c.l.b16 %v2417
    %v6082 = vunpack.c.h.b16 %v2417
    %v6083 = vunpack.c.l.b16 %v2418
    %v6084 = vunpack.c.h.b16 %v2418
    %v6085 = vunpack.c.l.b16 %v2419
    %v6086 = vunpack.c.h.b16 %v2419
    %v6087 = vunpack.c.l.b16 %v2420
    %v6088 = vunpack.c.h.b16 %v2420
    %v6089 = vunpack.c.l.b16 %v2421
    %v6090 = vunpack.c.h.b16 %v2421
    %v6091 = vunpack.c.l.b16 %v2422
    %v6092 = vunpack.c.h.b16 %v2422
    %v6093 = vunpack.c.l.b16 %v2423
    %v6094 = vunpack.c.h.b16 %v2423
    %v6095 = vunpack.c.l.b16 %v2424
    %v6096 = vunpack.c.h.b16 %v2424
    %v6097 = vunpack.c.l.b16 %v2425
    %v6098 = vunpack.c.h.b16 %v2425
    %v6099 = vunpack.c.l.b16 %v2426
    %v6100 = vunpack.c.h.b16 %v2426
    %v6101 = vunpack.c.l.b16 %v2427
    %v6102 = vunpack.c.h.b16 %v2427
    %v6103 = vunpack.c.l.b16 %v2428
    %v6104 = vunpack.c.h.b16 %v2428
    %v6105 = vunpack.c.l.b16 %v2429
    %v6106 = vunpack.c.h.b16 %v2429
    %v6107 = vunpack.c.l.b16 %v2430
    %v6108 = vunpack.c.h.b16 %v2430
    %v6109 = vunpack.c.l.b16 %v2431
    %v6110 = vunpack.c.h.b16 %v2431
    %v6111 = vunpack.c.l.b16 %v2432
    %v6112 = vunpack.c.h.b16 %v2432
    %v6113 = vunpack.c.l.b16 %v2433
    %v6114 = vunpack.c.h.b16 %v2433
    %v6115 = vunpack.c.l.b16 %v2434
    %v6116 = vunpack.c.h.b16 %v2434
    %v6117 = vunpack.c.l.b16 %v2435
    %v6118 = vunpack.c.h.b16 %v2435
    %v6119 = vunpack.c.l.b16 %v2436
    %v6120 = vunpack.c.h.b16 %v2436
    %v6121 = vunpack.c.l.b16 %v2437
    %v6122 = vunpack.c.h.b16 %v2437
    %v6123 = vunpack.c.l.b16 %v2438
    %v6124 = vunpack.c.h.b16 %v2438
    %v6125 = vunpack.c.l.b16 %v2439
    %v6126 = vunpack.c.h.b16 %v2439
    %v6127 = vunpack.c.l.b16 %v2440
    %v6128 = vunpack.c.h.b16 %v2440
    %v6129 = vunpack.c.l.b16 %v2441
    %v6130 = vunpack.c.h.b16 %v2441
    %v6131 = vunpack.c.l.b16 %v2442
    %v6132 = vunpack.c.h.b16 %v2442
    %v6133 = vunpack.c.l.b16 %v2443
    %v6134 = vunpack.c.h.b16 %v2443
    %v6135 = vunpack.c.l.b16 %v2444
    %v6136 = vunpack.c.h.b16 %v2444
    %v6137 = vunpack.c.l.b16 %v2445
    %v6138 = vunpack.c.h.b16 %v2445
    %v6139 = vunpack.c.l.b16 %v2446
    %v6140 = vunpack.c.h.b16 %v2446
    %v6141 = vunpack.c.l.b16 %v2447
    %v6142 = vunpack.c.h.b16 %v2447
    %v6143 = vunpack.c.l.b16 %v2448
    %v6144 = vunpack.c.h.b16 %v2448
    %v6145 = vunpack.c.l.b16 %v2449
    %v6146 = vunpack.c.h.b16 %v2449
    %v6147 = vunpack.c.l.b16 %v2450
    %v6148 = vunpack.c.h.b16 %v2450
    %v6149 = vunpack.c.l.b16 %v2451
    %v6150 = vunpack.c.h.b16 %v2451
    %v6151 = vunpack.c.l.b16 %v2452
    %v6152 = vunpack.c.h.b16 %v2452
    %v6153 = vunpack.c.l.b16 %v2453
    %v6154 = vunpack.c.h.b16 %v2453
    %v6155 = vunpack.c.l.b16 %v2454
    %v6156 = vunpack.c.h.b16 %v2454
    %v6157 = vunpack.c.l.b16 %v2455
    %v6158 = vunpack.c.h.b16 %v2455
    %v6159 = vunpack.c.l.b16 %v2456
    %v6160 = vunpack.c.h.b16 %v2456
    %v6161 = vunpack.c.l.b16 %v2457
    %v6162 = vunpack.c.h.b16 %v2457
    %v6163 = vunpack.c.l.b16 %v2458
    %v6164 = vunpack.c.h.b16 %v2458
    %v6165 = vunpack.c.l.b16 %v2459
    %v6166 = vunpack.c.h.b16 %v2459
    %v6167 = vunpack.c.l.b16 %v2460
    %v6168 = vunpack.c.h.b16 %v2460
    %v6169 = vunpack.c.l.b16 %v2461
    %v6170 = vunpack.c.h.b16 %v2461
    %v6171 = vunpack.c.l.b16 %v2462
    %v6172 = vunpack.c.h.b16 %v2462
    %v6173 = vunpack.c.l.b16 %v2463
    %v6174 = vunpack.c.h.b16 %v2463
    %v6175 = vunpack.c.l.b16 %v2464
    %v6176 = vunpack.c.h.b16 %v2464
    %v6177 = vunpack.c.l.b16 %v2465
    %v6178 = vunpack.c.h.b16 %v2465
    %v6179 = vunpack.c.l.b16 %v2466
    %v6180 = vunpack.c.h.b16 %v2466
    %v6181 = vunpack.c.l.b16 %v2467
    %v6182 = vunpack.c.h.b16 %v2467
    %v6183 = vunpack.c.l.b16 %v2468
    %v6184 = vunpack.c.h.b16 %v2468
    %v6185 = vunpack.c.l.b16 %v2469
    %v6186 = vunpack.c.h.b16 %v2469
    %v6187 = vunpack.c.l.b16 %v2470
    %v6188 = vunpack.c.h.b16 %v2470
    %v6189 = vunpack.c.l.b16 %v2471
    %v6190 = vunpack.c.h.b16 %v2471
    %v6191 = vunpack.c.l.b16 %v2472
    %v6192 = vunpack.c.h.b16 %v2472
    %v6193 = vunpack.c.l.b16 %v2473
    %v6194 = vunpack.c.h.b16 %v2473
    %v6195 = vunpack.c.l.b16 %v2474
    %v6196 = vunpack.c.h.b16 %v2474
    %v6197 = vunpack.c.l.b16 %v2475
    %v6198 = vunpack.c.h.b16 %v2475
    %v6199 = vunpack.c.l.b16 %v2476
    %v6200 = vunpack.c.h.b16 %v2476
    %v6201 = vunpack.c.l.b16 %v2477
    %v6202 = vunpack.c.h.b16 %v2477
    %v6203 = vunpack.c.l.b16 %v2478
    %v6204 = vunpack.c.h.b16 %v2478
    %v6205 = vunpack.c.l.b16 %v2479
    %v6206 = vunpack.c.h.b16 %v2479
    %v6207 = vunpack.c.l.b16 %v2480
    %v6208 = vunpack.c.h.b16 %v2480
    %v6209 = vunpack.c.l.b16 %v2481
    %v6210 = vunpack.c.h.b16 %v2481
    %v6211 = vunpack.c.l.b16 %v2482
    %v6212 = vunpack.c.h.b16 %v2482
    %v6213 = vunpack.c.l.b16 %v2483
    %v6214 = vunpack.c.h.b16 %v2483
    %v6215 = vunpack.c.l.b16 %v2484
    %v6216 = vunpack.c.h.b16 %v2484
    %v6217 = vunpack.c.l.b16 %v2485
    %v6218 = vunpack.c.h.b16 %v2485
    %v6219 = vunpack.c.l.b16 %v2486
    %v6220 = vunpack.c.h.b16 %v2486
    %v6221 = vunpack.c.l.b16 %v2487
    %v6222 = vunpack.c.h.b16 %v2487
    %v6223 = vunpack.c.l.b16 %v2488
    %v6224 = vunpack.c.h.b16 %v2488
    %v6225 = vunpack.c.l.b16 %v2489
    %v6226 = vunpack.c.h.b16 %v2489
    %v6227 = vunpack.c.l.b16 %v2490
    %v6228 = vunpack.c.h.b16 %v2490
    %v6229 = vunpack.c.l.b16 %v2491
    %v6230 = vunpack.c.h.b16 %v2491
    %v6231 = vunpack.c.l.b16 %v2492
    %v6232 = vunpack.c.h.b16 %v2492
    %v6233 = vunpack.c.l.b16 %v2493
    %v6234 = vunpack.c.h.b16 %v2493
    %v6235 = vunpack.c.l.b16 %v2494
    %v6236 = vunpack.c.h.b16 %v2494
    %v6237 = vunpack.c.l.b16 %v2495
    %v6238 = vunpack.c.h.b16 %v2495
    %v6239 = vunpack.c.l.b16 %v2496
    %v6240 = vunpack.c.h.b16 %v2496
    %v6241 = vunpack.c.l.b16 %v2497
    %v6242 = vunpack.c.h.b16 %v2497
    %v6243 = vunpack.c.l.b16 %v2498
    %v6244 = vunpack.c.h.b16 %v2498
    %v6245 = vunpack.c.l.b16 %v2499
    %v6246 = vunpack.c.h.b16 %v2499
    %v6247 = vunpack.c.l.b16 %v2500
    %v6248 = vunpack.c.h.b16 %v2500
    %v6249 = vunpack.c.l.b16 %v2501
    %v6250 = vunpack.c.h.b16 %v2501
    %v6251 = vunpack.c.l.b16 %v2502
    %v6252 = vunpack.c.h.b16 %v2502
    %v6253 = vunpack.c.l.b16 %v2503
    %v6254 = vunpack.c.h.b16 %v2503
    %v6255 = vunpack.c.l.b16 %v2504
    %v6256 = vunpack.c.h.b16 %v2504
    %v6257 = vunpack.c.l.b16 %v2505
    %v6258 = vunpack.c.h.b16 %v2505
    %v6259 = vunpack.c.l.b16 %v2506
    %v6260 = vunpack.c.h.b16 %v2506
    %v6261 = vunpack.c.l.b16 %v2507
    %v6262 = vunpack.c.h.b16 %v2507
    %v6263 = vunpack.c.l.b16 %v2508
    %v6264 = vunpack.c.h.b16 %v2508
    %v6265 = vunpack.c.l.b16 %v2509
    %v6266 = vunpack.c.h.b16 %v2509
    %v6267 = vunpack.c.l.b16 %v2510
    %v6268 = vunpack.c.h.b16 %v2510
    %v6269 = vunpack.c.l.b16 %v2511
    %v6270 = vunpack.c.h.b16 %v2511
    %v6271 = vunpack.c.l.b16 %v2512
    %v6272 = vunpack.c.h.b16 %v2512
    %v6273 = vunpack.c.l.b16 %v2513
    %v6274 = vunpack.c.h.b16 %v2513
    %v6275 = vunpack.c.l.b16 %v2514
    %v6276 = vunpack.c.h.b16 %v2514
    %v6277 = vunpack.c.l.b16 %v2515
    %v6278 = vunpack.c.h.b16 %v2515
    %v6279 = vunpack.c.l.b16 %v2516
    %v6280 = vunpack.c.h.b16 %v2516
    %v6281 = vunpack.c.l.b16 %v2517
    %v6282 = vunpack.c.h.b16 %v2517
    %v6283 = vunpack.c.l.b16 %v2518
    %v6284 = vunpack.c.h.b16 %v2518
    %v6285 = vunpack.c.l.b16 %v2519
    %v6286 = vunpack.c.h.b16 %v2519
    %v6287 = vunpack.c.l.b16 %v2520
    %v6288 = vunpack.c.h.b16 %v2520
    %v6289 = vunpack.c.l.b16 %v2521
    %v6290 = vunpack.c.h.b16 %v2521
    %v6291 = vunpack.c.l.b16 %v2522
    %v6292 = vunpack.c.h.b16 %v2522
    %v6293 = vunpack.c.l.b16 %v2523
    %v6294 = vunpack.c.h.b16 %v2523
    %v6295 = vunpack.c.l.b16 %v2524
    %v6296 = vunpack.c.h.b16 %v2524
    %v6297 = vunpack.c.l.b16 %v2525
    %v6298 = vunpack.c.h.b16 %v2525
    %v6299 = vunpack.c.l.b16 %v2526
    %v6300 = vunpack.c.h.b16 %v2526
    %v6301 = vunpack.c.l.b16 %v2527
    %v6302 = vunpack.c.h.b16 %v2527
    %v6303 = vunpack.c.l.b16 %v2528
    %v6304 = vunpack.c.h.b16 %v2528
    %v6305 = vunpack.c.l.b16 %v2529
    %v6306 = vunpack.c.h.b16 %v2529
    %v6307 = vunpack.c.l.b16 %v2530
    %v6308 = vunpack.c.h.b16 %v2530
    %v6309 = vunpack.c.l.b16 %v2531
    %v6310 = vunpack.c.h.b16 %v2531
    %v6311 = vunpack.c.l.b16 %v2532
    %v6312 = vunpack.c.h.b16 %v2532
    %v6313 = vunpack.c.l.b16 %v2533
    %v6314 = vunpack.c.h.b16 %v2533
    %v6315 = vunpack.c.l.b16 %v2534
    %v6316 = vunpack.c.h.b16 %v2534
    %v6317 = vunpack.c.l.b16 %v2535
    %v6318 = vunpack.c.h.b16 %v2535
    %v6319 = vunpack.c.l.b16 %v2536
    %v6320 = vunpack.c.h.b16 %v2536
    %v6321 = vunpack.c.l.b16 %v2537
    %v6322 = vunpack.c.h.b16 %v2537
    %v6323 = vunpack.c.l.b16 %v2538
    %v6324 = vunpack.c.h.b16 %v2538
    %v6325 = vunpack.c.l.b16 %v2539
    %v6326 = vunpack.c.h.b16 %v2539
    %v6327 = vunpack.c.l.b16 %v2540
    %v6328 = vunpack.c.h.b16 %v2540
    %v6329 = vunpack.c.l.b16 %v2541
    %v6330 = vunpack.c.h.b16 %v2541
    %v6331 = vunpack.c.l.b16 %v2542
    %v6332 = vunpack.c.h.b16 %v2542
    %v6333 = vunpack.c.l.b16 %v2543
    %v6334 = vunpack.c.h.b16 %v2543
    %v6335 = vunpack.c.l.b16 %v2544
    %v6336 = vunpack.c.h.b16 %v2544
    %v6337 = vunpack.c.l.b16 %v2545
    %v6338 = vunpack.c.h.b16 %v2545
    %v6339 = vunpack.c.l.b16 %v2546
    %v6340 = vunpack.c.h.b16 %v2546
    %v6341 = vunpack.c.l.b16 %v2547
    %v6342 = vunpack.c.h.b16 %v2547
    %v6343 = vunpack.c.l.b16 %v2548
    %v6344 = vunpack.c.h.b16 %v2548
    %v6345 = vunpack.c.l.b16 %v2549
    %v6346 = vunpack.c.h.b16 %v2549
    %v6347 = vunpack.c.l.b16 %v2550
    %v6348 = vunpack.c.h.b16 %v2550
    %v6349 = vunpack.c.l.b16 %v2551
    %v6350 = vunpack.c.h.b16 %v2551
    %v6351 = vunpack.c.l.b16 %v2552
    %v6352 = vunpack.c.h.b16 %v2552
    %v6353 = vunpack.c.l.b16 %v2553
    %v6354 = vunpack.c.h.b16 %v2553
    %v6355 = vunpack.c.l.b16 %v2554
    %v6356 = vunpack.c.h.b16 %v2554
    %v6357 = vunpack.c.l.b16 %v2555
    %v6358 = vunpack.c.h.b16 %v2555
    %v6359 = vunpack.c.l.b16 %v2556
    %v6360 = vunpack.c.h.b16 %v2556
    %v6361 = vunpack.c.l.b16 %v2557
    %v6362 = vunpack.c.h.b16 %v2557
    %v6363 = vunpack.c.l.b16 %v2558
    %v6364 = vunpack.c.h.b16 %v2558
    %v6365 = vunpack.c.l.b16 %v2559
    %v6366 = vunpack.c.h.b16 %v2559
    %v6367 = vunpack.c.l.b16 %v2560
    %v6368 = vunpack.c.h.b16 %v2560
    %v6369 = vunpack.c.l.b16 %v2561
    %v6370 = vunpack.c.h.b16 %v2561
    %v6371 = vunpack.c.l.b16 %v2562
    %v6372 = vunpack.c.h.b16 %v2562
    %v6373 = vunpack.c.l.b16 %v2563
    %v6374 = vunpack.c.h.b16 %v2563
    %v6375 = vunpack.c.l.b16 %v2564
    %v6376 = vunpack.c.h.b16 %v2564
    %v6377 = vunpack.c.l.b16 %v2565
    %v6378 = vunpack.c.h.b16 %v2565
    %v6379 = vunpack.c.l.b16 %v2566
    %v6380 = vunpack.c.h.b16 %v2566
    %v6381 = vunpack.c.l.b16 %v2567
    %v6382 = vunpack.c.h.b16 %v2567
    %v6383 = vunpack.c.l.b16 %v2568
    %v6384 = vunpack.c.h.b16 %v2568
    %v6385 = vunpack.c.l.b16 %v2569
    %v6386 = vunpack.c.h.b16 %v2569
    %v6387 = vunpack.c.l.b16 %v2570
    %v6388 = vunpack.c.h.b16 %v2570
    %v6389 = vunpack.c.l.b16 %v2571
    %v6390 = vunpack.c.h.b16 %v2571
    %v6391 = vunpack.c.l.b16 %v2572
    %v6392 = vunpack.c.h.b16 %v2572
    %v6393 = vunpack.c.l.b16 %v2573
    %v6394 = vunpack.c.h.b16 %v2573
    %v6395 = vunpack.c.l.b16 %v2574
    %v6396 = vunpack.c.h.b16 %v2574
    %v6397 = vunpack.c.l.b16 %v2575
    %v6398 = vunpack.c.h.b16 %v2575
    %v6399 = vunpack.c.l.b16 %v2576
    %v6400 = vunpack.c.h.b16 %v2576
    %v6401 = vunpack.c.l.b16 %v2577
    %v6402 = vunpack.c.h.b16 %v2577
    %v6403 = vunpack.c.l.b16 %v2578
    %v6404 = vunpack.c.h.b16 %v2578
    %v6405 = vunpack.c.l.b16 %v2579
    %v6406 = vunpack.c.h.b16 %v2579
    %v6407 = vunpack.c.l.b16 %v2580
    %v6408 = vunpack.c.h.b16 %v2580
    %v6409 = vunpack.c.l.b16 %v2581
    %v6410 = vunpack.c.h.b16 %v2581
    %v6411 = vunpack.c.l.b16 %v2582
    %v6412 = vunpack.c.h.b16 %v2582
    %v6413 = vunpack.c.l.b16 %v2583
    %v6414 = vunpack.c.h.b16 %v2583
    %v6415 = vunpack.c.l.b16 %v2584
    %v6416 = vunpack.c.h.b16 %v2584
    %v6417 = vunpack.c.l.b16 %v2585
    %v6418 = vunpack.c.h.b16 %v2585
    %v6419 = vunpack.c.l.b16 %v2586
    %v6420 = vunpack.c.h.b16 %v2586
    %v6421 = vunpack.c.l.b16 %v2587
    %v6422 = vunpack.c.h.b16 %v2587
    %v6423 = vunpack.c.l.b16 %v2588
    %v6424 = vunpack.c.h.b16 %v2588
    %v6425 = vunpack.c.l.b16 %v2589
    %v6426 = vunpack.c.h.b16 %v2589
    %v6427 = vunpack.c.l.b16 %v2590
    %v6428 = vunpack.c.h.b16 %v2590
    %v6429 = vunpack.c.l.b16 %v2591
    %v6430 = vunpack.c.h.b16 %v2591
    %v6431 = vunpack.c.l.b16 %v2592
    %v6432 = vunpack.c.h.b16 %v2592
    %v6433 = vunpack.c.l.b16 %v2593
    %v6434 = vunpack.c.h.b16 %v2593
    %v6435 = vunpack.c.l.b16 %v2594
    %v6436 = vunpack.c.h.b16 %v2594
    %v6437 = vunpack.c.l.b16 %v2595
    %v6438 = vunpack.c.h.b16 %v2595
    %v6439 = vunpack.c.l.b16 %v2596
    %v6440 = vunpack.c.h.b16 %v2596
    %v6441 = vunpack.c.l.b16 %v2597
    %v6442 = vunpack.c.h.b16 %v2597
    %v6443 = vunpack.c.l.b16 %v2598
    %v6444 = vunpack.c.h.b16 %v2598
    %v6445 = vunpack.c.l.b16 %v2599
    %v6446 = vunpack.c.h.b16 %v2599
    %v6447 = vunpack.c.l.b16 %v2600
    %v6448 = vunpack.c.h.b16 %v2600
    %v6449 = vunpack.c.l.b16 %v2601
    %v6450 = vunpack.c.h.b16 %v2601
    %v6451 = vunpack.c.l.b16 %v2602
    %v6452 = vunpack.c.h.b16 %v2602
    %v6453 = vunpack.c.l.b16 %v2603
    %v6454 = vunpack.c.h.b16 %v2603
    %v6455 = vunpack.c.l.b16 %v2604
    %v6456 = vunpack.c.h.b16 %v2604
    %v6457 = vunpack.c.l.b16 %v2605
    %v6458 = vunpack.c.h.b16 %v2605
    %v6459 = vunpack.c.l.b16 %v2606
    %v6460 = vunpack.c.h.b16 %v2606
    %v6461 = vunpack.c.l.b16 %v2607
    %v6462 = vunpack.c.h.b16 %v2607
    %v6463 = vunpack.c.l.b16 %v2608
    %v6464 = vunpack.c.h.b16 %v2608
    %v6465 = vunpack.c.l.b16 %v2609
    %v6466 = vunpack.c.h.b16 %v2609
    %v6467 = vunpack.c.l.b16 %v2610
    %v6468 = vunpack.c.h.b16 %v2610
    %v6469 = vunpack.c.l.b16 %v2611
    %v6470 = vunpack.c.h.b16 %v2611
    %v6471 = vunpack.c.l.b16 %v2612
    %v6472 = vunpack.c.h.b16 %v2612
    %v6473 = vunpack.c.l.b16 %v2613
    %v6474 = vunpack.c.h.b16 %v2613
    %v6475 = vunpack.c.l.b16 %v2614
    %v6476 = vunpack.c.h.b16 %v2614
    %v6477 = vunpack.c.l.b16 %v2615
    %v6478 = vunpack.c.h.b16 %v2615
    %v6479 = vunpack.c.l.b16 %v2616
    %v6480 = vunpack.c.h.b16 %v2616
    %v6481 = vunpack.c.l.b16 %v2617
    %v6482 = vunpack.c.h.b16 %v2617
    %v6483 = vunpack.c.l.b16 %v2618
    %v6484 = vunpack.c.h.b16 %v2618
    %v6485 = vunpack.c.l.b16 %v2619
    %v6486 = vunpack.c.h.b16 %v2619
    %v6487 = vunpack.c.l.b16 %v2620
    %v6488 = vunpack.c.h.b16 %v2620
    %v6489 = vunpack.c.l.b16 %v2621
    %v6490 = vunpack.c.h.b16 %v2621
    %v6491 = vunpack.c.l.b16 %v2622
    %v6492 = vunpack.c.h.b16 %v2622
    %v6493 = vunpack.c.l.b16 %v2623
    %v6494 = vunpack.c.h.b16 %v2623
    %v6495 = vunpack.c.l.b16 %v2624
    %v6496 = vunpack.c.h.b16 %v2624
    %v6497 = vunpack.c.l.b16 %v2625
    %v6498 = vunpack.c.h.b16 %v2625
    %v6499 = vunpack.c.l.b16 %v2626
    %v6500 = vunpack.c.h.b16 %v2626
    %v6501 = vunpack.c.l.b16 %v2627
    %v6502 = vunpack.c.h.b16 %v2627
    %v6503 = vunpack.c.l.b16 %v2628
    %v6504 = vunpack.c.h.b16 %v2628
    %v6505 = vunpack.c.l.b16 %v2629
    %v6506 = vunpack.c.h.b16 %v2629
    %v6507 = vunpack.c.l.b16 %v2630
    %v6508 = vunpack.c.h.b16 %v2630
    %v6509 = vunpack.c.l.b16 %v2631
    %v6510 = vunpack.c.h.b16 %v2631
    %v6511 = vunpack.c.l.b16 %v2632
    %v6512 = vunpack.c.h.b16 %v2632
    %v6513 = vunpack.c.l.b16 %v2633
    %v6514 = vunpack.c.h.b16 %v2633
    %v6515 = vunpack.c.l.b16 %v2634
    %v6516 = vunpack.c.h.b16 %v2634
    %v6517 = vunpack.c.l.b16 %v2635
    %v6518 = vunpack.c.h.b16 %v2635
    %v6519 = vunpack.c.l.b16 %v2636
    %v6520 = vunpack.c.h.b16 %v2636
    %v6521 = vunpack.c.l.b16 %v2637
    %v6522 = vunpack.c.h.b16 %v2637
    %v6523 = vunpack.c.l.b16 %v2638
    %v6524 = vunpack.c.h.b16 %v2638
    %v6525 = vunpack.c.l.b16 %v2639
    %v6526 = vunpack.c.h.b16 %v2639
    %v6527 = vunpack.c.l.b16 %v2640
    %v6528 = vunpack.c.h.b16 %v2640
    %v6529 = vunpack.c.l.b16 %v2641
    %v6530 = vunpack.c.h.b16 %v2641
    %v6531 = vunpack.c.l.b16 %v2642
    %v6532 = vunpack.c.h.b16 %v2642
    %v6533 = vunpack.c.l.b16 %v2643
    %v6534 = vunpack.c.h.b16 %v2643
    %v6535 = vunpack.c.l.b16 %v2644
    %v6536 = vunpack.c.h.b16 %v2644
    %v6537 = vunpack.c.l.b16 %v2645
    %v6538 = vunpack.c.h.b16 %v2645
    %v6539 = vunpack.c.l.b16 %v2646
    %v6540 = vunpack.c.h.b16 %v2646
    %v6541 = vunpack.c.l.b16 %v2647
    %v6542 = vunpack.c.h.b16 %v2647
    %v6543 = vunpack.c.l.b16 %v2648
    %v6544 = vunpack.c.h.b16 %v2648
    %v6545 = vunpack.c.l.b16 %v2649
    %v6546 = vunpack.c.h.b16 %v2649
    %v6547 = vunpack.c.l.b16 %v2650
    %v6548 = vunpack.c.h.b16 %v2650
    %v6549 = vunpack.c.l.b16 %v2651
    %v6550 = vunpack.c.h.b16 %v2651
    %v6551 = vunpack.c.l.b16 %v2652
    %v6552 = vunpack.c.h.b16 %v2652
    %v6553 = vunpack.c.l.b16 %v2653
    %v6554 = vunpack.c.h.b16 %v2653
    %v6555 = vunpack.c.l.b16 %v2654
    %v6556 = vunpack.c.h.b16 %v2654
    %v6557 = vunpack.c.l.b16 %v2655
    %v6558 = vunpack.c.h.b16 %v2655
    %v6559 = vunpack.c.l.b16 %v2656
    %v6560 = vunpack.c.h.b16 %v2656
    %v6561 = vunpack.c.l.b16 %v2657
    %v6562 = vunpack.c.h.b16 %v2657
    %v6563 = vunpack.c.l.b16 %v2658
    %v6564 = vunpack.c.h.b16 %v2658
    %v6565 = vunpack.c.l.b16 %v2659
    %v6566 = vunpack.c.h.b16 %v2659
    %v6567 = vunpack.c.l.b16 %v2660
    %v6568 = vunpack.c.h.b16 %v2660
    %v6569 = vunpack.c.l.b16 %v2661
    %v6570 = vunpack.c.h.b16 %v2661
    %v6571 = vunpack.c.l.b16 %v2662
    %v6572 = vunpack.c.h.b16 %v2662
    %v6573 = vunpack.c.l.b16 %v2663
    %v6574 = vunpack.c.h.b16 %v2663
    %v6575 = vunpack.c.l.b16 %v2664
    %v6576 = vunpack.c.h.b16 %v2664
    %v6577 = vunpack.c.l.b16 %v2665
    %v6578 = vunpack.c.h.b16 %v2665
    %v6579 = vunpack.c.l.b16 %v2666
    %v6580 = vunpack.c.h.b16 %v2666
    %v6581 = vunpack.c.l.b16 %v2667
    %v6582 = vunpack.c.h.b16 %v2667
    %v6583 = vunpack.c.l.b16 %v2668
    %v6584 = vunpack.c.h.b16 %v2668
    %v6585 = vunpack.c.l.b16 %v2669
    %v6586 = vunpack.c.h.b16 %v2669
    %v6587 = vunpack.c.l.b16 %v2670
    %v6588 = vunpack.c.h.b16 %v2670
    %v6589 = vunpack.c.l.b16 %v2671
    %v6590 = vunpack.c.h.b16 %v2671
    %v6591 = vunpack.c.l.b16 %v2672
    %v6592 = vunpack.c.h.b16 %v2672
    %v6593 = vunpack.c.l.b16 %v2673
    %v6594 = vunpack.c.h.b16 %v2673
    %v6595 = vunpack.c.l.b16 %v2674
    %v6596 = vunpack.c.h.b16 %v2674
    %v6597 = vunpack.c.l.b16 %v2675
    %v6598 = vunpack.c.h.b16 %v2675
    %v6599 = vunpack.c.l.b16 %v2676
    %v6600 = vunpack.c.h.b16 %v2676
    %v6601 = vunpack.c.l.b16 %v2677
    %v6602 = vunpack.c.h.b16 %v2677
    %v6603 = vunpack.c.l.b16 %v2678
    %v6604 = vunpack.c.h.b16 %v2678
    %v6605 = vunpack.c.l.b16 %v2679
    %v6606 = vunpack.c.h.b16 %v2679
    %v6607 = vunpack.c.l.b16 %v2680
    %v6608 = vunpack.c.h.b16 %v2680
    %v6609 = vunpack.c.l.b16 %v2681
    %v6610 = vunpack.c.h.b16 %v2681
    %v6611 = vunpack.c.l.b16 %v2682
    %v6612 = vunpack.c.h.b16 %v2682
    %v6613 = vunpack.c.l.b16 %v2683
    %v6614 = vunpack.c.h.b16 %v2683
    %v6615 = vunpack.c.l.b16 %v2684
    %v6616 = vunpack.c.h.b16 %v2684
    %v6617 = vunpack.c.l.b16 %v2685
    %v6618 = vunpack.c.h.b16 %v2685
    %v6619 = vunpack.c.l.b16 %v2686
    %v6620 = vunpack.c.h.b16 %v2686
    %v6621 = vunpack.c.l.b16 %v2687
    %v6622 = vunpack.c.h.b16 %v2687
    %v6623 = vunpack.c.l.b16 %v2688
    %v6624 = vunpack.c.h.b16 %v2688
    %v6625 = vunpack.c.l.b16 %v2689
    %v6626 = vunpack.c.h.b16 %v2689
    %v6627 = vunpack.c.l.b16 %v2690
    %v6628 = vunpack.c.h.b16 %v2690
    %v6629 = vunpack.c.l.b16 %v2691
    %v6630 = vunpack.c.h.b16 %v2691
    %v6631 = vunpack.c.l.b16 %v2692
    %v6632 = vunpack.c.h.b16 %v2692
    %v6633 = vunpack.c.l.b16 %v2693
    %v6634 = vunpack.c.h.b16 %v2693
    %v6635 = vunpack.c.l.b16 %v2694
    %v6636 = vunpack.c.h.b16 %v2694
    %v6637 = vunpack.c.l.b16 %v2695
    %v6638 = vunpack.c.h.b16 %v2695
    %v6639 = vunpack.c.l.b16 %v2696
    %v6640 = vunpack.c.h.b16 %v2696
    %v6641 = vunpack.c.l.b16 %v2697
    %v6642 = vunpack.c.h.b16 %v2697
    %v6643 = vunpack.c.l.b16 %v2698
    %v6644 = vunpack.c.h.b16 %v2698
    %v6645 = vunpack.c.l.b16 %v2699
    %v6646 = vunpack.c.h.b16 %v2699
    %v6647 = vunpack.c.l.b16 %v2700
    %v6648 = vunpack.c.h.b16 %v2700
    %v6649 = vunpack.c.l.b16 %v2701
    %v6650 = vunpack.c.h.b16 %v2701
    %v6651 = vunpack.c.l.b16 %v2702
    %v6652 = vunpack.c.h.b16 %v2702
    %v6653 = vunpack.c.l.b16 %v2703
    %v6654 = vunpack.c.h.b16 %v2703
    %v6655 = vunpack.c.l.b16 %v2704
    %v6656 = vunpack.c.h.b16 %v2704
    %v6657 = vunpack.c.l.b16 %v2705
    %v6658 = vunpack.c.h.b16 %v2705
    %v6659 = vunpack.c.l.b16 %v2706
    %v6660 = vunpack.c.h.b16 %v2706
    %v6661 = vunpack.c.l.b16 %v2707
    %v6662 = vunpack.c.h.b16 %v2707
    %v6663 = vunpack.c.l.b16 %v2708
    %v6664 = vunpack.c.h.b16 %v2708
    %v6665 = vunpack.c.l.b16 %v2709
    %v6666 = vunpack.c.h.b16 %v2709
    %v6667 = vunpack.c.l.b16 %v2710
    %v6668 = vunpack.c.h.b16 %v2710
    %v6669 = vunpack.c.l.b16 %v2711
    %v6670 = vunpack.c.h.b16 %v2711
    %v6671 = vunpack.c.l.b16 %v2712
    %v6672 = vunpack.c.h.b16 %v2712
    %v6673 = vunpack.c.l.b16 %v2713
    %v6674 = vunpack.c.h.b16 %v2713
    %v6675 = vunpack.c.l.b16 %v2714
    %v6676 = vunpack.c.h.b16 %v2714
    %v6677 = vunpack.c.l.b16 %v2715
    %v6678 = vunpack.c.h.b16 %v2715
    %v6679 = vunpack.c.l.b16 %v2716
    %v6680 = vunpack.c.h.b16 %v2716
    %v6681 = vunpack.c.l.b16 %v2717
    %v6682 = vunpack.c.h.b16 %v2717
    %v6683 = vunpack.c.l.b16 %v2718
    %v6684 = vunpack.c.h.b16 %v2718
    %v6685 = vunpack.c.l.b16 %v2719
    %v6686 = vunpack.c.h.b16 %v2719
    %v6687 = vunpack.c.l.b16 %v2720
    %v6688 = vunpack.c.h.b16 %v2720
    %v6689 = vunpack.c.l.b16 %v2721
    %v6690 = vunpack.c.h.b16 %v2721
    %v6691 = vunpack.c.l.b16 %v2722
    %v6692 = vunpack.c.h.b16 %v2722
    %v6693 = vunpack.c.l.b16 %v2723
    %v6694 = vunpack.c.h.b16 %v2723
    %v6695 = vunpack.c.l.b16 %v2724
    %v6696 = vunpack.c.h.b16 %v2724
    %v6697 = vunpack.c.l.b16 %v2725
    %v6698 = vunpack.c.h.b16 %v2725
    %v6699 = vunpack.c.l.b16 %v2726
    %v6700 = vunpack.c.h.b16 %v2726
    %v6701 = vunpack.c.l.b16 %v2727
    %v6702 = vunpack.c.h.b16 %v2727
    %v6703 = vunpack.c.l.b16 %v2728
    %v6704 = vunpack.c.h.b16 %v2728
    %v6705 = vunpack.c.l.b16 %v2729
    %v6706 = vunpack.c.h.b16 %v2729
    %v6707 = vunpack.c.l.b16 %v2730
    %v6708 = vunpack.c.h.b16 %v2730
    %v6709 = vunpack.c.l.b16 %v2731
    %v6710 = vunpack.c.h.b16 %v2731
    %v6711 = vunpack.c.l.b16 %v2732
    %v6712 = vunpack.c.h.b16 %v2732
    %v6713 = vunpack.c.l.b16 %v2733
    %v6714 = vunpack.c.h.b16 %v2733
    %v6715 = vunpack.c.l.b16 %v2734
    %v6716 = vunpack.c.h.b16 %v2734
    %v6717 = vunpack.c.l.b16 %v2735
    %v6718 = vunpack.c.h.b16 %v2735
    %v6719 = vunpack.c.l.b16 %v2736
    %v6720 = vunpack.c.h.b16 %v2736
    %v6721 = vunpack.c.l.b16 %v2737
    %v6722 = vunpack.c.h.b16 %v2737
    %v6723 = vunpack.c.l.b16 %v2738
    %v6724 = vunpack.c.h.b16 %v2738
    %v6725 = vunpack.c.l.b16 %v2739
    %v6726 = vunpack.c.h.b16 %v2739
    %v6727 = vunpack.c.l.b16 %v2740
    %v6728 = vunpack.c.h.b16 %v2740
    %v6729 = vunpack.c.l.b16 %v2741
    %v6730 = vunpack.c.h.b16 %v2741
    %v6731 = vunpack.c.l.b16 %v2742
    %v6732 = vunpack.c.h.b16 %v2742
    %v6733 = vunpack.c.l.b16 %v2743
    %v6734 = vunpack.c.h.b16 %v2743
    %v6735 = vunpack.c.l.b16 %v2744
    %v6736 = vunpack.c.h.b16 %v2744
    %v6737 = vunpack.c.l.b16 %v2745
    %v6738 = vunpack.c.h.b16 %v2745
    %v6739 = vunpack.c.l.b16 %v2746
    %v6740 = vunpack.c.h.b16 %v2746
    %v6741 = vunpack.c.l.b16 %v2747
    %v6742 = vunpack.c.h.b16 %v2747
    %v6743 = vunpack.c.l.b16 %v2748
    %v6744 = vunpack.c.h.b16 %v2748
    %v6745 = vunpack.c.l.b16 %v2749
    %v6746 = vunpack.c.h.b16 %v2749
    %v6747 = vunpack.c.l.b16 %v2750
    %v6748 = vunpack.c.h.b16 %v2750
    %v6749 = vunpack.c.l.b16 %v2751
    %v6750 = vunpack.c.h.b16 %v2751
    %v6751 = vunpack.c.l.b16 %v2752
    %v6752 = vunpack.c.h.b16 %v2752
    %v6753 = vunpack.c.l.b16 %v2753
    %v6754 = vunpack.c.h.b16 %v2753
    %v6755 = vunpack.c.l.b16 %v2754
    %v6756 = vunpack.c.h.b16 %v2754
    %v6757 = vunpack.c.l.b16 %v2755
    %v6758 = vunpack.c.h.b16 %v2755
    %v6759 = vunpack.c.l.b16 %v2756
    %v6760 = vunpack.c.h.b16 %v2756
    %v6761 = vunpack.c.l.b16 %v2757
    %v6762 = vunpack.c.h.b16 %v2757
    %v6763 = vunpack.c.l.b16 %v2758
    %v6764 = vunpack.c.h.b16 %v2758
    %v6765 = vunpack.c.l.b16 %v2759
    %v6766 = vunpack.c.h.b16 %v2759
    %v6767 = vunpack.c.l.b16 %v2760
    %v6768 = vunpack.c.h.b16 %v2760
    %v6769 = vunpack.c.l.b16 %v2761
    %v6770 = vunpack.c.h.b16 %v2761
    %v6771 = vunpack.c.l.b16 %v2762
    %v6772 = vunpack.c.h.b16 %v2762
    %v6773 = vunpack.c.l.b16 %v2763
    %v6774 = vunpack.c.h.b16 %v2763
    %v6775 = vunpack.c.l.b16 %v2764
    %v6776 = vunpack.c.h.b16 %v2764
    %v6777 = vunpack.c.l.b16 %v2765
    %v6778 = vunpack.c.h.b16 %v2765
    %v6779 = vunpack.c.l.b16 %v2766
    %v6780 = vunpack.c.h.b16 %v2766
    %v6781 = vunpack.c.l.b16 %v2767
    %v6782 = vunpack.c.h.b16 %v2767
    %v6783 = vunpack.c.l.b16 %v2768
    %v6784 = vunpack.c.h.b16 %v2768
    %v6785 = vunpack.c.l.b16 %v2769
    %v6786 = vunpack.c.h.b16 %v2769
    %v6787 = vunpack.c.l.b16 %v2770
    %v6788 = vunpack.c.h.b16 %v2770
    %v6789 = vunpack.c.l.b16 %v2771
    %v6790 = vunpack.c.h.b16 %v2771
    %v6791 = vunpack.c.l.b16 %v2772
    %v6792 = vunpack.c.h.b16 %v2772
    %v6793 = vunpack.c.l.b16 %v2773
    %v6794 = vunpack.c.h.b16 %v2773
    %v6795 = vunpack.c.l.b16 %v2774
    %v6796 = vunpack.c.h.b16 %v2774
    %v6797 = vunpack.c.l.b16 %v2775
    %v6798 = vunpack.c.h.b16 %v2775
    %v6799 = vunpack.c.l.b16 %v2776
    %v6800 = vunpack.c.h.b16 %v2776
    %v6801 = vunpack.c.l.b16 %v2777
    %v6802 = vunpack.c.h.b16 %v2777
    %v6803 = vunpack.c.l.b16 %v2778
    %v6804 = vunpack.c.h.b16 %v2778
    %v6805 = vunpack.c.l.b16 %v2779
    %v6806 = vunpack.c.h.b16 %v2779
    %v6807 = vunpack.c.l.b16 %v2780
    %v6808 = vunpack.c.h.b16 %v2780
    %v6809 = vunpack.c.l.b16 %v2781
    %v6810 = vunpack.c.h.b16 %v2781
    %v6811 = vunpack.c.l.b16 %v2782
    %v6812 = vunpack.c.h.b16 %v2782
    %v6813 = vunpack.c.l.b16 %v2783
    %v6814 = vunpack.c.h.b16 %v2783
    %v6815 = vunpack.c.l.b16 %v2784
    %v6816 = vunpack.c.h.b16 %v2784
    %v6817 = vunpack.c.l.b16 %v2785
    %v6818 = vunpack.c.h.b16 %v2785
    %v6819 = vunpack.c.l.b16 %v2786
    %v6820 = vunpack.c.h.b16 %v2786
    %v6821 = vunpack.c.l.b16 %v2787
    %v6822 = vunpack.c.h.b16 %v2787
    %v6823 = vunpack.c.l.b16 %v2788
    %v6824 = vunpack.c.h.b16 %v2788
    %v6825 = vunpack.c.l.b16 %v2789
    %v6826 = vunpack.c.h.b16 %v2789
    %v6827 = vunpack.c.l.b16 %v2790
    %v6828 = vunpack.c.h.b16 %v2790
    %v6829 = vunpack.c.l.b16 %v2791
    %v6830 = vunpack.c.h.b16 %v2791
    %v6831 = vunpack.c.l.b16 %v2792
    %v6832 = vunpack.c.h.b16 %v2792
    %v6833 = vunpack.c.l.b16 %v2793
    %v6834 = vunpack.c.h.b16 %v2793
    %v6835 = vunpack.c.l.b16 %v2794
    %v6836 = vunpack.c.h.b16 %v2794
    %v6837 = vunpack.c.l.b16 %v2795
    %v6838 = vunpack.c.h.b16 %v2795
    %v6839 = vunpack.c.l.b16 %v2796
    %v6840 = vunpack.c.h.b16 %v2796
    %v6841 = vunpack.c.l.b16 %v2797
    %v6842 = vunpack.c.h.b16 %v2797
    %v6843 = vunpack.c.l.b16 %v2798
    %v6844 = vunpack.c.h.b16 %v2798
    %v6845 = vunpack.c.l.b16 %v2799
    %v6846 = vunpack.c.h.b16 %v2799
    %v6847 = vunpack.c.l.b16 %v2800
    %v6848 = vunpack.c.h.b16 %v2800
    %v6849 = vunpack.c.l.b16 %v2801
    %v6850 = vunpack.c.h.b16 %v2801
    %v6851 = vunpack.c.l.b16 %v2802
    %v6852 = vunpack.c.h.b16 %v2802
    %v6853 = vunpack.c.l.b16 %v2803
    %v6854 = vunpack.c.h.b16 %v2803
    %v6855 = vunpack.c.l.b16 %v2804
    %v6856 = vunpack.c.h.b16 %v2804
    %v6857 = vunpack.c.l.b16 %v2805
    %v6858 = vunpack.c.h.b16 %v2805
    %v6859 = vunpack.c.l.b16 %v2806
    %v6860 = vunpack.c.h.b16 %v2806
    %v6861 = vunpack.c.l.b16 %v2807
    %v6862 = vunpack.c.h.b16 %v2807
    %v6863 = vunpack.c.l.b16 %v2808
    %v6864 = vunpack.c.h.b16 %v2808
    %v6865 = vunpack.c.l.b16 %v2809
    %v6866 = vunpack.c.h.b16 %v2809
    %v6867 = vunpack.c.l.b16 %v2810
    %v6868 = vunpack.c.h.b16 %v2810
    %v6869 = vunpack.c.l.b16 %v2811
    %v6870 = vunpack.c.h.b16 %v2811
    %v6871 = vunpack.c.l.b16 %v2812
    %v6872 = vunpack.c.h.b16 %v2812
    %v6873 = vunpack.c.l.b16 %v2813
    %v6874 = vunpack.c.h.b16 %v2813
    %v6875 = vunpack.c.l.b16 %v2814
    %v6876 = vunpack.c.h.b16 %v2814
    %v6877 = vunpack.c.l.b16 %v2815
    %v6878 = vunpack.c.h.b16 %v2815
    %v6879 = vunpack.c.l.b16 %v2816
    %v6880 = vunpack.c.h.b16 %v2816
    %v6881 = vunpack.c.l.b16 %v2817
    %v6882 = vunpack.c.h.b16 %v2817
    %v6883 = vunpack.c.l.b16 %v2818
    %v6884 = vunpack.c.h.b16 %v2818
    %v6885 = vunpack.c.l.b16 %v2819
    %v6886 = vunpack.c.h.b16 %v2819
    %v6887 = vunpack.c.l.b16 %v2820
    %v6888 = vunpack.c.h.b16 %v2820
    %v6889 = vunpack.c.l.b16 %v2821
    %v6890 = vunpack.c.h.b16 %v2821
    %v6891 = vunpack.c.l.b16 %v2822
    %v6892 = vunpack.c.h.b16 %v2822
    %v6893 = vunpack.c.l.b16 %v2823
    %v6894 = vunpack.c.h.b16 %v2823
    %v6895 = vunpack.c.l.b16 %v2824
    %v6896 = vunpack.c.h.b16 %v2824
    %v6897 = vunpack.c.l.b16 %v2825
    %v6898 = vunpack.c.h.b16 %v2825
    %v6899 = vunpack.c.l.b16 %v2826
    %v6900 = vunpack.c.h.b16 %v2826
    %v6901 = vunpack.c.l.b16 %v2827
    %v6902 = vunpack.c.h.b16 %v2827
    %v6903 = vunpack.c.l.b16 %v2828
    %v6904 = vunpack.c.h.b16 %v2828
    %v6905 = vunpack.c.l.b16 %v2829
    %v6906 = vunpack.c.h.b16 %v2829
    %v6907 = vunpack.c.l.b16 %v2830
    %v6908 = vunpack.c.h.b16 %v2830
    %v6909 = vunpack.c.l.b16 %v2831
    %v6910 = vunpack.c.h.b16 %v2831
    %v6911 = vunpack.c.l.b16 %v2832
    %v6912 = vunpack.c.h.b16 %v2832
    %v6913 = vunpack.c.l.b16 %v2833
    %v6914 = vunpack.c.h.b16 %v2833
    %v6915 = vunpack.c.l.b16 %v2834
    %v6916 = vunpack.c.h.b16 %v2834
    %v6917 = vunpack.c.l.b16 %v2835
    %v6918 = vunpack.c.h.b16 %v2835
    %v6919 = vunpack.c.l.b16 %v2836
    %v6920 = vunpack.c.h.b16 %v2836
    %v6921 = vunpack.c.l.b16 %v2837
    %v6922 = vunpack.c.h.b16 %v2837
    %v6923 = vpack.c.b16 %v5651, %v5643
    %v6924 = vpack.c.b16 %v5652, %v5644
    %v6925 = vpack.c.b16 %v5653, %v5645
    %v6926 = vpack.c.b16 %v5654, %v5646
    %v6927 = vpack.c.b16 %v5655, %v5647
    %v6928 = vpack.c.b16 %v5656, %v5648
    %v6929 = vpack.c.b16 %v5657, %v5649
    %v6930 = vpack.c.b16 %v5658, %v5650
    %v6931 = vpack.c.b16 %v5667, %v5659
    %v6932 = vpack.c.b16 %v5668, %v5660
    %v6933 = vpack.c.b16 %v5669, %v5661
    %v6934 = vpack.c.b16 %v5670, %v5662
    %v6935 = vpack.c.b16 %v5671, %v5663
    %v6936 = vpack.c.b16 %v5672, %v5664
    %v6937 = vpack.c.b16 %v5673, %v5665
    %v6938 = vpack.c.b16 %v5674, %v5666
    %v6939 = vpack.c.b16 %v5683, %v5675
    %v6940 = vpack.c.b16 %v5684, %v5676
    %v6941 = vpack.c.b16 %v5685, %v5677
    %v6942 = vpack.c.b16 %v5686, %v5678
    %v6943 = vpack.c.b16 %v5687, %v5679
    %v6944 = vpack.c.b16 %v5688, %v5680
    %v6945 = vpack.c.b16 %v5689, %v5681
    %v6946 = vpack.c.b16 %v5690, %v5682
    %v6947 = vpack.c.b16 %v5699, %v5691
    %v6948 = vpack.c.b16 %v5700, %v5692
    %v6949 = vpack.c.b16 %v5701, %v5693
    %v6950 = vpack.c.b16 %v5702, %v5694
    %v6951 = vpack.c.b16 %v5703, %v5695
    %v6952 = vpack.c.b16 %v5704, %v5696
    %v6953 = vpack.c.b16 %v5705, %v5697
    %v6954 = vpack.c.b16 %v5706, %v5698
    %v6955 = vpack.c.b16 %v5715, %v5707
    %v6956 = vpack.c.b16 %v5716, %v5708
    %v6957 = vpack.c.b16 %v5717, %v5709
    %v6958 = vpack.c.b16 %v5718, %v5710
    %v6959 = vpack.c.b16 %v5719, %v5711
    %v6960 = vpack.c.b16 %v5720, %v5712
    %v6961 = vpack.c.b16 %v5721, %v5713
    %v6962 = vpack.c.b16 %v5722, %v5714
    %v6963 = vpack.c.b16 %v5731, %v5723
    %v6964 = vpack.c.b16 %v5732, %v5724
    %v6965 = vpack.c.b16 %v5733, %v5725
    %v6966 = vpack.c.b16 %v5734, %v5726
    %v6967 = vpack.c.b16 %v5735, %v5727
    %v6968 = vpack.c.b16 %v5736, %v5728
    %v6969 = vpack.c.b16 %v5737, %v5729
    %v6970 = vpack.c.b16 %v5738, %v5730
    %v6971 = vpack.c.b16 %v5747, %v5739
    %v6972 = vpack.c.b16 %v5748, %v5740
    %v6973 = vpack.c.b16 %v5749, %v5741
    %v6974 = vpack.c.b16 %v5750, %v5742
    %v6975 = vpack.c.b16 %v5751, %v5743
    %v6976 = vpack.c.b16 %v5752, %v5744
    %v6977 = vpack.c.b16 %v5753, %v5745
    %v6978 = vpack.c.b16 %v5754, %v5746
    %v6979 = vpack.c.b16 %v5763, %v5755
    %v6980 = vpack.c.b16 %v5764, %v5756
    %v6981 = vpack.c.b16 %v5765, %v5757
    %v6982 = vpack.c.b16 %v5766, %v5758
    %v6983 = vpack.c.b16 %v5767, %v5759
    %v6984 = vpack.c.b16 %v5768, %v5760
    %v6985 = vpack.c.b16 %v5769, %v5761
    %v6986 = vpack.c.b16 %v5770, %v5762
    %v6987 = vpack.c.b16 %v5779, %v5771
    %v6988 = vpack.c.b16 %v5780, %v5772
    %v6989 = vpack.c.b16 %v5781, %v5773
    %v6990 = vpack.c.b16 %v5782, %v5774
    %v6991 = vpack.c.b16 %v5783, %v5775
    %v6992 = vpack.c.b16 %v5784, %v5776
    %v6993 = vpack.c.b16 %v5785, %v5777
    %v6994 = vpack.c.b16 %v5786, %v5778
    %v6995 = vpack.c.b16 %v5795, %v5787
    %v6996 = vpack.c.b16 %v5796, %v5788
    %v6997 = vpack.c.b16 %v5797, %v5789
    %v6998 = vpack.c.b16 %v5798, %v5790
    %v6999 = vpack.c.b16 %v5799, %v5791
    %v7000 = vpack.c.b16 %v5800, %v5792
    %v7001 = vpack.c.b16 %v5801, %v5793
    %v7002 = vpack.c.b16 %v5802, %v5794
    %v7003 = vpack.c.b16 %v5811, %v5803
    %v7004 = vpack.c.b16 %v5812, %v5804
    %v7005 = vpack.c.b16 %v5813, %v5805
    %v7006 = vpack.c.b16 %v5814, %v5806
    %v7007 = vpack.c.b16 %v5815, %v5807
    %v7008 = vpack.c.b16 %v5816, %v5808
    %v7009 = vpack.c.b16 %v5817, %v5809
    %v7010 = vpack.c.b16 %v5818, %v5810
    %v7011 = vpack.c.b16 %v5827, %v5819
    %v7012 = vpack.c.b16 %v5828, %v5820
    %v7013 = vpack.c.b16 %v5829, %v5821
    %v7014 = vpack.c.b16 %v5830, %v5822
    %v7015 = vpack.c.b16 %v5831, %v5823
    %v7016 = vpack.c.b16 %v5832, %v5824
    %v7017 = vpack.c.b16 %v5833, %v5825
    %v7018 = vpack.c.b16 %v5834, %v5826
    %v7019 = vpack.c.b16 %v5843, %v5835
    %v7020 = vpack.c.b16 %v5844, %v5836
    %v7021 = vpack.c.b16 %v5845, %v5837
    %v7022 = vpack.c.b16 %v5846, %v5838
    %v7023 = vpack.c.b16 %v5847, %v5839
    %v7024 = vpack.c.b16 %v5848, %v5840
    %v7025 = vpack.c.b16 %v5849, %v5841
    %v7026 = vpack.c.b16 %v5850, %v5842
    %v7027 = vpack.c.b16 %v5859, %v5851
    %v7028 = vpack.c.b16 %v5860, %v5852
    %v7029 = vpack.c.b16 %v5861, %v5853
    %v7030 = vpack.c.b16 %v5862, %v5854
    %v7031 = vpack.c.b16 %v5863, %v5855
    %v7032 = vpack.c.b16 %v5864, %v5856
    %v7033 = vpack.c.b16 %v5865, %v5857
    %v7034 = vpack.c.b16 %v5866, %v5858
    %v7035 = vpack.c.b16 %v5875, %v5867
    %v7036 = vpack.c.b16 %v5876, %v5868
    %v7037 = vpack.c.b16 %v5877, %v5869
    %v7038 = vpack.c.b16 %v5878, %v5870
    %v7039 = vpack.c.b16 %v5879, %v5871
    %v7040 = vpack.c.b16 %v5880, %v5872
    %v7041 = vpack.c.b16 %v5881, %v5873
    %v7042 = vpack.c.b16 %v5882, %v5874
    %v7043 = vpack.c.b16 %v5891, %v5883
    %v7044 = vpack.c.b16 %v5892, %v5884
    %v7045 = vpack.c.b16 %v5893, %v5885
    %v7046 = vpack.c.b16 %v5894, %v5886
    %v7047 = vpack.c.b16 %v5895, %v5887
    %v7048 = vpack.c.b16 %v5896, %v5888
    %v7049 = vpack.c.b16 %v5897, %v5889
    %v7050 = vpack.c.b16 %v5898, %v5890
    %v7051 = vpack.c.b16 %v5907, %v5899
    %v7052 = vpack.c.b16 %v5908, %v5900
    %v7053 = vpack.c.b16 %v5909, %v5901
    %v7054 = vpack.c.b16 %v5910, %v5902
    %v7055 = vpack.c.b16 %v5911, %v5903
    %v7056 = vpack.c.b16 %v5912, %v5904
    %v7057 = vpack.c.b16 %v5913, %v5905
    %v7058 = vpack.c.b16 %v5914, %v5906
    %v7059 = vpack.c.b16 %v5923, %v5915
    %v7060 = vpack.c.b16 %v5924, %v5916
    %v7061 = vpack.c.b16 %v5925, %v5917
    %v7062 = vpack.c.b16 %v5926, %v5918
    %v7063 = vpack.c.b16 %v5927, %v5919
    %v7064 = vpack.c.b16 %v5928, %v5920
    %v7065 = vpack.c.b16 %v5929, %v5921
    %v7066 = vpack.c.b16 %v5930, %v5922
    %v7067 = vpack.c.b16 %v5939, %v5931
    %v7068 = vpack.c.b16 %v5940, %v5932
    %v7069 = vpack.c.b16 %v5941, %v5933
    %v7070 = vpack.c.b16 %v5942, %v5934
    %v7071 = vpack.c.b16 %v5943, %v5935
    %v7072 = vpack.c.b16 %v5944, %v5936
    %v7073 = vpack.c.b16 %v5945, %v5937
    %v7074 = vpack.c.b16 %v5946, %v5938
    %v7075 = vpack.c.b16 %v5955, %v5947
    %v7076 = vpack.c.b16 %v5956, %v5948
    %v7077 = vpack.c.b16 %v5957, %v5949
    %v7078 = vpack.c.b16 %v5958, %v5950
    %v7079 = vpack.c.b16 %v5959, %v5951
    %v7080 = vpack.c.b16 %v5960, %v5952
    %v7081 = vpack.c.b16 %v5961, %v5953
    %v7082 = vpack.c.b16 %v5962, %v5954
    %v7083 = vpack.c.b16 %v5971, %v5963
    %v7084 = vpack.c.b16 %v5972, %v5964
    %v7085 = vpack.c.b16 %v5973, %v5965
    %v7086 = vpack.c.b16 %v5974, %v5966
    %v7087 = vpack.c.b16 %v5975, %v5967
    %v7088 = vpack.c.b16 %v5976, %v5968
    %v7089 = vpack.c.b16 %v5977, %v5969
    %v7090 = vpack.c.b16 %v5978, %v5970
    %v7091 = vpack.c.b16 %v5987, %v5979
    %v7092 = vpack.c.b16 %v5988, %v5980
    %v7093 = vpack.c.b16 %v5989, %v5981
    %v7094 = vpack.c.b16 %v5990, %v5982
    %v7095 = vpack.c.b16 %v5991, %v5983
    %v7096 = vpack.c.b16 %v5992, %v5984
    %v7097 = vpack.c.b16 %v5993, %v5985
    %v7098 = vpack.c.b16 %v5994, %v5986
    %v7099 = vpack.c.b16 %v6003, %v5995
    %v7100 = vpack.c.b16 %v6004, %v5996
    %v7101 = vpack.c.b16 %v6005, %v5997
    %v7102 = vpack.c.b16 %v6006, %v5998
    %v7103 = vpack.c.b16 %v6007, %v5999
    %v7104 = vpack.c.b16 %v6008, %v6000
    %v7105 = vpack.c.b16 %v6009, %v6001
    %v7106 = vpack.c.b16 %v6010, %v6002
    %v7107 = vpack.c.b16 %v6019, %v6011
    %v7108 = vpack.c.b16 %v6020, %v6012
    %v7109 = vpack.c.b16 %v6021, %v6013
    %v7110 = vpack.c.b16 %v6022, %v6014
    %v7111 = vpack.c.b16 %v6023, %v6015
    %v7112 = vpack.c.b16 %v6024, %v6016
    %v7113 = vpack.c.b16 %v6025, %v6017
    %v7114 = vpack.c.b16 %v6026, %v6018
    %v7115 = vpack.c.b16 %v6035, %v6027
    %v7116 = vpack.c.b16 %v6036, %v6028
    %v7117 = vpack.c.b16 %v6037, %v6029
    %v7118 = vpack.c.b16 %v6038, %v6030
    %v7119 = vpack.c.b16 %v6039, %v6031
    %v7120 = vpack.c.b16 %v6040, %v6032
    %v7121 = vpack.c.b16 %v6041, %v6033
    %v7122 = vpack.c.b16 %v6042, %v6034
    %v7123 = vpack.c.b16 %v6051, %v6043
    %v7124 = vpack.c.b16 %v6052, %v6044
    %v7125 = vpack.c.b16 %v6053, %v6045
    %v7126 = vpack.c.b16 %v6054, %v6046
    %v7127 = vpack.c.b16 %v6055, %v6047
    %v7128 = vpack.c.b16 %v6056, %v6048
    %v7129 = vpack.c.b16 %v6057, %v6049
    %v7130 = vpack.c.b16 %v6058, %v6050
    %v7131 = vpack.c.b16 %v6067, %v6059
    %v7132 = vpack.c.b16 %v6068, %v6060
    %v7133 = vpack.c.b16 %v6069, %v6061
    %v7134 = vpack.c.b16 %v6070, %v6062
    %v7135 = vpack.c.b16 %v6071, %v6063
    %v7136 = vpack.c.b16 %v6072, %v6064
    %v7137 = vpack.c.b16 %v6073, %v6065
    %v7138 = vpack.c.b16 %v6074, %v6066
    %v7139 = vpack.c.b16 %v6083, %v6075
    %v7140 = vpack.c.b16 %v6084, %v6076
    %v7141 = vpack.c.b16 %v6085, %v6077
    %v7142 = vpack.c.b16 %v6086, %v6078
    %v7143 = vpack.c.b16 %v6087, %v6079
    %v7144 = vpack.c.b16 %v6088, %v6080
    %v7145 = vpack.c.b16 %v6089, %v6081
    %v7146 = vpack.c.b16 %v6090, %v6082
    %v7147 = vpack.c.b16 %v6099, %v6091
    %v7148 = vpack.c.b16 %v6100, %v6092
    %v7149 = vpack.c.b16 %v6101, %v6093
    %v7150 = vpack.c.b16 %v6102, %v6094
    %v7151 = vpack.c.b16 %v6103, %v6095
    %v7152 = vpack.c.b16 %v6104, %v6096
    %v7153 = vpack.c.b16 %v6105, %v6097
    %v7154 = vpack.c.b16 %v6106, %v6098
    %v7155 = vpack.c.b16 %v6115, %v6107
    %v7156 = vpack.c.b16 %v6116, %v6108
    %v7157 = vpack.c.b16 %v6117, %v6109
    %v7158 = vpack.c.b16 %v6118, %v6110
    %v7159 = vpack.c.b16 %v6119, %v6111
    %v7160 = vpack.c.b16 %v6120, %v6112
    %v7161 = vpack.c.b16 %v6121, %v6113
    %v7162 = vpack.c.b16 %v6122, %v6114
    %v7163 = vpack.c.b16 %v6131, %v6123
    %v7164 = vpack.c.b16 %v6132, %v6124
    %v7165 = vpack.c.b16 %v6133, %v6125
    %v7166 = vpack.c.b16 %v6134, %v6126
    %v7167 = vpack.c.b16 %v6135, %v6127
    %v7168 = vpack.c.b16 %v6136, %v6128
    %v7169 = vpack.c.b16 %v6137, %v6129
    %v7170 = vpack.c.b16 %v6138, %v6130
    %v7171 = vpack.c.b16 %v6147, %v6139
    %v7172 = vpack.c.b16 %v6148, %v6140
    %v7173 = vpack.c.b16 %v6149, %v6141
    %v7174 = vpack.c.b16 %v6150, %v6142
    %v7175 = vpack.c.b16 %v6151, %v6143
    %v7176 = vpack.c.b16 %v6152, %v6144
    %v7177 = vpack.c.b16 %v6153, %v6145
    %v7178 = vpack.c.b16 %v6154, %v6146
    %v7179 = vpack.c.b16 %v6163, %v6155
    %v7180 = vpack.c.b16 %v6164, %v6156
    %v7181 = vpack.c.b16 %v6165, %v6157
    %v7182 = vpack.c.b16 %v6166, %v6158
    %v7183 = vpack.c.b16 %v6167, %v6159
    %v7184 = vpack.c.b16 %v6168, %v6160
    %v7185 = vpack.c.b16 %v6169, %v6161
    %v7186 = vpack.c.b16 %v6170, %v6162
    %v7187 = vpack.c.b16 %v6179, %v6171
    %v7188 = vpack.c.b16 %v6180, %v6172
    %v7189 = vpack.c.b16 %v6181, %v6173
    %v7190 = vpack.c.b16 %v6182, %v6174
    %v7191 = vpack.c.b16 %v6183, %v6175
    %v7192 = vpack.c.b16 %v6184, %v6176
    %v7193 = vpack.c.b16 %v6185, %v6177
    %v7194 = vpack.c.b16 %v6186, %v6178
    %v7195 = vpack.c.b16 %v6195, %v6187
    %v7196 = vpack.c.b16 %v6196, %v6188
    %v7197 = vpack.c.b16 %v6197, %v6189
    %v7198 = vpack.c.b16 %v6198, %v6190
    %v7199 = vpack.c.b16 %v6199, %v6191
    %v7200 = vpack.c.b16 %v6200, %v6192
    %v7201 = vpack.c.b16 %v6201, %v6193
    %v7202 = vpack.c.b16 %v6202, %v6194
    %v7203 = vpack.c.b16 %v6211, %v6203
    %v7204 = vpack.c.b16 %v6212, %v6204
    %v7205 = vpack.c.b16 %v6213, %v6205
    %v7206 = vpack.c.b16 %v6214, %v6206
    %v7207 = vpack.c.b16 %v6215, %v6207
    %v7208 = vpack.c.b16 %v6216, %v6208
    %v7209 = vpack.c.b16 %v6217, %v6209
    %v7210 = vpack.c.b16 %v6218, %v6210
    %v7211 = vpack.c.b16 %v6227, %v6219
    %v7212 = vpack.c.b16 %v6228, %v6220
    %v7213 = vpack.c.b16 %v6229, %v6221
    %v7214 = vpack.c.b16 %v6230, %v6222
    %v7215 = vpack.c.b16 %v6231, %v6223
    %v7216 = vpack.c.b16 %v6232, %v6224
    %v7217 = vpack.c.b16 %v6233, %v6225
    %v7218 = vpack.c.b16 %v6234, %v6226
    %v7219 = vpack.c.b16 %v6243, %v6235
    %v7220 = vpack.c.b16 %v6244, %v6236
    %v7221 = vpack.c.b16 %v6245, %v6237
    %v7222 = vpack.c.b16 %v6246, %v6238
    %v7223 = vpack.c.b16 %v6247, %v6239
    %v7224 = vpack.c.b16 %v6248, %v6240
    %v7225 = vpack.c.b16 %v6249, %v6241
    %v7226 = vpack.c.b16 %v6250, %v6242
    %v7227 = vpack.c.b16 %v6259, %v6251
    %v7228 = vpack.c.b16 %v6260, %v6252
    %v7229 = vpack.c.b16 %v6261, %v6253
    %v7230 = vpack.c.b16 %v6262, %v6254
    %v7231 = vpack.c.b16 %v6263, %v6255
    %v7232 = vpack.c.b16 %v6264, %v6256
    %v7233 = vpack.c.b16 %v6265, %v6257
    %v7234 = vpack.c.b16 %v6266, %v6258
    %v7235 = vpack.c.b16 %v6275, %v6267
    %v7236 = vpack.c.b16 %v6276, %v6268
    %v7237 = vpack.c.b16 %v6277, %v6269
    %v7238 = vpack.c.b16 %v6278, %v6270
    %v7239 = vpack.c.b16 %v6279, %v6271
    %v7240 = vpack.c.b16 %v6280, %v6272
    %v7241 = vpack.c.b16 %v6281, %v6273
    %v7242 = vpack.c.b16 %v6282, %v6274
    %v7243 = vpack.c.b16 %v6291, %v6283
    %v7244 = vpack.c.b16 %v6292, %v6284
    %v7245 = vpack.c.b16 %v6293, %v6285
    %v7246 = vpack.c.b16 %v6294, %v6286
    %v7247 = vpack.c.b16 %v6295, %v6287
    %v7248 = vpack.c.b16 %v6296, %v6288
    %v7249 = vpack.c.b16 %v6297, %v6289
    %v7250 = vpack.c.b16 %v6298, %v6290
    %v7251 = vpack.c.b16 %v6307, %v6299
    %v7252 = vpack.c.b16 %v6308, %v6300
    %v7253 = vpack.c.b16 %v6309, %v6301
    %v7254 = vpack.c.b16 %v6310, %v6302
    %v7255 = vpack.c.b16 %v6311, %v6303
    %v7256 = vpack.c.b16 %v6312, %v6304
    %v7257 = vpack.c.b16 %v6313, %v6305
    %v7258 = vpack.c.b16 %v6314, %v6306
    %v7259 = vpack.c.b16 %v6323, %v6315
    %v7260 = vpack.c.b16 %v6324, %v6316
    %v7261 = vpack.c.b16 %v6325, %v6317
    %v7262 = vpack.c.b16 %v6326, %v6318
    %v7263 = vpack.c.b16 %v6327, %v6319
    %v7264 = vpack.c.b16 %v6328, %v6320
    %v7265 = vpack.c.b16 %v6329, %v6321
    %v7266 = vpack.c.b16 %v6330, %v6322
    %v7267 = vpack.c.b16 %v6339, %v6331
    %v7268 = vpack.c.b16 %v6340, %v6332
    %v7269 = vpack.c.b16 %v6341, %v6333
    %v7270 = vpack.c.b16 %v6342, %v6334
    %v7271 = vpack.c.b16 %v6343, %v6335
    %v7272 = vpack.c.b16 %v6344, %v6336
    %v7273 = vpack.c.b16 %v6345, %v6337
    %v7274 = vpack.c.b16 %v6346, %v6338
    %v7275 = vpack.c.b16 %v6355, %v6347
    %v7276 = vpack.c.b16 %v6356, %v6348
    %v7277 = vpack.c.b16 %v6357, %v6349
    %v7278 = vpack.c.b16 %v6358, %v6350
    %v7279 = vpack.c.b16 %v6359, %v6351
    %v7280 = vpack.c.b16 %v6360, %v6352
    %v7281 = vpack.c.b16 %v6361, %v6353
    %v7282 = vpack.c.b16 %v6362, %v6354
    %v7283 = vpack.c.b16 %v6371, %v6363
    %v7284 = vpack.c.b16 %v6372, %v6364
    %v7285 = vpack.c.b16 %v6373, %v6365
    %v7286 = vpack.c.b16 %v6374, %v6366
    %v7287 = vpack.c.b16 %v6375, %v6367
    %v7288 = vpack.c.b16 %v6376, %v6368
    %v7289 = vpack.c.b16 %v6377, %v6369
    %v7290 = vpack.c.b16 %v6378, %v6370
    %v7291 = vpack.c.b16 %v6387, %v6379
    %v7292 = vpack.c.b16 %v6388, %v6380
    %v7293 = vpack.c.b16 %v6389, %v6381
    %v7294 = vpack.c.b16 %v6390, %v6382
    %v7295 = vpack.c.b16 %v6391, %v6383
    %v7296 = vpack.c.b16 %v6392, %v6384
    %v7297 = vpack.c.b16 %v6393, %v6385
    %v7298 = vpack.c.b16 %v6394, %v6386
    %v7299 = vpack.c.b16 %v6403, %v6395
    %v7300 = vpack.c.b16 %v6404, %v6396
    %v7301 = vpack.c.b16 %v6405, %v6397
    %v7302 = vpack.c.b16 %v6406, %v6398
    %v7303 = vpack.c.b16 %v6407, %v6399
    %v7304 = vpack.c.b16 %v6408, %v6400
    %v7305 = vpack.c.b16 %v6409, %v6401
    %v7306 = vpack.c.b16 %v6410, %v6402
    %v7307 = vpack.c.b16 %v6419, %v6411
    %v7308 = vpack.c.b16 %v6420, %v6412
    %v7309 = vpack.c.b16 %v6421, %v6413
    %v7310 = vpack.c.b16 %v6422, %v6414
    %v7311 = vpack.c.b16 %v6423, %v6415
    %v7312 = vpack.c.b16 %v6424, %v6416
    %v7313 = vpack.c.b16 %v6425, %v6417
    %v7314 = vpack.c.b16 %v6426, %v6418
    %v7315 = vpack.c.b16 %v6435, %v6427
    %v7316 = vpack.c.b16 %v6436, %v6428
    %v7317 = vpack.c.b16 %v6437, %v6429
    %v7318 = vpack.c.b16 %v6438, %v6430
    %v7319 = vpack.c.b16 %v6439, %v6431
    %v7320 = vpack.c.b16 %v6440, %v6432
    %v7321 = vpack.c.b16 %v6441, %v6433
    %v7322 = vpack.c.b16 %v6442, %v6434
    %v7323 = vpack.c.b16 %v6451, %v6443
    %v7324 = vpack.c.b16 %v6452, %v6444
    %v7325 = vpack.c.b16 %v6453, %v6445
    %v7326 = vpack.c.b16 %v6454, %v6446
    %v7327 = vpack.c.b16 %v6455, %v6447
    %v7328 = vpack.c.b16 %v6456, %v6448
    %v7329 = vpack.c.b16 %v6457, %v6449
    %v7330 = vpack.c.b16 %v6458, %v6450
    %v7331 = vpack.c.b16 %v6467, %v6459
    %v7332 = vpack.c.b16 %v6468, %v6460
    %v7333 = vpack.c.b16 %v6469, %v6461
    %v7334 = vpack.c.b16 %v6470, %v6462
    %v7335 = vpack.c.b16 %v6471, %v6463
    %v7336 = vpack.c.b16 %v6472, %v6464
    %v7337 = vpack.c.b16 %v6473, %v6465
    %v7338 = vpack.c.b16 %v6474, %v6466
    %v7339 = vpack.c.b16 %v6483, %v6475
    %v7340 = vpack.c.b16 %v6484, %v6476
    %v7341 = vpack.c.b16 %v6485, %v6477
    %v7342 = vpack.c.b16 %v6486, %v6478
    %v7343 = vpack.c.b16 %v6487, %v6479
    %v7344 = vpack.c.b16 %v6488, %v6480
    %v7345 = vpack.c.b16 %v6489, %v6481
    %v7346 = vpack.c.b16 %v6490, %v6482
    %v7347 = vpack.c.b16 %v6499, %v6491
    %v7348 = vpack.c.b16 %v6500, %v6492
    %v7349 = vpack.c.b16 %v6501, %v6493
    %v7350 = vpack.c.b16 %v6502, %v6494
    %v7351 = vpack.c.b16 %v6503, %v6495
    %v7352 = vpack.c.b16 %v6504, %v6496
    %v7353 = vpack.c.b16 %v6505, %v6497
    %v7354 = vpack.c.b16 %v6506, %v6498
    %v7355 = vpack.c.b16 %v6515, %v6507
    %v7356 = vpack.c.b16 %v6516, %v6508
    %v7357 = vpack.c.b16 %v6517, %v6509
    %v7358 = vpack.c.b16 %v6518, %v6510
    %v7359 = vpack.c.b16 %v6519, %v6511
    %v7360 = vpack.c.b16 %v6520, %v6512
    %v7361 = vpack.c.b16 %v6521, %v6513
    %v7362 = vpack.c.b16 %v6522, %v6514
    %v7363 = vpack.c.b16 %v6531, %v6523
    %v7364 = vpack.c.b16 %v6532, %v6524
    %v7365 = vpack.c.b16 %v6533, %v6525
    %v7366 = vpack.c.b16 %v6534, %v6526
    %v7367 = vpack.c.b16 %v6535, %v6527
    %v7368 = vpack.c.b16 %v6536, %v6528
    %v7369 = vpack.c.b16 %v6537, %v6529
    %v7370 = vpack.c.b16 %v6538, %v6530
    %v7371 = vpack.c.b16 %v6547, %v6539
    %v7372 = vpack.c.b16 %v6548, %v6540
    %v7373 = vpack.c.b16 %v6549, %v6541
    %v7374 = vpack.c.b16 %v6550, %v6542
    %v7375 = vpack.c.b16 %v6551, %v6543
    %v7376 = vpack.c.b16 %v6552, %v6544
    %v7377 = vpack.c.b16 %v6553, %v6545
    %v7378 = vpack.c.b16 %v6554, %v6546
    %v7379 = vpack.c.b16 %v6563, %v6555
    %v7380 = vpack.c.b16 %v6564, %v6556
    %v7381 = vpack.c.b16 %v6565, %v6557
    %v7382 = vpack.c.b16 %v6566, %v6558
    %v7383 = vpack.c.b16 %v6567, %v6559
    %v7384 = vpack.c.b16 %v6568, %v6560
    %v7385 = vpack.c.b16 %v6569, %v6561
    %v7386 = vpack.c.b16 %v6570, %v6562
    %v7387 = vpack.c.b16 %v6579, %v6571
    %v7388 = vpack.c.b16 %v6580, %v6572
    %v7389 = vpack.c.b16 %v6581, %v6573
    %v7390 = vpack.c.b16 %v6582, %v6574
    %v7391 = vpack.c.b16 %v6583, %v6575
    %v7392 = vpack.c.b16 %v6584, %v6576
    %v7393 = vpack.c.b16 %v6585, %v6577
    %v7394 = vpack.c.b16 %v6586, %v6578
    %v7395 = vpack.c.b16 %v6595, %v6587
    %v7396 = vpack.c.b16 %v6596, %v6588
    %v7397 = vpack.c.b16 %v6597, %v6589
    %v7398 = vpack.c.b16 %v6598, %v6590
    %v7399 = vpack.c.b16 %v6599, %v6591
    %v7400 = vpack.c.b16 %v6600, %v6592
    %v7401 = vpack.c.b16 %v6601, %v6593
    %v7402 = vpack.c.b16 %v6602, %v6594
    %v7403 = vpack.c.b16 %v6611, %v6603
    %v7404 = vpack.c.b16 %v6612, %v6604
    %v7405 = vpack.c.b16 %v6613, %v6605
    %v7406 = vpack.c.b16 %v6614, %v6606
    %v7407 = vpack.c.b16 %v6615, %v6607
    %v7408 = vpack.c.b16 %v6616, %v6608
    %v7409 = vpack.c.b16 %v6617, %v6609
    %v7410 = vpack.c.b16 %v6618, %v6610
    %v7411 = vpack.c.b16 %v6627, %v6619
    %v7412 = vpack.c.b16 %v6628, %v6620
    %v7413 = vpack.c.b16 %v6629, %v6621
    %v7414 = vpack.c.b16 %v6630, %v6622
    %v7415 = vpack.c.b16 %v6631, %v6623
    %v7416 = vpack.c.b16 %v6632, %v6624
    %v7417 = vpack.c.b16 %v6633, %v6625
    %v7418 = vpack.c.b16 %v6634, %v6626
    %v7419 = vpack.c.b16 %v6643, %v6635
    %v7420 = vpack.c.b16 %v6644, %v6636
    %v7421 = vpack.c.b16 %v6645, %v6637
    %v7422 = vpack.c.b16 %v6646, %v6638
    %v7423 = vpack.c.b16 %v6647, %v6639
    %v7424 = vpack.c.b16 %v6648, %v6640
    %v7425 = vpack.c.b16 %v6649, %v6641
    %v7426 = vpack.c.b16 %v6650, %v6642
    %v7427 = vpack.c.b16 %v6659, %v6651
    %v7428 = vpack.c.b16 %v6660, %v6652
    %v7429 = vpack.c.b16 %v6661, %v6653
    %v7430 = vpack.c.b16 %v6662, %v6654
    %v7431 = vpack.c.b16 %v6663, %v6655
    %v7432 = vpack.c.b16 %v6664, %v6656
    %v7433 = vpack.c.b16 %v6665, %v6657
    %v7434 = vpack.c.b16 %v6666, %v6658
    %v7435 = vpack.c.b16 %v6675, %v6667
    %v7436 = vpack.c.b16 %v6676, %v6668
    %v7437 = vpack.c.b16 %v6677, %v6669
    %v7438 = vpack.c.b16 %v6678, %v6670
    %v7439 = vpack.c.b16 %v6679, %v6671
    %v7440 = vpack.c.b16 %v6680, %v6672
    %v7441 = vpack.c.b16 %v6681, %v6673
    %v7442 = vpack.c.b16 %v6682, %v6674
    %v7443 = vpack.c.b16 %v6691, %v6683
    %v7444 = vpack.c.b16 %v6692, %v6684
    %v7445 = vpack.c.b16 %v6693, %v6685
    %v7446 = vpack.c.b16 %v6694, %v6686
    %v7447 = vpack.c.b16 %v6695, %v6687
    %v7448 = vpack.c.b16 %v6696, %v6688
    %v7449 = vpack.c.b16 %v6697, %v6689
    %v7450 = vpack.c.b16 %v6698, %v6690
    %v7451 = vpack.c.b16 %v6707, %v6699
    %v7452 = vpack.c.b16 %v6708, %v6700
    %v7453 = vpack.c.b16 %v6709, %v6701
    %v7454 = vpack.c.b16 %v6710, %v6702
    %v7455 = vpack.c.b16 %v6711, %v6703
    %v7456 = vpack.c.b16 %v6712, %v6704
    %v7457 = vpack.c.b16 %v6713, %v6705
    %v7458 = vpack.c.b16 %v6714, %v6706
    %v7459 = vpack.c.b16 %v6723, %v6715
    %v7460 = vpack.c.b16 %v6724, %v6716
    %v7461 = vpack.c.b16 %v6725, %v6717
    %v7462 = vpack.c.b16 %v6726, %v6718
    %v7463 = vpack.c.b16 %v6727, %v6719
    %v7464 = vpack.c.b16 %v6728, %v6720
    %v7465 = vpack.c.b16 %v6729, %v6721
    %v7466 = vpack.c.b16 %v6730, %v6722
    %v7467 = vpack.c.b16 %v6739, %v6731
    %v7468 = vpack.c.b16 %v6740, %v6732
    %v7469 = vpack.c.b16 %v6741, %v6733
    %v7470 = vpack.c.b16 %v6742, %v6734
    %v7471 = vpack.c.b16 %v6743, %v6735
    %v7472 = vpack.c.b16 %v6744, %v6736
    %v7473 = vpack.c.b16 %v6745, %v6737
    %v7474 = vpack.c.b16 %v6746, %v6738
    %v7475 = vpack.c.b16 %v6755, %v6747
    %v7476 = vpack.c.b16 %v6756, %v6748
    %v7477 = vpack.c.b16 %v6757, %v6749
    %v7478 = vpack.c.b16 %v6758, %v6750
    %v7479 = vpack.c.b16 %v6759, %v6751
    %v7480 = vpack.c.b16 %v6760, %v6752
    %v7481 = vpack.c.b16 %v6761, %v6753
    %v7482 = vpack.c.b16 %v6762, %v6754
    %v7483 = vpack.c.b16 %v6771, %v6763
    %v7484 = vpack.c.b16 %v6772, %v6764
    %v7485 = vpack.c.b16 %v6773, %v6765
    %v7486 = vpack.c.b16 %v6774, %v6766
    %v7487 = vpack.c.b16 %v6775, %v6767
    %v7488 = vpack.c.b16 %v6776, %v6768
    %v7489 = vpack.c.b16 %v6777, %v6769
    %v7490 = vpack.c.b16 %v6778, %v6770
    %v7491 = vpack.c.b16 %v6787, %v6779
    %v7492 = vpack.c.b16 %v6788, %v6780
    %v7493 = vpack.c.b16 %v6789, %v6781
    %v7494 = vpack.c.b16 %v6790, %v6782
    %v7495 = vpack.c.b16 %v6791, %v6783
    %v7496 = vpack.c.b16 %v6792, %v6784
    %v7497 = vpack.c.b16 %v6793, %v6785
    %v7498 = vpack.c.b16 %v6794, %v6786
    %v7499 = vpack.c.b16 %v6803, %v6795
    %v7500 = vpack.c.b16 %v6804, %v6796
    %v7501 = vpack.c.b16 %v6805, %v6797
    %v7502 = vpack.c.b16 %v6806, %v6798
    %v7503 = vpack.c.b16 %v6807, %v6799
    %v7504 = vpack.c.b16 %v6808, %v6800
    %v7505 = vpack.c.b16 %v6809, %v6801
    %v7506 = vpack.c.b16 %v6810, %v6802
    %v7507 = vpack.c.b16 %v6819, %v6811
    %v7508 = vpack.c.b16 %v6820, %v6812
    %v7509 = vpack.c.b16 %v6821, %v6813
    %v7510 = vpack.c.b16 %v6822, %v6814
    %v7511 = vpack.c.b16 %v6823, %v6815
    %v7512 = vpack.c.b16 %v6824, %v6816
    %v7513 = vpack.c.b16 %v6825, %v6817
    %v7514 = vpack.c.b16 %v6826, %v6818
    %v7515 = vpack.c.b16 %v6835, %v6827
    %v7516 = vpack.c.b16 %v6836, %v6828
    %v7517 = vpack.c.b16 %v6837, %v6829
    %v7518 = vpack.c.b16 %v6838, %v6830
    %v7519 = vpack.c.b16 %v6839, %v6831
    %v7520 = vpack.c.b16 %v6840, %v6832
    %v7521 = vpack.c.b16 %v6841, %v6833
    %v7522 = vpack.c.b16 %v6842, %v6834
    %v7523 = vpack.c.b16 %v6851, %v6843
    %v7524 = vpack.c.b16 %v6852, %v6844
    %v7525 = vpack.c.b16 %v6853, %v6845
    %v7526 = vpack.c.b16 %v6854, %v6846
    %v7527 = vpack.c.b16 %v6855, %v6847
    %v7528 = vpack.c.b16 %v6856, %v6848
    %v7529 = vpack.c.b16 %v6857, %v6849
    %v7530 = vpack.c.b16 %v6858, %v6850
    %v7531 = vpack.c.b16 %v6867, %v6859
    %v7532 = vpack.c.b16 %v6868, %v6860
    %v7533 = vpack.c.b16 %v6869, %v6861
    %v7534 = vpack.c.b16 %v6870, %v6862
    %v7535 = vpack.c.b16 %v6871, %v6863
    %v7536 = vpack.c.b16 %v6872, %v6864
    %v7537 = vpack.c.b16 %v6873, %v6865
    %v7538 = vpack.c.b16 %v6874, %v6866
    %v7539 = vpack.c.b16 %v6883, %v6875
    %v7540 = vpack.c.b16 %v6884, %v6876
    %v7541 = vpack.c.b16 %v6885, %v6877
    %v7542 = vpack.c.b16 %v6886, %v6878
    %v7543 = vpack.c.b16 %v6887, %v6879
    %v7544 = vpack.c.b16 %v6888, %v6880
    %v7545 = vpack.c.b16 %v6889, %v6881
    %v7546 = vpack.c.b16 %v6890, %v6882
    %v7547 = vpack.c.b16 %v6899, %v6891
    %v7548 = vpack.c.b16 %v6900, %v6892
    %v7549 = vpack.c.b16 %v6901, %v6893
    %v7550 = vpack.c.b16 %v6902, %v6894
    %v7551 = vpack.c.b16 %v6903, %v6895
    %v7552 = vpack.c.b16 %v6904, %v6896
    %v7553 = vpack.c.b16 %v6905, %v6897
    %v7554 = vpack.c.b16 %v6906, %v6898
    %v7555 = vpack.c.b16 %v6915, %v6907
    %v7556 = vpack.c.b16 %v6916, %v6908
    %v7557 = vpack.c.b16 %v6917, %v6909
    %v7558 = vpack.c.b16 %v6918, %v6910
    %v7559 = vpack.c.b16 %v6919, %v6911
    %v7560 = vpack.c.b16 %v6920, %v6912
    %v7561 = vpack.c.b16 %v6921, %v6913
    %v7562 = vpack.c.b16 %v6922, %v6914
    %8203 = vmatprep.subr.bf16.mxu0 %v6980
    %8204 = vmatpush1.bf16.msra.mxu0 %v6979
    %8205 = vmatprep.subr.bf16.mxu0 %v6972
    %8206 = vmatpush1.bf16.msra.mxu0 %v6971
    %8207 = vmatprep.subr.bf16.mxu0 %v6964
    %8208 = vmatpush1.bf16.msra.mxu0 %v6963
    %8209 = vmatprep.subr.bf16.mxu0 %v6956
    %8210 = vmatpush1.bf16.msra.mxu0 %v6955
    %8211 = vmatprep.subr.bf16.mxu0 %v6948
    %8212 = vmatpush1.bf16.msra.mxu0 %v6947
    %8213 = vmatprep.subr.bf16.mxu0 %v6940
    %8214 = vmatpush1.bf16.msra.mxu0 %v6939
    %8215 = vmatprep.subr.bf16.mxu0 %v6932
    %8216 = vmatpush1.bf16.msra.mxu0 %v6931
    %8217 = vmatprep.subr.bf16.mxu0 %v6924
    %8218 = vmatpush1.bf16.msra.mxu0 %v6923
    %8219 = vmatprep.subr.bf16.mxu0 %v7044
    %8220 = vmatpush2.bf16.msra.mxu0 %v7043
    %8221 = vmatprep.subr.bf16.mxu0 %v7036
    %8222 = vmatpush2.bf16.msra.mxu0 %v7035
    %8223 = vmatprep.subr.bf16.mxu0 %v7028
    %8224 = vmatpush2.bf16.msra.mxu0 %v7027
    %8225 = vmatprep.subr.bf16.mxu0 %v7020
    %8226 = vmatpush2.bf16.msra.mxu0 %v7019
    %8227 = vmatprep.subr.bf16.mxu0 %v7012
    %8228 = vmatpush2.bf16.msra.mxu0 %v7011
    %8229 = vmatprep.subr.bf16.mxu0 %v7004
    %8230 = vmatpush2.bf16.msra.mxu0 %v7003
    %8231 = vmatprep.subr.bf16.mxu0 %v6996
    %8232 = vmatpush2.bf16.msra.mxu0 %v6995
    %8233 = vmatprep.subr.bf16.mxu0 %v6988
    %8234 = vmatpush2.bf16.msra.mxu0 %v6987
    %8235 = vmatprep.mubr.bf16.mxu0 %v4984
    %8236 = vmatmul.mubr.bf16.gmra.mxu0 %v4983
    %v8237 = vpop.f32.mrf.mxu0
    %v8238 = vadd.f32 %v2843, %v8237
    %v8239 = vpop.f32.mrf.mxu0
    %v8240 = vadd.f32 %v2847, %v8239
    %v8241 = vpop.f32.mrf.mxu0
    %v8242 = vpop.f32.mrf.mxu0
    %8243 = vdwg.mxu0
    %8244 = vmatprep.subr.bf16.mxu0 %v7108
    %8245 = vmatpush1.bf16.msra.mxu0 %v7107
    %8246 = vmatprep.subr.bf16.mxu0 %v7100
    %8247 = vmatpush1.bf16.msra.mxu0 %v7099
    %8248 = vmatprep.subr.bf16.mxu0 %v7092
    %8249 = vmatpush1.bf16.msra.mxu0 %v7091
    %8250 = vmatprep.subr.bf16.mxu0 %v7084
    %8251 = vmatpush1.bf16.msra.mxu0 %v7083
    %8252 = vmatprep.subr.bf16.mxu0 %v7076
    %8253 = vmatpush1.bf16.msra.mxu0 %v7075
    %8254 = vmatprep.subr.bf16.mxu0 %v7068
    %8255 = vmatpush1.bf16.msra.mxu0 %v7067
    %8256 = vmatprep.subr.bf16.mxu0 %v7060
    %8257 = vmatpush1.bf16.msra.mxu0 %v7059
    %8258 = vmatprep.subr.bf16.mxu0 %v7052
    %8259 = vmatpush1.bf16.msra.mxu0 %v7051
    %8260 = vmatprep.subr.bf16.mxu0 %v7172
    %8261 = vmatpush2.bf16.msra.mxu0 %v7171
    %8262 = vmatprep.subr.bf16.mxu0 %v7164
    %8263 = vmatpush2.bf16.msra.mxu0 %v7163
    %8264 = vmatprep.subr.bf16.mxu0 %v7156
    %8265 = vmatpush2.bf16.msra.mxu0 %v7155
    %8266 = vmatprep.subr.bf16.mxu0 %v7148
    %8267 = vmatpush2.bf16.msra.mxu0 %v7147
    %8268 = vmatprep.subr.bf16.mxu0 %v7140
    %8269 = vmatpush2.bf16.msra.mxu0 %v7139
    %8270 = vmatprep.subr.bf16.mxu0 %v7132
    %8271 = vmatpush2.bf16.msra.mxu0 %v7131
    %8272 = vmatprep.subr.bf16.mxu0 %v7124
    %8273 = vmatpush2.bf16.msra.mxu0 %v7123
    %8274 = vmatprep.subr.bf16.mxu0 %v7116
    %8275 = vmatpush2.bf16.msra.mxu0 %v7115
    %8276 = vmatprep.mubr.bf16.mxu0 %v4986
    %8277 = vmatmul.mubr.bf16.gmra.mxu0 %v4985
    %v8278 = vpop.f32.mrf.mxu0
    %v8279 = vadd.f32 %v8238, %v8278
    %v8280 = vpop.f32.mrf.mxu0
    %v8281 = vadd.f32 %v8240, %v8280
    %v8282 = vpop.f32.mrf.mxu0
    %v8283 = vpop.f32.mrf.mxu0
    %8284 = vdwg.mxu0
    %8285 = vmatprep.subr.bf16.mxu0 %v7236
    %8286 = vmatpush1.bf16.msra.mxu0 %v7235
    %8287 = vmatprep.subr.bf16.mxu0 %v7228
    %8288 = vmatpush1.bf16.msra.mxu0 %v7227
    %8289 = vmatprep.subr.bf16.mxu0 %v7220
    %8290 = vmatpush1.bf16.msra.mxu0 %v7219
    %8291 = vmatprep.subr.bf16.mxu0 %v7212
    %8292 = vmatpush1.bf16.msra.mxu0 %v7211
    %8293 = vmatprep.subr.bf16.mxu0 %v7204
    %8294 = vmatpush1.bf16.msra.mxu0 %v7203
    %8295 = vmatprep.subr.bf16.mxu0 %v7196
    %8296 = vmatpush1.bf16.msra.mxu0 %v7195
    %8297 = vmatprep.subr.bf16.mxu0 %v7188
    %8298 = vmatpush1.bf16.msra.mxu0 %v7187
    %8299 = vmatprep.subr.bf16.mxu0 %v7180
    %8300 = vmatpush1.bf16.msra.mxu0 %v7179
    %8301 = vmatprep.subr.bf16.mxu0 %v7300
    %8302 = vmatpush2.bf16.msra.mxu0 %v7299
    %8303 = vmatprep.subr.bf16.mxu0 %v7292
    %8304 = vmatpush2.bf16.msra.mxu0 %v7291
    %8305 = vmatprep.subr.bf16.mxu0 %v7284
    %8306 = vmatpush2.bf16.msra.mxu0 %v7283
    %8307 = vmatprep.subr.bf16.mxu0 %v7276
    %8308 = vmatpush2.bf16.msra.mxu0 %v7275
    %8309 = vmatprep.subr.bf16.mxu0 %v7268
    %8310 = vmatpush2.bf16.msra.mxu0 %v7267
    %8311 = vmatprep.subr.bf16.mxu0 %v7260
    %8312 = vmatpush2.bf16.msra.mxu0 %v7259
    %8313 = vmatprep.subr.bf16.mxu0 %v7252
    %8314 = vmatpush2.bf16.msra.mxu0 %v7251
    %8315 = vmatprep.subr.bf16.mxu0 %v7244
    %8316 = vmatpush2.bf16.msra.mxu0 %v7243
    %8317 = vmatprep.mubr.bf16.mxu0 %v4988
    %8318 = vmatmul.mubr.bf16.gmra.mxu0 %v4987
    %v8319 = vpop.f32.mrf.mxu0
    %v8320 = vadd.f32 %v8279, %v8319
    %v8321 = vpop.f32.mrf.mxu0
    %v8322 = vadd.f32 %v8281, %v8321
    %v8323 = vpop.f32.mrf.mxu0
    %v8324 = vpop.f32.mrf.mxu0
    %8325 = vdwg.mxu0
    %8326 = vmatprep.subr.bf16.mxu0 %v7364
    %8327 = vmatpush1.bf16.msra.mxu0 %v7363
    %8328 = vmatprep.subr.bf16.mxu0 %v7356
    %8329 = vmatpush1.bf16.msra.mxu0 %v7355
    %8330 = vmatprep.subr.bf16.mxu0 %v7348
    %8331 = vmatpush1.bf16.msra.mxu0 %v7347
    %8332 = vmatprep.subr.bf16.mxu0 %v7340
    %8333 = vmatpush1.bf16.msra.mxu0 %v7339
    %8334 = vmatprep.subr.bf16.mxu0 %v7332
    %8335 = vmatpush1.bf16.msra.mxu0 %v7331
    %8336 = vmatprep.subr.bf16.mxu0 %v7324
    %8337 = vmatpush1.bf16.msra.mxu0 %v7323
    %8338 = vmatprep.subr.bf16.mxu0 %v7316
    %8339 = vmatpush1.bf16.msra.mxu0 %v7315
    %8340 = vmatprep.subr.bf16.mxu0 %v7308
    %8341 = vmatpush1.bf16.msra.mxu0 %v7307
    %8342 = vmatprep.subr.bf16.mxu0 %v7428
    %8343 = vmatpush2.bf16.msra.mxu0 %v7427
    %8344 = vmatprep.subr.bf16.mxu0 %v7420
    %8345 = vmatpush2.bf16.msra.mxu0 %v7419
    %8346 = vmatprep.subr.bf16.mxu0 %v7412
    %8347 = vmatpush2.bf16.msra.mxu0 %v7411
    %8348 = vmatprep.subr.bf16.mxu0 %v7404
    %8349 = vmatpush2.bf16.msra.mxu0 %v7403
    %8350 = vmatprep.subr.bf16.mxu0 %v7396
    %8351 = vmatpush2.bf16.msra.mxu0 %v7395
    %8352 = vmatprep.subr.bf16.mxu0 %v7388
    %8353 = vmatpush2.bf16.msra.mxu0 %v7387
    %8354 = vmatprep.subr.bf16.mxu0 %v7380
    %8355 = vmatpush2.bf16.msra.mxu0 %v7379
    %8356 = vmatprep.subr.bf16.mxu0 %v7372
    %8357 = vmatpush2.bf16.msra.mxu0 %v7371
    %8358 = vmatprep.mubr.bf16.mxu0 %v4990
    %8359 = vmatmul.mubr.bf16.gmra.mxu0 %v4989
    %v8360 = vpop.f32.mrf.mxu0
    %v8361 = vadd.f32 %v8320, %v8360
    %v8362 = vpop.f32.mrf.mxu0
    %v8363 = vadd.f32 %v8322, %v8362
    %v8364 = vpop.f32.mrf.mxu0
    %v8365 = vpop.f32.mrf.mxu0
    %8366 = vdwg.mxu0
    %8367 = vmatprep.subr.bf16.mxu0 %v7492
    %8368 = vmatpush1.bf16.msra.mxu0 %v7491
    %8369 = vmatprep.subr.bf16.mxu0 %v7484
    %8370 = vmatpush1.bf16.msra.mxu0 %v7483
    %8371 = vmatprep.subr.bf16.mxu0 %v7476
    %8372 = vmatpush1.bf16.msra.mxu0 %v7475
    %8373 = vmatprep.subr.bf16.mxu0 %v7468
    %8374 = vmatpush1.bf16.msra.mxu0 %v7467
    %8375 = vmatprep.subr.bf16.mxu0 %v7460
    %8376 = vmatpush1.bf16.msra.mxu0 %v7459
    %8377 = vmatprep.subr.bf16.mxu0 %v7452
    %8378 = vmatpush1.bf16.msra.mxu0 %v7451
    %8379 = vmatprep.subr.bf16.mxu0 %v7444
    %8380 = vmatpush1.bf16.msra.mxu0 %v7443
    %8381 = vmatprep.subr.bf16.mxu0 %v7436
    %8382 = vmatpush1.bf16.msra.mxu0 %v7435
    %8383 = vmatprep.subr.bf16.mxu0 %v7556
    %8384 = vmatpush2.bf16.msra.mxu0 %v7555
    %8385 = vmatprep.subr.bf16.mxu0 %v7548
    %8386 = vmatpush2.bf16.msra.mxu0 %v7547
    %8387 = vmatprep.subr.bf16.mxu0 %v7540
    %8388 = vmatpush2.bf16.msra.mxu0 %v7539
    %8389 = vmatprep.subr.bf16.mxu0 %v7532
    %8390 = vmatpush2.bf16.msra.mxu0 %v7531
    %8391 = vmatprep.subr.bf16.mxu0 %v7524
    %8392 = vmatpush2.bf16.msra.mxu0 %v7523
    %8393 = vmatprep.subr.bf16.mxu0 %v7516
    %8394 = vmatpush2.bf16.msra.mxu0 %v7515
    %8395 = vmatprep.subr.bf16.mxu0 %v7508
    %8396 = vmatpush2.bf16.msra.mxu0 %v7507
    %8397 = vmatprep.subr.bf16.mxu0 %v7500
    %8398 = vmatpush2.bf16.msra.mxu0 %v7499
    %8399 = vmatprep.mubr.bf16.mxu0 %v4992
    %8400 = vmatmul.mubr.bf16.gmra.mxu0 %v4991
    %v8401 = vpop.f32.mrf.mxu0
    %v8402 = vadd.f32 %v8361, %v8401
    %v8403 = vpop.f32.mrf.mxu0
    %v8404 = vadd.f32 %v8363, %v8403
    %v8405 = vpop.f32.mrf.mxu0
    %v8406 = vpop.f32.mrf.mxu0
    %8407 = vdwg.mxu0
    %8408 = vmatprep.subr.bf16.mxu0 %v6982
    %8409 = vmatpush1.bf16.msra.mxu0 %v6981
    %8410 = vmatprep.subr.bf16.mxu0 %v6974
    %8411 = vmatpush1.bf16.msra.mxu0 %v6973
    %8412 = vmatprep.subr.bf16.mxu0 %v6966
    %8413 = vmatpush1.bf16.msra.mxu0 %v6965
    %8414 = vmatprep.subr.bf16.mxu0 %v6958
    %8415 = vmatpush1.bf16.msra.mxu0 %v6957
    %8416 = vmatprep.subr.bf16.mxu0 %v6950
    %8417 = vmatpush1.bf16.msra.mxu0 %v6949
    %8418 = vmatprep.subr.bf16.mxu0 %v6942
    %8419 = vmatpush1.bf16.msra.mxu0 %v6941
    %8420 = vmatprep.subr.bf16.mxu0 %v6934
    %8421 = vmatpush1.bf16.msra.mxu0 %v6933
    %8422 = vmatprep.subr.bf16.mxu0 %v6926
    %8423 = vmatpush1.bf16.msra.mxu0 %v6925
    %8424 = vmatprep.subr.bf16.mxu0 %v7046
    %8425 = vmatpush2.bf16.msra.mxu0 %v7045
    %8426 = vmatprep.subr.bf16.mxu0 %v7038
    %8427 = vmatpush2.bf16.msra.mxu0 %v7037
    %8428 = vmatprep.subr.bf16.mxu0 %v7030
    %8429 = vmatpush2.bf16.msra.mxu0 %v7029
    %8430 = vmatprep.subr.bf16.mxu0 %v7022
    %8431 = vmatpush2.bf16.msra.mxu0 %v7021
    %8432 = vmatprep.subr.bf16.mxu0 %v7014
    %8433 = vmatpush2.bf16.msra.mxu0 %v7013
    %8434 = vmatprep.subr.bf16.mxu0 %v7006
    %8435 = vmatpush2.bf16.msra.mxu0 %v7005
    %8436 = vmatprep.subr.bf16.mxu0 %v6998
    %8437 = vmatpush2.bf16.msra.mxu0 %v6997
    %8438 = vmatprep.subr.bf16.mxu0 %v6990
    %8439 = vmatpush2.bf16.msra.mxu0 %v6989
    %8440 = vmatprep.mubr.bf16.mxu0 %v4984
    %8441 = vmatmul.mubr.bf16.gmra.mxu0 %v4983
    %v8442 = vpop.f32.mrf.mxu0
    %v8443 = vadd.f32 %v2851, %v8442
    %v8444 = vpop.f32.mrf.mxu0
    %v8445 = vadd.f32 %v2855, %v8444
    %v8446 = vpop.f32.mrf.mxu0
    %v8447 = vpop.f32.mrf.mxu0
    %8448 = vdwg.mxu0
    %8449 = vmatprep.subr.bf16.mxu0 %v7110
    %8450 = vmatpush1.bf16.msra.mxu0 %v7109
    %8451 = vmatprep.subr.bf16.mxu0 %v7102
    %8452 = vmatpush1.bf16.msra.mxu0 %v7101
    %8453 = vmatprep.subr.bf16.mxu0 %v7094
    %8454 = vmatpush1.bf16.msra.mxu0 %v7093
    %8455 = vmatprep.subr.bf16.mxu0 %v7086
    %8456 = vmatpush1.bf16.msra.mxu0 %v7085
    %8457 = vmatprep.subr.bf16.mxu0 %v7078
    %8458 = vmatpush1.bf16.msra.mxu0 %v7077
    %8459 = vmatprep.subr.bf16.mxu0 %v7070
    %8460 = vmatpush1.bf16.msra.mxu0 %v7069
    %8461 = vmatprep.subr.bf16.mxu0 %v7062
    %8462 = vmatpush1.bf16.msra.mxu0 %v7061
    %8463 = vmatprep.subr.bf16.mxu0 %v7054
    %8464 = vmatpush1.bf16.msra.mxu0 %v7053
    %8465 = vmatprep.subr.bf16.mxu0 %v7174
    %8466 = vmatpush2.bf16.msra.mxu0 %v7173
    %8467 = vmatprep.subr.bf16.mxu0 %v7166
    %8468 = vmatpush2.bf16.msra.mxu0 %v7165
    %8469 = vmatprep.subr.bf16.mxu0 %v7158
    %8470 = vmatpush2.bf16.msra.mxu0 %v7157
    %8471 = vmatprep.subr.bf16.mxu0 %v7150
    %8472 = vmatpush2.bf16.msra.mxu0 %v7149
    %8473 = vmatprep.subr.bf16.mxu0 %v7142
    %8474 = vmatpush2.bf16.msra.mxu0 %v7141
    %8475 = vmatprep.subr.bf16.mxu0 %v7134
    %8476 = vmatpush2.bf16.msra.mxu0 %v7133
    %8477 = vmatprep.subr.bf16.mxu0 %v7126
    %8478 = vmatpush2.bf16.msra.mxu0 %v7125
    %8479 = vmatprep.subr.bf16.mxu0 %v7118
    %8480 = vmatpush2.bf16.msra.mxu0 %v7117
    %8481 = vmatprep.mubr.bf16.mxu0 %v4986
    %8482 = vmatmul.mubr.bf16.gmra.mxu0 %v4985
    %v8483 = vpop.f32.mrf.mxu0
    %v8484 = vadd.f32 %v8443, %v8483
    %v8485 = vpop.f32.mrf.mxu0
    %v8486 = vadd.f32 %v8445, %v8485
    %v8487 = vpop.f32.mrf.mxu0
    %v8488 = vpop.f32.mrf.mxu0
    %8489 = vdwg.mxu0
    %8490 = vmatprep.subr.bf16.mxu0 %v7238
    %8491 = vmatpush1.bf16.msra.mxu0 %v7237
    %8492 = vmatprep.subr.bf16.mxu0 %v7230
    %8493 = vmatpush1.bf16.msra.mxu0 %v7229
    %8494 = vmatprep.subr.bf16.mxu0 %v7222
    %8495 = vmatpush1.bf16.msra.mxu0 %v7221
    %8496 = vmatprep.subr.bf16.mxu0 %v7214
    %8497 = vmatpush1.bf16.msra.mxu0 %v7213
    %8498 = vmatprep.subr.bf16.mxu0 %v7206
    %8499 = vmatpush1.bf16.msra.mxu0 %v7205
    %8500 = vmatprep.subr.bf16.mxu0 %v7198
    %8501 = vmatpush1.bf16.msra.mxu0 %v7197
    %8502 = vmatprep.subr.bf16.mxu0 %v7190
    %8503 = vmatpush1.bf16.msra.mxu0 %v7189
    %8504 = vmatprep.subr.bf16.mxu0 %v7182
    %8505 = vmatpush1.bf16.msra.mxu0 %v7181
    %8506 = vmatprep.subr.bf16.mxu0 %v7302
    %8507 = vmatpush2.bf16.msra.mxu0 %v7301
    %8508 = vmatprep.subr.bf16.mxu0 %v7294
    %8509 = vmatpush2.bf16.msra.mxu0 %v7293
    %8510 = vmatprep.subr.bf16.mxu0 %v7286
    %8511 = vmatpush2.bf16.msra.mxu0 %v7285
    %8512 = vmatprep.subr.bf16.mxu0 %v7278
    %8513 = vmatpush2.bf16.msra.mxu0 %v7277
    %8514 = vmatprep.subr.bf16.mxu0 %v7270
    %8515 = vmatpush2.bf16.msra.mxu0 %v7269
    %8516 = vmatprep.subr.bf16.mxu0 %v7262
    %8517 = vmatpush2.bf16.msra.mxu0 %v7261
    %8518 = vmatprep.subr.bf16.mxu0 %v7254
    %8519 = vmatpush2.bf16.msra.mxu0 %v7253
    %8520 = vmatprep.subr.bf16.mxu0 %v7246
    %8521 = vmatpush2.bf16.msra.mxu0 %v7245
    %8522 = vmatprep.mubr.bf16.mxu0 %v4988
    %8523 = vmatmul.mubr.bf16.gmra.mxu0 %v4987
    %v8524 = vpop.f32.mrf.mxu0
    %v8525 = vadd.f32 %v8484, %v8524
    %v8526 = vpop.f32.mrf.mxu0
    %v8527 = vadd.f32 %v8486, %v8526
    %v8528 = vpop.f32.mrf.mxu0
    %v8529 = vpop.f32.mrf.mxu0
    %8530 = vdwg.mxu0
    %8531 = vmatprep.subr.bf16.mxu0 %v7366
    %8532 = vmatpush1.bf16.msra.mxu0 %v7365
    %8533 = vmatprep.subr.bf16.mxu0 %v7358
    %8534 = vmatpush1.bf16.msra.mxu0 %v7357
    %8535 = vmatprep.subr.bf16.mxu0 %v7350
    %8536 = vmatpush1.bf16.msra.mxu0 %v7349
    %8537 = vmatprep.subr.bf16.mxu0 %v7342
    %8538 = vmatpush1.bf16.msra.mxu0 %v7341
    %8539 = vmatprep.subr.bf16.mxu0 %v7334
    %8540 = vmatpush1.bf16.msra.mxu0 %v7333
    %8541 = vmatprep.subr.bf16.mxu0 %v7326
    %8542 = vmatpush1.bf16.msra.mxu0 %v7325
    %8543 = vmatprep.subr.bf16.mxu0 %v7318
    %8544 = vmatpush1.bf16.msra.mxu0 %v7317
    %8545 = vmatprep.subr.bf16.mxu0 %v7310
    %8546 = vmatpush1.bf16.msra.mxu0 %v7309
    %8547 = vmatprep.subr.bf16.mxu0 %v7430
    %8548 = vmatpush2.bf16.msra.mxu0 %v7429
    %8549 = vmatprep.subr.bf16.mxu0 %v7422
    %8550 = vmatpush2.bf16.msra.mxu0 %v7421
    %8551 = vmatprep.subr.bf16.mxu0 %v7414
    %8552 = vmatpush2.bf16.msra.mxu0 %v7413
    %8553 = vmatprep.subr.bf16.mxu0 %v7406
    %8554 = vmatpush2.bf16.msra.mxu0 %v7405
    %8555 = vmatprep.subr.bf16.mxu0 %v7398
    %8556 = vmatpush2.bf16.msra.mxu0 %v7397
    %8557 = vmatprep.subr.bf16.mxu0 %v7390
    %8558 = vmatpush2.bf16.msra.mxu0 %v7389
    %8559 = vmatprep.subr.bf16.mxu0 %v7382
    %8560 = vmatpush2.bf16.msra.mxu0 %v7381
    %8561 = vmatprep.subr.bf16.mxu0 %v7374
    %8562 = vmatpush2.bf16.msra.mxu0 %v7373
    %8563 = vmatprep.mubr.bf16.mxu0 %v4990
    %8564 = vmatmul.mubr.bf16.gmra.mxu0 %v4989
    %v8565 = vpop.f32.mrf.mxu0
    %v8566 = vadd.f32 %v8525, %v8565
    %v8567 = vpop.f32.mrf.mxu0
    %v8568 = vadd.f32 %v8527, %v8567
    %v8569 = vpop.f32.mrf.mxu0
    %v8570 = vpop.f32.mrf.mxu0
    %8571 = vdwg.mxu0
    %8572 = vmatprep.subr.bf16.mxu0 %v7494
    %8573 = vmatpush1.bf16.msra.mxu0 %v7493
    %8574 = vmatprep.subr.bf16.mxu0 %v7486
    %8575 = vmatpush1.bf16.msra.mxu0 %v7485
    %8576 = vmatprep.subr.bf16.mxu0 %v7478
    %8577 = vmatpush1.bf16.msra.mxu0 %v7477
    %8578 = vmatprep.subr.bf16.mxu0 %v7470
    %8579 = vmatpush1.bf16.msra.mxu0 %v7469
    %8580 = vmatprep.subr.bf16.mxu0 %v7462
    %8581 = vmatpush1.bf16.msra.mxu0 %v7461
    %8582 = vmatprep.subr.bf16.mxu0 %v7454
    %8583 = vmatpush1.bf16.msra.mxu0 %v7453
    %8584 = vmatprep.subr.bf16.mxu0 %v7446
    %8585 = vmatpush1.bf16.msra.mxu0 %v7445
    %8586 = vmatprep.subr.bf16.mxu0 %v7438
    %8587 = vmatpush1.bf16.msra.mxu0 %v7437
    %8588 = vmatprep.subr.bf16.mxu0 %v7558
    %8589 = vmatpush2.bf16.msra.mxu0 %v7557
    %8590 = vmatprep.subr.bf16.mxu0 %v7550
    %8591 = vmatpush2.bf16.msra.mxu0 %v7549
    %8592 = vmatprep.subr.bf16.mxu0 %v7542
    %8593 = vmatpush2.bf16.msra.mxu0 %v7541
    %8594 = vmatprep.subr.bf16.mxu0 %v7534
    %8595 = vmatpush2.bf16.msra.mxu0 %v7533
    %8596 = vmatprep.subr.bf16.mxu0 %v7526
    %8597 = vmatpush2.bf16.msra.mxu0 %v7525
    %8598 = vmatprep.subr.bf16.mxu0 %v7518
    %8599 = vmatpush2.bf16.msra.mxu0 %v7517
    %8600 = vmatprep.subr.bf16.mxu0 %v7510
    %8601 = vmatpush2.bf16.msra.mxu0 %v7509
    %8602 = vmatprep.subr.bf16.mxu0 %v7502
    %8603 = vmatpush2.bf16.msra.mxu0 %v7501
    %8604 = vmatprep.mubr.bf16.mxu0 %v4992
    %8605 = vmatmul.mubr.bf16.gmra.mxu0 %v4991
    %v8606 = vpop.f32.mrf.mxu0
    %v8607 = vadd.f32 %v8566, %v8606
    %v8608 = vpop.f32.mrf.mxu0
    %v8609 = vadd.f32 %v8568, %v8608
    %v8610 = vpop.f32.mrf.mxu0
    %v8611 = vpop.f32.mrf.mxu0
    %8612 = vdwg.mxu0
    %8613 = vmatprep.subr.bf16.mxu0 %v6984
    %8614 = vmatpush1.bf16.msra.mxu0 %v6983
    %8615 = vmatprep.subr.bf16.mxu0 %v6976
    %8616 = vmatpush1.bf16.msra.mxu0 %v6975
    %8617 = vmatprep.subr.bf16.mxu0 %v6968
    %8618 = vmatpush1.bf16.msra.mxu0 %v6967
    %8619 = vmatprep.subr.bf16.mxu0 %v6960
    %8620 = vmatpush1.bf16.msra.mxu0 %v6959
    %8621 = vmatprep.subr.bf16.mxu0 %v6952
    %8622 = vmatpush1.bf16.msra.mxu0 %v6951
    %8623 = vmatprep.subr.bf16.mxu0 %v6944
    %8624 = vmatpush1.bf16.msra.mxu0 %v6943
    %8625 = vmatprep.subr.bf16.mxu0 %v6936
    %8626 = vmatpush1.bf16.msra.mxu0 %v6935
    %8627 = vmatprep.subr.bf16.mxu0 %v6928
    %8628 = vmatpush1.bf16.msra.mxu0 %v6927
    %8629 = vmatprep.subr.bf16.mxu0 %v7048
    %8630 = vmatpush2.bf16.msra.mxu0 %v7047
    %8631 = vmatprep.subr.bf16.mxu0 %v7040
    %8632 = vmatpush2.bf16.msra.mxu0 %v7039
    %8633 = vmatprep.subr.bf16.mxu0 %v7032
    %8634 = vmatpush2.bf16.msra.mxu0 %v7031
    %8635 = vmatprep.subr.bf16.mxu0 %v7024
    %8636 = vmatpush2.bf16.msra.mxu0 %v7023
    %8637 = vmatprep.subr.bf16.mxu0 %v7016
    %8638 = vmatpush2.bf16.msra.mxu0 %v7015
    %8639 = vmatprep.subr.bf16.mxu0 %v7008
    %8640 = vmatpush2.bf16.msra.mxu0 %v7007
    %8641 = vmatprep.subr.bf16.mxu0 %v7000
    %8642 = vmatpush2.bf16.msra.mxu0 %v6999
    %8643 = vmatprep.subr.bf16.mxu0 %v6992
    %8644 = vmatpush2.bf16.msra.mxu0 %v6991
    %8645 = vmatprep.mubr.bf16.mxu0 %v4984
    %8646 = vmatmul.mubr.bf16.gmra.mxu0 %v4983
    %v8647 = vpop.f32.mrf.mxu0
    %v8648 = vadd.f32 %v2859, %v8647
    %v8649 = vpop.f32.mrf.mxu0
    %v8650 = vadd.f32 %v2863, %v8649
    %v8651 = vpop.f32.mrf.mxu0
    %v8652 = vpop.f32.mrf.mxu0
    %8653 = vdwg.mxu0
    %8654 = vmatprep.subr.bf16.mxu0 %v7112
    %8655 = vmatpush1.bf16.msra.mxu0 %v7111
    %8656 = vmatprep.subr.bf16.mxu0 %v7104
    %8657 = vmatpush1.bf16.msra.mxu0 %v7103
    %8658 = vmatprep.subr.bf16.mxu0 %v7096
    %8659 = vmatpush1.bf16.msra.mxu0 %v7095
    %8660 = vmatprep.subr.bf16.mxu0 %v7088
    %8661 = vmatpush1.bf16.msra.mxu0 %v7087
    %8662 = vmatprep.subr.bf16.mxu0 %v7080
    %8663 = vmatpush1.bf16.msra.mxu0 %v7079
    %8664 = vmatprep.subr.bf16.mxu0 %v7072
    %8665 = vmatpush1.bf16.msra.mxu0 %v7071
    %8666 = vmatprep.subr.bf16.mxu0 %v7064
    %8667 = vmatpush1.bf16.msra.mxu0 %v7063
    %8668 = vmatprep.subr.bf16.mxu0 %v7056
    %8669 = vmatpush1.bf16.msra.mxu0 %v7055
    %8670 = vmatprep.subr.bf16.mxu0 %v7176
    %8671 = vmatpush2.bf16.msra.mxu0 %v7175
    %8672 = vmatprep.subr.bf16.mxu0 %v7168
    %8673 = vmatpush2.bf16.msra.mxu0 %v7167
    %8674 = vmatprep.subr.bf16.mxu0 %v7160
    %8675 = vmatpush2.bf16.msra.mxu0 %v7159
    %8676 = vmatprep.subr.bf16.mxu0 %v7152
    %8677 = vmatpush2.bf16.msra.mxu0 %v7151
    %8678 = vmatprep.subr.bf16.mxu0 %v7144
    %8679 = vmatpush2.bf16.msra.mxu0 %v7143
    %8680 = vmatprep.subr.bf16.mxu0 %v7136
    %8681 = vmatpush2.bf16.msra.mxu0 %v7135
    %8682 = vmatprep.subr.bf16.mxu0 %v7128
    %8683 = vmatpush2.bf16.msra.mxu0 %v7127
    %8684 = vmatprep.subr.bf16.mxu0 %v7120
    %8685 = vmatpush2.bf16.msra.mxu0 %v7119
    %8686 = vmatprep.mubr.bf16.mxu0 %v4986
    %8687 = vmatmul.mubr.bf16.gmra.mxu0 %v4985
    %v8688 = vpop.f32.mrf.mxu0
    %v8689 = vadd.f32 %v8648, %v8688
    %v8690 = vpop.f32.mrf.mxu0
    %v8691 = vadd.f32 %v8650, %v8690
    %v8692 = vpop.f32.mrf.mxu0
    %v8693 = vpop.f32.mrf.mxu0
    %8694 = vdwg.mxu0
    %8695 = vmatprep.subr.bf16.mxu0 %v7240
    %8696 = vmatpush1.bf16.msra.mxu0 %v7239
    %8697 = vmatprep.subr.bf16.mxu0 %v7232
    %8698 = vmatpush1.bf16.msra.mxu0 %v7231
    %8699 = vmatprep.subr.bf16.mxu0 %v7224
    %8700 = vmatpush1.bf16.msra.mxu0 %v7223
    %8701 = vmatprep.subr.bf16.mxu0 %v7216
    %8702 = vmatpush1.bf16.msra.mxu0 %v7215
    %8703 = vmatprep.subr.bf16.mxu0 %v7208
    %8704 = vmatpush1.bf16.msra.mxu0 %v7207
    %8705 = vmatprep.subr.bf16.mxu0 %v7200
    %8706 = vmatpush1.bf16.msra.mxu0 %v7199
    %8707 = vmatprep.subr.bf16.mxu0 %v7192
    %8708 = vmatpush1.bf16.msra.mxu0 %v7191
    %8709 = vmatprep.subr.bf16.mxu0 %v7184
    %8710 = vmatpush1.bf16.msra.mxu0 %v7183
    %8711 = vmatprep.subr.bf16.mxu0 %v7304
    %8712 = vmatpush2.bf16.msra.mxu0 %v7303
    %8713 = vmatprep.subr.bf16.mxu0 %v7296
    %8714 = vmatpush2.bf16.msra.mxu0 %v7295
    %8715 = vmatprep.subr.bf16.mxu0 %v7288
    %8716 = vmatpush2.bf16.msra.mxu0 %v7287
    %8717 = vmatprep.subr.bf16.mxu0 %v7280
    %8718 = vmatpush2.bf16.msra.mxu0 %v7279
    %8719 = vmatprep.subr.bf16.mxu0 %v7272
    %8720 = vmatpush2.bf16.msra.mxu0 %v7271
    %8721 = vmatprep.subr.bf16.mxu0 %v7264
    %8722 = vmatpush2.bf16.msra.mxu0 %v7263
    %8723 = vmatprep.subr.bf16.mxu0 %v7256
    %8724 = vmatpush2.bf16.msra.mxu0 %v7255
    %8725 = vmatprep.subr.bf16.mxu0 %v7248
    %8726 = vmatpush2.bf16.msra.mxu0 %v7247
    %8727 = vmatprep.mubr.bf16.mxu0 %v4988
    %8728 = vmatmul.mubr.bf16.gmra.mxu0 %v4987
    %v8729 = vpop.f32.mrf.mxu0
    %v8730 = vadd.f32 %v8689, %v8729
    %v8731 = vpop.f32.mrf.mxu0
    %v8732 = vadd.f32 %v8691, %v8731
    %v8733 = vpop.f32.mrf.mxu0
    %v8734 = vpop.f32.mrf.mxu0
    %8735 = vdwg.mxu0
    %8736 = vmatprep.subr.bf16.mxu0 %v7368
    %8737 = vmatpush1.bf16.msra.mxu0 %v7367
    %8738 = vmatprep.subr.bf16.mxu0 %v7360
    %8739 = vmatpush1.bf16.msra.mxu0 %v7359
    %8740 = vmatprep.subr.bf16.mxu0 %v7352
    %8741 = vmatpush1.bf16.msra.mxu0 %v7351
    %8742 = vmatprep.subr.bf16.mxu0 %v7344
    %8743 = vmatpush1.bf16.msra.mxu0 %v7343
    %8744 = vmatprep.subr.bf16.mxu0 %v7336
    %8745 = vmatpush1.bf16.msra.mxu0 %v7335
    %8746 = vmatprep.subr.bf16.mxu0 %v7328
    %8747 = vmatpush1.bf16.msra.mxu0 %v7327
    %8748 = vmatprep.subr.bf16.mxu0 %v7320
    %8749 = vmatpush1.bf16.msra.mxu0 %v7319
    %8750 = vmatprep.subr.bf16.mxu0 %v7312
    %8751 = vmatpush1.bf16.msra.mxu0 %v7311
    %8752 = vmatprep.subr.bf16.mxu0 %v7432
    %8753 = vmatpush2.bf16.msra.mxu0 %v7431
    %8754 = vmatprep.subr.bf16.mxu0 %v7424
    %8755 = vmatpush2.bf16.msra.mxu0 %v7423
    %8756 = vmatprep.subr.bf16.mxu0 %v7416
    %8757 = vmatpush2.bf16.msra.mxu0 %v7415
    %8758 = vmatprep.subr.bf16.mxu0 %v7408
    %8759 = vmatpush2.bf16.msra.mxu0 %v7407
    %8760 = vmatprep.subr.bf16.mxu0 %v7400
    %8761 = vmatpush2.bf16.msra.mxu0 %v7399
    %8762 = vmatprep.subr.bf16.mxu0 %v7392
    %8763 = vmatpush2.bf16.msra.mxu0 %v7391
    %8764 = vmatprep.subr.bf16.mxu0 %v7384
    %8765 = vmatpush2.bf16.msra.mxu0 %v7383
    %8766 = vmatprep.subr.bf16.mxu0 %v7376
    %8767 = vmatpush2.bf16.msra.mxu0 %v7375
    %8768 = vmatprep.mubr.bf16.mxu0 %v4990
    %8769 = vmatmul.mubr.bf16.gmra.mxu0 %v4989
    %v8770 = vpop.f32.mrf.mxu0
    %v8771 = vadd.f32 %v8730, %v8770
    %v8772 = vpop.f32.mrf.mxu0
    %v8773 = vadd.f32 %v8732, %v8772
    %v8774 = vpop.f32.mrf.mxu0
    %v8775 = vpop.f32.mrf.mxu0
    %8776 = vdwg.mxu0
    %8777 = vmatprep.subr.bf16.mxu0 %v7496
    %8778 = vmatpush1.bf16.msra.mxu0 %v7495
    %8779 = vmatprep.subr.bf16.mxu0 %v7488
    %8780 = vmatpush1.bf16.msra.mxu0 %v7487
    %8781 = vmatprep.subr.bf16.mxu0 %v7480
    %8782 = vmatpush1.bf16.msra.mxu0 %v7479
    %8783 = vmatprep.subr.bf16.mxu0 %v7472
    %8784 = vmatpush1.bf16.msra.mxu0 %v7471
    %8785 = vmatprep.subr.bf16.mxu0 %v7464
    %8786 = vmatpush1.bf16.msra.mxu0 %v7463
    %8787 = vmatprep.subr.bf16.mxu0 %v7456
    %8788 = vmatpush1.bf16.msra.mxu0 %v7455
    %8789 = vmatprep.subr.bf16.mxu0 %v7448
    %8790 = vmatpush1.bf16.msra.mxu0 %v7447
    %8791 = vmatprep.subr.bf16.mxu0 %v7440
    %8792 = vmatpush1.bf16.msra.mxu0 %v7439
    %8793 = vmatprep.subr.bf16.mxu0 %v7560
    %8794 = vmatpush2.bf16.msra.mxu0 %v7559
    %8795 = vmatprep.subr.bf16.mxu0 %v7552
    %8796 = vmatpush2.bf16.msra.mxu0 %v7551
    %8797 = vmatprep.subr.bf16.mxu0 %v7544
    %8798 = vmatpush2.bf16.msra.mxu0 %v7543
    %8799 = vmatprep.subr.bf16.mxu0 %v7536
    %8800 = vmatpush2.bf16.msra.mxu0 %v7535
    %8801 = vmatprep.subr.bf16.mxu0 %v7528
    %8802 = vmatpush2.bf16.msra.mxu0 %v7527
    %8803 = vmatprep.subr.bf16.mxu0 %v7520
    %8804 = vmatpush2.bf16.msra.mxu0 %v7519
    %8805 = vmatprep.subr.bf16.mxu0 %v7512
    %8806 = vmatpush2.bf16.msra.mxu0 %v7511
    %8807 = vmatprep.subr.bf16.mxu0 %v7504
    %8808 = vmatpush2.bf16.msra.mxu0 %v7503
    %8809 = vmatprep.mubr.bf16.mxu0 %v4992
    %8810 = vmatmul.mubr.bf16.gmra.mxu0 %v4991
    %v8811 = vpop.f32.mrf.mxu0
    %v8812 = vadd.f32 %v8771, %v8811
    %v8813 = vpop.f32.mrf.mxu0
    %v8814 = vadd.f32 %v8773, %v8813
    %v8815 = vpop.f32.mrf.mxu0
    %v8816 = vpop.f32.mrf.mxu0
    %8817 = vdwg.mxu0
    %8818 = vmatprep.subr.bf16.mxu0 %v6986
    %8819 = vmatpush1.bf16.msra.mxu0 %v6985
    %8820 = vmatprep.subr.bf16.mxu0 %v6978
    %8821 = vmatpush1.bf16.msra.mxu0 %v6977
    %8822 = vmatprep.subr.bf16.mxu0 %v6970
    %8823 = vmatpush1.bf16.msra.mxu0 %v6969
    %8824 = vmatprep.subr.bf16.mxu0 %v6962
    %8825 = vmatpush1.bf16.msra.mxu0 %v6961
    %8826 = vmatprep.subr.bf16.mxu0 %v6954
    %8827 = vmatpush1.bf16.msra.mxu0 %v6953
    %8828 = vmatprep.subr.bf16.mxu0 %v6946
    %8829 = vmatpush1.bf16.msra.mxu0 %v6945
    %8830 = vmatprep.subr.bf16.mxu0 %v6938
    %8831 = vmatpush1.bf16.msra.mxu0 %v6937
    %8832 = vmatprep.subr.bf16.mxu0 %v6930
    %8833 = vmatpush1.bf16.msra.mxu0 %v6929
    %8834 = vmatprep.subr.bf16.mxu0 %v7050
    %8835 = vmatpush2.bf16.msra.mxu0 %v7049
    %8836 = vmatprep.subr.bf16.mxu0 %v7042
    %8837 = vmatpush2.bf16.msra.mxu0 %v7041
    %8838 = vmatprep.subr.bf16.mxu0 %v7034
    %8839 = vmatpush2.bf16.msra.mxu0 %v7033
    %8840 = vmatprep.subr.bf16.mxu0 %v7026
    %8841 = vmatpush2.bf16.msra.mxu0 %v7025
    %8842 = vmatprep.subr.bf16.mxu0 %v7018
    %8843 = vmatpush2.bf16.msra.mxu0 %v7017
    %8844 = vmatprep.subr.bf16.mxu0 %v7010
    %8845 = vmatpush2.bf16.msra.mxu0 %v7009
    %8846 = vmatprep.subr.bf16.mxu0 %v7002
    %8847 = vmatpush2.bf16.msra.mxu0 %v7001
    %8848 = vmatprep.subr.bf16.mxu0 %v6994
    %8849 = vmatpush2.bf16.msra.mxu0 %v6993
    %8850 = vmatprep.mubr.bf16.mxu0 %v4984
    %8851 = vmatmul.mubr.bf16.gmra.mxu0 %v4983
    %v8852 = vpop.f32.mrf.mxu0
    %v8853 = vadd.f32 %v2867, %v8852
    %v8854 = vpop.f32.mrf.mxu0
    %v8855 = vadd.f32 %v2871, %v8854
    %v8856 = vpop.f32.mrf.mxu0
    %v8857 = vpop.f32.mrf.mxu0
    %8858 = vdwg.mxu0
    %8859 = vmatprep.subr.bf16.mxu0 %v7114
    %8860 = vmatpush1.bf16.msra.mxu0 %v7113
    %8861 = vmatprep.subr.bf16.mxu0 %v7106
    %8862 = vmatpush1.bf16.msra.mxu0 %v7105
    %8863 = vmatprep.subr.bf16.mxu0 %v7098
    %8864 = vmatpush1.bf16.msra.mxu0 %v7097
    %8865 = vmatprep.subr.bf16.mxu0 %v7090
    %8866 = vmatpush1.bf16.msra.mxu0 %v7089
    %8867 = vmatprep.subr.bf16.mxu0 %v7082
    %8868 = vmatpush1.bf16.msra.mxu0 %v7081
    %8869 = vmatprep.subr.bf16.mxu0 %v7074
    %8870 = vmatpush1.bf16.msra.mxu0 %v7073
    %8871 = vmatprep.subr.bf16.mxu0 %v7066
    %8872 = vmatpush1.bf16.msra.mxu0 %v7065
    %8873 = vmatprep.subr.bf16.mxu0 %v7058
    %8874 = vmatpush1.bf16.msra.mxu0 %v7057
    %8875 = vmatprep.subr.bf16.mxu0 %v7178
    %8876 = vmatpush2.bf16.msra.mxu0 %v7177
    %8877 = vmatprep.subr.bf16.mxu0 %v7170
    %8878 = vmatpush2.bf16.msra.mxu0 %v7169
    %8879 = vmatprep.subr.bf16.mxu0 %v7162
    %8880 = vmatpush2.bf16.msra.mxu0 %v7161
    %8881 = vmatprep.subr.bf16.mxu0 %v7154
    %8882 = vmatpush2.bf16.msra.mxu0 %v7153
    %8883 = vmatprep.subr.bf16.mxu0 %v7146
    %8884 = vmatpush2.bf16.msra.mxu0 %v7145
    %8885 = vmatprep.subr.bf16.mxu0 %v7138
    %8886 = vmatpush2.bf16.msra.mxu0 %v7137
    %8887 = vmatprep.subr.bf16.mxu0 %v7130
    %8888 = vmatpush2.bf16.msra.mxu0 %v7129
    %8889 = vmatprep.subr.bf16.mxu0 %v7122
    %8890 = vmatpush2.bf16.msra.mxu0 %v7121
    %8891 = vmatprep.mubr.bf16.mxu0 %v4986
    %8892 = vmatmul.mubr.bf16.gmra.mxu0 %v4985
    %v8893 = vpop.f32.mrf.mxu0
    %v8894 = vadd.f32 %v8853, %v8893
    %v8895 = vpop.f32.mrf.mxu0
    %v8896 = vadd.f32 %v8855, %v8895
    %v8897 = vpop.f32.mrf.mxu0
    %v8898 = vpop.f32.mrf.mxu0
    %8899 = vdwg.mxu0
    %8900 = vmatprep.subr.bf16.mxu0 %v7242
    %8901 = vmatpush1.bf16.msra.mxu0 %v7241
    %8902 = vmatprep.subr.bf16.mxu0 %v7234
    %8903 = vmatpush1.bf16.msra.mxu0 %v7233
    %8904 = vmatprep.subr.bf16.mxu0 %v7226
    %8905 = vmatpush1.bf16.msra.mxu0 %v7225
    %8906 = vmatprep.subr.bf16.mxu0 %v7218
    %8907 = vmatpush1.bf16.msra.mxu0 %v7217
    %8908 = vmatprep.subr.bf16.mxu0 %v7210
    %8909 = vmatpush1.bf16.msra.mxu0 %v7209
    %8910 = vmatprep.subr.bf16.mxu0 %v7202
    %8911 = vmatpush1.bf16.msra.mxu0 %v7201
    %8912 = vmatprep.subr.bf16.mxu0 %v7194
    %8913 = vmatpush1.bf16.msra.mxu0 %v7193
    %8914 = vmatprep.subr.bf16.mxu0 %v7186
    %8915 = vmatpush1.bf16.msra.mxu0 %v7185
    %8916 = vmatprep.subr.bf16.mxu0 %v7306
    %8917 = vmatpush2.bf16.msra.mxu0 %v7305
    %8918 = vmatprep.subr.bf16.mxu0 %v7298
    %8919 = vmatpush2.bf16.msra.mxu0 %v7297
    %8920 = vmatprep.subr.bf16.mxu0 %v7290
    %8921 = vmatpush2.bf16.msra.mxu0 %v7289
    %8922 = vmatprep.subr.bf16.mxu0 %v7282
    %8923 = vmatpush2.bf16.msra.mxu0 %v7281
    %8924 = vmatprep.subr.bf16.mxu0 %v7274
    %8925 = vmatpush2.bf16.msra.mxu0 %v7273
    %8926 = vmatprep.subr.bf16.mxu0 %v7266
    %8927 = vmatpush2.bf16.msra.mxu0 %v7265
    %8928 = vmatprep.subr.bf16.mxu0 %v7258
    %8929 = vmatpush2.bf16.msra.mxu0 %v7257
    %8930 = vmatprep.subr.bf16.mxu0 %v7250
    %8931 = vmatpush2.bf16.msra.mxu0 %v7249
    %8932 = vmatprep.mubr.bf16.mxu0 %v4988
    %8933 = vmatmul.mubr.bf16.gmra.mxu0 %v4987
    %v8934 = vpop.f32.mrf.mxu0
    %v8935 = vadd.f32 %v8894, %v8934
    %v8936 = vpop.f32.mrf.mxu0
    %v8937 = vadd.f32 %v8896, %v8936
    %v8938 = vpop.f32.mrf.mxu0
    %v8939 = vpop.f32.mrf.mxu0
    %8940 = vdwg.mxu0
    %8941 = vmatprep.subr.bf16.mxu0 %v7370
    %8942 = vmatpush1.bf16.msra.mxu0 %v7369
    %8943 = vmatprep.subr.bf16.mxu0 %v7362
    %8944 = vmatpush1.bf16.msra.mxu0 %v7361
    %8945 = vmatprep.subr.bf16.mxu0 %v7354
    %8946 = vmatpush1.bf16.msra.mxu0 %v7353
    %8947 = vmatprep.subr.bf16.mxu0 %v7346
    %8948 = vmatpush1.bf16.msra.mxu0 %v7345
    %8949 = vmatprep.subr.bf16.mxu0 %v7338
    %8950 = vmatpush1.bf16.msra.mxu0 %v7337
    %8951 = vmatprep.subr.bf16.mxu0 %v7330
    %8952 = vmatpush1.bf16.msra.mxu0 %v7329
    %8953 = vmatprep.subr.bf16.mxu0 %v7322
    %8954 = vmatpush1.bf16.msra.mxu0 %v7321
    %8955 = vmatprep.subr.bf16.mxu0 %v7314
    %8956 = vmatpush1.bf16.msra.mxu0 %v7313
    %8957 = vmatprep.subr.bf16.mxu0 %v7434
    %8958 = vmatpush2.bf16.msra.mxu0 %v7433
    %8959 = vmatprep.subr.bf16.mxu0 %v7426
    %8960 = vmatpush2.bf16.msra.mxu0 %v7425
    %8961 = vmatprep.subr.bf16.mxu0 %v7418
    %8962 = vmatpush2.bf16.msra.mxu0 %v7417
    %8963 = vmatprep.subr.bf16.mxu0 %v7410
    %8964 = vmatpush2.bf16.msra.mxu0 %v7409
    %8965 = vmatprep.subr.bf16.mxu0 %v7402
    %8966 = vmatpush2.bf16.msra.mxu0 %v7401
    %8967 = vmatprep.subr.bf16.mxu0 %v7394
    %8968 = vmatpush2.bf16.msra.mxu0 %v7393
    %8969 = vmatprep.subr.bf16.mxu0 %v7386
    %8970 = vmatpush2.bf16.msra.mxu0 %v7385
    %8971 = vmatprep.subr.bf16.mxu0 %v7378
    %8972 = vmatpush2.bf16.msra.mxu0 %v7377
    %8973 = vmatprep.mubr.bf16.mxu0 %v4990
    %8974 = vmatmul.mubr.bf16.gmra.mxu0 %v4989
    %v8975 = vpop.f32.mrf.mxu0
    %v8976 = vadd.f32 %v8935, %v8975
    %v8977 = vpop.f32.mrf.mxu0
    %v8978 = vadd.f32 %v8937, %v8977
    %v8979 = vpop.f32.mrf.mxu0
    %v8980 = vpop.f32.mrf.mxu0
    %8981 = vdwg.mxu0
    %8982 = vmatprep.subr.bf16.mxu0 %v7498
    %8983 = vmatpush1.bf16.msra.mxu0 %v7497
    %8984 = vmatprep.subr.bf16.mxu0 %v7490
    %8985 = vmatpush1.bf16.msra.mxu0 %v7489
    %8986 = vmatprep.subr.bf16.mxu0 %v7482
    %8987 = vmatpush1.bf16.msra.mxu0 %v7481
    %8988 = vmatprep.subr.bf16.mxu0 %v7474
    %8989 = vmatpush1.bf16.msra.mxu0 %v7473
    %8990 = vmatprep.subr.bf16.mxu0 %v7466
    %8991 = vmatpush1.bf16.msra.mxu0 %v7465
    %8992 = vmatprep.subr.bf16.mxu0 %v7458
    %8993 = vmatpush1.bf16.msra.mxu0 %v7457
    %8994 = vmatprep.subr.bf16.mxu0 %v7450
    %8995 = vmatpush1.bf16.msra.mxu0 %v7449
    %8996 = vmatprep.subr.bf16.mxu0 %v7442
    %8997 = vmatpush1.bf16.msra.mxu0 %v7441
    %8998 = vmatprep.subr.bf16.mxu0 %v7562
    %8999 = vmatpush2.bf16.msra.mxu0 %v7561
    %9000 = vmatprep.subr.bf16.mxu0 %v7554
    %9001 = vmatpush2.bf16.msra.mxu0 %v7553
    %9002 = vmatprep.subr.bf16.mxu0 %v7546
    %9003 = vmatpush2.bf16.msra.mxu0 %v7545
    %9004 = vmatprep.subr.bf16.mxu0 %v7538
    %9005 = vmatpush2.bf16.msra.mxu0 %v7537
    %9006 = vmatprep.subr.bf16.mxu0 %v7530
    %9007 = vmatpush2.bf16.msra.mxu0 %v7529
    %9008 = vmatprep.subr.bf16.mxu0 %v7522
    %9009 = vmatpush2.bf16.msra.mxu0 %v7521
    %9010 = vmatprep.subr.bf16.mxu0 %v7514
    %9011 = vmatpush2.bf16.msra.mxu0 %v7513
    %9012 = vmatprep.subr.bf16.mxu0 %v7506
    %9013 = vmatpush2.bf16.msra.mxu0 %v7505
    %9014 = vmatprep.mubr.bf16.mxu0 %v4992
    %9015 = vmatmul.mubr.bf16.gmra.mxu0 %v4991
    %v9016 = vpop.f32.mrf.mxu0
    %v9017 = vadd.f32 %v8976, %v9016
    %v9018 = vpop.f32.mrf.mxu0
    %v9019 = vadd.f32 %v8978, %v9018
    %v9020 = vpop.f32.mrf.mxu0
    %v9021 = vpop.f32.mrf.mxu0
    %9022 = vdwg.mxu0
    %v9023 = vmul.f32 %v8402, 0.5
    %v9024 = vmul.f32 %v8404, 0.5
    %v9025 = vmul.f32 %v8607, 0.5
    %v9026 = vmul.f32 %v8609, 0.5
    %v9027 = vmul.f32 %v8812, 0.5
    %v9028 = vmul.f32 %v8814, 0.5
    %v9029 = vmul.f32 %v9017, 0.5
    %v9030 = vmul.f32 %v9019, 0.5
    %v9031 = vmul.f32 %v8402, 0.70710677
    %v9032 = vmul.f32 %v8404, 0.70710677
    %v9033 = vmul.f32 %v8607, 0.70710677
    %v9034 = vmul.f32 %v8609, 0.70710677
    %v9035 = vmul.f32 %v8812, 0.70710677
    %v9036 = vmul.f32 %v8814, 0.70710677
    %v9037 = vmul.f32 %v9017, 0.70710677
    %v9038 = vmul.f32 %v9019, 0.70710677
    %v9039 = verf.f32.pop %v9031
    %v9040 = verf.f32.pop %v9032
    %v9041 = verf.f32.pop %v9033
    %v9042 = verf.f32.pop %v9034
    %v9043 = verf.f32.pop %v9035
    %v9044 = verf.f32.pop %v9036
    %v9045 = verf.f32.pop %v9037
    %v9046 = verf.f32.pop %v9038
    %v9047 = vadd.f32 %v9039, 1.0
    %v9048 = vadd.f32 %v9040, 1.0
    %v9049 = vadd.f32 %v9041, 1.0
    %v9050 = vadd.f32 %v9042, 1.0
    %v9051 = vadd.f32 %v9043, 1.0
    %v9052 = vadd.f32 %v9044, 1.0
    %v9053 = vadd.f32 %v9045, 1.0
    %v9054 = vadd.f32 %v9046, 1.0
    %v9055 = vmul.f32 %v9023, %v9047
    %v9056 = vmul.f32 %v9024, %v9048
    %v9057 = vmul.f32 %v9025, %v9049
    %v9058 = vmul.f32 %v9026, %v9050
    %v9059 = vmul.f32 %v9027, %v9051
    %v9060 = vmul.f32 %v9028, %v9052
    %v9061 = vmul.f32 %v9029, %v9053
    %v9062 = vmul.f32 %v9030, %v9054
    %v9063 = vpack.c.bf16 %v9055, %v9055
    %v9064 = vpack.c.bf16 %v9056, %v9056
    %v9065 = vpack.c.bf16 %v9057, %v9057
    %v9066 = vpack.c.bf16 %v9058, %v9058
    %v9067 = vpack.c.bf16 %v9059, %v9059
    %v9068 = vpack.c.bf16 %v9060, %v9060
    %v9069 = vpack.c.bf16 %v9061, %v9061
    %v9070 = vpack.c.bf16 %v9062, %v9062
    %v9071 = vld [vmem:[#allocation8] sm:$0xff]
    %v9072 = vld [vmem:[#allocation8 + $0x8] sm:$0xff]
    %v9073 = vld [vmem:[#allocation8 + $0x10] sm:$0xff]
    %v9074 = vld [vmem:[#allocation8 + $0x18] sm:$0xff]
    %v9075 = vld [vmem:[#allocation8 + $0x20] sm:$0xff]
    %v9076 = vld [vmem:[#allocation8 + $0x28] sm:$0xff]
    %v9077 = vld [vmem:[#allocation8 + $0x30] sm:$0xff]
    %v9078 = vld [vmem:[#allocation8 + $0x38] sm:$0xff]
    %v9079 = vld [vmem:[#allocation8 + $0x40] sm:$0xff]
    %v9080 = vld [vmem:[#allocation8 + $0x48] sm:$0xff]
    %v9081 = vld [vmem:[#allocation8 + $0x50] sm:$0xff]
    %v9082 = vld [vmem:[#allocation8 + $0x58] sm:$0xff]
    %v9083 = vld [vmem:[#allocation8 + $0x60] sm:$0xff]
    %v9084 = vld [vmem:[#allocation8 + $0x68] sm:$0xff]
    %v9085 = vld [vmem:[#allocation8 + $0x70] sm:$0xff]
    %v9086 = vld [vmem:[#allocation8 + $0x78] sm:$0xff]
    %v9087 = vld [vmem:[#allocation8 + $0x80] sm:$0xff]
    %v9088 = vld [vmem:[#allocation8 + $0x88] sm:$0xff]
    %v9089 = vld [vmem:[#allocation8 + $0x90] sm:$0xff]
    %v9090 = vld [vmem:[#allocation8 + $0x98] sm:$0xff]
    %v9091 = vld [vmem:[#allocation8 + $0xa0] sm:$0xff]
    %v9092 = vld [vmem:[#allocation8 + $0xa8] sm:$0xff]
    %v9093 = vld [vmem:[#allocation8 + $0xb0] sm:$0xff]
    %v9094 = vld [vmem:[#allocation8 + $0xb8] sm:$0xff]
    %v9095 = vld [vmem:[#allocation8 + $0xc0] sm:$0xff]
    %v9096 = vld [vmem:[#allocation8 + $0xc8] sm:$0xff]
    %v9097 = vld [vmem:[#allocation8 + $0xd0] sm:$0xff]
    %v9098 = vld [vmem:[#allocation8 + $0xd8] sm:$0xff]
    %v9099 = vld [vmem:[#allocation8 + $0xe0] sm:$0xff]
    %v9100 = vld [vmem:[#allocation8 + $0xe8] sm:$0xff]
    %v9101 = vld [vmem:[#allocation8 + $0xf0] sm:$0xff]
    %v9102 = vld [vmem:[#allocation8 + $0xf8] sm:$0xff]
    %v9103 = vld [vmem:[#allocation8 + $0x100] sm:$0xff]
    %v9104 = vld [vmem:[#allocation8 + $0x108] sm:$0xff]
    %v9105 = vld [vmem:[#allocation8 + $0x110] sm:$0xff]
    %v9106 = vld [vmem:[#allocation8 + $0x118] sm:$0xff]
    %v9107 = vld [vmem:[#allocation8 + $0x120] sm:$0xff]
    %v9108 = vld [vmem:[#allocation8 + $0x128] sm:$0xff]
    %v9109 = vld [vmem:[#allocation8 + $0x130] sm:$0xff]
    %v9110 = vld [vmem:[#allocation8 + $0x138] sm:$0xff]
    %v9111 = vld [vmem:[#allocation8 + $0x140] sm:$0xff]
    %v9112 = vld [vmem:[#allocation8 + $0x148] sm:$0xff]
    %v9113 = vld [vmem:[#allocation8 + $0x150] sm:$0xff]
    %v9114 = vld [vmem:[#allocation8 + $0x158] sm:$0xff]
    %v9115 = vld [vmem:[#allocation8 + $0x160] sm:$0xff]
    %v9116 = vld [vmem:[#allocation8 + $0x168] sm:$0xff]
    %v9117 = vld [vmem:[#allocation8 + $0x170] sm:$0xff]
    %v9118 = vld [vmem:[#allocation8 + $0x178] sm:$0xff]
    %v9119 = vld [vmem:[#allocation8 + $0x180] sm:$0xff]
    %v9120 = vld [vmem:[#allocation8 + $0x188] sm:$0xff]
    %v9121 = vld [vmem:[#allocation8 + $0x190] sm:$0xff]
    %v9122 = vld [vmem:[#allocation8 + $0x198] sm:$0xff]
    %v9123 = vld [vmem:[#allocation8 + $0x1a0] sm:$0xff]
    %v9124 = vld [vmem:[#allocation8 + $0x1a8] sm:$0xff]
    %v9125 = vld [vmem:[#allocation8 + $0x1b0] sm:$0xff]
    %v9126 = vld [vmem:[#allocation8 + $0x1b8] sm:$0xff]
    %v9127 = vld [vmem:[#allocation8 + $0x1c0] sm:$0xff]
    %v9128 = vld [vmem:[#allocation8 + $0x1c8] sm:$0xff]
    %v9129 = vld [vmem:[#allocation8 + $0x1d0] sm:$0xff]
    %v9130 = vld [vmem:[#allocation8 + $0x1d8] sm:$0xff]
    %v9131 = vld [vmem:[#allocation8 + $0x1e0] sm:$0xff]
    %v9132 = vld [vmem:[#allocation8 + $0x1e8] sm:$0xff]
    %v9133 = vld [vmem:[#allocation8 + $0x1f0] sm:$0xff]
    %v9134 = vld [vmem:[#allocation8 + $0x1f8] sm:$0xff]
    %v9135 = vld [vmem:[#allocation8 + $0x200] sm:$0xff]
    %v9136 = vld [vmem:[#allocation8 + $0x208] sm:$0xff]
    %v9137 = vld [vmem:[#allocation8 + $0x210] sm:$0xff]
    %v9138 = vld [vmem:[#allocation8 + $0x218] sm:$0xff]
    %v9139 = vld [vmem:[#allocation8 + $0x220] sm:$0xff]
    %v9140 = vld [vmem:[#allocation8 + $0x228] sm:$0xff]
    %v9141 = vld [vmem:[#allocation8 + $0x230] sm:$0xff]
    %v9142 = vld [vmem:[#allocation8 + $0x238] sm:$0xff]
    %v9143 = vld [vmem:[#allocation8 + $0x240] sm:$0xff]
    %v9144 = vld [vmem:[#allocation8 + $0x248] sm:$0xff]
    %v9145 = vld [vmem:[#allocation8 + $0x250] sm:$0xff]
    %v9146 = vld [vmem:[#allocation8 + $0x258] sm:$0xff]
    %v9147 = vld [vmem:[#allocation8 + $0x260] sm:$0xff]
    %v9148 = vld [vmem:[#allocation8 + $0x268] sm:$0xff]
    %v9149 = vld [vmem:[#allocation8 + $0x270] sm:$0xff]
    %v9150 = vld [vmem:[#allocation8 + $0x278] sm:$0xff]
    %v9151 = vld [vmem:[#allocation8 + $0x280] sm:$0xff]
    %v9152 = vld [vmem:[#allocation8 + $0x288] sm:$0xff]
    %v9153 = vld [vmem:[#allocation8 + $0x290] sm:$0xff]
    %v9154 = vld [vmem:[#allocation8 + $0x298] sm:$0xff]
    %v9155 = vld [vmem:[#allocation8 + $0x2a0] sm:$0xff]
    %v9156 = vld [vmem:[#allocation8 + $0x2a8] sm:$0xff]
    %v9157 = vld [vmem:[#allocation8 + $0x2b0] sm:$0xff]
    %v9158 = vld [vmem:[#allocation8 + $0x2b8] sm:$0xff]
    %v9159 = vld [vmem:[#allocation8 + $0x2c0] sm:$0xff]
    %v9160 = vld [vmem:[#allocation8 + $0x2c8] sm:$0xff]
    %v9161 = vld [vmem:[#allocation8 + $0x2d0] sm:$0xff]
    %v9162 = vld [vmem:[#allocation8 + $0x2d8] sm:$0xff]
    %v9163 = vld [vmem:[#allocation8 + $0x2e0] sm:$0xff]
    %v9164 = vld [vmem:[#allocation8 + $0x2e8] sm:$0xff]
    %v9165 = vld [vmem:[#allocation8 + $0x2f0] sm:$0xff]
    %v9166 = vld [vmem:[#allocation8 + $0x2f8] sm:$0xff]
    %v9167 = vld [vmem:[#allocation8 + $0x300] sm:$0xff]
    %v9168 = vld [vmem:[#allocation8 + $0x308] sm:$0xff]
    %v9169 = vld [vmem:[#allocation8 + $0x310] sm:$0xff]
    %v9170 = vld [vmem:[#allocation8 + $0x318] sm:$0xff]
    %v9171 = vld [vmem:[#allocation8 + $0x320] sm:$0xff]
    %v9172 = vld [vmem:[#allocation8 + $0x328] sm:$0xff]
    %v9173 = vld [vmem:[#allocation8 + $0x330] sm:$0xff]
    %v9174 = vld [vmem:[#allocation8 + $0x338] sm:$0xff]
    %v9175 = vld [vmem:[#allocation8 + $0x340] sm:$0xff]
    %v9176 = vld [vmem:[#allocation8 + $0x348] sm:$0xff]
    %v9177 = vld [vmem:[#allocation8 + $0x350] sm:$0xff]
    %v9178 = vld [vmem:[#allocation8 + $0x358] sm:$0xff]
    %v9179 = vld [vmem:[#allocation8 + $0x360] sm:$0xff]
    %v9180 = vld [vmem:[#allocation8 + $0x368] sm:$0xff]
    %v9181 = vld [vmem:[#allocation8 + $0x370] sm:$0xff]
    %v9182 = vld [vmem:[#allocation8 + $0x378] sm:$0xff]
    %v9183 = vld [vmem:[#allocation8 + $0x380] sm:$0xff]
    %v9184 = vld [vmem:[#allocation8 + $0x388] sm:$0xff]
    %v9185 = vld [vmem:[#allocation8 + $0x390] sm:$0xff]
    %v9186 = vld [vmem:[#allocation8 + $0x398] sm:$0xff]
    %v9187 = vld [vmem:[#allocation8 + $0x3a0] sm:$0xff]
    %v9188 = vld [vmem:[#allocation8 + $0x3a8] sm:$0xff]
    %v9189 = vld [vmem:[#allocation8 + $0x3b0] sm:$0xff]
    %v9190 = vld [vmem:[#allocation8 + $0x3b8] sm:$0xff]
    %v9191 = vld [vmem:[#allocation8 + $0x3c0] sm:$0xff]
    %v9192 = vld [vmem:[#allocation8 + $0x3c8] sm:$0xff]
    %v9193 = vld [vmem:[#allocation8 + $0x3d0] sm:$0xff]
    %v9194 = vld [vmem:[#allocation8 + $0x3d8] sm:$0xff]
    %v9195 = vld [vmem:[#allocation8 + $0x3e0] sm:$0xff]
    %v9196 = vld [vmem:[#allocation8 + $0x3e8] sm:$0xff]
    %v9197 = vld [vmem:[#allocation8 + $0x3f0] sm:$0xff]
    %v9198 = vld [vmem:[#allocation8 + $0x3f8] sm:$0xff]
    %v9199 = vld [vmem:[#allocation8 + $0x400] sm:$0xff]
    %v9200 = vld [vmem:[#allocation8 + $0x408] sm:$0xff]
    %v9201 = vld [vmem:[#allocation8 + $0x410] sm:$0xff]
    %v9202 = vld [vmem:[#allocation8 + $0x418] sm:$0xff]
    %v9203 = vld [vmem:[#allocation8 + $0x420] sm:$0xff]
    %v9204 = vld [vmem:[#allocation8 + $0x428] sm:$0xff]
    %v9205 = vld [vmem:[#allocation8 + $0x430] sm:$0xff]
    %v9206 = vld [vmem:[#allocation8 + $0x438] sm:$0xff]
    %v9207 = vld [vmem:[#allocation8 + $0x440] sm:$0xff]
    %v9208 = vld [vmem:[#allocation8 + $0x448] sm:$0xff]
    %v9209 = vld [vmem:[#allocation8 + $0x450] sm:$0xff]
    %v9210 = vld [vmem:[#allocation8 + $0x458] sm:$0xff]
    %v9211 = vld [vmem:[#allocation8 + $0x460] sm:$0xff]
    %v9212 = vld [vmem:[#allocation8 + $0x468] sm:$0xff]
    %v9213 = vld [vmem:[#allocation8 + $0x470] sm:$0xff]
    %v9214 = vld [vmem:[#allocation8 + $0x478] sm:$0xff]
    %v9215 = vld [vmem:[#allocation8 + $0x480] sm:$0xff]
    %v9216 = vld [vmem:[#allocation8 + $0x488] sm:$0xff]
    %v9217 = vld [vmem:[#allocation8 + $0x490] sm:$0xff]
    %v9218 = vld [vmem:[#allocation8 + $0x498] sm:$0xff]
    %v9219 = vld [vmem:[#allocation8 + $0x4a0] sm:$0xff]
    %v9220 = vld [vmem:[#allocation8 + $0x4a8] sm:$0xff]
    %v9221 = vld [vmem:[#allocation8 + $0x4b0] sm:$0xff]
    %v9222 = vld [vmem:[#allocation8 + $0x4b8] sm:$0xff]
    %v9223 = vld [vmem:[#allocation8 + $0x4c0] sm:$0xff]
    %v9224 = vld [vmem:[#allocation8 + $0x4c8] sm:$0xff]
    %v9225 = vld [vmem:[#allocation8 + $0x4d0] sm:$0xff]
    %v9226 = vld [vmem:[#allocation8 + $0x4d8] sm:$0xff]
    %v9227 = vld [vmem:[#allocation8 + $0x4e0] sm:$0xff]
    %v9228 = vld [vmem:[#allocation8 + $0x4e8] sm:$0xff]
    %v9229 = vld [vmem:[#allocation8 + $0x4f0] sm:$0xff]
    %v9230 = vld [vmem:[#allocation8 + $0x4f8] sm:$0xff]
    %v9231 = vld [vmem:[#allocation8 + $0x500] sm:$0xff]
    %v9232 = vld [vmem:[#allocation8 + $0x508] sm:$0xff]
    %v9233 = vld [vmem:[#allocation8 + $0x510] sm:$0xff]
    %v9234 = vld [vmem:[#allocation8 + $0x518] sm:$0xff]
    %v9235 = vld [vmem:[#allocation8 + $0x520] sm:$0xff]
    %v9236 = vld [vmem:[#allocation8 + $0x528] sm:$0xff]
    %v9237 = vld [vmem:[#allocation8 + $0x530] sm:$0xff]
    %v9238 = vld [vmem:[#allocation8 + $0x538] sm:$0xff]
    %v9239 = vld [vmem:[#allocation8 + $0x540] sm:$0xff]
    %v9240 = vld [vmem:[#allocation8 + $0x548] sm:$0xff]
    %v9241 = vld [vmem:[#allocation8 + $0x550] sm:$0xff]
    %v9242 = vld [vmem:[#allocation8 + $0x558] sm:$0xff]
    %v9243 = vld [vmem:[#allocation8 + $0x560] sm:$0xff]
    %v9244 = vld [vmem:[#allocation8 + $0x568] sm:$0xff]
    %v9245 = vld [vmem:[#allocation8 + $0x570] sm:$0xff]
    %v9246 = vld [vmem:[#allocation8 + $0x578] sm:$0xff]
    %v9247 = vld [vmem:[#allocation8 + $0x580] sm:$0xff]
    %v9248 = vld [vmem:[#allocation8 + $0x588] sm:$0xff]
    %v9249 = vld [vmem:[#allocation8 + $0x590] sm:$0xff]
    %v9250 = vld [vmem:[#allocation8 + $0x598] sm:$0xff]
    %v9251 = vld [vmem:[#allocation8 + $0x5a0] sm:$0xff]
    %v9252 = vld [vmem:[#allocation8 + $0x5a8] sm:$0xff]
    %v9253 = vld [vmem:[#allocation8 + $0x5b0] sm:$0xff]
    %v9254 = vld [vmem:[#allocation8 + $0x5b8] sm:$0xff]
    %v9255 = vld [vmem:[#allocation8 + $0x5c0] sm:$0xff]
    %v9256 = vld [vmem:[#allocation8 + $0x5c8] sm:$0xff]
    %v9257 = vld [vmem:[#allocation8 + $0x5d0] sm:$0xff]
    %v9258 = vld [vmem:[#allocation8 + $0x5d8] sm:$0xff]
    %v9259 = vld [vmem:[#allocation8 + $0x5e0] sm:$0xff]
    %v9260 = vld [vmem:[#allocation8 + $0x5e8] sm:$0xff]
    %v9261 = vld [vmem:[#allocation8 + $0x5f0] sm:$0xff]
    %v9262 = vld [vmem:[#allocation8 + $0x5f8] sm:$0xff]
    %v9263 = vld [vmem:[#allocation8 + $0x600] sm:$0xff]
    %v9264 = vld [vmem:[#allocation8 + $0x608] sm:$0xff]
    %v9265 = vld [vmem:[#allocation8 + $0x610] sm:$0xff]
    %v9266 = vld [vmem:[#allocation8 + $0x618] sm:$0xff]
    %v9267 = vld [vmem:[#allocation8 + $0x620] sm:$0xff]
    %v9268 = vld [vmem:[#allocation8 + $0x628] sm:$0xff]
    %v9269 = vld [vmem:[#allocation8 + $0x630] sm:$0xff]
    %v9270 = vld [vmem:[#allocation8 + $0x638] sm:$0xff]
    %v9271 = vld [vmem:[#allocation8 + $0x640] sm:$0xff]
    %v9272 = vld [vmem:[#allocation8 + $0x648] sm:$0xff]
    %v9273 = vld [vmem:[#allocation8 + $0x650] sm:$0xff]
    %v9274 = vld [vmem:[#allocation8 + $0x658] sm:$0xff]
    %v9275 = vld [vmem:[#allocation8 + $0x660] sm:$0xff]
    %v9276 = vld [vmem:[#allocation8 + $0x668] sm:$0xff]
    %v9277 = vld [vmem:[#allocation8 + $0x670] sm:$0xff]
    %v9278 = vld [vmem:[#allocation8 + $0x678] sm:$0xff]
    %v9279 = vld [vmem:[#allocation8 + $0x680] sm:$0xff]
    %v9280 = vld [vmem:[#allocation8 + $0x688] sm:$0xff]
    %v9281 = vld [vmem:[#allocation8 + $0x690] sm:$0xff]
    %v9282 = vld [vmem:[#allocation8 + $0x698] sm:$0xff]
    %v9283 = vld [vmem:[#allocation8 + $0x6a0] sm:$0xff]
    %v9284 = vld [vmem:[#allocation8 + $0x6a8] sm:$0xff]
    %v9285 = vld [vmem:[#allocation8 + $0x6b0] sm:$0xff]
    %v9286 = vld [vmem:[#allocation8 + $0x6b8] sm:$0xff]
    %v9287 = vld [vmem:[#allocation8 + $0x6c0] sm:$0xff]
    %v9288 = vld [vmem:[#allocation8 + $0x6c8] sm:$0xff]
    %v9289 = vld [vmem:[#allocation8 + $0x6d0] sm:$0xff]
    %v9290 = vld [vmem:[#allocation8 + $0x6d8] sm:$0xff]
    %v9291 = vld [vmem:[#allocation8 + $0x6e0] sm:$0xff]
    %v9292 = vld [vmem:[#allocation8 + $0x6e8] sm:$0xff]
    %v9293 = vld [vmem:[#allocation8 + $0x6f0] sm:$0xff]
    %v9294 = vld [vmem:[#allocation8 + $0x6f8] sm:$0xff]
    %v9295 = vld [vmem:[#allocation8 + $0x700] sm:$0xff]
    %v9296 = vld [vmem:[#allocation8 + $0x708] sm:$0xff]
    %v9297 = vld [vmem:[#allocation8 + $0x710] sm:$0xff]
    %v9298 = vld [vmem:[#allocation8 + $0x718] sm:$0xff]
    %v9299 = vld [vmem:[#allocation8 + $0x720] sm:$0xff]
    %v9300 = vld [vmem:[#allocation8 + $0x728] sm:$0xff]
    %v9301 = vld [vmem:[#allocation8 + $0x730] sm:$0xff]
    %v9302 = vld [vmem:[#allocation8 + $0x738] sm:$0xff]
    %v9303 = vld [vmem:[#allocation8 + $0x740] sm:$0xff]
    %v9304 = vld [vmem:[#allocation8 + $0x748] sm:$0xff]
    %v9305 = vld [vmem:[#allocation8 + $0x750] sm:$0xff]
    %v9306 = vld [vmem:[#allocation8 + $0x758] sm:$0xff]
    %v9307 = vld [vmem:[#allocation8 + $0x760] sm:$0xff]
    %v9308 = vld [vmem:[#allocation8 + $0x768] sm:$0xff]
    %v9309 = vld [vmem:[#allocation8 + $0x770] sm:$0xff]
    %v9310 = vld [vmem:[#allocation8 + $0x778] sm:$0xff]
    %v9311 = vld [vmem:[#allocation8 + $0x780] sm:$0xff]
    %v9312 = vld [vmem:[#allocation8 + $0x788] sm:$0xff]
    %v9313 = vld [vmem:[#allocation8 + $0x790] sm:$0xff]
    %v9314 = vld [vmem:[#allocation8 + $0x798] sm:$0xff]
    %v9315 = vld [vmem:[#allocation8 + $0x7a0] sm:$0xff]
    %v9316 = vld [vmem:[#allocation8 + $0x7a8] sm:$0xff]
    %v9317 = vld [vmem:[#allocation8 + $0x7b0] sm:$0xff]
    %v9318 = vld [vmem:[#allocation8 + $0x7b8] sm:$0xff]
    %v9319 = vld [vmem:[#allocation8 + $0x7c0] sm:$0xff]
    %v9320 = vld [vmem:[#allocation8 + $0x7c8] sm:$0xff]
    %v9321 = vld [vmem:[#allocation8 + $0x7d0] sm:$0xff]
    %v9322 = vld [vmem:[#allocation8 + $0x7d8] sm:$0xff]
    %v9323 = vld [vmem:[#allocation8 + $0x7e0] sm:$0xff]
    %v9324 = vld [vmem:[#allocation8 + $0x7e8] sm:$0xff]
    %v9325 = vld [vmem:[#allocation8 + $0x7f0] sm:$0xff]
    %v9326 = vld [vmem:[#allocation8 + $0x7f8] sm:$0xff]
    %v9327 = vld [vmem:[#allocation8 + $0x800] sm:$0xff]
    %v9328 = vld [vmem:[#allocation8 + $0x808] sm:$0xff]
    %v9329 = vld [vmem:[#allocation8 + $0x810] sm:$0xff]
    %v9330 = vld [vmem:[#allocation8 + $0x818] sm:$0xff]
    %v9331 = vld [vmem:[#allocation8 + $0x820] sm:$0xff]
    %v9332 = vld [vmem:[#allocation8 + $0x828] sm:$0xff]
    %v9333 = vld [vmem:[#allocation8 + $0x830] sm:$0xff]
    %v9334 = vld [vmem:[#allocation8 + $0x838] sm:$0xff]
    %v9335 = vld [vmem:[#allocation8 + $0x840] sm:$0xff]
    %v9336 = vld [vmem:[#allocation8 + $0x848] sm:$0xff]
    %v9337 = vld [vmem:[#allocation8 + $0x850] sm:$0xff]
    %v9338 = vld [vmem:[#allocation8 + $0x858] sm:$0xff]
    %v9339 = vld [vmem:[#allocation8 + $0x860] sm:$0xff]
    %v9340 = vld [vmem:[#allocation8 + $0x868] sm:$0xff]
    %v9341 = vld [vmem:[#allocation8 + $0x870] sm:$0xff]
    %v9342 = vld [vmem:[#allocation8 + $0x878] sm:$0xff]
    %v9343 = vld [vmem:[#allocation8 + $0x880] sm:$0xff]
    %v9344 = vld [vmem:[#allocation8 + $0x888] sm:$0xff]
    %v9345 = vld [vmem:[#allocation8 + $0x890] sm:$0xff]
    %v9346 = vld [vmem:[#allocation8 + $0x898] sm:$0xff]
    %v9347 = vld [vmem:[#allocation8 + $0x8a0] sm:$0xff]
    %v9348 = vld [vmem:[#allocation8 + $0x8a8] sm:$0xff]
    %v9349 = vld [vmem:[#allocation8 + $0x8b0] sm:$0xff]
    %v9350 = vld [vmem:[#allocation8 + $0x8b8] sm:$0xff]
    %v9351 = vld [vmem:[#allocation8 + $0x8c0] sm:$0xff]
    %v9352 = vld [vmem:[#allocation8 + $0x8c8] sm:$0xff]
    %v9353 = vld [vmem:[#allocation8 + $0x8d0] sm:$0xff]
    %v9354 = vld [vmem:[#allocation8 + $0x8d8] sm:$0xff]
    %v9355 = vld [vmem:[#allocation8 + $0x8e0] sm:$0xff]
    %v9356 = vld [vmem:[#allocation8 + $0x8e8] sm:$0xff]
    %v9357 = vld [vmem:[#allocation8 + $0x8f0] sm:$0xff]
    %v9358 = vld [vmem:[#allocation8 + $0x8f8] sm:$0xff]
    %v9359 = vld [vmem:[#allocation8 + $0x900] sm:$0xff]
    %v9360 = vld [vmem:[#allocation8 + $0x908] sm:$0xff]
    %v9361 = vld [vmem:[#allocation8 + $0x910] sm:$0xff]
    %v9362 = vld [vmem:[#allocation8 + $0x918] sm:$0xff]
    %v9363 = vld [vmem:[#allocation8 + $0x920] sm:$0xff]
    %v9364 = vld [vmem:[#allocation8 + $0x928] sm:$0xff]
    %v9365 = vld [vmem:[#allocation8 + $0x930] sm:$0xff]
    %v9366 = vld [vmem:[#allocation8 + $0x938] sm:$0xff]
    %v9367 = vld [vmem:[#allocation8 + $0x940] sm:$0xff]
    %v9368 = vld [vmem:[#allocation8 + $0x948] sm:$0xff]
    %v9369 = vld [vmem:[#allocation8 + $0x950] sm:$0xff]
    %v9370 = vld [vmem:[#allocation8 + $0x958] sm:$0xff]
    %v9371 = vld [vmem:[#allocation8 + $0x960] sm:$0xff]
    %v9372 = vld [vmem:[#allocation8 + $0x968] sm:$0xff]
    %v9373 = vld [vmem:[#allocation8 + $0x970] sm:$0xff]
    %v9374 = vld [vmem:[#allocation8 + $0x978] sm:$0xff]
    %v9375 = vld [vmem:[#allocation8 + $0x980] sm:$0xff]
    %v9376 = vld [vmem:[#allocation8 + $0x988] sm:$0xff]
    %v9377 = vld [vmem:[#allocation8 + $0x990] sm:$0xff]
    %v9378 = vld [vmem:[#allocation8 + $0x998] sm:$0xff]
    %v9379 = vld [vmem:[#allocation8 + $0x9a0] sm:$0xff]
    %v9380 = vld [vmem:[#allocation8 + $0x9a8] sm:$0xff]
    %v9381 = vld [vmem:[#allocation8 + $0x9b0] sm:$0xff]
    %v9382 = vld [vmem:[#allocation8 + $0x9b8] sm:$0xff]
    %v9383 = vld [vmem:[#allocation8 + $0x9c0] sm:$0xff]
    %v9384 = vld [vmem:[#allocation8 + $0x9c8] sm:$0xff]
    %v9385 = vld [vmem:[#allocation8 + $0x9d0] sm:$0xff]
    %v9386 = vld [vmem:[#allocation8 + $0x9d8] sm:$0xff]
    %v9387 = vld [vmem:[#allocation8 + $0x9e0] sm:$0xff]
    %v9388 = vld [vmem:[#allocation8 + $0x9e8] sm:$0xff]
    %v9389 = vld [vmem:[#allocation8 + $0x9f0] sm:$0xff]
    %v9390 = vld [vmem:[#allocation8 + $0x9f8] sm:$0xff]
    %v9391 = vld [vmem:[#allocation8 + $0xa00] sm:$0xff]
    %v9392 = vld [vmem:[#allocation8 + $0xa08] sm:$0xff]
    %v9393 = vld [vmem:[#allocation8 + $0xa10] sm:$0xff]
    %v9394 = vld [vmem:[#allocation8 + $0xa18] sm:$0xff]
    %v9395 = vld [vmem:[#allocation8 + $0xa20] sm:$0xff]
    %v9396 = vld [vmem:[#allocation8 + $0xa28] sm:$0xff]
    %v9397 = vld [vmem:[#allocation8 + $0xa30] sm:$0xff]
    %v9398 = vld [vmem:[#allocation8 + $0xa38] sm:$0xff]
    %v9399 = vld [vmem:[#allocation8 + $0xa40] sm:$0xff]
    %v9400 = vld [vmem:[#allocation8 + $0xa48] sm:$0xff]
    %v9401 = vld [vmem:[#allocation8 + $0xa50] sm:$0xff]
    %v9402 = vld [vmem:[#allocation8 + $0xa58] sm:$0xff]
    %v9403 = vld [vmem:[#allocation8 + $0xa60] sm:$0xff]
    %v9404 = vld [vmem:[#allocation8 + $0xa68] sm:$0xff]
    %v9405 = vld [vmem:[#allocation8 + $0xa70] sm:$0xff]
    %v9406 = vld [vmem:[#allocation8 + $0xa78] sm:$0xff]
    %v9407 = vld [vmem:[#allocation8 + $0xa80] sm:$0xff]
    %v9408 = vld [vmem:[#allocation8 + $0xa88] sm:$0xff]
    %v9409 = vld [vmem:[#allocation8 + $0xa90] sm:$0xff]
    %v9410 = vld [vmem:[#allocation8 + $0xa98] sm:$0xff]
    %v9411 = vld [vmem:[#allocation8 + $0xaa0] sm:$0xff]
    %v9412 = vld [vmem:[#allocation8 + $0xaa8] sm:$0xff]
    %v9413 = vld [vmem:[#allocation8 + $0xab0] sm:$0xff]
    %v9414 = vld [vmem:[#allocation8 + $0xab8] sm:$0xff]
    %v9415 = vld [vmem:[#allocation8 + $0xac0] sm:$0xff]
    %v9416 = vld [vmem:[#allocation8 + $0xac8] sm:$0xff]
    %v9417 = vld [vmem:[#allocation8 + $0xad0] sm:$0xff]
    %v9418 = vld [vmem:[#allocation8 + $0xad8] sm:$0xff]
    %v9419 = vld [vmem:[#allocation8 + $0xae0] sm:$0xff]
    %v9420 = vld [vmem:[#allocation8 + $0xae8] sm:$0xff]
    %v9421 = vld [vmem:[#allocation8 + $0xaf0] sm:$0xff]
    %v9422 = vld [vmem:[#allocation8 + $0xaf8] sm:$0xff]
    %v9423 = vld [vmem:[#allocation8 + $0xb00] sm:$0xff]
    %v9424 = vld [vmem:[#allocation8 + $0xb08] sm:$0xff]
    %v9425 = vld [vmem:[#allocation8 + $0xb10] sm:$0xff]
    %v9426 = vld [vmem:[#allocation8 + $0xb18] sm:$0xff]
    %v9427 = vld [vmem:[#allocation8 + $0xb20] sm:$0xff]
    %v9428 = vld [vmem:[#allocation8 + $0xb28] sm:$0xff]
    %v9429 = vld [vmem:[#allocation8 + $0xb30] sm:$0xff]
    %v9430 = vld [vmem:[#allocation8 + $0xb38] sm:$0xff]
    %v9431 = vld [vmem:[#allocation8 + $0xb40] sm:$0xff]
    %v9432 = vld [vmem:[#allocation8 + $0xb48] sm:$0xff]
    %v9433 = vld [vmem:[#allocation8 + $0xb50] sm:$0xff]
    %v9434 = vld [vmem:[#allocation8 + $0xb58] sm:$0xff]
    %v9435 = vld [vmem:[#allocation8 + $0xb60] sm:$0xff]
    %v9436 = vld [vmem:[#allocation8 + $0xb68] sm:$0xff]
    %v9437 = vld [vmem:[#allocation8 + $0xb70] sm:$0xff]
    %v9438 = vld [vmem:[#allocation8 + $0xb78] sm:$0xff]
    %v9439 = vld [vmem:[#allocation8 + $0xb80] sm:$0xff]
    %v9440 = vld [vmem:[#allocation8 + $0xb88] sm:$0xff]
    %v9441 = vld [vmem:[#allocation8 + $0xb90] sm:$0xff]
    %v9442 = vld [vmem:[#allocation8 + $0xb98] sm:$0xff]
    %v9443 = vld [vmem:[#allocation8 + $0xba0] sm:$0xff]
    %v9444 = vld [vmem:[#allocation8 + $0xba8] sm:$0xff]
    %v9445 = vld [vmem:[#allocation8 + $0xbb0] sm:$0xff]
    %v9446 = vld [vmem:[#allocation8 + $0xbb8] sm:$0xff]
    %v9447 = vld [vmem:[#allocation8 + $0xbc0] sm:$0xff]
    %v9448 = vld [vmem:[#allocation8 + $0xbc8] sm:$0xff]
    %v9449 = vld [vmem:[#allocation8 + $0xbd0] sm:$0xff]
    %v9450 = vld [vmem:[#allocation8 + $0xbd8] sm:$0xff]
    %v9451 = vld [vmem:[#allocation8 + $0xbe0] sm:$0xff]
    %v9452 = vld [vmem:[#allocation8 + $0xbe8] sm:$0xff]
    %v9453 = vld [vmem:[#allocation8 + $0xbf0] sm:$0xff]
    %v9454 = vld [vmem:[#allocation8 + $0xbf8] sm:$0xff]
    %v9455 = vld [vmem:[#allocation8 + $0xc00] sm:$0xff]
    %v9456 = vld [vmem:[#allocation8 + $0xc08] sm:$0xff]
    %v9457 = vld [vmem:[#allocation8 + $0xc10] sm:$0xff]
    %v9458 = vld [vmem:[#allocation8 + $0xc18] sm:$0xff]
    %v9459 = vld [vmem:[#allocation8 + $0xc20] sm:$0xff]
    %v9460 = vld [vmem:[#allocation8 + $0xc28] sm:$0xff]
    %v9461 = vld [vmem:[#allocation8 + $0xc30] sm:$0xff]
    %v9462 = vld [vmem:[#allocation8 + $0xc38] sm:$0xff]
    %v9463 = vld [vmem:[#allocation8 + $0xc40] sm:$0xff]
    %v9464 = vld [vmem:[#allocation8 + $0xc48] sm:$0xff]
    %v9465 = vld [vmem:[#allocation8 + $0xc50] sm:$0xff]
    %v9466 = vld [vmem:[#allocation8 + $0xc58] sm:$0xff]
    %v9467 = vld [vmem:[#allocation8 + $0xc60] sm:$0xff]
    %v9468 = vld [vmem:[#allocation8 + $0xc68] sm:$0xff]
    %v9469 = vld [vmem:[#allocation8 + $0xc70] sm:$0xff]
    %v9470 = vld [vmem:[#allocation8 + $0xc78] sm:$0xff]
    %v9471 = vld [vmem:[#allocation8 + $0xc80] sm:$0xff]
    %v9472 = vld [vmem:[#allocation8 + $0xc88] sm:$0xff]
    %v9473 = vld [vmem:[#allocation8 + $0xc90] sm:$0xff]
    %v9474 = vld [vmem:[#allocation8 + $0xc98] sm:$0xff]
    %v9475 = vld [vmem:[#allocation8 + $0xca0] sm:$0xff]
    %v9476 = vld [vmem:[#allocation8 + $0xca8] sm:$0xff]
    %v9477 = vld [vmem:[#allocation8 + $0xcb0] sm:$0xff]
    %v9478 = vld [vmem:[#allocation8 + $0xcb8] sm:$0xff]
    %v9479 = vld [vmem:[#allocation8 + $0xcc0] sm:$0xff]
    %v9480 = vld [vmem:[#allocation8 + $0xcc8] sm:$0xff]
    %v9481 = vld [vmem:[#allocation8 + $0xcd0] sm:$0xff]
    %v9482 = vld [vmem:[#allocation8 + $0xcd8] sm:$0xff]
    %v9483 = vld [vmem:[#allocation8 + $0xce0] sm:$0xff]
    %v9484 = vld [vmem:[#allocation8 + $0xce8] sm:$0xff]
    %v9485 = vld [vmem:[#allocation8 + $0xcf0] sm:$0xff]
    %v9486 = vld [vmem:[#allocation8 + $0xcf8] sm:$0xff]
    %v9487 = vld [vmem:[#allocation8 + $0xd00] sm:$0xff]
    %v9488 = vld [vmem:[#allocation8 + $0xd08] sm:$0xff]
    %v9489 = vld [vmem:[#allocation8 + $0xd10] sm:$0xff]
    %v9490 = vld [vmem:[#allocation8 + $0xd18] sm:$0xff]
    %v9491 = vld [vmem:[#allocation8 + $0xd20] sm:$0xff]
    %v9492 = vld [vmem:[#allocation8 + $0xd28] sm:$0xff]
    %v9493 = vld [vmem:[#allocation8 + $0xd30] sm:$0xff]
    %v9494 = vld [vmem:[#allocation8 + $0xd38] sm:$0xff]
    %v9495 = vld [vmem:[#allocation8 + $0xd40] sm:$0xff]
    %v9496 = vld [vmem:[#allocation8 + $0xd48] sm:$0xff]
    %v9497 = vld [vmem:[#allocation8 + $0xd50] sm:$0xff]
    %v9498 = vld [vmem:[#allocation8 + $0xd58] sm:$0xff]
    %v9499 = vld [vmem:[#allocation8 + $0xd60] sm:$0xff]
    %v9500 = vld [vmem:[#allocation8 + $0xd68] sm:$0xff]
    %v9501 = vld [vmem:[#allocation8 + $0xd70] sm:$0xff]
    %v9502 = vld [vmem:[#allocation8 + $0xd78] sm:$0xff]
    %v9503 = vld [vmem:[#allocation8 + $0xd80] sm:$0xff]
    %v9504 = vld [vmem:[#allocation8 + $0xd88] sm:$0xff]
    %v9505 = vld [vmem:[#allocation8 + $0xd90] sm:$0xff]
    %v9506 = vld [vmem:[#allocation8 + $0xd98] sm:$0xff]
    %v9507 = vld [vmem:[#allocation8 + $0xda0] sm:$0xff]
    %v9508 = vld [vmem:[#allocation8 + $0xda8] sm:$0xff]
    %v9509 = vld [vmem:[#allocation8 + $0xdb0] sm:$0xff]
    %v9510 = vld [vmem:[#allocation8 + $0xdb8] sm:$0xff]
    %v9511 = vld [vmem:[#allocation8 + $0xdc0] sm:$0xff]
    %v9512 = vld [vmem:[#allocation8 + $0xdc8] sm:$0xff]
    %v9513 = vld [vmem:[#allocation8 + $0xdd0] sm:$0xff]
    %v9514 = vld [vmem:[#allocation8 + $0xdd8] sm:$0xff]
    %v9515 = vld [vmem:[#allocation8 + $0xde0] sm:$0xff]
    %v9516 = vld [vmem:[#allocation8 + $0xde8] sm:$0xff]
    %v9517 = vld [vmem:[#allocation8 + $0xdf0] sm:$0xff]
    %v9518 = vld [vmem:[#allocation8 + $0xdf8] sm:$0xff]
    %v9519 = vld [vmem:[#allocation8 + $0xe00] sm:$0xff]
    %v9520 = vld [vmem:[#allocation8 + $0xe08] sm:$0xff]
    %v9521 = vld [vmem:[#allocation8 + $0xe10] sm:$0xff]
    %v9522 = vld [vmem:[#allocation8 + $0xe18] sm:$0xff]
    %v9523 = vld [vmem:[#allocation8 + $0xe20] sm:$0xff]
    %v9524 = vld [vmem:[#allocation8 + $0xe28] sm:$0xff]
    %v9525 = vld [vmem:[#allocation8 + $0xe30] sm:$0xff]
    %v9526 = vld [vmem:[#allocation8 + $0xe38] sm:$0xff]
    %v9527 = vld [vmem:[#allocation8 + $0xe40] sm:$0xff]
    %v9528 = vld [vmem:[#allocation8 + $0xe48] sm:$0xff]
    %v9529 = vld [vmem:[#allocation8 + $0xe50] sm:$0xff]
    %v9530 = vld [vmem:[#allocation8 + $0xe58] sm:$0xff]
    %v9531 = vld [vmem:[#allocation8 + $0xe60] sm:$0xff]
    %v9532 = vld [vmem:[#allocation8 + $0xe68] sm:$0xff]
    %v9533 = vld [vmem:[#allocation8 + $0xe70] sm:$0xff]
    %v9534 = vld [vmem:[#allocation8 + $0xe78] sm:$0xff]
    %v9535 = vld [vmem:[#allocation8 + $0xe80] sm:$0xff]
    %v9536 = vld [vmem:[#allocation8 + $0xe88] sm:$0xff]
    %v9537 = vld [vmem:[#allocation8 + $0xe90] sm:$0xff]
    %v9538 = vld [vmem:[#allocation8 + $0xe98] sm:$0xff]
    %v9539 = vld [vmem:[#allocation8 + $0xea0] sm:$0xff]
    %v9540 = vld [vmem:[#allocation8 + $0xea8] sm:$0xff]
    %v9541 = vld [vmem:[#allocation8 + $0xeb0] sm:$0xff]
    %v9542 = vld [vmem:[#allocation8 + $0xeb8] sm:$0xff]
    %v9543 = vld [vmem:[#allocation8 + $0xec0] sm:$0xff]
    %v9544 = vld [vmem:[#allocation8 + $0xec8] sm:$0xff]
    %v9545 = vld [vmem:[#allocation8 + $0xed0] sm:$0xff]
    %v9546 = vld [vmem:[#allocation8 + $0xed8] sm:$0xff]
    %v9547 = vld [vmem:[#allocation8 + $0xee0] sm:$0xff]
    %v9548 = vld [vmem:[#allocation8 + $0xee8] sm:$0xff]
    %v9549 = vld [vmem:[#allocation8 + $0xef0] sm:$0xff]
    %v9550 = vld [vmem:[#allocation8 + $0xef8] sm:$0xff]
    %v9551 = vld [vmem:[#allocation8 + $0xf00] sm:$0xff]
    %v9552 = vld [vmem:[#allocation8 + $0xf08] sm:$0xff]
    %v9553 = vld [vmem:[#allocation8 + $0xf10] sm:$0xff]
    %v9554 = vld [vmem:[#allocation8 + $0xf18] sm:$0xff]
    %v9555 = vld [vmem:[#allocation8 + $0xf20] sm:$0xff]
    %v9556 = vld [vmem:[#allocation8 + $0xf28] sm:$0xff]
    %v9557 = vld [vmem:[#allocation8 + $0xf30] sm:$0xff]
    %v9558 = vld [vmem:[#allocation8 + $0xf38] sm:$0xff]
    %v9559 = vld [vmem:[#allocation8 + $0xf40] sm:$0xff]
    %v9560 = vld [vmem:[#allocation8 + $0xf48] sm:$0xff]
    %v9561 = vld [vmem:[#allocation8 + $0xf50] sm:$0xff]
    %v9562 = vld [vmem:[#allocation8 + $0xf58] sm:$0xff]
    %v9563 = vld [vmem:[#allocation8 + $0xf60] sm:$0xff]
    %v9564 = vld [vmem:[#allocation8 + $0xf68] sm:$0xff]
    %v9565 = vld [vmem:[#allocation8 + $0xf70] sm:$0xff]
    %v9566 = vld [vmem:[#allocation8 + $0xf78] sm:$0xff]
    %v9567 = vld [vmem:[#allocation8 + $0xf80] sm:$0xff]
    %v9568 = vld [vmem:[#allocation8 + $0xf88] sm:$0xff]
    %v9569 = vld [vmem:[#allocation8 + $0xf90] sm:$0xff]
    %v9570 = vld [vmem:[#allocation8 + $0xf98] sm:$0xff]
    %v9571 = vld [vmem:[#allocation8 + $0xfa0] sm:$0xff]
    %v9572 = vld [vmem:[#allocation8 + $0xfa8] sm:$0xff]
    %v9573 = vld [vmem:[#allocation8 + $0xfb0] sm:$0xff]
    %v9574 = vld [vmem:[#allocation8 + $0xfb8] sm:$0xff]
    %v9575 = vld [vmem:[#allocation8 + $0xfc0] sm:$0xff]
    %v9576 = vld [vmem:[#allocation8 + $0xfc8] sm:$0xff]
    %v9577 = vld [vmem:[#allocation8 + $0xfd0] sm:$0xff]
    %v9578 = vld [vmem:[#allocation8 + $0xfd8] sm:$0xff]
    %v9579 = vld [vmem:[#allocation8 + $0xfe0] sm:$0xff]
    %v9580 = vld [vmem:[#allocation8 + $0xfe8] sm:$0xff]
    %v9581 = vld [vmem:[#allocation8 + $0xff0] sm:$0xff]
    %v9582 = vld [vmem:[#allocation8 + $0xff8] sm:$0xff]
    %v9583 = vld [vmem:[#allocation10] sm:$0xff]
    %v9585 = vlaneseq
    %v9586 = vshrl.u32 %v9585, 7
    %v9587 = vsub.s32 0, %v9586
    %v9588 = vrot.slane %v9583, %v9587
    %v9589 = vlaneseq
    %v9590 = vshrl.u32 %v9589, 7
    %v9591 = vsub.s32 1, %v9590
    %v9592 = vrot.slane %v9583, %v9591
    %v9593 = vlaneseq
    %v9594 = vshrl.u32 %v9593, 7
    %v9595 = vsub.s32 2, %v9594
    %v9596 = vrot.slane %v9583, %v9595
    %v9597 = vlaneseq
    %v9598 = vshrl.u32 %v9597, 7
    %v9599 = vsub.s32 3, %v9598
    %v9600 = vrot.slane %v9583, %v9599
    %v9601 = vlaneseq
    %v9602 = vshrl.u32 %v9601, 7
    %v9603 = vsub.s32 4, %v9602
    %v9604 = vrot.slane %v9583, %v9603
    %v9605 = vlaneseq
    %v9606 = vshrl.u32 %v9605, 7
    %v9607 = vsub.s32 5, %v9606
    %v9608 = vrot.slane %v9583, %v9607
    %v9609 = vlaneseq
    %v9610 = vshrl.u32 %v9609, 7
    %v9611 = vsub.s32 6, %v9610
    %v9612 = vrot.slane %v9583, %v9611
    %v9613 = vlaneseq
    %v9614 = vshrl.u32 %v9613, 7
    %v9615 = vsub.s32 7, %v9614
    %v9616 = vrot.slane %v9583, %v9615
    %v10137 = vunpack.c.l.b16 %v9071
    %v10138 = vunpack.c.h.b16 %v9071
    %v10139 = vunpack.c.l.b16 %v9072
    %v10140 = vunpack.c.h.b16 %v9072
    %v10141 = vunpack.c.l.b16 %v9073
    %v10142 = vunpack.c.h.b16 %v9073
    %v10143 = vunpack.c.l.b16 %v9074
    %v10144 = vunpack.c.h.b16 %v9074
    %v10145 = vunpack.c.l.b16 %v9075
    %v10146 = vunpack.c.h.b16 %v9075
    %v10147 = vunpack.c.l.b16 %v9076
    %v10148 = vunpack.c.h.b16 %v9076
    %v10149 = vunpack.c.l.b16 %v9077
    %v10150 = vunpack.c.h.b16 %v9077
    %v10151 = vunpack.c.l.b16 %v9078
    %v10152 = vunpack.c.h.b16 %v9078
    %v10153 = vunpack.c.l.b16 %v9079
    %v10154 = vunpack.c.h.b16 %v9079
    %v10155 = vunpack.c.l.b16 %v9080
    %v10156 = vunpack.c.h.b16 %v9080
    %v10157 = vunpack.c.l.b16 %v9081
    %v10158 = vunpack.c.h.b16 %v9081
    %v10159 = vunpack.c.l.b16 %v9082
    %v10160 = vunpack.c.h.b16 %v9082
    %v10161 = vunpack.c.l.b16 %v9083
    %v10162 = vunpack.c.h.b16 %v9083
    %v10163 = vunpack.c.l.b16 %v9084
    %v10164 = vunpack.c.h.b16 %v9084
    %v10165 = vunpack.c.l.b16 %v9085
    %v10166 = vunpack.c.h.b16 %v9085
    %v10167 = vunpack.c.l.b16 %v9086
    %v10168 = vunpack.c.h.b16 %v9086
    %v10169 = vunpack.c.l.b16 %v9087
    %v10170 = vunpack.c.h.b16 %v9087
    %v10171 = vunpack.c.l.b16 %v9088
    %v10172 = vunpack.c.h.b16 %v9088
    %v10173 = vunpack.c.l.b16 %v9089
    %v10174 = vunpack.c.h.b16 %v9089
    %v10175 = vunpack.c.l.b16 %v9090
    %v10176 = vunpack.c.h.b16 %v9090
    %v10177 = vunpack.c.l.b16 %v9091
    %v10178 = vunpack.c.h.b16 %v9091
    %v10179 = vunpack.c.l.b16 %v9092
    %v10180 = vunpack.c.h.b16 %v9092
    %v10181 = vunpack.c.l.b16 %v9093
    %v10182 = vunpack.c.h.b16 %v9093
    %v10183 = vunpack.c.l.b16 %v9094
    %v10184 = vunpack.c.h.b16 %v9094
    %v10185 = vunpack.c.l.b16 %v9095
    %v10186 = vunpack.c.h.b16 %v9095
    %v10187 = vunpack.c.l.b16 %v9096
    %v10188 = vunpack.c.h.b16 %v9096
    %v10189 = vunpack.c.l.b16 %v9097
    %v10190 = vunpack.c.h.b16 %v9097
    %v10191 = vunpack.c.l.b16 %v9098
    %v10192 = vunpack.c.h.b16 %v9098
    %v10193 = vunpack.c.l.b16 %v9099
    %v10194 = vunpack.c.h.b16 %v9099
    %v10195 = vunpack.c.l.b16 %v9100
    %v10196 = vunpack.c.h.b16 %v9100
    %v10197 = vunpack.c.l.b16 %v9101
    %v10198 = vunpack.c.h.b16 %v9101
    %v10199 = vunpack.c.l.b16 %v9102
    %v10200 = vunpack.c.h.b16 %v9102
    %v10201 = vunpack.c.l.b16 %v9103
    %v10202 = vunpack.c.h.b16 %v9103
    %v10203 = vunpack.c.l.b16 %v9104
    %v10204 = vunpack.c.h.b16 %v9104
    %v10205 = vunpack.c.l.b16 %v9105
    %v10206 = vunpack.c.h.b16 %v9105
    %v10207 = vunpack.c.l.b16 %v9106
    %v10208 = vunpack.c.h.b16 %v9106
    %v10209 = vunpack.c.l.b16 %v9107
    %v10210 = vunpack.c.h.b16 %v9107
    %v10211 = vunpack.c.l.b16 %v9108
    %v10212 = vunpack.c.h.b16 %v9108
    %v10213 = vunpack.c.l.b16 %v9109
    %v10214 = vunpack.c.h.b16 %v9109
    %v10215 = vunpack.c.l.b16 %v9110
    %v10216 = vunpack.c.h.b16 %v9110
    %v10217 = vunpack.c.l.b16 %v9111
    %v10218 = vunpack.c.h.b16 %v9111
    %v10219 = vunpack.c.l.b16 %v9112
    %v10220 = vunpack.c.h.b16 %v9112
    %v10221 = vunpack.c.l.b16 %v9113
    %v10222 = vunpack.c.h.b16 %v9113
    %v10223 = vunpack.c.l.b16 %v9114
    %v10224 = vunpack.c.h.b16 %v9114
    %v10225 = vunpack.c.l.b16 %v9115
    %v10226 = vunpack.c.h.b16 %v9115
    %v10227 = vunpack.c.l.b16 %v9116
    %v10228 = vunpack.c.h.b16 %v9116
    %v10229 = vunpack.c.l.b16 %v9117
    %v10230 = vunpack.c.h.b16 %v9117
    %v10231 = vunpack.c.l.b16 %v9118
    %v10232 = vunpack.c.h.b16 %v9118
    %v10233 = vunpack.c.l.b16 %v9119
    %v10234 = vunpack.c.h.b16 %v9119
    %v10235 = vunpack.c.l.b16 %v9120
    %v10236 = vunpack.c.h.b16 %v9120
    %v10237 = vunpack.c.l.b16 %v9121
    %v10238 = vunpack.c.h.b16 %v9121
    %v10239 = vunpack.c.l.b16 %v9122
    %v10240 = vunpack.c.h.b16 %v9122
    %v10241 = vunpack.c.l.b16 %v9123
    %v10242 = vunpack.c.h.b16 %v9123
    %v10243 = vunpack.c.l.b16 %v9124
    %v10244 = vunpack.c.h.b16 %v9124
    %v10245 = vunpack.c.l.b16 %v9125
    %v10246 = vunpack.c.h.b16 %v9125
    %v10247 = vunpack.c.l.b16 %v9126
    %v10248 = vunpack.c.h.b16 %v9126
    %v10249 = vunpack.c.l.b16 %v9127
    %v10250 = vunpack.c.h.b16 %v9127
    %v10251 = vunpack.c.l.b16 %v9128
    %v10252 = vunpack.c.h.b16 %v9128
    %v10253 = vunpack.c.l.b16 %v9129
    %v10254 = vunpack.c.h.b16 %v9129
    %v10255 = vunpack.c.l.b16 %v9130
    %v10256 = vunpack.c.h.b16 %v9130
    %v10257 = vunpack.c.l.b16 %v9131
    %v10258 = vunpack.c.h.b16 %v9131
    %v10259 = vunpack.c.l.b16 %v9132
    %v10260 = vunpack.c.h.b16 %v9132
    %v10261 = vunpack.c.l.b16 %v9133
    %v10262 = vunpack.c.h.b16 %v9133
    %v10263 = vunpack.c.l.b16 %v9134
    %v10264 = vunpack.c.h.b16 %v9134
    %v10265 = vunpack.c.l.b16 %v9135
    %v10266 = vunpack.c.h.b16 %v9135
    %v10267 = vunpack.c.l.b16 %v9136
    %v10268 = vunpack.c.h.b16 %v9136
    %v10269 = vunpack.c.l.b16 %v9137
    %v10270 = vunpack.c.h.b16 %v9137
    %v10271 = vunpack.c.l.b16 %v9138
    %v10272 = vunpack.c.h.b16 %v9138
    %v10273 = vunpack.c.l.b16 %v9139
    %v10274 = vunpack.c.h.b16 %v9139
    %v10275 = vunpack.c.l.b16 %v9140
    %v10276 = vunpack.c.h.b16 %v9140
    %v10277 = vunpack.c.l.b16 %v9141
    %v10278 = vunpack.c.h.b16 %v9141
    %v10279 = vunpack.c.l.b16 %v9142
    %v10280 = vunpack.c.h.b16 %v9142
    %v10281 = vunpack.c.l.b16 %v9143
    %v10282 = vunpack.c.h.b16 %v9143
    %v10283 = vunpack.c.l.b16 %v9144
    %v10284 = vunpack.c.h.b16 %v9144
    %v10285 = vunpack.c.l.b16 %v9145
    %v10286 = vunpack.c.h.b16 %v9145
    %v10287 = vunpack.c.l.b16 %v9146
    %v10288 = vunpack.c.h.b16 %v9146
    %v10289 = vunpack.c.l.b16 %v9147
    %v10290 = vunpack.c.h.b16 %v9147
    %v10291 = vunpack.c.l.b16 %v9148
    %v10292 = vunpack.c.h.b16 %v9148
    %v10293 = vunpack.c.l.b16 %v9149
    %v10294 = vunpack.c.h.b16 %v9149
    %v10295 = vunpack.c.l.b16 %v9150
    %v10296 = vunpack.c.h.b16 %v9150
    %v10297 = vunpack.c.l.b16 %v9151
    %v10298 = vunpack.c.h.b16 %v9151
    %v10299 = vunpack.c.l.b16 %v9152
    %v10300 = vunpack.c.h.b16 %v9152
    %v10301 = vunpack.c.l.b16 %v9153
    %v10302 = vunpack.c.h.b16 %v9153
    %v10303 = vunpack.c.l.b16 %v9154
    %v10304 = vunpack.c.h.b16 %v9154
    %v10305 = vunpack.c.l.b16 %v9155
    %v10306 = vunpack.c.h.b16 %v9155
    %v10307 = vunpack.c.l.b16 %v9156
    %v10308 = vunpack.c.h.b16 %v9156
    %v10309 = vunpack.c.l.b16 %v9157
    %v10310 = vunpack.c.h.b16 %v9157
    %v10311 = vunpack.c.l.b16 %v9158
    %v10312 = vunpack.c.h.b16 %v9158
    %v10313 = vunpack.c.l.b16 %v9159
    %v10314 = vunpack.c.h.b16 %v9159
    %v10315 = vunpack.c.l.b16 %v9160
    %v10316 = vunpack.c.h.b16 %v9160
    %v10317 = vunpack.c.l.b16 %v9161
    %v10318 = vunpack.c.h.b16 %v9161
    %v10319 = vunpack.c.l.b16 %v9162
    %v10320 = vunpack.c.h.b16 %v9162
    %v10321 = vunpack.c.l.b16 %v9163
    %v10322 = vunpack.c.h.b16 %v9163
    %v10323 = vunpack.c.l.b16 %v9164
    %v10324 = vunpack.c.h.b16 %v9164
    %v10325 = vunpack.c.l.b16 %v9165
    %v10326 = vunpack.c.h.b16 %v9165
    %v10327 = vunpack.c.l.b16 %v9166
    %v10328 = vunpack.c.h.b16 %v9166
    %v10329 = vunpack.c.l.b16 %v9167
    %v10330 = vunpack.c.h.b16 %v9167
    %v10331 = vunpack.c.l.b16 %v9168
    %v10332 = vunpack.c.h.b16 %v9168
    %v10333 = vunpack.c.l.b16 %v9169
    %v10334 = vunpack.c.h.b16 %v9169
    %v10335 = vunpack.c.l.b16 %v9170
    %v10336 = vunpack.c.h.b16 %v9170
    %v10337 = vunpack.c.l.b16 %v9171
    %v10338 = vunpack.c.h.b16 %v9171
    %v10339 = vunpack.c.l.b16 %v9172
    %v10340 = vunpack.c.h.b16 %v9172
    %v10341 = vunpack.c.l.b16 %v9173
    %v10342 = vunpack.c.h.b16 %v9173
    %v10343 = vunpack.c.l.b16 %v9174
    %v10344 = vunpack.c.h.b16 %v9174
    %v10345 = vunpack.c.l.b16 %v9175
    %v10346 = vunpack.c.h.b16 %v9175
    %v10347 = vunpack.c.l.b16 %v9176
    %v10348 = vunpack.c.h.b16 %v9176
    %v10349 = vunpack.c.l.b16 %v9177
    %v10350 = vunpack.c.h.b16 %v9177
    %v10351 = vunpack.c.l.b16 %v9178
    %v10352 = vunpack.c.h.b16 %v9178
    %v10353 = vunpack.c.l.b16 %v9179
    %v10354 = vunpack.c.h.b16 %v9179
    %v10355 = vunpack.c.l.b16 %v9180
    %v10356 = vunpack.c.h.b16 %v9180
    %v10357 = vunpack.c.l.b16 %v9181
    %v10358 = vunpack.c.h.b16 %v9181
    %v10359 = vunpack.c.l.b16 %v9182
    %v10360 = vunpack.c.h.b16 %v9182
    %v10361 = vunpack.c.l.b16 %v9183
    %v10362 = vunpack.c.h.b16 %v9183
    %v10363 = vunpack.c.l.b16 %v9184
    %v10364 = vunpack.c.h.b16 %v9184
    %v10365 = vunpack.c.l.b16 %v9185
    %v10366 = vunpack.c.h.b16 %v9185
    %v10367 = vunpack.c.l.b16 %v9186
    %v10368 = vunpack.c.h.b16 %v9186
    %v10369 = vunpack.c.l.b16 %v9187
    %v10370 = vunpack.c.h.b16 %v9187
    %v10371 = vunpack.c.l.b16 %v9188
    %v10372 = vunpack.c.h.b16 %v9188
    %v10373 = vunpack.c.l.b16 %v9189
    %v10374 = vunpack.c.h.b16 %v9189
    %v10375 = vunpack.c.l.b16 %v9190
    %v10376 = vunpack.c.h.b16 %v9190
    %v10377 = vunpack.c.l.b16 %v9191
    %v10378 = vunpack.c.h.b16 %v9191
    %v10379 = vunpack.c.l.b16 %v9192
    %v10380 = vunpack.c.h.b16 %v9192
    %v10381 = vunpack.c.l.b16 %v9193
    %v10382 = vunpack.c.h.b16 %v9193
    %v10383 = vunpack.c.l.b16 %v9194
    %v10384 = vunpack.c.h.b16 %v9194
    %v10385 = vunpack.c.l.b16 %v9195
    %v10386 = vunpack.c.h.b16 %v9195
    %v10387 = vunpack.c.l.b16 %v9196
    %v10388 = vunpack.c.h.b16 %v9196
    %v10389 = vunpack.c.l.b16 %v9197
    %v10390 = vunpack.c.h.b16 %v9197
    %v10391 = vunpack.c.l.b16 %v9198
    %v10392 = vunpack.c.h.b16 %v9198
    %v10393 = vunpack.c.l.b16 %v9199
    %v10394 = vunpack.c.h.b16 %v9199
    %v10395 = vunpack.c.l.b16 %v9200
    %v10396 = vunpack.c.h.b16 %v9200
    %v10397 = vunpack.c.l.b16 %v9201
    %v10398 = vunpack.c.h.b16 %v9201
    %v10399 = vunpack.c.l.b16 %v9202
    %v10400 = vunpack.c.h.b16 %v9202
    %v10401 = vunpack.c.l.b16 %v9203
    %v10402 = vunpack.c.h.b16 %v9203
    %v10403 = vunpack.c.l.b16 %v9204
    %v10404 = vunpack.c.h.b16 %v9204
    %v10405 = vunpack.c.l.b16 %v9205
    %v10406 = vunpack.c.h.b16 %v9205
    %v10407 = vunpack.c.l.b16 %v9206
    %v10408 = vunpack.c.h.b16 %v9206
    %v10409 = vunpack.c.l.b16 %v9207
    %v10410 = vunpack.c.h.b16 %v9207
    %v10411 = vunpack.c.l.b16 %v9208
    %v10412 = vunpack.c.h.b16 %v9208
    %v10413 = vunpack.c.l.b16 %v9209
    %v10414 = vunpack.c.h.b16 %v9209
    %v10415 = vunpack.c.l.b16 %v9210
    %v10416 = vunpack.c.h.b16 %v9210
    %v10417 = vunpack.c.l.b16 %v9211
    %v10418 = vunpack.c.h.b16 %v9211
    %v10419 = vunpack.c.l.b16 %v9212
    %v10420 = vunpack.c.h.b16 %v9212
    %v10421 = vunpack.c.l.b16 %v9213
    %v10422 = vunpack.c.h.b16 %v9213
    %v10423 = vunpack.c.l.b16 %v9214
    %v10424 = vunpack.c.h.b16 %v9214
    %v10425 = vunpack.c.l.b16 %v9215
    %v10426 = vunpack.c.h.b16 %v9215
    %v10427 = vunpack.c.l.b16 %v9216
    %v10428 = vunpack.c.h.b16 %v9216
    %v10429 = vunpack.c.l.b16 %v9217
    %v10430 = vunpack.c.h.b16 %v9217
    %v10431 = vunpack.c.l.b16 %v9218
    %v10432 = vunpack.c.h.b16 %v9218
    %v10433 = vunpack.c.l.b16 %v9219
    %v10434 = vunpack.c.h.b16 %v9219
    %v10435 = vunpack.c.l.b16 %v9220
    %v10436 = vunpack.c.h.b16 %v9220
    %v10437 = vunpack.c.l.b16 %v9221
    %v10438 = vunpack.c.h.b16 %v9221
    %v10439 = vunpack.c.l.b16 %v9222
    %v10440 = vunpack.c.h.b16 %v9222
    %v10441 = vunpack.c.l.b16 %v9223
    %v10442 = vunpack.c.h.b16 %v9223
    %v10443 = vunpack.c.l.b16 %v9224
    %v10444 = vunpack.c.h.b16 %v9224
    %v10445 = vunpack.c.l.b16 %v9225
    %v10446 = vunpack.c.h.b16 %v9225
    %v10447 = vunpack.c.l.b16 %v9226
    %v10448 = vunpack.c.h.b16 %v9226
    %v10449 = vunpack.c.l.b16 %v9227
    %v10450 = vunpack.c.h.b16 %v9227
    %v10451 = vunpack.c.l.b16 %v9228
    %v10452 = vunpack.c.h.b16 %v9228
    %v10453 = vunpack.c.l.b16 %v9229
    %v10454 = vunpack.c.h.b16 %v9229
    %v10455 = vunpack.c.l.b16 %v9230
    %v10456 = vunpack.c.h.b16 %v9230
    %v10457 = vunpack.c.l.b16 %v9231
    %v10458 = vunpack.c.h.b16 %v9231
    %v10459 = vunpack.c.l.b16 %v9232
    %v10460 = vunpack.c.h.b16 %v9232
    %v10461 = vunpack.c.l.b16 %v9233
    %v10462 = vunpack.c.h.b16 %v9233
    %v10463 = vunpack.c.l.b16 %v9234
    %v10464 = vunpack.c.h.b16 %v9234
    %v10465 = vunpack.c.l.b16 %v9235
    %v10466 = vunpack.c.h.b16 %v9235
    %v10467 = vunpack.c.l.b16 %v9236
    %v10468 = vunpack.c.h.b16 %v9236
    %v10469 = vunpack.c.l.b16 %v9237
    %v10470 = vunpack.c.h.b16 %v9237
    %v10471 = vunpack.c.l.b16 %v9238
    %v10472 = vunpack.c.h.b16 %v9238
    %v10473 = vunpack.c.l.b16 %v9239
    %v10474 = vunpack.c.h.b16 %v9239
    %v10475 = vunpack.c.l.b16 %v9240
    %v10476 = vunpack.c.h.b16 %v9240
    %v10477 = vunpack.c.l.b16 %v9241
    %v10478 = vunpack.c.h.b16 %v9241
    %v10479 = vunpack.c.l.b16 %v9242
    %v10480 = vunpack.c.h.b16 %v9242
    %v10481 = vunpack.c.l.b16 %v9243
    %v10482 = vunpack.c.h.b16 %v9243
    %v10483 = vunpack.c.l.b16 %v9244
    %v10484 = vunpack.c.h.b16 %v9244
    %v10485 = vunpack.c.l.b16 %v9245
    %v10486 = vunpack.c.h.b16 %v9245
    %v10487 = vunpack.c.l.b16 %v9246
    %v10488 = vunpack.c.h.b16 %v9246
    %v10489 = vunpack.c.l.b16 %v9247
    %v10490 = vunpack.c.h.b16 %v9247
    %v10491 = vunpack.c.l.b16 %v9248
    %v10492 = vunpack.c.h.b16 %v9248
    %v10493 = vunpack.c.l.b16 %v9249
    %v10494 = vunpack.c.h.b16 %v9249
    %v10495 = vunpack.c.l.b16 %v9250
    %v10496 = vunpack.c.h.b16 %v9250
    %v10497 = vunpack.c.l.b16 %v9251
    %v10498 = vunpack.c.h.b16 %v9251
    %v10499 = vunpack.c.l.b16 %v9252
    %v10500 = vunpack.c.h.b16 %v9252
    %v10501 = vunpack.c.l.b16 %v9253
    %v10502 = vunpack.c.h.b16 %v9253
    %v10503 = vunpack.c.l.b16 %v9254
    %v10504 = vunpack.c.h.b16 %v9254
    %v10505 = vunpack.c.l.b16 %v9255
    %v10506 = vunpack.c.h.b16 %v9255
    %v10507 = vunpack.c.l.b16 %v9256
    %v10508 = vunpack.c.h.b16 %v9256
    %v10509 = vunpack.c.l.b16 %v9257
    %v10510 = vunpack.c.h.b16 %v9257
    %v10511 = vunpack.c.l.b16 %v9258
    %v10512 = vunpack.c.h.b16 %v9258
    %v10513 = vunpack.c.l.b16 %v9259
    %v10514 = vunpack.c.h.b16 %v9259
    %v10515 = vunpack.c.l.b16 %v9260
    %v10516 = vunpack.c.h.b16 %v9260
    %v10517 = vunpack.c.l.b16 %v9261
    %v10518 = vunpack.c.h.b16 %v9261
    %v10519 = vunpack.c.l.b16 %v9262
    %v10520 = vunpack.c.h.b16 %v9262
    %v10521 = vunpack.c.l.b16 %v9263
    %v10522 = vunpack.c.h.b16 %v9263
    %v10523 = vunpack.c.l.b16 %v9264
    %v10524 = vunpack.c.h.b16 %v9264
    %v10525 = vunpack.c.l.b16 %v9265
    %v10526 = vunpack.c.h.b16 %v9265
    %v10527 = vunpack.c.l.b16 %v9266
    %v10528 = vunpack.c.h.b16 %v9266
    %v10529 = vunpack.c.l.b16 %v9267
    %v10530 = vunpack.c.h.b16 %v9267
    %v10531 = vunpack.c.l.b16 %v9268
    %v10532 = vunpack.c.h.b16 %v9268
    %v10533 = vunpack.c.l.b16 %v9269
    %v10534 = vunpack.c.h.b16 %v9269
    %v10535 = vunpack.c.l.b16 %v9270
    %v10536 = vunpack.c.h.b16 %v9270
    %v10537 = vunpack.c.l.b16 %v9271
    %v10538 = vunpack.c.h.b16 %v9271
    %v10539 = vunpack.c.l.b16 %v9272
    %v10540 = vunpack.c.h.b16 %v9272
    %v10541 = vunpack.c.l.b16 %v9273
    %v10542 = vunpack.c.h.b16 %v9273
    %v10543 = vunpack.c.l.b16 %v9274
    %v10544 = vunpack.c.h.b16 %v9274
    %v10545 = vunpack.c.l.b16 %v9275
    %v10546 = vunpack.c.h.b16 %v9275
    %v10547 = vunpack.c.l.b16 %v9276
    %v10548 = vunpack.c.h.b16 %v9276
    %v10549 = vunpack.c.l.b16 %v9277
    %v10550 = vunpack.c.h.b16 %v9277
    %v10551 = vunpack.c.l.b16 %v9278
    %v10552 = vunpack.c.h.b16 %v9278
    %v10553 = vunpack.c.l.b16 %v9279
    %v10554 = vunpack.c.h.b16 %v9279
    %v10555 = vunpack.c.l.b16 %v9280
    %v10556 = vunpack.c.h.b16 %v9280
    %v10557 = vunpack.c.l.b16 %v9281
    %v10558 = vunpack.c.h.b16 %v9281
    %v10559 = vunpack.c.l.b16 %v9282
    %v10560 = vunpack.c.h.b16 %v9282
    %v10561 = vunpack.c.l.b16 %v9283
    %v10562 = vunpack.c.h.b16 %v9283
    %v10563 = vunpack.c.l.b16 %v9284
    %v10564 = vunpack.c.h.b16 %v9284
    %v10565 = vunpack.c.l.b16 %v9285
    %v10566 = vunpack.c.h.b16 %v9285
    %v10567 = vunpack.c.l.b16 %v9286
    %v10568 = vunpack.c.h.b16 %v9286
    %v10569 = vunpack.c.l.b16 %v9287
    %v10570 = vunpack.c.h.b16 %v9287
    %v10571 = vunpack.c.l.b16 %v9288
    %v10572 = vunpack.c.h.b16 %v9288
    %v10573 = vunpack.c.l.b16 %v9289
    %v10574 = vunpack.c.h.b16 %v9289
    %v10575 = vunpack.c.l.b16 %v9290
    %v10576 = vunpack.c.h.b16 %v9290
    %v10577 = vunpack.c.l.b16 %v9291
    %v10578 = vunpack.c.h.b16 %v9291
    %v10579 = vunpack.c.l.b16 %v9292
    %v10580 = vunpack.c.h.b16 %v9292
    %v10581 = vunpack.c.l.b16 %v9293
    %v10582 = vunpack.c.h.b16 %v9293
    %v10583 = vunpack.c.l.b16 %v9294
    %v10584 = vunpack.c.h.b16 %v9294
    %v10585 = vunpack.c.l.b16 %v9295
    %v10586 = vunpack.c.h.b16 %v9295
    %v10587 = vunpack.c.l.b16 %v9296
    %v10588 = vunpack.c.h.b16 %v9296
    %v10589 = vunpack.c.l.b16 %v9297
    %v10590 = vunpack.c.h.b16 %v9297
    %v10591 = vunpack.c.l.b16 %v9298
    %v10592 = vunpack.c.h.b16 %v9298
    %v10593 = vunpack.c.l.b16 %v9299
    %v10594 = vunpack.c.h.b16 %v9299
    %v10595 = vunpack.c.l.b16 %v9300
    %v10596 = vunpack.c.h.b16 %v9300
    %v10597 = vunpack.c.l.b16 %v9301
    %v10598 = vunpack.c.h.b16 %v9301
    %v10599 = vunpack.c.l.b16 %v9302
    %v10600 = vunpack.c.h.b16 %v9302
    %v10601 = vunpack.c.l.b16 %v9303
    %v10602 = vunpack.c.h.b16 %v9303
    %v10603 = vunpack.c.l.b16 %v9304
    %v10604 = vunpack.c.h.b16 %v9304
    %v10605 = vunpack.c.l.b16 %v9305
    %v10606 = vunpack.c.h.b16 %v9305
    %v10607 = vunpack.c.l.b16 %v9306
    %v10608 = vunpack.c.h.b16 %v9306
    %v10609 = vunpack.c.l.b16 %v9307
    %v10610 = vunpack.c.h.b16 %v9307
    %v10611 = vunpack.c.l.b16 %v9308
    %v10612 = vunpack.c.h.b16 %v9308
    %v10613 = vunpack.c.l.b16 %v9309
    %v10614 = vunpack.c.h.b16 %v9309
    %v10615 = vunpack.c.l.b16 %v9310
    %v10616 = vunpack.c.h.b16 %v9310
    %v10617 = vunpack.c.l.b16 %v9311
    %v10618 = vunpack.c.h.b16 %v9311
    %v10619 = vunpack.c.l.b16 %v9312
    %v10620 = vunpack.c.h.b16 %v9312
    %v10621 = vunpack.c.l.b16 %v9313
    %v10622 = vunpack.c.h.b16 %v9313
    %v10623 = vunpack.c.l.b16 %v9314
    %v10624 = vunpack.c.h.b16 %v9314
    %v10625 = vunpack.c.l.b16 %v9315
    %v10626 = vunpack.c.h.b16 %v9315
    %v10627 = vunpack.c.l.b16 %v9316
    %v10628 = vunpack.c.h.b16 %v9316
    %v10629 = vunpack.c.l.b16 %v9317
    %v10630 = vunpack.c.h.b16 %v9317
    %v10631 = vunpack.c.l.b16 %v9318
    %v10632 = vunpack.c.h.b16 %v9318
    %v10633 = vunpack.c.l.b16 %v9319
    %v10634 = vunpack.c.h.b16 %v9319
    %v10635 = vunpack.c.l.b16 %v9320
    %v10636 = vunpack.c.h.b16 %v9320
    %v10637 = vunpack.c.l.b16 %v9321
    %v10638 = vunpack.c.h.b16 %v9321
    %v10639 = vunpack.c.l.b16 %v9322
    %v10640 = vunpack.c.h.b16 %v9322
    %v10641 = vunpack.c.l.b16 %v9323
    %v10642 = vunpack.c.h.b16 %v9323
    %v10643 = vunpack.c.l.b16 %v9324
    %v10644 = vunpack.c.h.b16 %v9324
    %v10645 = vunpack.c.l.b16 %v9325
    %v10646 = vunpack.c.h.b16 %v9325
    %v10647 = vunpack.c.l.b16 %v9326
    %v10648 = vunpack.c.h.b16 %v9326
    %v10649 = vunpack.c.l.b16 %v9327
    %v10650 = vunpack.c.h.b16 %v9327
    %v10651 = vunpack.c.l.b16 %v9328
    %v10652 = vunpack.c.h.b16 %v9328
    %v10653 = vunpack.c.l.b16 %v9329
    %v10654 = vunpack.c.h.b16 %v9329
    %v10655 = vunpack.c.l.b16 %v9330
    %v10656 = vunpack.c.h.b16 %v9330
    %v10657 = vunpack.c.l.b16 %v9331
    %v10658 = vunpack.c.h.b16 %v9331
    %v10659 = vunpack.c.l.b16 %v9332
    %v10660 = vunpack.c.h.b16 %v9332
    %v10661 = vunpack.c.l.b16 %v9333
    %v10662 = vunpack.c.h.b16 %v9333
    %v10663 = vunpack.c.l.b16 %v9334
    %v10664 = vunpack.c.h.b16 %v9334
    %v10665 = vunpack.c.l.b16 %v9335
    %v10666 = vunpack.c.h.b16 %v9335
    %v10667 = vunpack.c.l.b16 %v9336
    %v10668 = vunpack.c.h.b16 %v9336
    %v10669 = vunpack.c.l.b16 %v9337
    %v10670 = vunpack.c.h.b16 %v9337
    %v10671 = vunpack.c.l.b16 %v9338
    %v10672 = vunpack.c.h.b16 %v9338
    %v10673 = vunpack.c.l.b16 %v9339
    %v10674 = vunpack.c.h.b16 %v9339
    %v10675 = vunpack.c.l.b16 %v9340
    %v10676 = vunpack.c.h.b16 %v9340
    %v10677 = vunpack.c.l.b16 %v9341
    %v10678 = vunpack.c.h.b16 %v9341
    %v10679 = vunpack.c.l.b16 %v9342
    %v10680 = vunpack.c.h.b16 %v9342
    %v10681 = vunpack.c.l.b16 %v9343
    %v10682 = vunpack.c.h.b16 %v9343
    %v10683 = vunpack.c.l.b16 %v9344
    %v10684 = vunpack.c.h.b16 %v9344
    %v10685 = vunpack.c.l.b16 %v9345
    %v10686 = vunpack.c.h.b16 %v9345
    %v10687 = vunpack.c.l.b16 %v9346
    %v10688 = vunpack.c.h.b16 %v9346
    %v10689 = vunpack.c.l.b16 %v9347
    %v10690 = vunpack.c.h.b16 %v9347
    %v10691 = vunpack.c.l.b16 %v9348
    %v10692 = vunpack.c.h.b16 %v9348
    %v10693 = vunpack.c.l.b16 %v9349
    %v10694 = vunpack.c.h.b16 %v9349
    %v10695 = vunpack.c.l.b16 %v9350
    %v10696 = vunpack.c.h.b16 %v9350
    %v10697 = vunpack.c.l.b16 %v9351
    %v10698 = vunpack.c.h.b16 %v9351
    %v10699 = vunpack.c.l.b16 %v9352
    %v10700 = vunpack.c.h.b16 %v9352
    %v10701 = vunpack.c.l.b16 %v9353
    %v10702 = vunpack.c.h.b16 %v9353
    %v10703 = vunpack.c.l.b16 %v9354
    %v10704 = vunpack.c.h.b16 %v9354
    %v10705 = vunpack.c.l.b16 %v9355
    %v10706 = vunpack.c.h.b16 %v9355
    %v10707 = vunpack.c.l.b16 %v9356
    %v10708 = vunpack.c.h.b16 %v9356
    %v10709 = vunpack.c.l.b16 %v9357
    %v10710 = vunpack.c.h.b16 %v9357
    %v10711 = vunpack.c.l.b16 %v9358
    %v10712 = vunpack.c.h.b16 %v9358
    %v10713 = vunpack.c.l.b16 %v9359
    %v10714 = vunpack.c.h.b16 %v9359
    %v10715 = vunpack.c.l.b16 %v9360
    %v10716 = vunpack.c.h.b16 %v9360
    %v10717 = vunpack.c.l.b16 %v9361
    %v10718 = vunpack.c.h.b16 %v9361
    %v10719 = vunpack.c.l.b16 %v9362
    %v10720 = vunpack.c.h.b16 %v9362
    %v10721 = vunpack.c.l.b16 %v9363
    %v10722 = vunpack.c.h.b16 %v9363
    %v10723 = vunpack.c.l.b16 %v9364
    %v10724 = vunpack.c.h.b16 %v9364
    %v10725 = vunpack.c.l.b16 %v9365
    %v10726 = vunpack.c.h.b16 %v9365
    %v10727 = vunpack.c.l.b16 %v9366
    %v10728 = vunpack.c.h.b16 %v9366
    %v10729 = vunpack.c.l.b16 %v9367
    %v10730 = vunpack.c.h.b16 %v9367
    %v10731 = vunpack.c.l.b16 %v9368
    %v10732 = vunpack.c.h.b16 %v9368
    %v10733 = vunpack.c.l.b16 %v9369
    %v10734 = vunpack.c.h.b16 %v9369
    %v10735 = vunpack.c.l.b16 %v9370
    %v10736 = vunpack.c.h.b16 %v9370
    %v10737 = vunpack.c.l.b16 %v9371
    %v10738 = vunpack.c.h.b16 %v9371
    %v10739 = vunpack.c.l.b16 %v9372
    %v10740 = vunpack.c.h.b16 %v9372
    %v10741 = vunpack.c.l.b16 %v9373
    %v10742 = vunpack.c.h.b16 %v9373
    %v10743 = vunpack.c.l.b16 %v9374
    %v10744 = vunpack.c.h.b16 %v9374
    %v10745 = vunpack.c.l.b16 %v9375
    %v10746 = vunpack.c.h.b16 %v9375
    %v10747 = vunpack.c.l.b16 %v9376
    %v10748 = vunpack.c.h.b16 %v9376
    %v10749 = vunpack.c.l.b16 %v9377
    %v10750 = vunpack.c.h.b16 %v9377
    %v10751 = vunpack.c.l.b16 %v9378
    %v10752 = vunpack.c.h.b16 %v9378
    %v10753 = vunpack.c.l.b16 %v9379
    %v10754 = vunpack.c.h.b16 %v9379
    %v10755 = vunpack.c.l.b16 %v9380
    %v10756 = vunpack.c.h.b16 %v9380
    %v10757 = vunpack.c.l.b16 %v9381
    %v10758 = vunpack.c.h.b16 %v9381
    %v10759 = vunpack.c.l.b16 %v9382
    %v10760 = vunpack.c.h.b16 %v9382
    %v10761 = vunpack.c.l.b16 %v9383
    %v10762 = vunpack.c.h.b16 %v9383
    %v10763 = vunpack.c.l.b16 %v9384
    %v10764 = vunpack.c.h.b16 %v9384
    %v10765 = vunpack.c.l.b16 %v9385
    %v10766 = vunpack.c.h.b16 %v9385
    %v10767 = vunpack.c.l.b16 %v9386
    %v10768 = vunpack.c.h.b16 %v9386
    %v10769 = vunpack.c.l.b16 %v9387
    %v10770 = vunpack.c.h.b16 %v9387
    %v10771 = vunpack.c.l.b16 %v9388
    %v10772 = vunpack.c.h.b16 %v9388
    %v10773 = vunpack.c.l.b16 %v9389
    %v10774 = vunpack.c.h.b16 %v9389
    %v10775 = vunpack.c.l.b16 %v9390
    %v10776 = vunpack.c.h.b16 %v9390
    %v10777 = vunpack.c.l.b16 %v9391
    %v10778 = vunpack.c.h.b16 %v9391
    %v10779 = vunpack.c.l.b16 %v9392
    %v10780 = vunpack.c.h.b16 %v9392
    %v10781 = vunpack.c.l.b16 %v9393
    %v10782 = vunpack.c.h.b16 %v9393
    %v10783 = vunpack.c.l.b16 %v9394
    %v10784 = vunpack.c.h.b16 %v9394
    %v10785 = vunpack.c.l.b16 %v9395
    %v10786 = vunpack.c.h.b16 %v9395
    %v10787 = vunpack.c.l.b16 %v9396
    %v10788 = vunpack.c.h.b16 %v9396
    %v10789 = vunpack.c.l.b16 %v9397
    %v10790 = vunpack.c.h.b16 %v9397
    %v10791 = vunpack.c.l.b16 %v9398
    %v10792 = vunpack.c.h.b16 %v9398
    %v10793 = vunpack.c.l.b16 %v9399
    %v10794 = vunpack.c.h.b16 %v9399
    %v10795 = vunpack.c.l.b16 %v9400
    %v10796 = vunpack.c.h.b16 %v9400
    %v10797 = vunpack.c.l.b16 %v9401
    %v10798 = vunpack.c.h.b16 %v9401
    %v10799 = vunpack.c.l.b16 %v9402
    %v10800 = vunpack.c.h.b16 %v9402
    %v10801 = vunpack.c.l.b16 %v9403
    %v10802 = vunpack.c.h.b16 %v9403
    %v10803 = vunpack.c.l.b16 %v9404
    %v10804 = vunpack.c.h.b16 %v9404
    %v10805 = vunpack.c.l.b16 %v9405
    %v10806 = vunpack.c.h.b16 %v9405
    %v10807 = vunpack.c.l.b16 %v9406
    %v10808 = vunpack.c.h.b16 %v9406
    %v10809 = vunpack.c.l.b16 %v9407
    %v10810 = vunpack.c.h.b16 %v9407
    %v10811 = vunpack.c.l.b16 %v9408
    %v10812 = vunpack.c.h.b16 %v9408
    %v10813 = vunpack.c.l.b16 %v9409
    %v10814 = vunpack.c.h.b16 %v9409
    %v10815 = vunpack.c.l.b16 %v9410
    %v10816 = vunpack.c.h.b16 %v9410
    %v10817 = vunpack.c.l.b16 %v9411
    %v10818 = vunpack.c.h.b16 %v9411
    %v10819 = vunpack.c.l.b16 %v9412
    %v10820 = vunpack.c.h.b16 %v9412
    %v10821 = vunpack.c.l.b16 %v9413
    %v10822 = vunpack.c.h.b16 %v9413
    %v10823 = vunpack.c.l.b16 %v9414
    %v10824 = vunpack.c.h.b16 %v9414
    %v10825 = vunpack.c.l.b16 %v9415
    %v10826 = vunpack.c.h.b16 %v9415
    %v10827 = vunpack.c.l.b16 %v9416
    %v10828 = vunpack.c.h.b16 %v9416
    %v10829 = vunpack.c.l.b16 %v9417
    %v10830 = vunpack.c.h.b16 %v9417
    %v10831 = vunpack.c.l.b16 %v9418
    %v10832 = vunpack.c.h.b16 %v9418
    %v10833 = vunpack.c.l.b16 %v9419
    %v10834 = vunpack.c.h.b16 %v9419
    %v10835 = vunpack.c.l.b16 %v9420
    %v10836 = vunpack.c.h.b16 %v9420
    %v10837 = vunpack.c.l.b16 %v9421
    %v10838 = vunpack.c.h.b16 %v9421
    %v10839 = vunpack.c.l.b16 %v9422
    %v10840 = vunpack.c.h.b16 %v9422
    %v10841 = vunpack.c.l.b16 %v9423
    %v10842 = vunpack.c.h.b16 %v9423
    %v10843 = vunpack.c.l.b16 %v9424
    %v10844 = vunpack.c.h.b16 %v9424
    %v10845 = vunpack.c.l.b16 %v9425
    %v10846 = vunpack.c.h.b16 %v9425
    %v10847 = vunpack.c.l.b16 %v9426
    %v10848 = vunpack.c.h.b16 %v9426
    %v10849 = vunpack.c.l.b16 %v9427
    %v10850 = vunpack.c.h.b16 %v9427
    %v10851 = vunpack.c.l.b16 %v9428
    %v10852 = vunpack.c.h.b16 %v9428
    %v10853 = vunpack.c.l.b16 %v9429
    %v10854 = vunpack.c.h.b16 %v9429
    %v10855 = vunpack.c.l.b16 %v9430
    %v10856 = vunpack.c.h.b16 %v9430
    %v10857 = vunpack.c.l.b16 %v9431
    %v10858 = vunpack.c.h.b16 %v9431
    %v10859 = vunpack.c.l.b16 %v9432
    %v10860 = vunpack.c.h.b16 %v9432
    %v10861 = vunpack.c.l.b16 %v9433
    %v10862 = vunpack.c.h.b16 %v9433
    %v10863 = vunpack.c.l.b16 %v9434
    %v10864 = vunpack.c.h.b16 %v9434
    %v10865 = vunpack.c.l.b16 %v9435
    %v10866 = vunpack.c.h.b16 %v9435
    %v10867 = vunpack.c.l.b16 %v9436
    %v10868 = vunpack.c.h.b16 %v9436
    %v10869 = vunpack.c.l.b16 %v9437
    %v10870 = vunpack.c.h.b16 %v9437
    %v10871 = vunpack.c.l.b16 %v9438
    %v10872 = vunpack.c.h.b16 %v9438
    %v10873 = vunpack.c.l.b16 %v9439
    %v10874 = vunpack.c.h.b16 %v9439
    %v10875 = vunpack.c.l.b16 %v9440
    %v10876 = vunpack.c.h.b16 %v9440
    %v10877 = vunpack.c.l.b16 %v9441
    %v10878 = vunpack.c.h.b16 %v9441
    %v10879 = vunpack.c.l.b16 %v9442
    %v10880 = vunpack.c.h.b16 %v9442
    %v10881 = vunpack.c.l.b16 %v9443
    %v10882 = vunpack.c.h.b16 %v9443
    %v10883 = vunpack.c.l.b16 %v9444
    %v10884 = vunpack.c.h.b16 %v9444
    %v10885 = vunpack.c.l.b16 %v9445
    %v10886 = vunpack.c.h.b16 %v9445
    %v10887 = vunpack.c.l.b16 %v9446
    %v10888 = vunpack.c.h.b16 %v9446
    %v10889 = vunpack.c.l.b16 %v9447
    %v10890 = vunpack.c.h.b16 %v9447
    %v10891 = vunpack.c.l.b16 %v9448
    %v10892 = vunpack.c.h.b16 %v9448
    %v10893 = vunpack.c.l.b16 %v9449
    %v10894 = vunpack.c.h.b16 %v9449
    %v10895 = vunpack.c.l.b16 %v9450
    %v10896 = vunpack.c.h.b16 %v9450
    %v10897 = vunpack.c.l.b16 %v9451
    %v10898 = vunpack.c.h.b16 %v9451
    %v10899 = vunpack.c.l.b16 %v9452
    %v10900 = vunpack.c.h.b16 %v9452
    %v10901 = vunpack.c.l.b16 %v9453
    %v10902 = vunpack.c.h.b16 %v9453
    %v10903 = vunpack.c.l.b16 %v9454
    %v10904 = vunpack.c.h.b16 %v9454
    %v10905 = vunpack.c.l.b16 %v9455
    %v10906 = vunpack.c.h.b16 %v9455
    %v10907 = vunpack.c.l.b16 %v9456
    %v10908 = vunpack.c.h.b16 %v9456
    %v10909 = vunpack.c.l.b16 %v9457
    %v10910 = vunpack.c.h.b16 %v9457
    %v10911 = vunpack.c.l.b16 %v9458
    %v10912 = vunpack.c.h.b16 %v9458
    %v10913 = vunpack.c.l.b16 %v9459
    %v10914 = vunpack.c.h.b16 %v9459
    %v10915 = vunpack.c.l.b16 %v9460
    %v10916 = vunpack.c.h.b16 %v9460
    %v10917 = vunpack.c.l.b16 %v9461
    %v10918 = vunpack.c.h.b16 %v9461
    %v10919 = vunpack.c.l.b16 %v9462
    %v10920 = vunpack.c.h.b16 %v9462
    %v10921 = vunpack.c.l.b16 %v9463
    %v10922 = vunpack.c.h.b16 %v9463
    %v10923 = vunpack.c.l.b16 %v9464
    %v10924 = vunpack.c.h.b16 %v9464
    %v10925 = vunpack.c.l.b16 %v9465
    %v10926 = vunpack.c.h.b16 %v9465
    %v10927 = vunpack.c.l.b16 %v9466
    %v10928 = vunpack.c.h.b16 %v9466
    %v10929 = vunpack.c.l.b16 %v9467
    %v10930 = vunpack.c.h.b16 %v9467
    %v10931 = vunpack.c.l.b16 %v9468
    %v10932 = vunpack.c.h.b16 %v9468
    %v10933 = vunpack.c.l.b16 %v9469
    %v10934 = vunpack.c.h.b16 %v9469
    %v10935 = vunpack.c.l.b16 %v9470
    %v10936 = vunpack.c.h.b16 %v9470
    %v10937 = vunpack.c.l.b16 %v9471
    %v10938 = vunpack.c.h.b16 %v9471
    %v10939 = vunpack.c.l.b16 %v9472
    %v10940 = vunpack.c.h.b16 %v9472
    %v10941 = vunpack.c.l.b16 %v9473
    %v10942 = vunpack.c.h.b16 %v9473
    %v10943 = vunpack.c.l.b16 %v9474
    %v10944 = vunpack.c.h.b16 %v9474
    %v10945 = vunpack.c.l.b16 %v9475
    %v10946 = vunpack.c.h.b16 %v9475
    %v10947 = vunpack.c.l.b16 %v9476
    %v10948 = vunpack.c.h.b16 %v9476
    %v10949 = vunpack.c.l.b16 %v9477
    %v10950 = vunpack.c.h.b16 %v9477
    %v10951 = vunpack.c.l.b16 %v9478
    %v10952 = vunpack.c.h.b16 %v9478
    %v10953 = vunpack.c.l.b16 %v9479
    %v10954 = vunpack.c.h.b16 %v9479
    %v10955 = vunpack.c.l.b16 %v9480
    %v10956 = vunpack.c.h.b16 %v9480
    %v10957 = vunpack.c.l.b16 %v9481
    %v10958 = vunpack.c.h.b16 %v9481
    %v10959 = vunpack.c.l.b16 %v9482
    %v10960 = vunpack.c.h.b16 %v9482
    %v10961 = vunpack.c.l.b16 %v9483
    %v10962 = vunpack.c.h.b16 %v9483
    %v10963 = vunpack.c.l.b16 %v9484
    %v10964 = vunpack.c.h.b16 %v9484
    %v10965 = vunpack.c.l.b16 %v9485
    %v10966 = vunpack.c.h.b16 %v9485
    %v10967 = vunpack.c.l.b16 %v9486
    %v10968 = vunpack.c.h.b16 %v9486
    %v10969 = vunpack.c.l.b16 %v9487
    %v10970 = vunpack.c.h.b16 %v9487
    %v10971 = vunpack.c.l.b16 %v9488
    %v10972 = vunpack.c.h.b16 %v9488
    %v10973 = vunpack.c.l.b16 %v9489
    %v10974 = vunpack.c.h.b16 %v9489
    %v10975 = vunpack.c.l.b16 %v9490
    %v10976 = vunpack.c.h.b16 %v9490
    %v10977 = vunpack.c.l.b16 %v9491
    %v10978 = vunpack.c.h.b16 %v9491
    %v10979 = vunpack.c.l.b16 %v9492
    %v10980 = vunpack.c.h.b16 %v9492
    %v10981 = vunpack.c.l.b16 %v9493
    %v10982 = vunpack.c.h.b16 %v9493
    %v10983 = vunpack.c.l.b16 %v9494
    %v10984 = vunpack.c.h.b16 %v9494
    %v10985 = vunpack.c.l.b16 %v9495
    %v10986 = vunpack.c.h.b16 %v9495
    %v10987 = vunpack.c.l.b16 %v9496
    %v10988 = vunpack.c.h.b16 %v9496
    %v10989 = vunpack.c.l.b16 %v9497
    %v10990 = vunpack.c.h.b16 %v9497
    %v10991 = vunpack.c.l.b16 %v9498
    %v10992 = vunpack.c.h.b16 %v9498
    %v10993 = vunpack.c.l.b16 %v9499
    %v10994 = vunpack.c.h.b16 %v9499
    %v10995 = vunpack.c.l.b16 %v9500
    %v10996 = vunpack.c.h.b16 %v9500
    %v10997 = vunpack.c.l.b16 %v9501
    %v10998 = vunpack.c.h.b16 %v9501
    %v10999 = vunpack.c.l.b16 %v9502
    %v11000 = vunpack.c.h.b16 %v9502
    %v11001 = vunpack.c.l.b16 %v9503
    %v11002 = vunpack.c.h.b16 %v9503
    %v11003 = vunpack.c.l.b16 %v9504
    %v11004 = vunpack.c.h.b16 %v9504
    %v11005 = vunpack.c.l.b16 %v9505
    %v11006 = vunpack.c.h.b16 %v9505
    %v11007 = vunpack.c.l.b16 %v9506
    %v11008 = vunpack.c.h.b16 %v9506
    %v11009 = vunpack.c.l.b16 %v9507
    %v11010 = vunpack.c.h.b16 %v9507
    %v11011 = vunpack.c.l.b16 %v9508
    %v11012 = vunpack.c.h.b16 %v9508
    %v11013 = vunpack.c.l.b16 %v9509
    %v11014 = vunpack.c.h.b16 %v9509
    %v11015 = vunpack.c.l.b16 %v9510
    %v11016 = vunpack.c.h.b16 %v9510
    %v11017 = vunpack.c.l.b16 %v9511
    %v11018 = vunpack.c.h.b16 %v9511
    %v11019 = vunpack.c.l.b16 %v9512
    %v11020 = vunpack.c.h.b16 %v9512
    %v11021 = vunpack.c.l.b16 %v9513
    %v11022 = vunpack.c.h.b16 %v9513
    %v11023 = vunpack.c.l.b16 %v9514
    %v11024 = vunpack.c.h.b16 %v9514
    %v11025 = vunpack.c.l.b16 %v9515
    %v11026 = vunpack.c.h.b16 %v9515
    %v11027 = vunpack.c.l.b16 %v9516
    %v11028 = vunpack.c.h.b16 %v9516
    %v11029 = vunpack.c.l.b16 %v9517
    %v11030 = vunpack.c.h.b16 %v9517
    %v11031 = vunpack.c.l.b16 %v9518
    %v11032 = vunpack.c.h.b16 %v9518
    %v11033 = vunpack.c.l.b16 %v9519
    %v11034 = vunpack.c.h.b16 %v9519
    %v11035 = vunpack.c.l.b16 %v9520
    %v11036 = vunpack.c.h.b16 %v9520
    %v11037 = vunpack.c.l.b16 %v9521
    %v11038 = vunpack.c.h.b16 %v9521
    %v11039 = vunpack.c.l.b16 %v9522
    %v11040 = vunpack.c.h.b16 %v9522
    %v11041 = vunpack.c.l.b16 %v9523
    %v11042 = vunpack.c.h.b16 %v9523
    %v11043 = vunpack.c.l.b16 %v9524
    %v11044 = vunpack.c.h.b16 %v9524
    %v11045 = vunpack.c.l.b16 %v9525
    %v11046 = vunpack.c.h.b16 %v9525
    %v11047 = vunpack.c.l.b16 %v9526
    %v11048 = vunpack.c.h.b16 %v9526
    %v11049 = vunpack.c.l.b16 %v9527
    %v11050 = vunpack.c.h.b16 %v9527
    %v11051 = vunpack.c.l.b16 %v9528
    %v11052 = vunpack.c.h.b16 %v9528
    %v11053 = vunpack.c.l.b16 %v9529
    %v11054 = vunpack.c.h.b16 %v9529
    %v11055 = vunpack.c.l.b16 %v9530
    %v11056 = vunpack.c.h.b16 %v9530
    %v11057 = vunpack.c.l.b16 %v9531
    %v11058 = vunpack.c.h.b16 %v9531
    %v11059 = vunpack.c.l.b16 %v9532
    %v11060 = vunpack.c.h.b16 %v9532
    %v11061 = vunpack.c.l.b16 %v9533
    %v11062 = vunpack.c.h.b16 %v9533
    %v11063 = vunpack.c.l.b16 %v9534
    %v11064 = vunpack.c.h.b16 %v9534
    %v11065 = vunpack.c.l.b16 %v9535
    %v11066 = vunpack.c.h.b16 %v9535
    %v11067 = vunpack.c.l.b16 %v9536
    %v11068 = vunpack.c.h.b16 %v9536
    %v11069 = vunpack.c.l.b16 %v9537
    %v11070 = vunpack.c.h.b16 %v9537
    %v11071 = vunpack.c.l.b16 %v9538
    %v11072 = vunpack.c.h.b16 %v9538
    %v11073 = vunpack.c.l.b16 %v9539
    %v11074 = vunpack.c.h.b16 %v9539
    %v11075 = vunpack.c.l.b16 %v9540
    %v11076 = vunpack.c.h.b16 %v9540
    %v11077 = vunpack.c.l.b16 %v9541
    %v11078 = vunpack.c.h.b16 %v9541
    %v11079 = vunpack.c.l.b16 %v9542
    %v11080 = vunpack.c.h.b16 %v9542
    %v11081 = vunpack.c.l.b16 %v9543
    %v11082 = vunpack.c.h.b16 %v9543
    %v11083 = vunpack.c.l.b16 %v9544
    %v11084 = vunpack.c.h.b16 %v9544
    %v11085 = vunpack.c.l.b16 %v9545
    %v11086 = vunpack.c.h.b16 %v9545
    %v11087 = vunpack.c.l.b16 %v9546
    %v11088 = vunpack.c.h.b16 %v9546
    %v11089 = vunpack.c.l.b16 %v9547
    %v11090 = vunpack.c.h.b16 %v9547
    %v11091 = vunpack.c.l.b16 %v9548
    %v11092 = vunpack.c.h.b16 %v9548
    %v11093 = vunpack.c.l.b16 %v9549
    %v11094 = vunpack.c.h.b16 %v9549
    %v11095 = vunpack.c.l.b16 %v9550
    %v11096 = vunpack.c.h.b16 %v9550
    %v11097 = vunpack.c.l.b16 %v9551
    %v11098 = vunpack.c.h.b16 %v9551
    %v11099 = vunpack.c.l.b16 %v9552
    %v11100 = vunpack.c.h.b16 %v9552
    %v11101 = vunpack.c.l.b16 %v9553
    %v11102 = vunpack.c.h.b16 %v9553
    %v11103 = vunpack.c.l.b16 %v9554
    %v11104 = vunpack.c.h.b16 %v9554
    %v11105 = vunpack.c.l.b16 %v9555
    %v11106 = vunpack.c.h.b16 %v9555
    %v11107 = vunpack.c.l.b16 %v9556
    %v11108 = vunpack.c.h.b16 %v9556
    %v11109 = vunpack.c.l.b16 %v9557
    %v11110 = vunpack.c.h.b16 %v9557
    %v11111 = vunpack.c.l.b16 %v9558
    %v11112 = vunpack.c.h.b16 %v9558
    %v11113 = vunpack.c.l.b16 %v9559
    %v11114 = vunpack.c.h.b16 %v9559
    %v11115 = vunpack.c.l.b16 %v9560
    %v11116 = vunpack.c.h.b16 %v9560
    %v11117 = vunpack.c.l.b16 %v9561
    %v11118 = vunpack.c.h.b16 %v9561
    %v11119 = vunpack.c.l.b16 %v9562
    %v11120 = vunpack.c.h.b16 %v9562
    %v11121 = vunpack.c.l.b16 %v9563
    %v11122 = vunpack.c.h.b16 %v9563
    %v11123 = vunpack.c.l.b16 %v9564
    %v11124 = vunpack.c.h.b16 %v9564
    %v11125 = vunpack.c.l.b16 %v9565
    %v11126 = vunpack.c.h.b16 %v9565
    %v11127 = vunpack.c.l.b16 %v9566
    %v11128 = vunpack.c.h.b16 %v9566
    %v11129 = vunpack.c.l.b16 %v9567
    %v11130 = vunpack.c.h.b16 %v9567
    %v11131 = vunpack.c.l.b16 %v9568
    %v11132 = vunpack.c.h.b16 %v9568
    %v11133 = vunpack.c.l.b16 %v9569
    %v11134 = vunpack.c.h.b16 %v9569
    %v11135 = vunpack.c.l.b16 %v9570
    %v11136 = vunpack.c.h.b16 %v9570
    %v11137 = vunpack.c.l.b16 %v9571
    %v11138 = vunpack.c.h.b16 %v9571
    %v11139 = vunpack.c.l.b16 %v9572
    %v11140 = vunpack.c.h.b16 %v9572
    %v11141 = vunpack.c.l.b16 %v9573
    %v11142 = vunpack.c.h.b16 %v9573
    %v11143 = vunpack.c.l.b16 %v9574
    %v11144 = vunpack.c.h.b16 %v9574
    %v11145 = vunpack.c.l.b16 %v9575
    %v11146 = vunpack.c.h.b16 %v9575
    %v11147 = vunpack.c.l.b16 %v9576
    %v11148 = vunpack.c.h.b16 %v9576
    %v11149 = vunpack.c.l.b16 %v9577
    %v11150 = vunpack.c.h.b16 %v9577
    %v11151 = vunpack.c.l.b16 %v9578
    %v11152 = vunpack.c.h.b16 %v9578
    %v11153 = vunpack.c.l.b16 %v9579
    %v11154 = vunpack.c.h.b16 %v9579
    %v11155 = vunpack.c.l.b16 %v9580
    %v11156 = vunpack.c.h.b16 %v9580
    %v11157 = vunpack.c.l.b16 %v9581
    %v11158 = vunpack.c.h.b16 %v9581
    %v11159 = vunpack.c.l.b16 %v9582
    %v11160 = vunpack.c.h.b16 %v9582
    %v11161 = vpack.c.b16 %v10145, %v10137
    %v11162 = vpack.c.b16 %v10146, %v10138
    %v11163 = vpack.c.b16 %v10147, %v10139
    %v11164 = vpack.c.b16 %v10148, %v10140
    %v11165 = vpack.c.b16 %v10149, %v10141
    %v11166 = vpack.c.b16 %v10150, %v10142
    %v11167 = vpack.c.b16 %v10151, %v10143
    %v11168 = vpack.c.b16 %v10152, %v10144
    %v11169 = vpack.c.b16 %v10161, %v10153
    %v11170 = vpack.c.b16 %v10162, %v10154
    %v11171 = vpack.c.b16 %v10163, %v10155
    %v11172 = vpack.c.b16 %v10164, %v10156
    %v11173 = vpack.c.b16 %v10165, %v10157
    %v11174 = vpack.c.b16 %v10166, %v10158
    %v11175 = vpack.c.b16 %v10167, %v10159
    %v11176 = vpack.c.b16 %v10168, %v10160
    %v11177 = vpack.c.b16 %v10177, %v10169
    %v11178 = vpack.c.b16 %v10178, %v10170
    %v11179 = vpack.c.b16 %v10179, %v10171
    %v11180 = vpack.c.b16 %v10180, %v10172
    %v11181 = vpack.c.b16 %v10181, %v10173
    %v11182 = vpack.c.b16 %v10182, %v10174
    %v11183 = vpack.c.b16 %v10183, %v10175
    %v11184 = vpack.c.b16 %v10184, %v10176
    %v11185 = vpack.c.b16 %v10193, %v10185
    %v11186 = vpack.c.b16 %v10194, %v10186
    %v11187 = vpack.c.b16 %v10195, %v10187
    %v11188 = vpack.c.b16 %v10196, %v10188
    %v11189 = vpack.c.b16 %v10197, %v10189
    %v11190 = vpack.c.b16 %v10198, %v10190
    %v11191 = vpack.c.b16 %v10199, %v10191
    %v11192 = vpack.c.b16 %v10200, %v10192
    %v11193 = vpack.c.b16 %v10209, %v10201
    %v11194 = vpack.c.b16 %v10210, %v10202
    %v11195 = vpack.c.b16 %v10211, %v10203
    %v11196 = vpack.c.b16 %v10212, %v10204
    %v11197 = vpack.c.b16 %v10213, %v10205
    %v11198 = vpack.c.b16 %v10214, %v10206
    %v11199 = vpack.c.b16 %v10215, %v10207
    %v11200 = vpack.c.b16 %v10216, %v10208
    %v11201 = vpack.c.b16 %v10225, %v10217
    %v11202 = vpack.c.b16 %v10226, %v10218
    %v11203 = vpack.c.b16 %v10227, %v10219
    %v11204 = vpack.c.b16 %v10228, %v10220
    %v11205 = vpack.c.b16 %v10229, %v10221
    %v11206 = vpack.c.b16 %v10230, %v10222
    %v11207 = vpack.c.b16 %v10231, %v10223
    %v11208 = vpack.c.b16 %v10232, %v10224
    %v11209 = vpack.c.b16 %v10241, %v10233
    %v11210 = vpack.c.b16 %v10242, %v10234
    %v11211 = vpack.c.b16 %v10243, %v10235
    %v11212 = vpack.c.b16 %v10244, %v10236
    %v11213 = vpack.c.b16 %v10245, %v10237
    %v11214 = vpack.c.b16 %v10246, %v10238
    %v11215 = vpack.c.b16 %v10247, %v10239
    %v11216 = vpack.c.b16 %v10248, %v10240
    %v11217 = vpack.c.b16 %v10257, %v10249
    %v11218 = vpack.c.b16 %v10258, %v10250
    %v11219 = vpack.c.b16 %v10259, %v10251
    %v11220 = vpack.c.b16 %v10260, %v10252
    %v11221 = vpack.c.b16 %v10261, %v10253
    %v11222 = vpack.c.b16 %v10262, %v10254
    %v11223 = vpack.c.b16 %v10263, %v10255
    %v11224 = vpack.c.b16 %v10264, %v10256
    %v11225 = vpack.c.b16 %v10273, %v10265
    %v11226 = vpack.c.b16 %v10274, %v10266
    %v11227 = vpack.c.b16 %v10275, %v10267
    %v11228 = vpack.c.b16 %v10276, %v10268
    %v11229 = vpack.c.b16 %v10277, %v10269
    %v11230 = vpack.c.b16 %v10278, %v10270
    %v11231 = vpack.c.b16 %v10279, %v10271
    %v11232 = vpack.c.b16 %v10280, %v10272
    %v11233 = vpack.c.b16 %v10289, %v10281
    %v11234 = vpack.c.b16 %v10290, %v10282
    %v11235 = vpack.c.b16 %v10291, %v10283
    %v11236 = vpack.c.b16 %v10292, %v10284
    %v11237 = vpack.c.b16 %v10293, %v10285
    %v11238 = vpack.c.b16 %v10294, %v10286
    %v11239 = vpack.c.b16 %v10295, %v10287
    %v11240 = vpack.c.b16 %v10296, %v10288
    %v11241 = vpack.c.b16 %v10305, %v10297
    %v11242 = vpack.c.b16 %v10306, %v10298
    %v11243 = vpack.c.b16 %v10307, %v10299
    %v11244 = vpack.c.b16 %v10308, %v10300
    %v11245 = vpack.c.b16 %v10309, %v10301
    %v11246 = vpack.c.b16 %v10310, %v10302
    %v11247 = vpack.c.b16 %v10311, %v10303
    %v11248 = vpack.c.b16 %v10312, %v10304
    %v11249 = vpack.c.b16 %v10321, %v10313
    %v11250 = vpack.c.b16 %v10322, %v10314
    %v11251 = vpack.c.b16 %v10323, %v10315
    %v11252 = vpack.c.b16 %v10324, %v10316
    %v11253 = vpack.c.b16 %v10325, %v10317
    %v11254 = vpack.c.b16 %v10326, %v10318
    %v11255 = vpack.c.b16 %v10327, %v10319
    %v11256 = vpack.c.b16 %v10328, %v10320
    %v11257 = vpack.c.b16 %v10337, %v10329
    %v11258 = vpack.c.b16 %v10338, %v10330
    %v11259 = vpack.c.b16 %v10339, %v10331
    %v11260 = vpack.c.b16 %v10340, %v10332
    %v11261 = vpack.c.b16 %v10341, %v10333
    %v11262 = vpack.c.b16 %v10342, %v10334
    %v11263 = vpack.c.b16 %v10343, %v10335
    %v11264 = vpack.c.b16 %v10344, %v10336
    %v11265 = vpack.c.b16 %v10353, %v10345
    %v11266 = vpack.c.b16 %v10354, %v10346
    %v11267 = vpack.c.b16 %v10355, %v10347
    %v11268 = vpack.c.b16 %v10356, %v10348
    %v11269 = vpack.c.b16 %v10357, %v10349
    %v11270 = vpack.c.b16 %v10358, %v10350
    %v11271 = vpack.c.b16 %v10359, %v10351
    %v11272 = vpack.c.b16 %v10360, %v10352
    %v11273 = vpack.c.b16 %v10369, %v10361
    %v11274 = vpack.c.b16 %v10370, %v10362
    %v11275 = vpack.c.b16 %v10371, %v10363
    %v11276 = vpack.c.b16 %v10372, %v10364
    %v11277 = vpack.c.b16 %v10373, %v10365
    %v11278 = vpack.c.b16 %v10374, %v10366
    %v11279 = vpack.c.b16 %v10375, %v10367
    %v11280 = vpack.c.b16 %v10376, %v10368
    %v11281 = vpack.c.b16 %v10385, %v10377
    %v11282 = vpack.c.b16 %v10386, %v10378
    %v11283 = vpack.c.b16 %v10387, %v10379
    %v11284 = vpack.c.b16 %v10388, %v10380
    %v11285 = vpack.c.b16 %v10389, %v10381
    %v11286 = vpack.c.b16 %v10390, %v10382
    %v11287 = vpack.c.b16 %v10391, %v10383
    %v11288 = vpack.c.b16 %v10392, %v10384
    %v11289 = vpack.c.b16 %v10401, %v10393
    %v11290 = vpack.c.b16 %v10402, %v10394
    %v11291 = vpack.c.b16 %v10403, %v10395
    %v11292 = vpack.c.b16 %v10404, %v10396
    %v11293 = vpack.c.b16 %v10405, %v10397
    %v11294 = vpack.c.b16 %v10406, %v10398
    %v11295 = vpack.c.b16 %v10407, %v10399
    %v11296 = vpack.c.b16 %v10408, %v10400
    %v11297 = vpack.c.b16 %v10417, %v10409
    %v11298 = vpack.c.b16 %v10418, %v10410
    %v11299 = vpack.c.b16 %v10419, %v10411
    %v11300 = vpack.c.b16 %v10420, %v10412
    %v11301 = vpack.c.b16 %v10421, %v10413
    %v11302 = vpack.c.b16 %v10422, %v10414
    %v11303 = vpack.c.b16 %v10423, %v10415
    %v11304 = vpack.c.b16 %v10424, %v10416
    %v11305 = vpack.c.b16 %v10433, %v10425
    %v11306 = vpack.c.b16 %v10434, %v10426
    %v11307 = vpack.c.b16 %v10435, %v10427
    %v11308 = vpack.c.b16 %v10436, %v10428
    %v11309 = vpack.c.b16 %v10437, %v10429
    %v11310 = vpack.c.b16 %v10438, %v10430
    %v11311 = vpack.c.b16 %v10439, %v10431
    %v11312 = vpack.c.b16 %v10440, %v10432
    %v11313 = vpack.c.b16 %v10449, %v10441
    %v11314 = vpack.c.b16 %v10450, %v10442
    %v11315 = vpack.c.b16 %v10451, %v10443
    %v11316 = vpack.c.b16 %v10452, %v10444
    %v11317 = vpack.c.b16 %v10453, %v10445
    %v11318 = vpack.c.b16 %v10454, %v10446
    %v11319 = vpack.c.b16 %v10455, %v10447
    %v11320 = vpack.c.b16 %v10456, %v10448
    %v11321 = vpack.c.b16 %v10465, %v10457
    %v11322 = vpack.c.b16 %v10466, %v10458
    %v11323 = vpack.c.b16 %v10467, %v10459
    %v11324 = vpack.c.b16 %v10468, %v10460
    %v11325 = vpack.c.b16 %v10469, %v10461
    %v11326 = vpack.c.b16 %v10470, %v10462
    %v11327 = vpack.c.b16 %v10471, %v10463
    %v11328 = vpack.c.b16 %v10472, %v10464
    %v11329 = vpack.c.b16 %v10481, %v10473
    %v11330 = vpack.c.b16 %v10482, %v10474
    %v11331 = vpack.c.b16 %v10483, %v10475
    %v11332 = vpack.c.b16 %v10484, %v10476
    %v11333 = vpack.c.b16 %v10485, %v10477
    %v11334 = vpack.c.b16 %v10486, %v10478
    %v11335 = vpack.c.b16 %v10487, %v10479
    %v11336 = vpack.c.b16 %v10488, %v10480
    %v11337 = vpack.c.b16 %v10497, %v10489
    %v11338 = vpack.c.b16 %v10498, %v10490
    %v11339 = vpack.c.b16 %v10499, %v10491
    %v11340 = vpack.c.b16 %v10500, %v10492
    %v11341 = vpack.c.b16 %v10501, %v10493
    %v11342 = vpack.c.b16 %v10502, %v10494
    %v11343 = vpack.c.b16 %v10503, %v10495
    %v11344 = vpack.c.b16 %v10504, %v10496
    %v11345 = vpack.c.b16 %v10513, %v10505
    %v11346 = vpack.c.b16 %v10514, %v10506
    %v11347 = vpack.c.b16 %v10515, %v10507
    %v11348 = vpack.c.b16 %v10516, %v10508
    %v11349 = vpack.c.b16 %v10517, %v10509
    %v11350 = vpack.c.b16 %v10518, %v10510
    %v11351 = vpack.c.b16 %v10519, %v10511
    %v11352 = vpack.c.b16 %v10520, %v10512
    %v11353 = vpack.c.b16 %v10529, %v10521
    %v11354 = vpack.c.b16 %v10530, %v10522
    %v11355 = vpack.c.b16 %v10531, %v10523
    %v11356 = vpack.c.b16 %v10532, %v10524
    %v11357 = vpack.c.b16 %v10533, %v10525
    %v11358 = vpack.c.b16 %v10534, %v10526
    %v11359 = vpack.c.b16 %v10535, %v10527
    %v11360 = vpack.c.b16 %v10536, %v10528
    %v11361 = vpack.c.b16 %v10545, %v10537
    %v11362 = vpack.c.b16 %v10546, %v10538
    %v11363 = vpack.c.b16 %v10547, %v10539
    %v11364 = vpack.c.b16 %v10548, %v10540
    %v11365 = vpack.c.b16 %v10549, %v10541
    %v11366 = vpack.c.b16 %v10550, %v10542
    %v11367 = vpack.c.b16 %v10551, %v10543
    %v11368 = vpack.c.b16 %v10552, %v10544
    %v11369 = vpack.c.b16 %v10561, %v10553
    %v11370 = vpack.c.b16 %v10562, %v10554
    %v11371 = vpack.c.b16 %v10563, %v10555
    %v11372 = vpack.c.b16 %v10564, %v10556
    %v11373 = vpack.c.b16 %v10565, %v10557
    %v11374 = vpack.c.b16 %v10566, %v10558
    %v11375 = vpack.c.b16 %v10567, %v10559
    %v11376 = vpack.c.b16 %v10568, %v10560
    %v11377 = vpack.c.b16 %v10577, %v10569
    %v11378 = vpack.c.b16 %v10578, %v10570
    %v11379 = vpack.c.b16 %v10579, %v10571
    %v11380 = vpack.c.b16 %v10580, %v10572
    %v11381 = vpack.c.b16 %v10581, %v10573
    %v11382 = vpack.c.b16 %v10582, %v10574
    %v11383 = vpack.c.b16 %v10583, %v10575
    %v11384 = vpack.c.b16 %v10584, %v10576
    %v11385 = vpack.c.b16 %v10593, %v10585
    %v11386 = vpack.c.b16 %v10594, %v10586
    %v11387 = vpack.c.b16 %v10595, %v10587
    %v11388 = vpack.c.b16 %v10596, %v10588
    %v11389 = vpack.c.b16 %v10597, %v10589
    %v11390 = vpack.c.b16 %v10598, %v10590
    %v11391 = vpack.c.b16 %v10599, %v10591
    %v11392 = vpack.c.b16 %v10600, %v10592
    %v11393 = vpack.c.b16 %v10609, %v10601
    %v11394 = vpack.c.b16 %v10610, %v10602
    %v11395 = vpack.c.b16 %v10611, %v10603
    %v11396 = vpack.c.b16 %v10612, %v10604
    %v11397 = vpack.c.b16 %v10613, %v10605
    %v11398 = vpack.c.b16 %v10614, %v10606
    %v11399 = vpack.c.b16 %v10615, %v10607
    %v11400 = vpack.c.b16 %v10616, %v10608
    %v11401 = vpack.c.b16 %v10625, %v10617
    %v11402 = vpack.c.b16 %v10626, %v10618
    %v11403 = vpack.c.b16 %v10627, %v10619
    %v11404 = vpack.c.b16 %v10628, %v10620
    %v11405 = vpack.c.b16 %v10629, %v10621
    %v11406 = vpack.c.b16 %v10630, %v10622
    %v11407 = vpack.c.b16 %v10631, %v10623
    %v11408 = vpack.c.b16 %v10632, %v10624
    %v11409 = vpack.c.b16 %v10641, %v10633
    %v11410 = vpack.c.b16 %v10642, %v10634
    %v11411 = vpack.c.b16 %v10643, %v10635
    %v11412 = vpack.c.b16 %v10644, %v10636
    %v11413 = vpack.c.b16 %v10645, %v10637
    %v11414 = vpack.c.b16 %v10646, %v10638
    %v11415 = vpack.c.b16 %v10647, %v10639
    %v11416 = vpack.c.b16 %v10648, %v10640
    %v11417 = vpack.c.b16 %v10657, %v10649
    %v11418 = vpack.c.b16 %v10658, %v10650
    %v11419 = vpack.c.b16 %v10659, %v10651
    %v11420 = vpack.c.b16 %v10660, %v10652
    %v11421 = vpack.c.b16 %v10661, %v10653
    %v11422 = vpack.c.b16 %v10662, %v10654
    %v11423 = vpack.c.b16 %v10663, %v10655
    %v11424 = vpack.c.b16 %v10664, %v10656
    %v11425 = vpack.c.b16 %v10673, %v10665
    %v11426 = vpack.c.b16 %v10674, %v10666
    %v11427 = vpack.c.b16 %v10675, %v10667
    %v11428 = vpack.c.b16 %v10676, %v10668
    %v11429 = vpack.c.b16 %v10677, %v10669
    %v11430 = vpack.c.b16 %v10678, %v10670
    %v11431 = vpack.c.b16 %v10679, %v10671
    %v11432 = vpack.c.b16 %v10680, %v10672
    %v11433 = vpack.c.b16 %v10689, %v10681
    %v11434 = vpack.c.b16 %v10690, %v10682
    %v11435 = vpack.c.b16 %v10691, %v10683
    %v11436 = vpack.c.b16 %v10692, %v10684
    %v11437 = vpack.c.b16 %v10693, %v10685
    %v11438 = vpack.c.b16 %v10694, %v10686
    %v11439 = vpack.c.b16 %v10695, %v10687
    %v11440 = vpack.c.b16 %v10696, %v10688
    %v11441 = vpack.c.b16 %v10705, %v10697
    %v11442 = vpack.c.b16 %v10706, %v10698
    %v11443 = vpack.c.b16 %v10707, %v10699
    %v11444 = vpack.c.b16 %v10708, %v10700
    %v11445 = vpack.c.b16 %v10709, %v10701
    %v11446 = vpack.c.b16 %v10710, %v10702
    %v11447 = vpack.c.b16 %v10711, %v10703
    %v11448 = vpack.c.b16 %v10712, %v10704
    %v11449 = vpack.c.b16 %v10721, %v10713
    %v11450 = vpack.c.b16 %v10722, %v10714
    %v11451 = vpack.c.b16 %v10723, %v10715
    %v11452 = vpack.c.b16 %v10724, %v10716
    %v11453 = vpack.c.b16 %v10725, %v10717
    %v11454 = vpack.c.b16 %v10726, %v10718
    %v11455 = vpack.c.b16 %v10727, %v10719
    %v11456 = vpack.c.b16 %v10728, %v10720
    %v11457 = vpack.c.b16 %v10737, %v10729
    %v11458 = vpack.c.b16 %v10738, %v10730
    %v11459 = vpack.c.b16 %v10739, %v10731
    %v11460 = vpack.c.b16 %v10740, %v10732
    %v11461 = vpack.c.b16 %v10741, %v10733
    %v11462 = vpack.c.b16 %v10742, %v10734
    %v11463 = vpack.c.b16 %v10743, %v10735
    %v11464 = vpack.c.b16 %v10744, %v10736
    %v11465 = vpack.c.b16 %v10753, %v10745
    %v11466 = vpack.c.b16 %v10754, %v10746
    %v11467 = vpack.c.b16 %v10755, %v10747
    %v11468 = vpack.c.b16 %v10756, %v10748
    %v11469 = vpack.c.b16 %v10757, %v10749
    %v11470 = vpack.c.b16 %v10758, %v10750
    %v11471 = vpack.c.b16 %v10759, %v10751
    %v11472 = vpack.c.b16 %v10760, %v10752
    %v11473 = vpack.c.b16 %v10769, %v10761
    %v11474 = vpack.c.b16 %v10770, %v10762
    %v11475 = vpack.c.b16 %v10771, %v10763
    %v11476 = vpack.c.b16 %v10772, %v10764
    %v11477 = vpack.c.b16 %v10773, %v10765
    %v11478 = vpack.c.b16 %v10774, %v10766
    %v11479 = vpack.c.b16 %v10775, %v10767
    %v11480 = vpack.c.b16 %v10776, %v10768
    %v11481 = vpack.c.b16 %v10785, %v10777
    %v11482 = vpack.c.b16 %v10786, %v10778
    %v11483 = vpack.c.b16 %v10787, %v10779
    %v11484 = vpack.c.b16 %v10788, %v10780
    %v11485 = vpack.c.b16 %v10789, %v10781
    %v11486 = vpack.c.b16 %v10790, %v10782
    %v11487 = vpack.c.b16 %v10791, %v10783
    %v11488 = vpack.c.b16 %v10792, %v10784
    %v11489 = vpack.c.b16 %v10801, %v10793
    %v11490 = vpack.c.b16 %v10802, %v10794
    %v11491 = vpack.c.b16 %v10803, %v10795
    %v11492 = vpack.c.b16 %v10804, %v10796
    %v11493 = vpack.c.b16 %v10805, %v10797
    %v11494 = vpack.c.b16 %v10806, %v10798
    %v11495 = vpack.c.b16 %v10807, %v10799
    %v11496 = vpack.c.b16 %v10808, %v10800
    %v11497 = vpack.c.b16 %v10817, %v10809
    %v11498 = vpack.c.b16 %v10818, %v10810
    %v11499 = vpack.c.b16 %v10819, %v10811
    %v11500 = vpack.c.b16 %v10820, %v10812
    %v11501 = vpack.c.b16 %v10821, %v10813
    %v11502 = vpack.c.b16 %v10822, %v10814
    %v11503 = vpack.c.b16 %v10823, %v10815
    %v11504 = vpack.c.b16 %v10824, %v10816
    %v11505 = vpack.c.b16 %v10833, %v10825
    %v11506 = vpack.c.b16 %v10834, %v10826
    %v11507 = vpack.c.b16 %v10835, %v10827
    %v11508 = vpack.c.b16 %v10836, %v10828
    %v11509 = vpack.c.b16 %v10837, %v10829
    %v11510 = vpack.c.b16 %v10838, %v10830
    %v11511 = vpack.c.b16 %v10839, %v10831
    %v11512 = vpack.c.b16 %v10840, %v10832
    %v11513 = vpack.c.b16 %v10849, %v10841
    %v11514 = vpack.c.b16 %v10850, %v10842
    %v11515 = vpack.c.b16 %v10851, %v10843
    %v11516 = vpack.c.b16 %v10852, %v10844
    %v11517 = vpack.c.b16 %v10853, %v10845
    %v11518 = vpack.c.b16 %v10854, %v10846
    %v11519 = vpack.c.b16 %v10855, %v10847
    %v11520 = vpack.c.b16 %v10856, %v10848
    %v11521 = vpack.c.b16 %v10865, %v10857
    %v11522 = vpack.c.b16 %v10866, %v10858
    %v11523 = vpack.c.b16 %v10867, %v10859
    %v11524 = vpack.c.b16 %v10868, %v10860
    %v11525 = vpack.c.b16 %v10869, %v10861
    %v11526 = vpack.c.b16 %v10870, %v10862
    %v11527 = vpack.c.b16 %v10871, %v10863
    %v11528 = vpack.c.b16 %v10872, %v10864
    %v11529 = vpack.c.b16 %v10881, %v10873
    %v11530 = vpack.c.b16 %v10882, %v10874
    %v11531 = vpack.c.b16 %v10883, %v10875
    %v11532 = vpack.c.b16 %v10884, %v10876
    %v11533 = vpack.c.b16 %v10885, %v10877
    %v11534 = vpack.c.b16 %v10886, %v10878
    %v11535 = vpack.c.b16 %v10887, %v10879
    %v11536 = vpack.c.b16 %v10888, %v10880
    %v11537 = vpack.c.b16 %v10897, %v10889
    %v11538 = vpack.c.b16 %v10898, %v10890
    %v11539 = vpack.c.b16 %v10899, %v10891
    %v11540 = vpack.c.b16 %v10900, %v10892
    %v11541 = vpack.c.b16 %v10901, %v10893
    %v11542 = vpack.c.b16 %v10902, %v10894
    %v11543 = vpack.c.b16 %v10903, %v10895
    %v11544 = vpack.c.b16 %v10904, %v10896
    %v11545 = vpack.c.b16 %v10913, %v10905
    %v11546 = vpack.c.b16 %v10914, %v10906
    %v11547 = vpack.c.b16 %v10915, %v10907
    %v11548 = vpack.c.b16 %v10916, %v10908
    %v11549 = vpack.c.b16 %v10917, %v10909
    %v11550 = vpack.c.b16 %v10918, %v10910
    %v11551 = vpack.c.b16 %v10919, %v10911
    %v11552 = vpack.c.b16 %v10920, %v10912
    %v11553 = vpack.c.b16 %v10929, %v10921
    %v11554 = vpack.c.b16 %v10930, %v10922
    %v11555 = vpack.c.b16 %v10931, %v10923
    %v11556 = vpack.c.b16 %v10932, %v10924
    %v11557 = vpack.c.b16 %v10933, %v10925
    %v11558 = vpack.c.b16 %v10934, %v10926
    %v11559 = vpack.c.b16 %v10935, %v10927
    %v11560 = vpack.c.b16 %v10936, %v10928
    %v11561 = vpack.c.b16 %v10945, %v10937
    %v11562 = vpack.c.b16 %v10946, %v10938
    %v11563 = vpack.c.b16 %v10947, %v10939
    %v11564 = vpack.c.b16 %v10948, %v10940
    %v11565 = vpack.c.b16 %v10949, %v10941
    %v11566 = vpack.c.b16 %v10950, %v10942
    %v11567 = vpack.c.b16 %v10951, %v10943
    %v11568 = vpack.c.b16 %v10952, %v10944
    %v11569 = vpack.c.b16 %v10961, %v10953
    %v11570 = vpack.c.b16 %v10962, %v10954
    %v11571 = vpack.c.b16 %v10963, %v10955
    %v11572 = vpack.c.b16 %v10964, %v10956
    %v11573 = vpack.c.b16 %v10965, %v10957
    %v11574 = vpack.c.b16 %v10966, %v10958
    %v11575 = vpack.c.b16 %v10967, %v10959
    %v11576 = vpack.c.b16 %v10968, %v10960
    %v11577 = vpack.c.b16 %v10977, %v10969
    %v11578 = vpack.c.b16 %v10978, %v10970
    %v11579 = vpack.c.b16 %v10979, %v10971
    %v11580 = vpack.c.b16 %v10980, %v10972
    %v11581 = vpack.c.b16 %v10981, %v10973
    %v11582 = vpack.c.b16 %v10982, %v10974
    %v11583 = vpack.c.b16 %v10983, %v10975
    %v11584 = vpack.c.b16 %v10984, %v10976
    %v11585 = vpack.c.b16 %v10993, %v10985
    %v11586 = vpack.c.b16 %v10994, %v10986
    %v11587 = vpack.c.b16 %v10995, %v10987
    %v11588 = vpack.c.b16 %v10996, %v10988
    %v11589 = vpack.c.b16 %v10997, %v10989
    %v11590 = vpack.c.b16 %v10998, %v10990
    %v11591 = vpack.c.b16 %v10999, %v10991
    %v11592 = vpack.c.b16 %v11000, %v10992
    %v11593 = vpack.c.b16 %v11009, %v11001
    %v11594 = vpack.c.b16 %v11010, %v11002
    %v11595 = vpack.c.b16 %v11011, %v11003
    %v11596 = vpack.c.b16 %v11012, %v11004
    %v11597 = vpack.c.b16 %v11013, %v11005
    %v11598 = vpack.c.b16 %v11014, %v11006
    %v11599 = vpack.c.b16 %v11015, %v11007
    %v11600 = vpack.c.b16 %v11016, %v11008
    %v11601 = vpack.c.b16 %v11025, %v11017
    %v11602 = vpack.c.b16 %v11026, %v11018
    %v11603 = vpack.c.b16 %v11027, %v11019
    %v11604 = vpack.c.b16 %v11028, %v11020
    %v11605 = vpack.c.b16 %v11029, %v11021
    %v11606 = vpack.c.b16 %v11030, %v11022
    %v11607 = vpack.c.b16 %v11031, %v11023
    %v11608 = vpack.c.b16 %v11032, %v11024
    %v11609 = vpack.c.b16 %v11041, %v11033
    %v11610 = vpack.c.b16 %v11042, %v11034
    %v11611 = vpack.c.b16 %v11043, %v11035
    %v11612 = vpack.c.b16 %v11044, %v11036
    %v11613 = vpack.c.b16 %v11045, %v11037
    %v11614 = vpack.c.b16 %v11046, %v11038
    %v11615 = vpack.c.b16 %v11047, %v11039
    %v11616 = vpack.c.b16 %v11048, %v11040
    %v11617 = vpack.c.b16 %v11057, %v11049
    %v11618 = vpack.c.b16 %v11058, %v11050
    %v11619 = vpack.c.b16 %v11059, %v11051
    %v11620 = vpack.c.b16 %v11060, %v11052
    %v11621 = vpack.c.b16 %v11061, %v11053
    %v11622 = vpack.c.b16 %v11062, %v11054
    %v11623 = vpack.c.b16 %v11063, %v11055
    %v11624 = vpack.c.b16 %v11064, %v11056
    %v11625 = vpack.c.b16 %v11073, %v11065
    %v11626 = vpack.c.b16 %v11074, %v11066
    %v11627 = vpack.c.b16 %v11075, %v11067
    %v11628 = vpack.c.b16 %v11076, %v11068
    %v11629 = vpack.c.b16 %v11077, %v11069
    %v11630 = vpack.c.b16 %v11078, %v11070
    %v11631 = vpack.c.b16 %v11079, %v11071
    %v11632 = vpack.c.b16 %v11080, %v11072
    %v11633 = vpack.c.b16 %v11089, %v11081
    %v11634 = vpack.c.b16 %v11090, %v11082
    %v11635 = vpack.c.b16 %v11091, %v11083
    %v11636 = vpack.c.b16 %v11092, %v11084
    %v11637 = vpack.c.b16 %v11093, %v11085
    %v11638 = vpack.c.b16 %v11094, %v11086
    %v11639 = vpack.c.b16 %v11095, %v11087
    %v11640 = vpack.c.b16 %v11096, %v11088
    %v11641 = vpack.c.b16 %v11105, %v11097
    %v11642 = vpack.c.b16 %v11106, %v11098
    %v11643 = vpack.c.b16 %v11107, %v11099
    %v11644 = vpack.c.b16 %v11108, %v11100
    %v11645 = vpack.c.b16 %v11109, %v11101
    %v11646 = vpack.c.b16 %v11110, %v11102
    %v11647 = vpack.c.b16 %v11111, %v11103
    %v11648 = vpack.c.b16 %v11112, %v11104
    %v11649 = vpack.c.b16 %v11121, %v11113
    %v11650 = vpack.c.b16 %v11122, %v11114
    %v11651 = vpack.c.b16 %v11123, %v11115
    %v11652 = vpack.c.b16 %v11124, %v11116
    %v11653 = vpack.c.b16 %v11125, %v11117
    %v11654 = vpack.c.b16 %v11126, %v11118
    %v11655 = vpack.c.b16 %v11127, %v11119
    %v11656 = vpack.c.b16 %v11128, %v11120
    %v11657 = vpack.c.b16 %v11137, %v11129
    %v11658 = vpack.c.b16 %v11138, %v11130
    %v11659 = vpack.c.b16 %v11139, %v11131
    %v11660 = vpack.c.b16 %v11140, %v11132
    %v11661 = vpack.c.b16 %v11141, %v11133
    %v11662 = vpack.c.b16 %v11142, %v11134
    %v11663 = vpack.c.b16 %v11143, %v11135
    %v11664 = vpack.c.b16 %v11144, %v11136
    %v11665 = vpack.c.b16 %v11153, %v11145
    %v11666 = vpack.c.b16 %v11154, %v11146
    %v11667 = vpack.c.b16 %v11155, %v11147
    %v11668 = vpack.c.b16 %v11156, %v11148
    %v11669 = vpack.c.b16 %v11157, %v11149
    %v11670 = vpack.c.b16 %v11158, %v11150
    %v11671 = vpack.c.b16 %v11159, %v11151
    %v11672 = vpack.c.b16 %v11160, %v11152
    %12185 = vmatprep.subr.bf16.mxu0 %v11218
    %12186 = vmatpush1.bf16.msra.mxu0 %v11217
    %12187 = vmatprep.subr.bf16.mxu0 %v11210
    %12188 = vmatpush1.bf16.msra.mxu0 %v11209
    %12189 = vmatprep.subr.bf16.mxu0 %v11202
    %12190 = vmatpush1.bf16.msra.mxu0 %v11201
    %12191 = vmatprep.subr.bf16.mxu0 %v11194
    %12192 = vmatpush1.bf16.msra.mxu0 %v11193
    %12193 = vmatprep.subr.bf16.mxu0 %v11186
    %12194 = vmatpush1.bf16.msra.mxu0 %v11185
    %12195 = vmatprep.subr.bf16.mxu0 %v11178
    %12196 = vmatpush1.bf16.msra.mxu0 %v11177
    %12197 = vmatprep.subr.bf16.mxu0 %v11170
    %12198 = vmatpush1.bf16.msra.mxu0 %v11169
    %12199 = vmatprep.subr.bf16.mxu0 %v11162
    %12200 = vmatpush1.bf16.msra.mxu0 %v11161
    %12201 = vmatprep.subr.bf16.mxu0 %v11282
    %12202 = vmatpush2.bf16.msra.mxu0 %v11281
    %12203 = vmatprep.subr.bf16.mxu0 %v11274
    %12204 = vmatpush2.bf16.msra.mxu0 %v11273
    %12205 = vmatprep.subr.bf16.mxu0 %v11266
    %12206 = vmatpush2.bf16.msra.mxu0 %v11265
    %12207 = vmatprep.subr.bf16.mxu0 %v11258
    %12208 = vmatpush2.bf16.msra.mxu0 %v11257
    %12209 = vmatprep.subr.bf16.mxu0 %v11250
    %12210 = vmatpush2.bf16.msra.mxu0 %v11249
    %12211 = vmatprep.subr.bf16.mxu0 %v11242
    %12212 = vmatpush2.bf16.msra.mxu0 %v11241
    %12213 = vmatprep.subr.bf16.mxu0 %v11234
    %12214 = vmatpush2.bf16.msra.mxu0 %v11233
    %12215 = vmatprep.subr.bf16.mxu0 %v11226
    %12216 = vmatpush2.bf16.msra.mxu0 %v11225
    %12217 = vmatprep.mubr.bf16.mxu0 %v9064
    %12218 = vmatmul.mubr.bf16.gmra.mxu0 %v9063
    %v12219 = vpop.f32.mrf.mxu0
    %v12220 = vadd.f32 %v9588, %v12219
    %v12221 = vpop.f32.mrf.mxu0
    %v12222 = vadd.f32 %v9592, %v12221
    %v12223 = vpop.f32.mrf.mxu0
    %v12224 = vpop.f32.mrf.mxu0
    %12225 = vdwg.mxu0
    %12226 = vmatprep.subr.bf16.mxu0 %v11346
    %12227 = vmatpush1.bf16.msra.mxu0 %v11345
    %12228 = vmatprep.subr.bf16.mxu0 %v11338
    %12229 = vmatpush1.bf16.msra.mxu0 %v11337
    %12230 = vmatprep.subr.bf16.mxu0 %v11330
    %12231 = vmatpush1.bf16.msra.mxu0 %v11329
    %12232 = vmatprep.subr.bf16.mxu0 %v11322
    %12233 = vmatpush1.bf16.msra.mxu0 %v11321
    %12234 = vmatprep.subr.bf16.mxu0 %v11314
    %12235 = vmatpush1.bf16.msra.mxu0 %v11313
    %12236 = vmatprep.subr.bf16.mxu0 %v11306
    %12237 = vmatpush1.bf16.msra.mxu0 %v11305
    %12238 = vmatprep.subr.bf16.mxu0 %v11298
    %12239 = vmatpush1.bf16.msra.mxu0 %v11297
    %12240 = vmatprep.subr.bf16.mxu0 %v11290
    %12241 = vmatpush1.bf16.msra.mxu0 %v11289
    %12242 = vmatprep.subr.bf16.mxu0 %v11410
    %12243 = vmatpush2.bf16.msra.mxu0 %v11409
    %12244 = vmatprep.subr.bf16.mxu0 %v11402
    %12245 = vmatpush2.bf16.msra.mxu0 %v11401
    %12246 = vmatprep.subr.bf16.mxu0 %v11394
    %12247 = vmatpush2.bf16.msra.mxu0 %v11393
    %12248 = vmatprep.subr.bf16.mxu0 %v11386
    %12249 = vmatpush2.bf16.msra.mxu0 %v11385
    %12250 = vmatprep.subr.bf16.mxu0 %v11378
    %12251 = vmatpush2.bf16.msra.mxu0 %v11377
    %12252 = vmatprep.subr.bf16.mxu0 %v11370
    %12253 = vmatpush2.bf16.msra.mxu0 %v11369
    %12254 = vmatprep.subr.bf16.mxu0 %v11362
    %12255 = vmatpush2.bf16.msra.mxu0 %v11361
    %12256 = vmatprep.subr.bf16.mxu0 %v11354
    %12257 = vmatpush2.bf16.msra.mxu0 %v11353
    %12258 = vmatprep.mubr.bf16.mxu0 %v9066
    %12259 = vmatmul.mubr.bf16.gmra.mxu0 %v9065
    %v12260 = vpop.f32.mrf.mxu0
    %v12261 = vadd.f32 %v12220, %v12260
    %v12262 = vpop.f32.mrf.mxu0
    %v12263 = vadd.f32 %v12222, %v12262
    %v12264 = vpop.f32.mrf.mxu0
    %v12265 = vpop.f32.mrf.mxu0
    %12266 = vdwg.mxu0
    %12267 = vmatprep.subr.bf16.mxu0 %v11474
    %12268 = vmatpush1.bf16.msra.mxu0 %v11473
    %12269 = vmatprep.subr.bf16.mxu0 %v11466
    %12270 = vmatpush1.bf16.msra.mxu0 %v11465
    %12271 = vmatprep.subr.bf16.mxu0 %v11458
    %12272 = vmatpush1.bf16.msra.mxu0 %v11457
    %12273 = vmatprep.subr.bf16.mxu0 %v11450
    %12274 = vmatpush1.bf16.msra.mxu0 %v11449
    %12275 = vmatprep.subr.bf16.mxu0 %v11442
    %12276 = vmatpush1.bf16.msra.mxu0 %v11441
    %12277 = vmatprep.subr.bf16.mxu0 %v11434
    %12278 = vmatpush1.bf16.msra.mxu0 %v11433
    %12279 = vmatprep.subr.bf16.mxu0 %v11426
    %12280 = vmatpush1.bf16.msra.mxu0 %v11425
    %12281 = vmatprep.subr.bf16.mxu0 %v11418
    %12282 = vmatpush1.bf16.msra.mxu0 %v11417
    %12283 = vmatprep.subr.bf16.mxu0 %v11538
    %12284 = vmatpush2.bf16.msra.mxu0 %v11537
    %12285 = vmatprep.subr.bf16.mxu0 %v11530
    %12286 = vmatpush2.bf16.msra.mxu0 %v11529
    %12287 = vmatprep.subr.bf16.mxu0 %v11522
    %12288 = vmatpush2.bf16.msra.mxu0 %v11521
    %12289 = vmatprep.subr.bf16.mxu0 %v11514
    %12290 = vmatpush2.bf16.msra.mxu0 %v11513
    %12291 = vmatprep.subr.bf16.mxu0 %v11506
    %12292 = vmatpush2.bf16.msra.mxu0 %v11505
    %12293 = vmatprep.subr.bf16.mxu0 %v11498
    %12294 = vmatpush2.bf16.msra.mxu0 %v11497
    %12295 = vmatprep.subr.bf16.mxu0 %v11490
    %12296 = vmatpush2.bf16.msra.mxu0 %v11489
    %12297 = vmatprep.subr.bf16.mxu0 %v11482
    %12298 = vmatpush2.bf16.msra.mxu0 %v11481
    %12299 = vmatprep.mubr.bf16.mxu0 %v9068
    %12300 = vmatmul.mubr.bf16.gmra.mxu0 %v9067
    %v12301 = vpop.f32.mrf.mxu0
    %v12302 = vadd.f32 %v12261, %v12301
    %v12303 = vpop.f32.mrf.mxu0
    %v12304 = vadd.f32 %v12263, %v12303
    %v12305 = vpop.f32.mrf.mxu0
    %v12306 = vpop.f32.mrf.mxu0
    %12307 = vdwg.mxu0
    %12308 = vmatprep.subr.bf16.mxu0 %v11602
    %12309 = vmatpush1.bf16.msra.mxu0 %v11601
    %12310 = vmatprep.subr.bf16.mxu0 %v11594
    %12311 = vmatpush1.bf16.msra.mxu0 %v11593
    %12312 = vmatprep.subr.bf16.mxu0 %v11586
    %12313 = vmatpush1.bf16.msra.mxu0 %v11585
    %12314 = vmatprep.subr.bf16.mxu0 %v11578
    %12315 = vmatpush1.bf16.msra.mxu0 %v11577
    %12316 = vmatprep.subr.bf16.mxu0 %v11570
    %12317 = vmatpush1.bf16.msra.mxu0 %v11569
    %12318 = vmatprep.subr.bf16.mxu0 %v11562
    %12319 = vmatpush1.bf16.msra.mxu0 %v11561
    %12320 = vmatprep.subr.bf16.mxu0 %v11554
    %12321 = vmatpush1.bf16.msra.mxu0 %v11553
    %12322 = vmatprep.subr.bf16.mxu0 %v11546
    %12323 = vmatpush1.bf16.msra.mxu0 %v11545
    %12324 = vmatprep.subr.bf16.mxu0 %v11666
    %12325 = vmatpush2.bf16.msra.mxu0 %v11665
    %12326 = vmatprep.subr.bf16.mxu0 %v11658
    %12327 = vmatpush2.bf16.msra.mxu0 %v11657
    %12328 = vmatprep.subr.bf16.mxu0 %v11650
    %12329 = vmatpush2.bf16.msra.mxu0 %v11649
    %12330 = vmatprep.subr.bf16.mxu0 %v11642
    %12331 = vmatpush2.bf16.msra.mxu0 %v11641
    %12332 = vmatprep.subr.bf16.mxu0 %v11634
    %12333 = vmatpush2.bf16.msra.mxu0 %v11633
    %12334 = vmatprep.subr.bf16.mxu0 %v11626
    %12335 = vmatpush2.bf16.msra.mxu0 %v11625
    %12336 = vmatprep.subr.bf16.mxu0 %v11618
    %12337 = vmatpush2.bf16.msra.mxu0 %v11617
    %12338 = vmatprep.subr.bf16.mxu0 %v11610
    %12339 = vmatpush2.bf16.msra.mxu0 %v11609
    %12340 = vmatprep.mubr.bf16.mxu0 %v9070
    %12341 = vmatmul.mubr.bf16.gmra.mxu0 %v9069
    %v12342 = vpop.f32.mrf.mxu0
    %v12343 = vadd.f32 %v12302, %v12342
    %v12344 = vpop.f32.mrf.mxu0
    %v12345 = vadd.f32 %v12304, %v12344
    %v12346 = vpop.f32.mrf.mxu0
    %v12347 = vpop.f32.mrf.mxu0
    %12348 = vdwg.mxu0
    %12349 = vmatprep.subr.bf16.mxu0 %v11220
    %12350 = vmatpush1.bf16.msra.mxu0 %v11219
    %12351 = vmatprep.subr.bf16.mxu0 %v11212
    %12352 = vmatpush1.bf16.msra.mxu0 %v11211
    %12353 = vmatprep.subr.bf16.mxu0 %v11204
    %12354 = vmatpush1.bf16.msra.mxu0 %v11203
    %12355 = vmatprep.subr.bf16.mxu0 %v11196
    %12356 = vmatpush1.bf16.msra.mxu0 %v11195
    %12357 = vmatprep.subr.bf16.mxu0 %v11188
    %12358 = vmatpush1.bf16.msra.mxu0 %v11187
    %12359 = vmatprep.subr.bf16.mxu0 %v11180
    %12360 = vmatpush1.bf16.msra.mxu0 %v11179
    %12361 = vmatprep.subr.bf16.mxu0 %v11172
    %12362 = vmatpush1.bf16.msra.mxu0 %v11171
    %12363 = vmatprep.subr.bf16.mxu0 %v11164
    %12364 = vmatpush1.bf16.msra.mxu0 %v11163
    %12365 = vmatprep.subr.bf16.mxu0 %v11284
    %12366 = vmatpush2.bf16.msra.mxu0 %v11283
    %12367 = vmatprep.subr.bf16.mxu0 %v11276
    %12368 = vmatpush2.bf16.msra.mxu0 %v11275
    %12369 = vmatprep.subr.bf16.mxu0 %v11268
    %12370 = vmatpush2.bf16.msra.mxu0 %v11267
    %12371 = vmatprep.subr.bf16.mxu0 %v11260
    %12372 = vmatpush2.bf16.msra.mxu0 %v11259
    %12373 = vmatprep.subr.bf16.mxu0 %v11252
    %12374 = vmatpush2.bf16.msra.mxu0 %v11251
    %12375 = vmatprep.subr.bf16.mxu0 %v11244
    %12376 = vmatpush2.bf16.msra.mxu0 %v11243
    %12377 = vmatprep.subr.bf16.mxu0 %v11236
    %12378 = vmatpush2.bf16.msra.mxu0 %v11235
    %12379 = vmatprep.subr.bf16.mxu0 %v11228
    %12380 = vmatpush2.bf16.msra.mxu0 %v11227
    %12381 = vmatprep.mubr.bf16.mxu0 %v9064
    %12382 = vmatmul.mubr.bf16.gmra.mxu0 %v9063
    %v12383 = vpop.f32.mrf.mxu0
    %v12384 = vadd.f32 %v9596, %v12383
    %v12385 = vpop.f32.mrf.mxu0
    %v12386 = vadd.f32 %v9600, %v12385
    %v12387 = vpop.f32.mrf.mxu0
    %v12388 = vpop.f32.mrf.mxu0
    %12389 = vdwg.mxu0
    %12390 = vmatprep.subr.bf16.mxu0 %v11348
    %12391 = vmatpush1.bf16.msra.mxu0 %v11347
    %12392 = vmatprep.subr.bf16.mxu0 %v11340
    %12393 = vmatpush1.bf16.msra.mxu0 %v11339
    %12394 = vmatprep.subr.bf16.mxu0 %v11332
    %12395 = vmatpush1.bf16.msra.mxu0 %v11331
    %12396 = vmatprep.subr.bf16.mxu0 %v11324
    %12397 = vmatpush1.bf16.msra.mxu0 %v11323
    %12398 = vmatprep.subr.bf16.mxu0 %v11316
    %12399 = vmatpush1.bf16.msra.mxu0 %v11315
    %12400 = vmatprep.subr.bf16.mxu0 %v11308
    %12401 = vmatpush1.bf16.msra.mxu0 %v11307
    %12402 = vmatprep.subr.bf16.mxu0 %v11300
    %12403 = vmatpush1.bf16.msra.mxu0 %v11299
    %12404 = vmatprep.subr.bf16.mxu0 %v11292
    %12405 = vmatpush1.bf16.msra.mxu0 %v11291
    %12406 = vmatprep.subr.bf16.mxu0 %v11412
    %12407 = vmatpush2.bf16.msra.mxu0 %v11411
    %12408 = vmatprep.subr.bf16.mxu0 %v11404
    %12409 = vmatpush2.bf16.msra.mxu0 %v11403
    %12410 = vmatprep.subr.bf16.mxu0 %v11396
    %12411 = vmatpush2.bf16.msra.mxu0 %v11395
    %12412 = vmatprep.subr.bf16.mxu0 %v11388
    %12413 = vmatpush2.bf16.msra.mxu0 %v11387
    %12414 = vmatprep.subr.bf16.mxu0 %v11380
    %12415 = vmatpush2.bf16.msra.mxu0 %v11379
    %12416 = vmatprep.subr.bf16.mxu0 %v11372
    %12417 = vmatpush2.bf16.msra.mxu0 %v11371
    %12418 = vmatprep.subr.bf16.mxu0 %v11364
    %12419 = vmatpush2.bf16.msra.mxu0 %v11363
    %12420 = vmatprep.subr.bf16.mxu0 %v11356
    %12421 = vmatpush2.bf16.msra.mxu0 %v11355
    %12422 = vmatprep.mubr.bf16.mxu0 %v9066
    %12423 = vmatmul.mubr.bf16.gmra.mxu0 %v9065
    %v12424 = vpop.f32.mrf.mxu0
    %v12425 = vadd.f32 %v12384, %v12424
    %v12426 = vpop.f32.mrf.mxu0
    %v12427 = vadd.f32 %v12386, %v12426
    %v12428 = vpop.f32.mrf.mxu0
    %v12429 = vpop.f32.mrf.mxu0
    %12430 = vdwg.mxu0
    %12431 = vmatprep.subr.bf16.mxu0 %v11476
    %12432 = vmatpush1.bf16.msra.mxu0 %v11475
    %12433 = vmatprep.subr.bf16.mxu0 %v11468
    %12434 = vmatpush1.bf16.msra.mxu0 %v11467
    %12435 = vmatprep.subr.bf16.mxu0 %v11460
    %12436 = vmatpush1.bf16.msra.mxu0 %v11459
    %12437 = vmatprep.subr.bf16.mxu0 %v11452
    %12438 = vmatpush1.bf16.msra.mxu0 %v11451
    %12439 = vmatprep.subr.bf16.mxu0 %v11444
    %12440 = vmatpush1.bf16.msra.mxu0 %v11443
    %12441 = vmatprep.subr.bf16.mxu0 %v11436
    %12442 = vmatpush1.bf16.msra.mxu0 %v11435
    %12443 = vmatprep.subr.bf16.mxu0 %v11428
    %12444 = vmatpush1.bf16.msra.mxu0 %v11427
    %12445 = vmatprep.subr.bf16.mxu0 %v11420
    %12446 = vmatpush1.bf16.msra.mxu0 %v11419
    %12447 = vmatprep.subr.bf16.mxu0 %v11540
    %12448 = vmatpush2.bf16.msra.mxu0 %v11539
    %12449 = vmatprep.subr.bf16.mxu0 %v11532
    %12450 = vmatpush2.bf16.msra.mxu0 %v11531
    %12451 = vmatprep.subr.bf16.mxu0 %v11524
    %12452 = vmatpush2.bf16.msra.mxu0 %v11523
    %12453 = vmatprep.subr.bf16.mxu0 %v11516
    %12454 = vmatpush2.bf16.msra.mxu0 %v11515
    %12455 = vmatprep.subr.bf16.mxu0 %v11508
    %12456 = vmatpush2.bf16.msra.mxu0 %v11507
    %12457 = vmatprep.subr.bf16.mxu0 %v11500
    %12458 = vmatpush2.bf16.msra.mxu0 %v11499
    %12459 = vmatprep.subr.bf16.mxu0 %v11492
    %12460 = vmatpush2.bf16.msra.mxu0 %v11491
    %12461 = vmatprep.subr.bf16.mxu0 %v11484
    %12462 = vmatpush2.bf16.msra.mxu0 %v11483
    %12463 = vmatprep.mubr.bf16.mxu0 %v9068
    %12464 = vmatmul.mubr.bf16.gmra.mxu0 %v9067
    %v12465 = vpop.f32.mrf.mxu0
    %v12466 = vadd.f32 %v12425, %v12465
    %v12467 = vpop.f32.mrf.mxu0
    %v12468 = vadd.f32 %v12427, %v12467
    %v12469 = vpop.f32.mrf.mxu0
    %v12470 = vpop.f32.mrf.mxu0
    %12471 = vdwg.mxu0
    %12472 = vmatprep.subr.bf16.mxu0 %v11604
    %12473 = vmatpush1.bf16.msra.mxu0 %v11603
    %12474 = vmatprep.subr.bf16.mxu0 %v11596
    %12475 = vmatpush1.bf16.msra.mxu0 %v11595
    %12476 = vmatprep.subr.bf16.mxu0 %v11588
    %12477 = vmatpush1.bf16.msra.mxu0 %v11587
    %12478 = vmatprep.subr.bf16.mxu0 %v11580
    %12479 = vmatpush1.bf16.msra.mxu0 %v11579
    %12480 = vmatprep.subr.bf16.mxu0 %v11572
    %12481 = vmatpush1.bf16.msra.mxu0 %v11571
    %12482 = vmatprep.subr.bf16.mxu0 %v11564
    %12483 = vmatpush1.bf16.msra.mxu0 %v11563
    %12484 = vmatprep.subr.bf16.mxu0 %v11556
    %12485 = vmatpush1.bf16.msra.mxu0 %v11555
    %12486 = vmatprep.subr.bf16.mxu0 %v11548
    %12487 = vmatpush1.bf16.msra.mxu0 %v11547
    %12488 = vmatprep.subr.bf16.mxu0 %v11668
    %12489 = vmatpush2.bf16.msra.mxu0 %v11667
    %12490 = vmatprep.subr.bf16.mxu0 %v11660
    %12491 = vmatpush2.bf16.msra.mxu0 %v11659
    %12492 = vmatprep.subr.bf16.mxu0 %v11652
    %12493 = vmatpush2.bf16.msra.mxu0 %v11651
    %12494 = vmatprep.subr.bf16.mxu0 %v11644
    %12495 = vmatpush2.bf16.msra.mxu0 %v11643
    %12496 = vmatprep.subr.bf16.mxu0 %v11636
    %12497 = vmatpush2.bf16.msra.mxu0 %v11635
    %12498 = vmatprep.subr.bf16.mxu0 %v11628
    %12499 = vmatpush2.bf16.msra.mxu0 %v11627
    %12500 = vmatprep.subr.bf16.mxu0 %v11620
    %12501 = vmatpush2.bf16.msra.mxu0 %v11619
    %12502 = vmatprep.subr.bf16.mxu0 %v11612
    %12503 = vmatpush2.bf16.msra.mxu0 %v11611
    %12504 = vmatprep.mubr.bf16.mxu0 %v9070
    %12505 = vmatmul.mubr.bf16.gmra.mxu0 %v9069
    %v12506 = vpop.f32.mrf.mxu0
    %v12507 = vadd.f32 %v12466, %v12506
    %v12508 = vpop.f32.mrf.mxu0
    %v12509 = vadd.f32 %v12468, %v12508
    %v12510 = vpop.f32.mrf.mxu0
    %v12511 = vpop.f32.mrf.mxu0
    %12512 = vdwg.mxu0
    %12513 = vmatprep.subr.bf16.mxu0 %v11222
    %12514 = vmatpush1.bf16.msra.mxu0 %v11221
    %12515 = vmatprep.subr.bf16.mxu0 %v11214
    %12516 = vmatpush1.bf16.msra.mxu0 %v11213
    %12517 = vmatprep.subr.bf16.mxu0 %v11206
    %12518 = vmatpush1.bf16.msra.mxu0 %v11205
    %12519 = vmatprep.subr.bf16.mxu0 %v11198
    %12520 = vmatpush1.bf16.msra.mxu0 %v11197
    %12521 = vmatprep.subr.bf16.mxu0 %v11190
    %12522 = vmatpush1.bf16.msra.mxu0 %v11189
    %12523 = vmatprep.subr.bf16.mxu0 %v11182
    %12524 = vmatpush1.bf16.msra.mxu0 %v11181
    %12525 = vmatprep.subr.bf16.mxu0 %v11174
    %12526 = vmatpush1.bf16.msra.mxu0 %v11173
    %12527 = vmatprep.subr.bf16.mxu0 %v11166
    %12528 = vmatpush1.bf16.msra.mxu0 %v11165
    %12529 = vmatprep.subr.bf16.mxu0 %v11286
    %12530 = vmatpush2.bf16.msra.mxu0 %v11285
    %12531 = vmatprep.subr.bf16.mxu0 %v11278
    %12532 = vmatpush2.bf16.msra.mxu0 %v11277
    %12533 = vmatprep.subr.bf16.mxu0 %v11270
    %12534 = vmatpush2.bf16.msra.mxu0 %v11269
    %12535 = vmatprep.subr.bf16.mxu0 %v11262
    %12536 = vmatpush2.bf16.msra.mxu0 %v11261
    %12537 = vmatprep.subr.bf16.mxu0 %v11254
    %12538 = vmatpush2.bf16.msra.mxu0 %v11253
    %12539 = vmatprep.subr.bf16.mxu0 %v11246
    %12540 = vmatpush2.bf16.msra.mxu0 %v11245
    %12541 = vmatprep.subr.bf16.mxu0 %v11238
    %12542 = vmatpush2.bf16.msra.mxu0 %v11237
    %12543 = vmatprep.subr.bf16.mxu0 %v11230
    %12544 = vmatpush2.bf16.msra.mxu0 %v11229
    %12545 = vmatprep.mubr.bf16.mxu0 %v9064
    %12546 = vmatmul.mubr.bf16.gmra.mxu0 %v9063
    %v12547 = vpop.f32.mrf.mxu0
    %v12548 = vadd.f32 %v9604, %v12547
    %v12549 = vpop.f32.mrf.mxu0
    %v12550 = vadd.f32 %v9608, %v12549
    %v12551 = vpop.f32.mrf.mxu0
    %v12552 = vpop.f32.mrf.mxu0
    %12553 = vdwg.mxu0
    %12554 = vmatprep.subr.bf16.mxu0 %v11350
    %12555 = vmatpush1.bf16.msra.mxu0 %v11349
    %12556 = vmatprep.subr.bf16.mxu0 %v11342
    %12557 = vmatpush1.bf16.msra.mxu0 %v11341
    %12558 = vmatprep.subr.bf16.mxu0 %v11334
    %12559 = vmatpush1.bf16.msra.mxu0 %v11333
    %12560 = vmatprep.subr.bf16.mxu0 %v11326
    %12561 = vmatpush1.bf16.msra.mxu0 %v11325
    %12562 = vmatprep.subr.bf16.mxu0 %v11318
    %12563 = vmatpush1.bf16.msra.mxu0 %v11317
    %12564 = vmatprep.subr.bf16.mxu0 %v11310
    %12565 = vmatpush1.bf16.msra.mxu0 %v11309
    %12566 = vmatprep.subr.bf16.mxu0 %v11302
    %12567 = vmatpush1.bf16.msra.mxu0 %v11301
    %12568 = vmatprep.subr.bf16.mxu0 %v11294
    %12569 = vmatpush1.bf16.msra.mxu0 %v11293
    %12570 = vmatprep.subr.bf16.mxu0 %v11414
    %12571 = vmatpush2.bf16.msra.mxu0 %v11413
    %12572 = vmatprep.subr.bf16.mxu0 %v11406
    %12573 = vmatpush2.bf16.msra.mxu0 %v11405
    %12574 = vmatprep.subr.bf16.mxu0 %v11398
    %12575 = vmatpush2.bf16.msra.mxu0 %v11397
    %12576 = vmatprep.subr.bf16.mxu0 %v11390
    %12577 = vmatpush2.bf16.msra.mxu0 %v11389
    %12578 = vmatprep.subr.bf16.mxu0 %v11382
    %12579 = vmatpush2.bf16.msra.mxu0 %v11381
    %12580 = vmatprep.subr.bf16.mxu0 %v11374
    %12581 = vmatpush2.bf16.msra.mxu0 %v11373
    %12582 = vmatprep.subr.bf16.mxu0 %v11366
    %12583 = vmatpush2.bf16.msra.mxu0 %v11365
    %12584 = vmatprep.subr.bf16.mxu0 %v11358
    %12585 = vmatpush2.bf16.msra.mxu0 %v11357
    %12586 = vmatprep.mubr.bf16.mxu0 %v9066
    %12587 = vmatmul.mubr.bf16.gmra.mxu0 %v9065
    %v12588 = vpop.f32.mrf.mxu0
    %v12589 = vadd.f32 %v12548, %v12588
    %v12590 = vpop.f32.mrf.mxu0
    %v12591 = vadd.f32 %v12550, %v12590
    %v12592 = vpop.f32.mrf.mxu0
    %v12593 = vpop.f32.mrf.mxu0
    %12594 = vdwg.mxu0
    %12595 = vmatprep.subr.bf16.mxu0 %v11478
    %12596 = vmatpush1.bf16.msra.mxu0 %v11477
    %12597 = vmatprep.subr.bf16.mxu0 %v11470
    %12598 = vmatpush1.bf16.msra.mxu0 %v11469
    %12599 = vmatprep.subr.bf16.mxu0 %v11462
    %12600 = vmatpush1.bf16.msra.mxu0 %v11461
    %12601 = vmatprep.subr.bf16.mxu0 %v11454
    %12602 = vmatpush1.bf16.msra.mxu0 %v11453
    %12603 = vmatprep.subr.bf16.mxu0 %v11446
    %12604 = vmatpush1.bf16.msra.mxu0 %v11445
    %12605 = vmatprep.subr.bf16.mxu0 %v11438
    %12606 = vmatpush1.bf16.msra.mxu0 %v11437
    %12607 = vmatprep.subr.bf16.mxu0 %v11430
    %12608 = vmatpush1.bf16.msra.mxu0 %v11429
    %12609 = vmatprep.subr.bf16.mxu0 %v11422
    %12610 = vmatpush1.bf16.msra.mxu0 %v11421
    %12611 = vmatprep.subr.bf16.mxu0 %v11542
    %12612 = vmatpush2.bf16.msra.mxu0 %v11541
    %12613 = vmatprep.subr.bf16.mxu0 %v11534
    %12614 = vmatpush2.bf16.msra.mxu0 %v11533
    %12615 = vmatprep.subr.bf16.mxu0 %v11526
    %12616 = vmatpush2.bf16.msra.mxu0 %v11525
    %12617 = vmatprep.subr.bf16.mxu0 %v11518
    %12618 = vmatpush2.bf16.msra.mxu0 %v11517
    %12619 = vmatprep.subr.bf16.mxu0 %v11510
    %12620 = vmatpush2.bf16.msra.mxu0 %v11509
    %12621 = vmatprep.subr.bf16.mxu0 %v11502
    %12622 = vmatpush2.bf16.msra.mxu0 %v11501
    %12623 = vmatprep.subr.bf16.mxu0 %v11494
    %12624 = vmatpush2.bf16.msra.mxu0 %v11493
    %12625 = vmatprep.subr.bf16.mxu0 %v11486
    %12626 = vmatpush2.bf16.msra.mxu0 %v11485
    %12627 = vmatprep.mubr.bf16.mxu0 %v9068
    %12628 = vmatmul.mubr.bf16.gmra.mxu0 %v9067
    %v12629 = vpop.f32.mrf.mxu0
    %v12630 = vadd.f32 %v12589, %v12629
    %v12631 = vpop.f32.mrf.mxu0
    %v12632 = vadd.f32 %v12591, %v12631
    %v12633 = vpop.f32.mrf.mxu0
    %v12634 = vpop.f32.mrf.mxu0
    %12635 = vdwg.mxu0
    %12636 = vmatprep.subr.bf16.mxu0 %v11606
    %12637 = vmatpush1.bf16.msra.mxu0 %v11605
    %12638 = vmatprep.subr.bf16.mxu0 %v11598
    %12639 = vmatpush1.bf16.msra.mxu0 %v11597
    %12640 = vmatprep.subr.bf16.mxu0 %v11590
    %12641 = vmatpush1.bf16.msra.mxu0 %v11589
    %12642 = vmatprep.subr.bf16.mxu0 %v11582
    %12643 = vmatpush1.bf16.msra.mxu0 %v11581
    %12644 = vmatprep.subr.bf16.mxu0 %v11574
    %12645 = vmatpush1.bf16.msra.mxu0 %v11573
    %12646 = vmatprep.subr.bf16.mxu0 %v11566
    %12647 = vmatpush1.bf16.msra.mxu0 %v11565
    %12648 = vmatprep.subr.bf16.mxu0 %v11558
    %12649 = vmatpush1.bf16.msra.mxu0 %v11557
    %12650 = vmatprep.subr.bf16.mxu0 %v11550
    %12651 = vmatpush1.bf16.msra.mxu0 %v11549
    %12652 = vmatprep.subr.bf16.mxu0 %v11670
    %12653 = vmatpush2.bf16.msra.mxu0 %v11669
    %12654 = vmatprep.subr.bf16.mxu0 %v11662
    %12655 = vmatpush2.bf16.msra.mxu0 %v11661
    %12656 = vmatprep.subr.bf16.mxu0 %v11654
    %12657 = vmatpush2.bf16.msra.mxu0 %v11653
    %12658 = vmatprep.subr.bf16.mxu0 %v11646
    %12659 = vmatpush2.bf16.msra.mxu0 %v11645
    %12660 = vmatprep.subr.bf16.mxu0 %v11638
    %12661 = vmatpush2.bf16.msra.mxu0 %v11637
    %12662 = vmatprep.subr.bf16.mxu0 %v11630
    %12663 = vmatpush2.bf16.msra.mxu0 %v11629
    %12664 = vmatprep.subr.bf16.mxu0 %v11622
    %12665 = vmatpush2.bf16.msra.mxu0 %v11621
    %12666 = vmatprep.subr.bf16.mxu0 %v11614
    %12667 = vmatpush2.bf16.msra.mxu0 %v11613
    %12668 = vmatprep.mubr.bf16.mxu0 %v9070
    %12669 = vmatmul.mubr.bf16.gmra.mxu0 %v9069
    %v12670 = vpop.f32.mrf.mxu0
    %v12671 = vadd.f32 %v12630, %v12670
    %v12672 = vpop.f32.mrf.mxu0
    %v12673 = vadd.f32 %v12632, %v12672
    %v12674 = vpop.f32.mrf.mxu0
    %v12675 = vpop.f32.mrf.mxu0
    %12676 = vdwg.mxu0
    %12677 = vmatprep.subr.bf16.mxu0 %v11224
    %12678 = vmatpush1.bf16.msra.mxu0 %v11223
    %12679 = vmatprep.subr.bf16.mxu0 %v11216
    %12680 = vmatpush1.bf16.msra.mxu0 %v11215
    %12681 = vmatprep.subr.bf16.mxu0 %v11208
    %12682 = vmatpush1.bf16.msra.mxu0 %v11207
    %12683 = vmatprep.subr.bf16.mxu0 %v11200
    %12684 = vmatpush1.bf16.msra.mxu0 %v11199
    %12685 = vmatprep.subr.bf16.mxu0 %v11192
    %12686 = vmatpush1.bf16.msra.mxu0 %v11191
    %12687 = vmatprep.subr.bf16.mxu0 %v11184
    %12688 = vmatpush1.bf16.msra.mxu0 %v11183
    %12689 = vmatprep.subr.bf16.mxu0 %v11176
    %12690 = vmatpush1.bf16.msra.mxu0 %v11175
    %12691 = vmatprep.subr.bf16.mxu0 %v11168
    %12692 = vmatpush1.bf16.msra.mxu0 %v11167
    %12693 = vmatprep.subr.bf16.mxu0 %v11288
    %12694 = vmatpush2.bf16.msra.mxu0 %v11287
    %12695 = vmatprep.subr.bf16.mxu0 %v11280
    %12696 = vmatpush2.bf16.msra.mxu0 %v11279
    %12697 = vmatprep.subr.bf16.mxu0 %v11272
    %12698 = vmatpush2.bf16.msra.mxu0 %v11271
    %12699 = vmatprep.subr.bf16.mxu0 %v11264
    %12700 = vmatpush2.bf16.msra.mxu0 %v11263
    %12701 = vmatprep.subr.bf16.mxu0 %v11256
    %12702 = vmatpush2.bf16.msra.mxu0 %v11255
    %12703 = vmatprep.subr.bf16.mxu0 %v11248
    %12704 = vmatpush2.bf16.msra.mxu0 %v11247
    %12705 = vmatprep.subr.bf16.mxu0 %v11240
    %12706 = vmatpush2.bf16.msra.mxu0 %v11239
    %12707 = vmatprep.subr.bf16.mxu0 %v11232
    %12708 = vmatpush2.bf16.msra.mxu0 %v11231
    %12709 = vmatprep.mubr.bf16.mxu0 %v9064
    %12710 = vmatmul.mubr.bf16.gmra.mxu0 %v9063
    %v12711 = vpop.f32.mrf.mxu0
    %v12712 = vadd.f32 %v9612, %v12711
    %v12713 = vpop.f32.mrf.mxu0
    %v12714 = vadd.f32 %v9616, %v12713
    %v12715 = vpop.f32.mrf.mxu0
    %v12716 = vpop.f32.mrf.mxu0
    %12717 = vdwg.mxu0
    %12718 = vmatprep.subr.bf16.mxu0 %v11352
    %12719 = vmatpush1.bf16.msra.mxu0 %v11351
    %12720 = vmatprep.subr.bf16.mxu0 %v11344
    %12721 = vmatpush1.bf16.msra.mxu0 %v11343
    %12722 = vmatprep.subr.bf16.mxu0 %v11336
    %12723 = vmatpush1.bf16.msra.mxu0 %v11335
    %12724 = vmatprep.subr.bf16.mxu0 %v11328
    %12725 = vmatpush1.bf16.msra.mxu0 %v11327
    %12726 = vmatprep.subr.bf16.mxu0 %v11320
    %12727 = vmatpush1.bf16.msra.mxu0 %v11319
    %12728 = vmatprep.subr.bf16.mxu0 %v11312
    %12729 = vmatpush1.bf16.msra.mxu0 %v11311
    %12730 = vmatprep.subr.bf16.mxu0 %v11304
    %12731 = vmatpush1.bf16.msra.mxu0 %v11303
    %12732 = vmatprep.subr.bf16.mxu0 %v11296
    %12733 = vmatpush1.bf16.msra.mxu0 %v11295
    %12734 = vmatprep.subr.bf16.mxu0 %v11416
    %12735 = vmatpush2.bf16.msra.mxu0 %v11415
    %12736 = vmatprep.subr.bf16.mxu0 %v11408
    %12737 = vmatpush2.bf16.msra.mxu0 %v11407
    %12738 = vmatprep.subr.bf16.mxu0 %v11400
    %12739 = vmatpush2.bf16.msra.mxu0 %v11399
    %12740 = vmatprep.subr.bf16.mxu0 %v11392
    %12741 = vmatpush2.bf16.msra.mxu0 %v11391
    %12742 = vmatprep.subr.bf16.mxu0 %v11384
    %12743 = vmatpush2.bf16.msra.mxu0 %v11383
    %12744 = vmatprep.subr.bf16.mxu0 %v11376
    %12745 = vmatpush2.bf16.msra.mxu0 %v11375
    %12746 = vmatprep.subr.bf16.mxu0 %v11368
    %12747 = vmatpush2.bf16.msra.mxu0 %v11367
    %12748 = vmatprep.subr.bf16.mxu0 %v11360
    %12749 = vmatpush2.bf16.msra.mxu0 %v11359
    %12750 = vmatprep.mubr.bf16.mxu0 %v9066
    %12751 = vmatmul.mubr.bf16.gmra.mxu0 %v9065
    %v12752 = vpop.f32.mrf.mxu0
    %v12753 = vadd.f32 %v12712, %v12752
    %v12754 = vpop.f32.mrf.mxu0
    %v12755 = vadd.f32 %v12714, %v12754
    %v12756 = vpop.f32.mrf.mxu0
    %v12757 = vpop.f32.mrf.mxu0
    %12758 = vdwg.mxu0
    %12759 = vmatprep.subr.bf16.mxu0 %v11480
    %12760 = vmatpush1.bf16.msra.mxu0 %v11479
    %12761 = vmatprep.subr.bf16.mxu0 %v11472
    %12762 = vmatpush1.bf16.msra.mxu0 %v11471
    %12763 = vmatprep.subr.bf16.mxu0 %v11464
    %12764 = vmatpush1.bf16.msra.mxu0 %v11463
    %12765 = vmatprep.subr.bf16.mxu0 %v11456
    %12766 = vmatpush1.bf16.msra.mxu0 %v11455
    %12767 = vmatprep.subr.bf16.mxu0 %v11448
    %12768 = vmatpush1.bf16.msra.mxu0 %v11447
    %12769 = vmatprep.subr.bf16.mxu0 %v11440
    %12770 = vmatpush1.bf16.msra.mxu0 %v11439
    %12771 = vmatprep.subr.bf16.mxu0 %v11432
    %12772 = vmatpush1.bf16.msra.mxu0 %v11431
    %12773 = vmatprep.subr.bf16.mxu0 %v11424
    %12774 = vmatpush1.bf16.msra.mxu0 %v11423
    %12775 = vmatprep.subr.bf16.mxu0 %v11544
    %12776 = vmatpush2.bf16.msra.mxu0 %v11543
    %12777 = vmatprep.subr.bf16.mxu0 %v11536
    %12778 = vmatpush2.bf16.msra.mxu0 %v11535
    %12779 = vmatprep.subr.bf16.mxu0 %v11528
    %12780 = vmatpush2.bf16.msra.mxu0 %v11527
    %12781 = vmatprep.subr.bf16.mxu0 %v11520
    %12782 = vmatpush2.bf16.msra.mxu0 %v11519
    %12783 = vmatprep.subr.bf16.mxu0 %v11512
    %12784 = vmatpush2.bf16.msra.mxu0 %v11511
    %12785 = vmatprep.subr.bf16.mxu0 %v11504
    %12786 = vmatpush2.bf16.msra.mxu0 %v11503
    %12787 = vmatprep.subr.bf16.mxu0 %v11496
    %12788 = vmatpush2.bf16.msra.mxu0 %v11495
    %12789 = vmatprep.subr.bf16.mxu0 %v11488
    %12790 = vmatpush2.bf16.msra.mxu0 %v11487
    %12791 = vmatprep.mubr.bf16.mxu0 %v9068
    %12792 = vmatmul.mubr.bf16.gmra.mxu0 %v9067
    %v12793 = vpop.f32.mrf.mxu0
    %v12794 = vadd.f32 %v12753, %v12793
    %v12795 = vpop.f32.mrf.mxu0
    %v12796 = vadd.f32 %v12755, %v12795
    %v12797 = vpop.f32.mrf.mxu0
    %v12798 = vpop.f32.mrf.mxu0
    %12799 = vdwg.mxu0
    %12800 = vmatprep.subr.bf16.mxu0 %v11608
    %12801 = vmatpush1.bf16.msra.mxu0 %v11607
    %12802 = vmatprep.subr.bf16.mxu0 %v11600
    %12803 = vmatpush1.bf16.msra.mxu0 %v11599
    %12804 = vmatprep.subr.bf16.mxu0 %v11592
    %12805 = vmatpush1.bf16.msra.mxu0 %v11591
    %12806 = vmatprep.subr.bf16.mxu0 %v11584
    %12807 = vmatpush1.bf16.msra.mxu0 %v11583
    %12808 = vmatprep.subr.bf16.mxu0 %v11576
    %12809 = vmatpush1.bf16.msra.mxu0 %v11575
    %12810 = vmatprep.subr.bf16.mxu0 %v11568
    %12811 = vmatpush1.bf16.msra.mxu0 %v11567
    %12812 = vmatprep.subr.bf16.mxu0 %v11560
    %12813 = vmatpush1.bf16.msra.mxu0 %v11559
    %12814 = vmatprep.subr.bf16.mxu0 %v11552
    %12815 = vmatpush1.bf16.msra.mxu0 %v11551
    %12816 = vmatprep.subr.bf16.mxu0 %v11672
    %12817 = vmatpush2.bf16.msra.mxu0 %v11671
    %12818 = vmatprep.subr.bf16.mxu0 %v11664
    %12819 = vmatpush2.bf16.msra.mxu0 %v11663
    %12820 = vmatprep.subr.bf16.mxu0 %v11656
    %12821 = vmatpush2.bf16.msra.mxu0 %v11655
    %12822 = vmatprep.subr.bf16.mxu0 %v11648
    %12823 = vmatpush2.bf16.msra.mxu0 %v11647
    %12824 = vmatprep.subr.bf16.mxu0 %v11640
    %12825 = vmatpush2.bf16.msra.mxu0 %v11639
    %12826 = vmatprep.subr.bf16.mxu0 %v11632
    %12827 = vmatpush2.bf16.msra.mxu0 %v11631
    %12828 = vmatprep.subr.bf16.mxu0 %v11624
    %12829 = vmatpush2.bf16.msra.mxu0 %v11623
    %12830 = vmatprep.subr.bf16.mxu0 %v11616
    %12831 = vmatpush2.bf16.msra.mxu0 %v11615
    %12832 = vmatprep.mubr.bf16.mxu0 %v9070
    %12833 = vmatmul.mubr.bf16.gmra.mxu0 %v9069
    %v12834 = vpop.f32.mrf.mxu0
    %v12835 = vadd.f32 %v12794, %v12834
    %v12836 = vpop.f32.mrf.mxu0
    %v12837 = vadd.f32 %v12796, %v12836
    %v12838 = vpop.f32.mrf.mxu0
    %v12839 = vpop.f32.mrf.mxu0
    %12840 = vdwg.mxu0
    %v12841 = vmul.f32 %v12343, 0.5
    %v12842 = vmul.f32 %v12345, 0.5
    %v12843 = vmul.f32 %v12507, 0.5
    %v12844 = vmul.f32 %v12509, 0.5
    %v12845 = vmul.f32 %v12671, 0.5
    %v12846 = vmul.f32 %v12673, 0.5
    %v12847 = vmul.f32 %v12835, 0.5
    %v12848 = vmul.f32 %v12837, 0.5
    %v12849 = vmul.f32 %v12343, 0.70710677
    %v12850 = vmul.f32 %v12345, 0.70710677
    %v12851 = vmul.f32 %v12507, 0.70710677
    %v12852 = vmul.f32 %v12509, 0.70710677
    %v12853 = vmul.f32 %v12671, 0.70710677
    %v12854 = vmul.f32 %v12673, 0.70710677
    %v12855 = vmul.f32 %v12835, 0.70710677
    %v12856 = vmul.f32 %v12837, 0.70710677
    %v12857 = verf.f32.pop %v12849
    %v12858 = verf.f32.pop %v12850
    %v12859 = verf.f32.pop %v12851
    %v12860 = verf.f32.pop %v12852
    %v12861 = verf.f32.pop %v12853
    %v12862 = verf.f32.pop %v12854
    %v12863 = verf.f32.pop %v12855
    %v12864 = verf.f32.pop %v12856
    %v12865 = vadd.f32 %v12857, 1.0
    %v12866 = vadd.f32 %v12858, 1.0
    %v12867 = vadd.f32 %v12859, 1.0
    %v12868 = vadd.f32 %v12860, 1.0
    %v12869 = vadd.f32 %v12861, 1.0
    %v12870 = vadd.f32 %v12862, 1.0
    %v12871 = vadd.f32 %v12863, 1.0
    %v12872 = vadd.f32 %v12864, 1.0
    %v12873 = vmul.f32 %v12841, %v12865
    %v12874 = vmul.f32 %v12842, %v12866
    %v12875 = vmul.f32 %v12843, %v12867
    %v12876 = vmul.f32 %v12844, %v12868
    %v12877 = vmul.f32 %v12845, %v12869
    %v12878 = vmul.f32 %v12846, %v12870
    %v12879 = vmul.f32 %v12847, %v12871
    %v12880 = vmul.f32 %v12848, %v12872
    %v12881 = vpack.c.bf16 %v12873, %v12873
    %v12882 = vpack.c.bf16 %v12874, %v12874
    %v12883 = vpack.c.bf16 %v12875, %v12875
    %v12884 = vpack.c.bf16 %v12876, %v12876
    %v12885 = vpack.c.bf16 %v12877, %v12877
    %v12886 = vpack.c.bf16 %v12878, %v12878
    %v12887 = vpack.c.bf16 %v12879, %v12879
    %v12888 = vpack.c.bf16 %v12880, %v12880
    %v12889 = vld [vmem:[#allocation11] sm:$0xf]
    %v12890 = vld [vmem:[#allocation11 + $0x4] sm:$0xf]
    %v12891 = vld [vmem:[#allocation11 + $0x8] sm:$0xf]
    %v12892 = vld [vmem:[#allocation11 + $0xc] sm:$0xf]
    %v12893 = vld [vmem:[#allocation11 + $0x10] sm:$0xf]
    %v12894 = vld [vmem:[#allocation11 + $0x14] sm:$0xf]
    %v12895 = vld [vmem:[#allocation11 + $0x18] sm:$0xf]
    %v12896 = vld [vmem:[#allocation11 + $0x1c] sm:$0xf]
    %v12897 = vld [vmem:[#allocation11 + $0x20] sm:$0xf]
    %v12898 = vld [vmem:[#allocation11 + $0x24] sm:$0xf]
    %v12899 = vld [vmem:[#allocation11 + $0x28] sm:$0xf]
    %v12900 = vld [vmem:[#allocation11 + $0x2c] sm:$0xf]
    %v12901 = vld [vmem:[#allocation11 + $0x30] sm:$0xf]
    %v12902 = vld [vmem:[#allocation11 + $0x34] sm:$0xf]
    %v12903 = vld [vmem:[#allocation11 + $0x38] sm:$0xf]
    %v12904 = vld [vmem:[#allocation11 + $0x3c] sm:$0xf]
    %v12905 = vld [vmem:[#allocation11 + $0x40] sm:$0xf]
    %v12906 = vld [vmem:[#allocation11 + $0x44] sm:$0xf]
    %v12907 = vld [vmem:[#allocation11 + $0x48] sm:$0xf]
    %v12908 = vld [vmem:[#allocation11 + $0x4c] sm:$0xf]
    %v12909 = vld [vmem:[#allocation11 + $0x50] sm:$0xf]
    %v12910 = vld [vmem:[#allocation11 + $0x54] sm:$0xf]
    %v12911 = vld [vmem:[#allocation11 + $0x58] sm:$0xf]
    %v12912 = vld [vmem:[#allocation11 + $0x5c] sm:$0xf]
    %v12913 = vld [vmem:[#allocation11 + $0x60] sm:$0xf]
    %v12914 = vld [vmem:[#allocation11 + $0x64] sm:$0xf]
    %v12915 = vld [vmem:[#allocation11 + $0x68] sm:$0xf]
    %v12916 = vld [vmem:[#allocation11 + $0x6c] sm:$0xf]
    %v12917 = vld [vmem:[#allocation11 + $0x70] sm:$0xf]
    %v12918 = vld [vmem:[#allocation11 + $0x74] sm:$0xf]
    %v12919 = vld [vmem:[#allocation11 + $0x78] sm:$0xf]
    %v12920 = vld [vmem:[#allocation11 + $0x7c] sm:$0xf]
    %v12921 = vld [vmem:[#allocation11 + $0x80] sm:$0xf]
    %v12922 = vld [vmem:[#allocation11 + $0x84] sm:$0xf]
    %v12923 = vld [vmem:[#allocation11 + $0x88] sm:$0xf]
    %v12924 = vld [vmem:[#allocation11 + $0x8c] sm:$0xf]
    %v12925 = vld [vmem:[#allocation11 + $0x90] sm:$0xf]
    %v12926 = vld [vmem:[#allocation11 + $0x94] sm:$0xf]
    %v12927 = vld [vmem:[#allocation11 + $0x98] sm:$0xf]
    %v12928 = vld [vmem:[#allocation11 + $0x9c] sm:$0xf]
    %v12929 = vld [vmem:[#allocation11 + $0xa0] sm:$0xf]
    %v12930 = vld [vmem:[#allocation11 + $0xa4] sm:$0xf]
    %v12931 = vld [vmem:[#allocation11 + $0xa8] sm:$0xf]
    %v12932 = vld [vmem:[#allocation11 + $0xac] sm:$0xf]
    %v12933 = vld [vmem:[#allocation11 + $0xb0] sm:$0xf]
    %v12934 = vld [vmem:[#allocation11 + $0xb4] sm:$0xf]
    %v12935 = vld [vmem:[#allocation11 + $0xb8] sm:$0xf]
    %v12936 = vld [vmem:[#allocation11 + $0xbc] sm:$0xf]
    %v12937 = vld [vmem:[#allocation11 + $0xc0] sm:$0xf]
    %v12938 = vld [vmem:[#allocation11 + $0xc4] sm:$0xf]
    %v12939 = vld [vmem:[#allocation11 + $0xc8] sm:$0xf]
    %v12940 = vld [vmem:[#allocation11 + $0xcc] sm:$0xf]
    %v12941 = vld [vmem:[#allocation11 + $0xd0] sm:$0xf]
    %v12942 = vld [vmem:[#allocation11 + $0xd4] sm:$0xf]
    %v12943 = vld [vmem:[#allocation11 + $0xd8] sm:$0xf]
    %v12944 = vld [vmem:[#allocation11 + $0xdc] sm:$0xf]
    %v12945 = vld [vmem:[#allocation11 + $0xe0] sm:$0xf]
    %v12946 = vld [vmem:[#allocation11 + $0xe4] sm:$0xf]
    %v12947 = vld [vmem:[#allocation11 + $0xe8] sm:$0xf]
    %v12948 = vld [vmem:[#allocation11 + $0xec] sm:$0xf]
    %v12949 = vld [vmem:[#allocation11 + $0xf0] sm:$0xf]
    %v12950 = vld [vmem:[#allocation11 + $0xf4] sm:$0xf]
    %v12951 = vld [vmem:[#allocation11 + $0xf8] sm:$0xf]
    %v12952 = vld [vmem:[#allocation11 + $0xfc] sm:$0xf]
    %v12953 = vld [vmem:[#allocation11 + $0x100] sm:$0xf]
    %v12954 = vld [vmem:[#allocation11 + $0x104] sm:$0xf]
    %v12955 = vld [vmem:[#allocation11 + $0x108] sm:$0xf]
    %v12956 = vld [vmem:[#allocation11 + $0x10c] sm:$0xf]
    %v12957 = vld [vmem:[#allocation11 + $0x110] sm:$0xf]
    %v12958 = vld [vmem:[#allocation11 + $0x114] sm:$0xf]
    %v12959 = vld [vmem:[#allocation11 + $0x118] sm:$0xf]
    %v12960 = vld [vmem:[#allocation11 + $0x11c] sm:$0xf]
    %v12961 = vld [vmem:[#allocation11 + $0x120] sm:$0xf]
    %v12962 = vld [vmem:[#allocation11 + $0x124] sm:$0xf]
    %v12963 = vld [vmem:[#allocation11 + $0x128] sm:$0xf]
    %v12964 = vld [vmem:[#allocation11 + $0x12c] sm:$0xf]
    %v12965 = vld [vmem:[#allocation11 + $0x130] sm:$0xf]
    %v12966 = vld [vmem:[#allocation11 + $0x134] sm:$0xf]
    %v12967 = vld [vmem:[#allocation11 + $0x138] sm:$0xf]
    %v12968 = vld [vmem:[#allocation11 + $0x13c] sm:$0xf]
    %v12969 = vld [vmem:[#allocation11 + $0x140] sm:$0xf]
    %v12970 = vld [vmem:[#allocation11 + $0x144] sm:$0xf]
    %v12971 = vld [vmem:[#allocation11 + $0x148] sm:$0xf]
    %v12972 = vld [vmem:[#allocation11 + $0x14c] sm:$0xf]
    %v12973 = vld [vmem:[#allocation11 + $0x150] sm:$0xf]
    %v12974 = vld [vmem:[#allocation11 + $0x154] sm:$0xf]
    %v12975 = vld [vmem:[#allocation11 + $0x158] sm:$0xf]
    %v12976 = vld [vmem:[#allocation11 + $0x15c] sm:$0xf]
    %v12977 = vld [vmem:[#allocation11 + $0x160] sm:$0xf]
    %v12978 = vld [vmem:[#allocation11 + $0x164] sm:$0xf]
    %v12979 = vld [vmem:[#allocation11 + $0x168] sm:$0xf]
    %v12980 = vld [vmem:[#allocation11 + $0x16c] sm:$0xf]
    %v12981 = vld [vmem:[#allocation11 + $0x170] sm:$0xf]
    %v12982 = vld [vmem:[#allocation11 + $0x174] sm:$0xf]
    %v12983 = vld [vmem:[#allocation11 + $0x178] sm:$0xf]
    %v12984 = vld [vmem:[#allocation11 + $0x17c] sm:$0xf]
    %v12985 = vld [vmem:[#allocation11 + $0x180] sm:$0xf]
    %v12986 = vld [vmem:[#allocation11 + $0x184] sm:$0xf]
    %v12987 = vld [vmem:[#allocation11 + $0x188] sm:$0xf]
    %v12988 = vld [vmem:[#allocation11 + $0x18c] sm:$0xf]
    %v12989 = vld [vmem:[#allocation11 + $0x190] sm:$0xf]
    %v12990 = vld [vmem:[#allocation11 + $0x194] sm:$0xf]
    %v12991 = vld [vmem:[#allocation11 + $0x198] sm:$0xf]
    %v12992 = vld [vmem:[#allocation11 + $0x19c] sm:$0xf]
    %v12993 = vld [vmem:[#allocation11 + $0x1a0] sm:$0xf]
    %v12994 = vld [vmem:[#allocation11 + $0x1a4] sm:$0xf]
    %v12995 = vld [vmem:[#allocation11 + $0x1a8] sm:$0xf]
    %v12996 = vld [vmem:[#allocation11 + $0x1ac] sm:$0xf]
    %v12997 = vld [vmem:[#allocation11 + $0x1b0] sm:$0xf]
    %v12998 = vld [vmem:[#allocation11 + $0x1b4] sm:$0xf]
    %v12999 = vld [vmem:[#allocation11 + $0x1b8] sm:$0xf]
    %v13000 = vld [vmem:[#allocation11 + $0x1bc] sm:$0xf]
    %v13001 = vld [vmem:[#allocation11 + $0x1c0] sm:$0xf]
    %v13002 = vld [vmem:[#allocation11 + $0x1c4] sm:$0xf]
    %v13003 = vld [vmem:[#allocation11 + $0x1c8] sm:$0xf]
    %v13004 = vld [vmem:[#allocation11 + $0x1cc] sm:$0xf]
    %v13005 = vld [vmem:[#allocation11 + $0x1d0] sm:$0xf]
    %v13006 = vld [vmem:[#allocation11 + $0x1d4] sm:$0xf]
    %v13007 = vld [vmem:[#allocation11 + $0x1d8] sm:$0xf]
    %v13008 = vld [vmem:[#allocation11 + $0x1dc] sm:$0xf]
    %v13009 = vld [vmem:[#allocation11 + $0x1e0] sm:$0xf]
    %v13010 = vld [vmem:[#allocation11 + $0x1e4] sm:$0xf]
    %v13011 = vld [vmem:[#allocation11 + $0x1e8] sm:$0xf]
    %v13012 = vld [vmem:[#allocation11 + $0x1ec] sm:$0xf]
    %v13013 = vld [vmem:[#allocation11 + $0x1f0] sm:$0xf]
    %v13014 = vld [vmem:[#allocation11 + $0x1f4] sm:$0xf]
    %v13015 = vld [vmem:[#allocation11 + $0x1f8] sm:$0xf]
    %v13016 = vld [vmem:[#allocation11 + $0x1fc] sm:$0xf]
    %v13017 = vld [vmem:[#allocation13] sm:$0x1]
    %v13019 = vlaneseq
    %v13020 = vshrl.u32 %v13019, 7
    %v13021 = vsub.s32 0, %v13020
    %v13022 = vrot.slane %v13017, %v13021
    %v13152 = vunpack.c.l.b16 %v12889
    %v13153 = vunpack.c.l.b16 %v12890
    %v13154 = vunpack.c.l.b16 %v12891
    %v13155 = vunpack.c.l.b16 %v12892
    %v13156 = vunpack.c.l.b16 %v12893
    %v13157 = vunpack.c.l.b16 %v12894
    %v13158 = vunpack.c.l.b16 %v12895
    %v13159 = vunpack.c.l.b16 %v12896
    %v13160 = vunpack.c.l.b16 %v12897
    %v13161 = vunpack.c.l.b16 %v12898
    %v13162 = vunpack.c.l.b16 %v12899
    %v13163 = vunpack.c.l.b16 %v12900
    %v13164 = vunpack.c.l.b16 %v12901
    %v13165 = vunpack.c.l.b16 %v12902
    %v13166 = vunpack.c.l.b16 %v12903
    %v13167 = vunpack.c.l.b16 %v12904
    %v13168 = vunpack.c.l.b16 %v12905
    %v13169 = vunpack.c.l.b16 %v12906
    %v13170 = vunpack.c.l.b16 %v12907
    %v13171 = vunpack.c.l.b16 %v12908
    %v13172 = vunpack.c.l.b16 %v12909
    %v13173 = vunpack.c.l.b16 %v12910
    %v13174 = vunpack.c.l.b16 %v12911
    %v13175 = vunpack.c.l.b16 %v12912
    %v13176 = vunpack.c.l.b16 %v12913
    %v13177 = vunpack.c.l.b16 %v12914
    %v13178 = vunpack.c.l.b16 %v12915
    %v13179 = vunpack.c.l.b16 %v12916
    %v13180 = vunpack.c.l.b16 %v12917
    %v13181 = vunpack.c.l.b16 %v12918
    %v13182 = vunpack.c.l.b16 %v12919
    %v13183 = vunpack.c.l.b16 %v12920
    %v13184 = vunpack.c.l.b16 %v12921
    %v13185 = vunpack.c.l.b16 %v12922
    %v13186 = vunpack.c.l.b16 %v12923
    %v13187 = vunpack.c.l.b16 %v12924
    %v13188 = vunpack.c.l.b16 %v12925
    %v13189 = vunpack.c.l.b16 %v12926
    %v13190 = vunpack.c.l.b16 %v12927
    %v13191 = vunpack.c.l.b16 %v12928
    %v13192 = vunpack.c.l.b16 %v12929
    %v13193 = vunpack.c.l.b16 %v12930
    %v13194 = vunpack.c.l.b16 %v12931
    %v13195 = vunpack.c.l.b16 %v12932
    %v13196 = vunpack.c.l.b16 %v12933
    %v13197 = vunpack.c.l.b16 %v12934
    %v13198 = vunpack.c.l.b16 %v12935
    %v13199 = vunpack.c.l.b16 %v12936
    %v13200 = vunpack.c.l.b16 %v12937
    %v13201 = vunpack.c.l.b16 %v12938
    %v13202 = vunpack.c.l.b16 %v12939
    %v13203 = vunpack.c.l.b16 %v12940
    %v13204 = vunpack.c.l.b16 %v12941
    %v13205 = vunpack.c.l.b16 %v12942
    %v13206 = vunpack.c.l.b16 %v12943
    %v13207 = vunpack.c.l.b16 %v12944
    %v13208 = vunpack.c.l.b16 %v12945
    %v13209 = vunpack.c.l.b16 %v12946
    %v13210 = vunpack.c.l.b16 %v12947
    %v13211 = vunpack.c.l.b16 %v12948
    %v13212 = vunpack.c.l.b16 %v12949
    %v13213 = vunpack.c.l.b16 %v12950
    %v13214 = vunpack.c.l.b16 %v12951
    %v13215 = vunpack.c.l.b16 %v12952
    %v13216 = vunpack.c.l.b16 %v12953
    %v13217 = vunpack.c.l.b16 %v12954
    %v13218 = vunpack.c.l.b16 %v12955
    %v13219 = vunpack.c.l.b16 %v12956
    %v13220 = vunpack.c.l.b16 %v12957
    %v13221 = vunpack.c.l.b16 %v12958
    %v13222 = vunpack.c.l.b16 %v12959
    %v13223 = vunpack.c.l.b16 %v12960
    %v13224 = vunpack.c.l.b16 %v12961
    %v13225 = vunpack.c.l.b16 %v12962
    %v13226 = vunpack.c.l.b16 %v12963
    %v13227 = vunpack.c.l.b16 %v12964
    %v13228 = vunpack.c.l.b16 %v12965
    %v13229 = vunpack.c.l.b16 %v12966
    %v13230 = vunpack.c.l.b16 %v12967
    %v13231 = vunpack.c.l.b16 %v12968
    %v13232 = vunpack.c.l.b16 %v12969
    %v13233 = vunpack.c.l.b16 %v12970
    %v13234 = vunpack.c.l.b16 %v12971
    %v13235 = vunpack.c.l.b16 %v12972
    %v13236 = vunpack.c.l.b16 %v12973
    %v13237 = vunpack.c.l.b16 %v12974
    %v13238 = vunpack.c.l.b16 %v12975
    %v13239 = vunpack.c.l.b16 %v12976
    %v13240 = vunpack.c.l.b16 %v12977
    %v13241 = vunpack.c.l.b16 %v12978
    %v13242 = vunpack.c.l.b16 %v12979
    %v13243 = vunpack.c.l.b16 %v12980
    %v13244 = vunpack.c.l.b16 %v12981
    %v13245 = vunpack.c.l.b16 %v12982
    %v13246 = vunpack.c.l.b16 %v12983
    %v13247 = vunpack.c.l.b16 %v12984
    %v13248 = vunpack.c.l.b16 %v12985
    %v13249 = vunpack.c.l.b16 %v12986
    %v13250 = vunpack.c.l.b16 %v12987
    %v13251 = vunpack.c.l.b16 %v12988
    %v13252 = vunpack.c.l.b16 %v12989
    %v13253 = vunpack.c.l.b16 %v12990
    %v13254 = vunpack.c.l.b16 %v12991
    %v13255 = vunpack.c.l.b16 %v12992
    %v13256 = vunpack.c.l.b16 %v12993
    %v13257 = vunpack.c.l.b16 %v12994
    %v13258 = vunpack.c.l.b16 %v12995
    %v13259 = vunpack.c.l.b16 %v12996
    %v13260 = vunpack.c.l.b16 %v12997
    %v13261 = vunpack.c.l.b16 %v12998
    %v13262 = vunpack.c.l.b16 %v12999
    %v13263 = vunpack.c.l.b16 %v13000
    %v13264 = vunpack.c.l.b16 %v13001
    %v13265 = vunpack.c.l.b16 %v13002
    %v13266 = vunpack.c.l.b16 %v13003
    %v13267 = vunpack.c.l.b16 %v13004
    %v13268 = vunpack.c.l.b16 %v13005
    %v13269 = vunpack.c.l.b16 %v13006
    %v13270 = vunpack.c.l.b16 %v13007
    %v13271 = vunpack.c.l.b16 %v13008
    %v13272 = vunpack.c.l.b16 %v13009
    %v13273 = vunpack.c.l.b16 %v13010
    %v13274 = vunpack.c.l.b16 %v13011
    %v13275 = vunpack.c.l.b16 %v13012
    %v13276 = vunpack.c.l.b16 %v13013
    %v13277 = vunpack.c.l.b16 %v13014
    %v13278 = vunpack.c.l.b16 %v13015
    %v13279 = vunpack.c.l.b16 %v13016
    %v13280 = vpack.c.b16 %v13153, %v13152
    %v13281 = vpack.c.b16 %v13155, %v13154
    %v13282 = vpack.c.b16 %v13157, %v13156
    %v13283 = vpack.c.b16 %v13159, %v13158
    %v13284 = vpack.c.b16 %v13161, %v13160
    %v13285 = vpack.c.b16 %v13163, %v13162
    %v13286 = vpack.c.b16 %v13165, %v13164
    %v13287 = vpack.c.b16 %v13167, %v13166
    %v13288 = vpack.c.b16 %v13169, %v13168
    %v13289 = vpack.c.b16 %v13171, %v13170
    %v13290 = vpack.c.b16 %v13173, %v13172
    %v13291 = vpack.c.b16 %v13175, %v13174
    %v13292 = vpack.c.b16 %v13177, %v13176
    %v13293 = vpack.c.b16 %v13179, %v13178
    %v13294 = vpack.c.b16 %v13181, %v13180
    %v13295 = vpack.c.b16 %v13183, %v13182
    %v13296 = vpack.c.b16 %v13185, %v13184
    %v13297 = vpack.c.b16 %v13187, %v13186
    %v13298 = vpack.c.b16 %v13189, %v13188
    %v13299 = vpack.c.b16 %v13191, %v13190
    %v13300 = vpack.c.b16 %v13193, %v13192
    %v13301 = vpack.c.b16 %v13195, %v13194
    %v13302 = vpack.c.b16 %v13197, %v13196
    %v13303 = vpack.c.b16 %v13199, %v13198
    %v13304 = vpack.c.b16 %v13201, %v13200
    %v13305 = vpack.c.b16 %v13203, %v13202
    %v13306 = vpack.c.b16 %v13205, %v13204
    %v13307 = vpack.c.b16 %v13207, %v13206
    %v13308 = vpack.c.b16 %v13209, %v13208
    %v13309 = vpack.c.b16 %v13211, %v13210
    %v13310 = vpack.c.b16 %v13213, %v13212
    %v13311 = vpack.c.b16 %v13215, %v13214
    %v13312 = vpack.c.b16 %v13217, %v13216
    %v13313 = vpack.c.b16 %v13219, %v13218
    %v13314 = vpack.c.b16 %v13221, %v13220
    %v13315 = vpack.c.b16 %v13223, %v13222
    %v13316 = vpack.c.b16 %v13225, %v13224
    %v13317 = vpack.c.b16 %v13227, %v13226
    %v13318 = vpack.c.b16 %v13229, %v13228
    %v13319 = vpack.c.b16 %v13231, %v13230
    %v13320 = vpack.c.b16 %v13233, %v13232
    %v13321 = vpack.c.b16 %v13235, %v13234
    %v13322 = vpack.c.b16 %v13237, %v13236
    %v13323 = vpack.c.b16 %v13239, %v13238
    %v13324 = vpack.c.b16 %v13241, %v13240
    %v13325 = vpack.c.b16 %v13243, %v13242
    %v13326 = vpack.c.b16 %v13245, %v13244
    %v13327 = vpack.c.b16 %v13247, %v13246
    %v13328 = vpack.c.b16 %v13249, %v13248
    %v13329 = vpack.c.b16 %v13251, %v13250
    %v13330 = vpack.c.b16 %v13253, %v13252
    %v13331 = vpack.c.b16 %v13255, %v13254
    %v13332 = vpack.c.b16 %v13257, %v13256
    %v13333 = vpack.c.b16 %v13259, %v13258
    %v13334 = vpack.c.b16 %v13261, %v13260
    %v13335 = vpack.c.b16 %v13263, %v13262
    %v13336 = vpack.c.b16 %v13265, %v13264
    %v13337 = vpack.c.b16 %v13267, %v13266
    %v13338 = vpack.c.b16 %v13269, %v13268
    %v13339 = vpack.c.b16 %v13271, %v13270
    %v13340 = vpack.c.b16 %v13273, %v13272
    %v13341 = vpack.c.b16 %v13275, %v13274
    %v13342 = vpack.c.b16 %v13277, %v13276
    %v13343 = vpack.c.b16 %v13279, %v13278
    %13408 = vmatprep.subr.bf16.mxu0 0
    %13409 = vmatpush1.bf16.msra.mxu0 %v13287
    %13410 = vmatprep.subr.bf16.mxu0 0
    %13411 = vmatpush1.bf16.msra.mxu0 %v13286
    %13412 = vmatprep.subr.bf16.mxu0 0
    %13413 = vmatpush1.bf16.msra.mxu0 %v13285
    %13414 = vmatprep.subr.bf16.mxu0 0
    %13415 = vmatpush1.bf16.msra.mxu0 %v13284
    %13416 = vmatprep.subr.bf16.mxu0 0
    %13417 = vmatpush1.bf16.msra.mxu0 %v13283
    %13418 = vmatprep.subr.bf16.mxu0 0
    %13419 = vmatpush1.bf16.msra.mxu0 %v13282
    %13420 = vmatprep.subr.bf16.mxu0 0
    %13421 = vmatpush1.bf16.msra.mxu0 %v13281
    %13422 = vmatprep.subr.bf16.mxu0 0
    %13423 = vmatpush1.bf16.msra.mxu0 %v13280
    %13424 = vmatprep.subr.bf16.mxu0 0
    %13425 = vmatpush2.bf16.msra.mxu0 %v13295
    %13426 = vmatprep.subr.bf16.mxu0 0
    %13427 = vmatpush2.bf16.msra.mxu0 %v13294
    %13428 = vmatprep.subr.bf16.mxu0 0
    %13429 = vmatpush2.bf16.msra.mxu0 %v13293
    %13430 = vmatprep.subr.bf16.mxu0 0
    %13431 = vmatpush2.bf16.msra.mxu0 %v13292
    %13432 = vmatprep.subr.bf16.mxu0 0
    %13433 = vmatpush2.bf16.msra.mxu0 %v13291
    %13434 = vmatprep.subr.bf16.mxu0 0
    %13435 = vmatpush2.bf16.msra.mxu0 %v13290
    %13436 = vmatprep.subr.bf16.mxu0 0
    %13437 = vmatpush2.bf16.msra.mxu0 %v13289
    %13438 = vmatprep.subr.bf16.mxu0 0
    %13439 = vmatpush2.bf16.msra.mxu0 %v13288
    %13440 = vmatprep.mubr.bf16.mxu0 %v12882
    %13441 = vmatmul.mubr.bf16.gmra.mxu0 %v12881
    %v13442 = vpop.f32.mrf.mxu0
    %v13443 = vadd.f32 %v13022, %v13442
    %v13444 = vpop.f32.mrf.mxu0
    %v13445 = vpop.f32.mrf.mxu0
    %v13446 = vpop.f32.mrf.mxu0
    %13447 = vdwg.mxu0
    %13448 = vmatprep.subr.bf16.mxu0 0
    %13449 = vmatpush1.bf16.msra.mxu0 %v13303
    %13450 = vmatprep.subr.bf16.mxu0 0
    %13451 = vmatpush1.bf16.msra.mxu0 %v13302
    %13452 = vmatprep.subr.bf16.mxu0 0
    %13453 = vmatpush1.bf16.msra.mxu0 %v13301
    %13454 = vmatprep.subr.bf16.mxu0 0
    %13455 = vmatpush1.bf16.msra.mxu0 %v13300
    %13456 = vmatprep.subr.bf16.mxu0 0
    %13457 = vmatpush1.bf16.msra.mxu0 %v13299
    %13458 = vmatprep.subr.bf16.mxu0 0
    %13459 = vmatpush1.bf16.msra.mxu0 %v13298
    %13460 = vmatprep.subr.bf16.mxu0 0
    %13461 = vmatpush1.bf16.msra.mxu0 %v13297
    %13462 = vmatprep.subr.bf16.mxu0 0
    %13463 = vmatpush1.bf16.msra.mxu0 %v13296
    %13464 = vmatprep.subr.bf16.mxu0 0
    %13465 = vmatpush2.bf16.msra.mxu0 %v13311
    %13466 = vmatprep.subr.bf16.mxu0 0
    %13467 = vmatpush2.bf16.msra.mxu0 %v13310
    %13468 = vmatprep.subr.bf16.mxu0 0
    %13469 = vmatpush2.bf16.msra.mxu0 %v13309
    %13470 = vmatprep.subr.bf16.mxu0 0
    %13471 = vmatpush2.bf16.msra.mxu0 %v13308
    %13472 = vmatprep.subr.bf16.mxu0 0
    %13473 = vmatpush2.bf16.msra.mxu0 %v13307
    %13474 = vmatprep.subr.bf16.mxu0 0
    %13475 = vmatpush2.bf16.msra.mxu0 %v13306
    %13476 = vmatprep.subr.bf16.mxu0 0
    %13477 = vmatpush2.bf16.msra.mxu0 %v13305
    %13478 = vmatprep.subr.bf16.mxu0 0
    %13479 = vmatpush2.bf16.msra.mxu0 %v13304
    %13480 = vmatprep.mubr.bf16.mxu0 %v12884
    %13481 = vmatmul.mubr.bf16.gmra.mxu0 %v12883
    %v13482 = vpop.f32.mrf.mxu0
    %v13483 = vadd.f32 %v13443, %v13482
    %v13484 = vpop.f32.mrf.mxu0
    %v13485 = vpop.f32.mrf.mxu0
    %v13486 = vpop.f32.mrf.mxu0
    %13487 = vdwg.mxu0
    %13488 = vmatprep.subr.bf16.mxu0 0
    %13489 = vmatpush1.bf16.msra.mxu0 %v13319
    %13490 = vmatprep.subr.bf16.mxu0 0
    %13491 = vmatpush1.bf16.msra.mxu0 %v13318
    %13492 = vmatprep.subr.bf16.mxu0 0
    %13493 = vmatpush1.bf16.msra.mxu0 %v13317
    %13494 = vmatprep.subr.bf16.mxu0 0
    %13495 = vmatpush1.bf16.msra.mxu0 %v13316
    %13496 = vmatprep.subr.bf16.mxu0 0
    %13497 = vmatpush1.bf16.msra.mxu0 %v13315
    %13498 = vmatprep.subr.bf16.mxu0 0
    %13499 = vmatpush1.bf16.msra.mxu0 %v13314
    %13500 = vmatprep.subr.bf16.mxu0 0
    %13501 = vmatpush1.bf16.msra.mxu0 %v13313
    %13502 = vmatprep.subr.bf16.mxu0 0
    %13503 = vmatpush1.bf16.msra.mxu0 %v13312
    %13504 = vmatprep.subr.bf16.mxu0 0
    %13505 = vmatpush2.bf16.msra.mxu0 %v13327
    %13506 = vmatprep.subr.bf16.mxu0 0
    %13507 = vmatpush2.bf16.msra.mxu0 %v13326
    %13508 = vmatprep.subr.bf16.mxu0 0
    %13509 = vmatpush2.bf16.msra.mxu0 %v13325
    %13510 = vmatprep.subr.bf16.mxu0 0
    %13511 = vmatpush2.bf16.msra.mxu0 %v13324
    %13512 = vmatprep.subr.bf16.mxu0 0
    %13513 = vmatpush2.bf16.msra.mxu0 %v13323
    %13514 = vmatprep.subr.bf16.mxu0 0
    %13515 = vmatpush2.bf16.msra.mxu0 %v13322
    %13516 = vmatprep.subr.bf16.mxu0 0
    %13517 = vmatpush2.bf16.msra.mxu0 %v13321
    %13518 = vmatprep.subr.bf16.mxu0 0
    %13519 = vmatpush2.bf16.msra.mxu0 %v13320
    %13520 = vmatprep.mubr.bf16.mxu0 %v12886
    %13521 = vmatmul.mubr.bf16.gmra.mxu0 %v12885
    %v13522 = vpop.f32.mrf.mxu0
    %v13523 = vadd.f32 %v13483, %v13522
    %v13524 = vpop.f32.mrf.mxu0
    %v13525 = vpop.f32.mrf.mxu0
    %v13526 = vpop.f32.mrf.mxu0
    %13527 = vdwg.mxu0
    %13528 = vmatprep.subr.bf16.mxu0 0
    %13529 = vmatpush1.bf16.msra.mxu0 %v13335
    %13530 = vmatprep.subr.bf16.mxu0 0
    %13531 = vmatpush1.bf16.msra.mxu0 %v13334
    %13532 = vmatprep.subr.bf16.mxu0 0
    %13533 = vmatpush1.bf16.msra.mxu0 %v13333
    %13534 = vmatprep.subr.bf16.mxu0 0
    %13535 = vmatpush1.bf16.msra.mxu0 %v13332
    %13536 = vmatprep.subr.bf16.mxu0 0
    %13537 = vmatpush1.bf16.msra.mxu0 %v13331
    %13538 = vmatprep.subr.bf16.mxu0 0
    %13539 = vmatpush1.bf16.msra.mxu0 %v13330
    %13540 = vmatprep.subr.bf16.mxu0 0
    %13541 = vmatpush1.bf16.msra.mxu0 %v13329
    %13542 = vmatprep.subr.bf16.mxu0 0
    %13543 = vmatpush1.bf16.msra.mxu0 %v13328
    %13544 = vmatprep.subr.bf16.mxu0 0
    %13545 = vmatpush2.bf16.msra.mxu0 %v13343
    %13546 = vmatprep.subr.bf16.mxu0 0
    %13547 = vmatpush2.bf16.msra.mxu0 %v13342
    %13548 = vmatprep.subr.bf16.mxu0 0
    %13549 = vmatpush2.bf16.msra.mxu0 %v13341
    %13550 = vmatprep.subr.bf16.mxu0 0
    %13551 = vmatpush2.bf16.msra.mxu0 %v13340
    %13552 = vmatprep.subr.bf16.mxu0 0
    %13553 = vmatpush2.bf16.msra.mxu0 %v13339
    %13554 = vmatprep.subr.bf16.mxu0 0
    %13555 = vmatpush2.bf16.msra.mxu0 %v13338
    %13556 = vmatprep.subr.bf16.mxu0 0
    %13557 = vmatpush2.bf16.msra.mxu0 %v13337
    %13558 = vmatprep.subr.bf16.mxu0 0
    %13559 = vmatpush2.bf16.msra.mxu0 %v13336
    %13560 = vmatprep.mubr.bf16.mxu0 %v12888
    %13561 = vmatmul.mubr.bf16.gmra.mxu0 %v12887
    %v13562 = vpop.f32.mrf.mxu0
    %v13563 = vadd.f32 %v13523, %v13562
    %v13564 = vpop.f32.mrf.mxu0
    %v13565 = vpop.f32.mrf.mxu0
    %v13566 = vpop.f32.mrf.mxu0
    %13567 = vdwg.mxu0
    %13568 = vst [vmem:[#allocation14] sm:$0x3] %v13563
    // Predicated region
    $region58: #{tpu_custom_call.1} parent=1 // pred_check
      _
    $region59: #{tpu_custom_call.1} parent=1 // pred_check_branch
      %13570 = sbr.rel (0) target = $region61
    $region60: #{tpu_custom_call.1} parent=1 // pred_region
      %s13572 = ssub.s32 32, 32
      %13573 = vsyncadd [#allocation4], %s13572
      %s13575 = sshll.u32 [#allocation14], 4
      %s13576 = int_to_ptr.vmem [resolvable:$true] %s13575
      %13578 = dma.vmem_to_hbm [thread:$0]  %s13576, 32, %s7, [#allocation4]
    $region61: #{tpu_custom_call.1} parent=1 // pred_fallthru
      _
    // Predicated region
    $region62: #{tpu_custom_call.1} parent=1 // pred_check
      _
    $region63: #{tpu_custom_call.1} parent=1 // pred_check_branch
      %13580 = sbr.rel (0) target = $region65
    $region64: #{tpu_custom_call.1} parent=1 // pred_region
      %13581 = dma.done [#allocation4], 32
    $region65: #{tpu_custom_call.1} parent=1 // pred_fallthru
      _
    %13582 = vsyncpa [#allocation3], 1
    %13583 = vsyncpa [#allocation6], 1
    %13584 = vsyncpa [#allocation9], 1
    %13585 = vsyncpa [#allocation12], 1
    %13586 = vsyncpa [#allocation4], 1

</llo_original>
